<compile_context>
chip_gen: v6e
topology: v6e:2x2x1
jax: 0.10.0
libtpu: 0.0.40
codegen_flags: <defaults>
</compile_context>

<pallas_src>
import functools

import jax
import jax.numpy as jnp
from jax.experimental import pallas as pl
from jax.experimental.pallas import tpu as pltpu

LANE = 128


def _round_up(x, m):
    return ((x + m - 1) // m) * m


def _pick_strip(h, target):
    """Largest divisor of h that is <= target (>=1)."""
    s = max(1, min(h, target))
    while h % s != 0:
        s -= 1
    return s


# ----------------------------------------------------------------------------
# Fused kernel: [3x3 conv (pad=1) + folded-BN bias + ReLU] x 2 on one row strip.
#   xs_ref : (S+4, W+2, Cin_p)   input band incl. 2-row / 1-col zero halo (pre-padded)
#   w1_ref : (9*Cin_p, Cmid_p)   tap-major weights, BN1 scale folded in
#   b1_ref : (1, Cmid_p)         BN1 bias (beta - mean*scale), f32
#   w2_ref : (9*Cmid_p, Cout_p)
#   b2_ref : (1, Cout_p)
#   o_ref  : (S*W, Cout_p)       lane-dense output slab for this strip
#   mid_ref: (S+2, W+2, Cmid_p)  VMEM-resident conv1 output (+1-row/1-col halo)
# ----------------------------------------------------------------------------
def _fused_double_conv_kernel(xs_ref, w1_ref, b1_ref, w2_ref, b2_ref, o_ref,
                              mid_ref):
    sp4, wp2, cin = xs_ref.shape
    S, W = sp4 - 4, wp2 - 2
    cmid = mid_ref.shape[2]

    s_idx = pl.program_id(1)
    s_last = pl.num_programs(1) - 1

    def conv3x3(src, rows, w_ref, c):
        # 9 accumulated matmuls instead of a materialized (rows*W, 9*c) im2col.
        acc = None
        for dy in range(3):
            for dx in range(3):
                tap = dy * 3 + dx
                p = src[dy:dy + rows, dx:dx + W, :].reshape(rows * W, c)
                r = jnp.dot(p, w_ref[tap * c:(tap + 1) * c, :],
                            preferred_element_type=jnp.float32)
                acc = r if acc is None else acc + r
        return acc

    # conv1 -> bias -> ReLU over S+2 rows (strip rows + 1-row halo each side),
    # so conv2's row halo is available without re-reading neighbouring strips.
    xs = xs_ref[...]
    y1 = conv3x3(xs, S + 2, w1_ref, cin)
    y1 = jnp.maximum(y1 + b1_ref[...], 0.0)                 # f32 epilogue
    mid_ref[:, 1:W + 1, :] = y1.reshape(S + 2, W, cmid).astype(mid_ref.dtype)

    # Zero only the 1-pixel border of the intermediate (not the whole tile):
    # left/right halo columns every step (cheap, megacore-safe) ...
    zcol = jnp.zeros((S + 2, 1, cmid), mid_ref.dtype)
    mid_ref[:, 0:1, :] = zcol
    mid_ref[:, W + 1:W + 2, :] = zcol

    # ... and the top/bottom halo rows only at the image boundary strips.
    @pl.when(s_idx == 0)
    def _():
        mid_ref[0:1, :, :] = jnp.zeros((1, W + 2, cmid), mid_ref.dtype)

    @pl.when(s_idx == s_last)
    def _():
        mid_ref[S + 1:S + 2, :, :] = jnp.zeros((1, W + 2, cmid), mid_ref.dtype)

    # conv2 -> bias -> ReLU; intermediate never leaves VMEM.
    mid = mid_ref[...]
    y2 = conv3x3(mid, S, w2_ref, cmid)
    y2 = jnp.maximum(y2 + b2_ref[...], 0.0)
    o_ref[...] = y2.astype(o_ref.dtype)                     # unmasked lane-dense store


def fused_double_conv_strips(strips, w1, b1, w2, b2, cout_pad):
    """strips: (N, n_strips, S+4, W+2, Cin_p) -> (N, n_strips, S*W, Cout_p)."""
    N, ns, sp4, wp2, cin_pad = strips.shape
    S, W = sp4 - 4, wp2 - 2
    cmid_pad = w1.shape[1]
    itm = strips.dtype.itemsize

    # Re-derived VMEM budget (review): per-step need, with headroom, clamped so
    # v5e/v6e can use their 128 MiB while staying sane on v7x's 64 MiB.
    in_b = (S + 4) * (W + 2) * cin_pad * itm
    out_b = S * W * cout_pad * itm
    w_b = (9 * cin_pad * cmid_pad + 9 * cmid_pad * cout_pad) * itm
    mid_b = (S + 2) * (W + 2) * cmid_pad * itm
    acc_b = ((S + 2) * W * cmid_pad + S * W * cout_pad) * 4
    est = 3 * in_b + 2 * out_b + w_b + mid_b + 3 * acc_b
    vmem_limit = int(min(max(32 * 1024 * 1024, 2 * est), 100 * 1024 * 1024))

    return pl.pallas_call(
        _fused_double_conv_kernel,
        out_shape=jax.ShapeDtypeStruct((N, ns, S * W, cout_pad), strips.dtype),
        grid=(N, ns),
        in_specs=[
            pl.BlockSpec((None, None, S + 4, W + 2, cin_pad),
                         lambda n, s: (n, s, 0, 0, 0)),
            pl.BlockSpec((9 * cin_pad, cmid_pad), lambda n, s: (0, 0)),
            pl.BlockSpec((1, cmid_pad), lambda n, s: (0, 0)),
            pl.BlockSpec((9 * cmid_pad, cout_pad), lambda n, s: (0, 0)),
            pl.BlockSpec((1, cout_pad), lambda n, s: (0, 0)),
        ],
        out_specs=pl.BlockSpec((None, None, S * W, cout_pad),
                               lambda n, s: (n, s, 0, 0)),
        scratch_shapes=[
            pltpu.VMEM((S + 2, W + 2, cmid_pad), strips.dtype),
        ],
        compiler_params=pltpu.CompilerParams(
            dimension_semantics=("parallel", "parallel"),
            vmem_limit_bytes=vmem_limit,
        ),
    )(strips, w1, b1, w2, b2)


# ----------------------------------------------------------------------------
# Parameter prep: fold BN scale into weights, pad channels, tap-major reshape
# ----------------------------------------------------------------------------
def fold_bn(gamma, beta, mean, var, eps=1e-5):
    scale = gamma / jnp.sqrt(var + eps)
    return scale, beta - mean * scale


def _prep_conv_bn(w_hwio, gamma, beta, mean, var, cin_pad, cout_pad, w_dtype):
    scale, bias = fold_bn(gamma, beta, mean, var)
    w = w_hwio * scale[None, None, None, :]          # fold BN scale into weights
    kh, kw, cin, cout = w.shape
    w = jnp.pad(w, ((0, 0), (0, 0), (0, cin_pad - cin), (0, cout_pad - cout)))
    w = w.reshape(kh * kw * cin_pad, cout_pad).astype(w_dtype)
    b = jnp.pad(bias, (0, cout_pad - cout)).reshape(1, cout_pad)
    return w, b.astype(jnp.float32)


# ----------------------------------------------------------------------------
# Glue: bilinear x2 upsample (align_corners=True) in NHWC (plain JAX)
# ----------------------------------------------------------------------------
def upsample_bilinear_x2_align_corners_nhwc(x):  # x: (N, H, W, C)
    N, H, W, C = x.shape
    Ho, Wo = 2 * H, 2 * W
    ys = jnp.arange(Ho, dtype=jnp.float32) * ((H - 1) / (Ho - 1))
    xs = jnp.arange(Wo, dtype=jnp.float32) * ((W - 1) / (Wo - 1))
    y0 = jnp.floor(ys).astype(jnp.int32)
    x0 = jnp.floor(xs).astype(jnp.int32)
    y1 = jnp.minimum(y0 + 1, H - 1)
    x1 = jnp.minimum(x0 + 1, W - 1)
    wy = (ys - y0.astype(jnp.float32))[None, :, None, None]
    wx = (xs - x0.astype(jnp.float32))[None, None, :, None]

    v00 = x[:, y0[:, None], x0[None, :], :]
    v01 = x[:, y0[:, None], x1[None, :], :]
    v10 = x[:, y1[:, None], x0[None, :], :]
    v11 = x[:, y1[:, None], x1[None, :], :]
    top = v00 * (1.0 - wx) + v01 * wx
    bot = v10 * (1.0 - wx) + v11 * wx
    return top * (1.0 - wy) + bot * wy


def _pad_or_crop_nhwc(x, dY, dX):
    """PyTorch F.pad semantics (negative pad = crop) on NHWC spatial dims."""
    top, bot = dY // 2, dY - dY // 2
    left, right = dX // 2, dX - dX // 2
    if top < 0:
        x = x[:, -top:, :, :]; top = 0
    if bot < 0:
        x = x[:, :bot, :, :]; bot = 0
    if left < 0:
        x = x[:, :, -left:, :]; left = 0
    if right < 0:
        x = x[:, :, :right, :]; right = 0
    return jnp.pad(x, ((0, 0), (top, bot), (left, right), (0, 0)))


# ----------------------------------------------------------------------------
# Up module forward (bilinear=True path).  NCHW in / NCHW out.
# ----------------------------------------------------------------------------
@functools.partial(jax.jit, static_argnames=("use_bf16", "strip_rows"))
def up_forward(x1, x2, params, use_bf16=False, strip_rows=None):
    dtype = jnp.bfloat16 if use_bf16 else jnp.float32

    # NCHW -> NHWC once at the boundary; everything after is channels-last.
    x1 = jnp.transpose(x1, (0, 2, 3, 1))
    x2 = jnp.transpose(x2, (0, 2, 3, 1))

    x1 = upsample_bilinear_x2_align_corners_nhwc(x1)
    x1 = _pad_or_crop_nhwc(x1, x2.shape[1] - x1.shape[1], x2.shape[2] - x1.shape[2])

    N, H, W, c2 = x2.shape
    c1 = x1.shape[3]
    c_total = c1 + c2

    w1_hwio, w2_hwio = params["w1_hwio"], params["w2_hwio"]
    cmid, cout = w1_hwio.shape[3], w2_hwio.shape[3]

    cin_pad = _round_up(c_total, LANE)
    cmid_pad = _round_up(cmid, LANE)
    cout_pad = _round_up(cout, LANE)

    # Channel concat ([x2, x1] like torch.cat) + lane pad in the compute dtype
    # (bf16 halves this HBM materialization and the kernel input DMA).
    x = jnp.concatenate(
        [x2.astype(dtype), x1.astype(dtype),
         jnp.zeros((N, H, W, cin_pad - c_total), dtype)], axis=-1)
    # Spatial halo (2 rows / 1 col of zeros) so strips arrive pre-padded.
    xp = jnp.pad(x, ((0, 0), (2, 2), (1, 1), (0, 0)))

    # Row-strip tiling (strip must divide H); target ~64 rows per strip.
    S = _pick_strip(H, strip_rows if strip_rows is not None else 64)
    ns = H // S
    strips = jnp.stack([xp[:, s * S:s * S + S + 4] for s in range(ns)], axis=1)

    w1, b1 = _prep_conv_bn(w1_hwio, params["bn1_gamma"], params["bn1_beta"],
                           params["bn1_mean"], params["bn1_var"],
                           cin_pad, cmid_pad, dtype)
    w2, b2 = _prep_conv_bn(w2_hwio, params["bn2_gamma"], params["bn2_beta"],
                           params["bn2_mean"], params["bn2_var"],
                           cmid_pad, cout_pad, dtype)

    y = fused_double_conv_strips(strips, w1, b1, w2, b2, cout_pad)
    y = y.reshape(N, ns, S, W, cout_pad).reshape(N, H, W, cout_pad)
    y = y[:, :, :, :cout]                    # drop padded output channels
    return jnp.transpose(y, (0, 3, 1, 2))    # back to NCHW


# ----------------------------------------------------------------------------
# Pure-JAX reference for verification
# ----------------------------------------------------------------------------
def _ref_conv_bn_relu_nchw(x, w_oihw, gamma, beta, mean, var, eps=1e-5):
    y = jax.lax.conv_general_dilated(
        x, w_oihw, window_strides=(1, 1), padding="SAME",
        dimension_numbers=("NCHW", "OIHW", "NCHW"))
    scale = gamma / jnp.sqrt(var + eps)
    bias = beta - mean * scale
    y = y * scale[None, :, None, None] + bias[None, :, None, None]
    return jnp.maximum(y, 0.0)


def ref_up_forward(x1, x2, params):
    x1n = jnp.transpose(x1, (0, 2, 3, 1))
    x1n = upsample_bilinear_x2_align_corners_nhwc(x1n)
    x1 = jnp.transpose(x1n, (0, 3, 1, 2))
    dY = x2.shape[2] - x1.shape[2]
    dX = x2.shape[3] - x1.shape[3]
    x1 = jnp.pad(x1, ((0, 0), (0, 0),
                      (dY // 2, dY - dY // 2),
                      (dX // 2, dX - dX // 2)))
    x = jnp.concatenate([x2, x1], axis=1)
    y = _ref_conv_bn_relu_nchw(x, params["w1_oihw"], params["bn1_gamma"],
                               params["bn1_beta"], params["bn1_mean"],
                               params["bn1_var"])
    y = _ref_conv_bn_relu_nchw(y, params["w2_oihw"], params["bn2_gamma"],
                               params["bn2_beta"], params["bn2_mean"],
                               params["bn2_var"])
    return y


# ----------------------------------------------------------------------------
if __name__ == "__main__":
    # Up(in_channels=8, out_channels=4, bilinear=True):
    #   mid_channels = in_channels // 2 = 4; conv1: 8 -> 4, conv2: 4 -> 4
    in_channels, out_channels = 8, 4
    mid_channels = in_channels // 2
    N, H2, W2 = 2, 16, 16               # x2 spatial; x1 is half-resolution

    key = jax.random.PRNGKey(0)
    k = jax.random.split(key, 10)

    x1 = jax.random.normal(k[0], (N, in_channels // 2, H2 // 2, W2 // 2),
                           dtype=jnp.float32)
    x2 = jax.random.normal(k[1], (N, in_channels // 2, H2, W2),
                           dtype=jnp.float32)

    w1_oihw = 0.1 * jax.random.normal(
        k[2], (mid_channels, in_channels, 3, 3), dtype=jnp.float32)
    w2_oihw = 0.1 * jax.random.normal(
        k[3], (out_channels, mid_channels, 3, 3), dtype=jnp.float32)

    params = {
        "w1_oihw": w1_oihw,
        "w2_oihw": w2_oihw,
        "w1_hwio": jnp.transpose(w1_oihw, (2, 3, 1, 0)),
        "w2_hwio": jnp.transpose(w2_oihw, (2, 3, 1, 0)),
        "bn1_gamma": 1.0 + 0.1 * jax.random.normal(k[4], (mid_channels,)),
        "bn1_beta": 0.1 * jax.random.normal(k[5], (mid_channels,)),
        "bn1_mean": 0.05 * jax.random.normal(k[6], (mid_channels,)),
        "bn1_var": jnp.abs(1.0 + 0.1 * jax.random.normal(k[7], (mid_channels,))),
        "bn2_gamma": 1.0 + 0.1 * jax.random.normal(k[8], (out_channels,)),
        "bn2_beta": 0.1 * jax.random.normal(k[9], (out_channels,)),
        "bn2_mean": jnp.zeros((out_channels,), jnp.float32),
        "bn2_var": jnp.ones((out_channels,), jnp.float32),
    }

    ref = jax.block_until_ready(ref_up_forward(x1, x2, params))

    # f32 path, single strip (whole image fits): exact vs. reference.
    out = jax.block_until_ready(up_forward(x1, x2, params, use_bf16=False))
    assert out.shape == (N, out_channels, H2, W2), out.shape
    err = float(jnp.max(jnp.abs(out - ref)))
    assert err < 2e-4, err

    # f32 path with forced 4-row strips: exercises first / interior / last strip
    # boundary handling of the row-strip tiling.
    out_s = jax.block_until_ready(
        up_forward(x1, x2, params, use_bf16=False, strip_rows=4))
    err_s = float(jnp.max(jnp.abs(out_s - ref)))
    assert err_s < 2e-4, err_s

    # bf16 operand/scratch/output path (valid on v5e/v6e/v7x); f32 accumulation.
    out_bf16 = jax.block_until_ready(
        up_forward(x1, x2, params, use_bf16=True, strip_rows=8))
    err_bf16 = float(jnp.max(jnp.abs(out_bf16.astype(jnp.float32) - ref)))
    assert err_bf16 < 2e-1, err_bf16

    print("KERNEL_OK")
</pallas_src>

<mosaic_0001>
module attributes {stable_mosaic.version = 11 : i64} {
  func.func @_fused_double_conv_kernel(%arg0: i32, %arg1: i32, %arg2: memref<1x1x20x18x128xf32, #tpu.memory_space<vmem>>, %arg3: memref<1152x128xf32, #tpu.memory_space<vmem>>, %arg4: memref<1x128xf32, #tpu.memory_space<vmem>>, %arg5: memref<1152x128xf32, #tpu.memory_space<vmem>>, %arg6: memref<1x128xf32, #tpu.memory_space<vmem>>, %arg7: memref<1x1x256x128xf32, #tpu.memory_space<vmem>>, %arg8: memref<18x18x128xf32, #tpu.memory_space<vmem>>) attributes {dimension_semantics = [#tpu.dimension_semantics<parallel>, #tpu.dimension_semantics<parallel>], iteration_bounds = array<i64: 2, 1>, scalar_prefetch = 0 : i64, scratch_operands = 1 : i64, tpu.core_type = #tpu.core_type<tc>, window_params = [{transform_indices = @transform_0, window_bounds = array<i64: 1, 1, 20, 18, 128>}, {pipeline_mode = #tpu.pipeline_mode<synchronous>, transform_indices = @transform_1, window_bounds = array<i64: 1152, 128>}, {pipeline_mode = #tpu.pipeline_mode<synchronous>, transform_indices = @transform_2, window_bounds = array<i64: 1, 128>}, {pipeline_mode = #tpu.pipeline_mode<synchronous>, transform_indices = @transform_3, window_bounds = array<i64: 1152, 128>}, {pipeline_mode = #tpu.pipeline_mode<synchronous>, transform_indices = @transform_4, window_bounds = array<i64: 1, 128>}, {transform_indices = @transform_5, window_bounds = array<i64: 1, 1, 256, 128>}]} {
    %c0 = arith.constant 0 : index
    %c0_0 = arith.constant 0 : index
    %c0_1 = arith.constant 0 : index
    %c0_2 = arith.constant 0 : index
    %c0_3 = arith.constant 0 : index
    %0 = vector.load %arg2[%c0, %c0_0, %c0_1, %c0_2, %c0_3] : memref<1x1x20x18x128xf32, #tpu.memory_space<vmem>>, vector<1x1x20x18x128xf32>
    %1 = vector.shape_cast %0 : vector<1x1x20x18x128xf32> to vector<20x18x128xf32>
    %2 = vector.extract_strided_slice %1 {offsets = [0, 0, 0], sizes = [18, 16, 128], strides = [1, 1, 1]} : vector<20x18x128xf32> to vector<18x16x128xf32>
    %3 = vector.shape_cast %2 : vector<18x16x128xf32> to vector<288x128xf32>
    %c0_4 = arith.constant 0 : index
    %c0_5 = arith.constant 0 : index
    %4 = vector.load %arg3[%c0_4, %c0_5] : memref<1152x128xf32, #tpu.memory_space<vmem>>, vector<128x128xf32>
    %cst = arith.constant dense<0.000000e+00> : vector<288x128xf32>
    %5 = tpu.matmul %3, %4, %cst {dimension_numbers = #tpu.dot_dimension_numbers<[1], [0], [0], [1], [0, 0, 1, 1], [], []>} : vector<288x128xf32>, vector<128x128xf32>, vector<288x128xf32> -> vector<288x128xf32>
    %6 = vector.extract_strided_slice %1 {offsets = [0, 1, 0], sizes = [18, 16, 128], strides = [1, 1, 1]} : vector<20x18x128xf32> to vector<18x16x128xf32>
    %7 = vector.shape_cast %6 : vector<18x16x128xf32> to vector<288x128xf32>
    %c128 = arith.constant 128 : index
    %c0_6 = arith.constant 0 : index
    %8 = vector.load %arg3[%c128, %c0_6] : memref<1152x128xf32, #tpu.memory_space<vmem>>, vector<128x128xf32>
    %cst_7 = arith.constant dense<0.000000e+00> : vector<288x128xf32>
    %9 = tpu.matmul %7, %8, %cst_7 {dimension_numbers = #tpu.dot_dimension_numbers<[1], [0], [0], [1], [0, 0, 1, 1], [], []>} : vector<288x128xf32>, vector<128x128xf32>, vector<288x128xf32> -> vector<288x128xf32>
    %10 = arith.addf %5, %9 : vector<288x128xf32>
    %11 = vector.extract_strided_slice %1 {offsets = [0, 2, 0], sizes = [18, 16, 128], strides = [1, 1, 1]} : vector<20x18x128xf32> to vector<18x16x128xf32>
    %12 = vector.shape_cast %11 : vector<18x16x128xf32> to vector<288x128xf32>
    %c256 = arith.constant 256 : index
    %c0_8 = arith.constant 0 : index
    %13 = vector.load %arg3[%c256, %c0_8] : memref<1152x128xf32, #tpu.memory_space<vmem>>, vector<128x128xf32>
    %cst_9 = arith.constant dense<0.000000e+00> : vector<288x128xf32>
    %14 = tpu.matmul %12, %13, %cst_9 {dimension_numbers = #tpu.dot_dimension_numbers<[1], [0], [0], [1], [0, 0, 1, 1], [], []>} : vector<288x128xf32>, vector<128x128xf32>, vector<288x128xf32> -> vector<288x128xf32>
    %15 = arith.addf %10, %14 : vector<288x128xf32>
    %16 = vector.extract_strided_slice %1 {offsets = [1, 0, 0], sizes = [18, 16, 128], strides = [1, 1, 1]} : vector<20x18x128xf32> to vector<18x16x128xf32>
    %17 = vector.shape_cast %16 : vector<18x16x128xf32> to vector<288x128xf32>
    %c384 = arith.constant 384 : index
    %c0_10 = arith.constant 0 : index
    %18 = vector.load %arg3[%c384, %c0_10] : memref<1152x128xf32, #tpu.memory_space<vmem>>, vector<128x128xf32>
    %cst_11 = arith.constant dense<0.000000e+00> : vector<288x128xf32>
    %19 = tpu.matmul %17, %18, %cst_11 {dimension_numbers = #tpu.dot_dimension_numbers<[1], [0], [0], [1], [0, 0, 1, 1], [], []>} : vector<288x128xf32>, vector<128x128xf32>, vector<288x128xf32> -> vector<288x128xf32>
    %20 = arith.addf %15, %19 : vector<288x128xf32>
    %21 = vector.extract_strided_slice %1 {offsets = [1, 1, 0], sizes = [18, 16, 128], strides = [1, 1, 1]} : vector<20x18x128xf32> to vector<18x16x128xf32>
    %22 = vector.shape_cast %21 : vector<18x16x128xf32> to vector<288x128xf32>
    %c512 = arith.constant 512 : index
    %c0_12 = arith.constant 0 : index
    %23 = vector.load %arg3[%c512, %c0_12] : memref<1152x128xf32, #tpu.memory_space<vmem>>, vector<128x128xf32>
    %cst_13 = arith.constant dense<0.000000e+00> : vector<288x128xf32>
    %24 = tpu.matmul %22, %23, %cst_13 {dimension_numbers = #tpu.dot_dimension_numbers<[1], [0], [0], [1], [0, 0, 1, 1], [], []>} : vector<288x128xf32>, vector<128x128xf32>, vector<288x128xf32> -> vector<288x128xf32>
    %25 = arith.addf %20, %24 : vector<288x128xf32>
    %26 = vector.extract_strided_slice %1 {offsets = [1, 2, 0], sizes = [18, 16, 128], strides = [1, 1, 1]} : vector<20x18x128xf32> to vector<18x16x128xf32>
    %27 = vector.shape_cast %26 : vector<18x16x128xf32> to vector<288x128xf32>
    %c640 = arith.constant 640 : index
    %c0_14 = arith.constant 0 : index
    %28 = vector.load %arg3[%c640, %c0_14] : memref<1152x128xf32, #tpu.memory_space<vmem>>, vector<128x128xf32>
    %cst_15 = arith.constant dense<0.000000e+00> : vector<288x128xf32>
    %29 = tpu.matmul %27, %28, %cst_15 {dimension_numbers = #tpu.dot_dimension_numbers<[1], [0], [0], [1], [0, 0, 1, 1], [], []>} : vector<288x128xf32>, vector<128x128xf32>, vector<288x128xf32> -> vector<288x128xf32>
    %30 = arith.addf %25, %29 : vector<288x128xf32>
    %31 = vector.extract_strided_slice %1 {offsets = [2, 0, 0], sizes = [18, 16, 128], strides = [1, 1, 1]} : vector<20x18x128xf32> to vector<18x16x128xf32>
    %32 = vector.shape_cast %31 : vector<18x16x128xf32> to vector<288x128xf32>
    %c768 = arith.constant 768 : index
    %c0_16 = arith.constant 0 : index
    %33 = vector.load %arg3[%c768, %c0_16] : memref<1152x128xf32, #tpu.memory_space<vmem>>, vector<128x128xf32>
    %cst_17 = arith.constant dense<0.000000e+00> : vector<288x128xf32>
    %34 = tpu.matmul %32, %33, %cst_17 {dimension_numbers = #tpu.dot_dimension_numbers<[1], [0], [0], [1], [0, 0, 1, 1], [], []>} : vector<288x128xf32>, vector<128x128xf32>, vector<288x128xf32> -> vector<288x128xf32>
    %35 = arith.addf %30, %34 : vector<288x128xf32>
    %36 = vector.extract_strided_slice %1 {offsets = [2, 1, 0], sizes = [18, 16, 128], strides = [1, 1, 1]} : vector<20x18x128xf32> to vector<18x16x128xf32>
    %37 = vector.shape_cast %36 : vector<18x16x128xf32> to vector<288x128xf32>
    %c896 = arith.constant 896 : index
    %c0_18 = arith.constant 0 : index
    %38 = vector.load %arg3[%c896, %c0_18] : memref<1152x128xf32, #tpu.memory_space<vmem>>, vector<128x128xf32>
    %cst_19 = arith.constant dense<0.000000e+00> : vector<288x128xf32>
    %39 = tpu.matmul %37, %38, %cst_19 {dimension_numbers = #tpu.dot_dimension_numbers<[1], [0], [0], [1], [0, 0, 1, 1], [], []>} : vector<288x128xf32>, vector<128x128xf32>, vector<288x128xf32> -> vector<288x128xf32>
    %40 = arith.addf %35, %39 : vector<288x128xf32>
    %41 = vector.extract_strided_slice %1 {offsets = [2, 2, 0], sizes = [18, 16, 128], strides = [1, 1, 1]} : vector<20x18x128xf32> to vector<18x16x128xf32>
    %42 = vector.shape_cast %41 : vector<18x16x128xf32> to vector<288x128xf32>
    %c1024 = arith.constant 1024 : index
    %c0_20 = arith.constant 0 : index
    %43 = vector.load %arg3[%c1024, %c0_20] : memref<1152x128xf32, #tpu.memory_space<vmem>>, vector<128x128xf32>
    %cst_21 = arith.constant dense<0.000000e+00> : vector<288x128xf32>
    %44 = tpu.matmul %42, %43, %cst_21 {dimension_numbers = #tpu.dot_dimension_numbers<[1], [0], [0], [1], [0, 0, 1, 1], [], []>} : vector<288x128xf32>, vector<128x128xf32>, vector<288x128xf32> -> vector<288x128xf32>
    %45 = arith.addf %40, %44 : vector<288x128xf32>
    %c0_22 = arith.constant 0 : index
    %c0_23 = arith.constant 0 : index
    %46 = vector.load %arg4[%c0_22, %c0_23] : memref<1x128xf32, #tpu.memory_space<vmem>>, vector<1x128xf32>
    %47 = vector.broadcast %46 : vector<1x128xf32> to vector<288x128xf32>
    %48 = arith.addf %45, %47 : vector<288x128xf32>
    %cst_24 = arith.constant 0.000000e+00 : f32
    %49 = vector.broadcast %cst_24 : f32 to vector<288x128xf32>
    %50 = arith.maximumf %48, %49 : vector<288x128xf32>
    %51 = vector.shape_cast %50 : vector<288x128xf32> to vector<18x16x128xf32>
    %c0_25 = arith.constant 0 : index
    %c1 = arith.constant 1 : index
    %c0_26 = arith.constant 0 : index
    %52 = vector.load %arg8[%c0_25, %c1, %c0_26] : memref<18x18x128xf32, #tpu.memory_space<vmem>>, vector<18x16x128xf32>
    tpu.vector_store %arg8[%c0_25, %c1, %c0_26], %51 {strides = array<i32>} : memref<18x18x128xf32, #tpu.memory_space<vmem>>, vector<18x16x128xf32>,
    %cst_27 = arith.constant 0.000000e+00 : f32
    %53 = vector.broadcast %cst_27 : f32 to vector<18x1x128xf32>
    %c0_28 = arith.constant 0 : index
    %c0_29 = arith.constant 0 : index
    %c0_30 = arith.constant 0 : index
    %54 = vector.load %arg8[%c0_28, %c0_29, %c0_30] : memref<18x18x128xf32, #tpu.memory_space<vmem>>, vector<18x1x128xf32>
    tpu.vector_store %arg8[%c0_28, %c0_29, %c0_30], %53 {strides = array<i32>} : memref<18x18x128xf32, #tpu.memory_space<vmem>>, vector<18x1x128xf32>,
    %c0_31 = arith.constant 0 : index
    %c17 = arith.constant 17 : index
    %c0_32 = arith.constant 0 : index
    %55 = vector.load %arg8[%c0_31, %c17, %c0_32] : memref<18x18x128xf32, #tpu.memory_space<vmem>>, vector<18x1x128xf32>
    tpu.vector_store %arg8[%c0_31, %c17, %c0_32], %53 {strides = array<i32>} : memref<18x18x128xf32, #tpu.memory_space<vmem>>, vector<18x1x128xf32>,
    %c0_i32 = arith.constant 0 : i32
    %56 = arith.cmpi eq, %arg1, %c0_i32 : i32
    %57 = arith.extui %56 : i1 to i32
    %c0_i32_33 = arith.constant 0 : i32
    %58 = arith.cmpi ne, %57, %c0_i32_33 : i32
    scf.if %58 {
      %cst_73 = arith.constant 0.000000e+00 : f32
      %115 = vector.broadcast %cst_73 : f32 to vector<1x18x128xf32>
      %c0_74 = arith.constant 0 : index
      %c0_75 = arith.constant 0 : index
      %c0_76 = arith.constant 0 : index
      %116 = vector.load %arg8[%c0_74, %c0_75, %c0_76] : memref<18x18x128xf32, #tpu.memory_space<vmem>>, vector<1x18x128xf32>
      tpu.vector_store %arg8[%c0_74, %c0_75, %c0_76], %115 {strides = array<i32>} : memref<18x18x128xf32, #tpu.memory_space<vmem>>, vector<1x18x128xf32>,
    } else {
    }
    %c0_i32_34 = arith.constant 0 : i32
    %59 = arith.cmpi eq, %arg1, %c0_i32_34 : i32
    %60 = arith.extui %59 : i1 to i32
    %c0_i32_35 = arith.constant 0 : i32
    %61 = arith.cmpi ne, %60, %c0_i32_35 : i32
    scf.if %61 {
      %cst_73 = arith.constant 0.000000e+00 : f32
      %115 = vector.broadcast %cst_73 : f32 to vector<1x18x128xf32>
      %c17_74 = arith.constant 17 : index
      %c0_75 = arith.constant 0 : index
      %c0_76 = arith.constant 0 : index
      %116 = vector.load %arg8[%c17_74, %c0_75, %c0_76] : memref<18x18x128xf32, #tpu.memory_space<vmem>>, vector<1x18x128xf32>
      tpu.vector_store %arg8[%c17_74, %c0_75, %c0_76], %115 {strides = array<i32>} : memref<18x18x128xf32, #tpu.memory_space<vmem>>, vector<1x18x128xf32>,
    } else {
    }
    %c0_36 = arith.constant 0 : index
    %c0_37 = arith.constant 0 : index
    %c0_38 = arith.constant 0 : index
    %62 = vector.load %arg8[%c0_36, %c0_37, %c0_38] : memref<18x18x128xf32, #tpu.memory_space<vmem>>, vector<18x18x128xf32>
    %63 = vector.extract_strided_slice %62 {offsets = [0, 0, 0], sizes = [16, 16, 128], strides = [1, 1, 1]} : vector<18x18x128xf32> to vector<16x16x128xf32>
    %64 = vector.shape_cast %63 : vector<16x16x128xf32> to vector<256x128xf32>
    %c0_39 = arith.constant 0 : index
    %c0_40 = arith.constant 0 : index
    %65 = vector.load %arg5[%c0_39, %c0_40] : memref<1152x128xf32, #tpu.memory_space<vmem>>, vector<128x128xf32>
    %cst_41 = arith.constant dense<0.000000e+00> : vector<256x128xf32>
    %66 = tpu.matmul %64, %65, %cst_41 {dimension_numbers = #tpu.dot_dimension_numbers<[1], [0], [0], [1], [0, 0, 1, 1], [], []>} : vector<256x128xf32>, vector<128x128xf32>, vector<256x128xf32> -> vector<256x128xf32>
    %67 = vector.extract_strided_slice %62 {offsets = [0, 1, 0], sizes = [16, 16, 128], strides = [1, 1, 1]} : vector<18x18x128xf32> to vector<16x16x128xf32>
    %68 = vector.shape_cast %67 : vector<16x16x128xf32> to vector<256x128xf32>
    %c128_42 = arith.constant 128 : index
    %c0_43 = arith.constant 0 : index
    %69 = vector.load %arg5[%c128_42, %c0_43] : memref<1152x128xf32, #tpu.memory_space<vmem>>, vector<128x128xf32>
    %cst_44 = arith.constant dense<0.000000e+00> : vector<256x128xf32>
    %70 = tpu.matmul %68, %69, %cst_44 {dimension_numbers = #tpu.dot_dimension_numbers<[1], [0], [0], [1], [0, 0, 1, 1], [], []>} : vector<256x128xf32>, vector<128x128xf32>, vector<256x128xf32> -> vector<256x128xf32>
    %71 = arith.addf %66, %70 : vector<256x128xf32>
    %72 = vector.extract_strided_slice %62 {offsets = [0, 2, 0], sizes = [16, 16, 128], strides = [1, 1, 1]} : vector<18x18x128xf32> to vector<16x16x128xf32>
    %73 = vector.shape_cast %72 : vector<16x16x128xf32> to vector<256x128xf32>
    %c256_45 = arith.constant 256 : index
    %c0_46 = arith.constant 0 : index
    %74 = vector.load %arg5[%c256_45, %c0_46] : memref<1152x128xf32, #tpu.memory_space<vmem>>, vector<128x128xf32>
    %cst_47 = arith.constant dense<0.000000e+00> : vector<256x128xf32>
    %75 = tpu.matmul %73, %74, %cst_47 {dimension_numbers = #tpu.dot_dimension_numbers<[1], [0], [0], [1], [0, 0, 1, 1], [], []>} : vector<256x128xf32>, vector<128x128xf32>, vector<256x128xf32> -> vector<256x128xf32>
    %76 = arith.addf %71, %75 : vector<256x128xf32>
    %77 = vector.extract_strided_slice %62 {offsets = [1, 0, 0], sizes = [16, 16, 128], strides = [1, 1, 1]} : vector<18x18x128xf32> to vector<16x16x128xf32>
    %78 = vector.shape_cast %77 : vector<16x16x128xf32> to vector<256x128xf32>
    %c384_48 = arith.constant 384 : index
    %c0_49 = arith.constant 0 : index
    %79 = vector.load %arg5[%c384_48, %c0_49] : memref<1152x128xf32, #tpu.memory_space<vmem>>, vector<128x128xf32>
    %cst_50 = arith.constant dense<0.000000e+00> : vector<256x128xf32>
    %80 = tpu.matmul %78, %79, %cst_50 {dimension_numbers = #tpu.dot_dimension_numbers<[1], [0], [0], [1], [0, 0, 1, 1], [], []>} : vector<256x128xf32>, vector<128x128xf32>, vector<256x128xf32> -> vector<256x128xf32>
    %81 = arith.addf %76, %80 : vector<256x128xf32>
    %82 = vector.extract_strided_slice %62 {offsets = [1, 1, 0], sizes = [16, 16, 128], strides = [1, 1, 1]} : vector<18x18x128xf32> to vector<16x16x128xf32>
    %83 = vector.shape_cast %82 : vector<16x16x128xf32> to vector<256x128xf32>
    %c512_51 = arith.constant 512 : index
    %c0_52 = arith.constant 0 : index
    %84 = vector.load %arg5[%c512_51, %c0_52] : memref<1152x128xf32, #tpu.memory_space<vmem>>, vector<128x128xf32>
    %cst_53 = arith.constant dense<0.000000e+00> : vector<256x128xf32>
    %85 = tpu.matmul %83, %84, %cst_53 {dimension_numbers = #tpu.dot_dimension_numbers<[1], [0], [0], [1], [0, 0, 1, 1], [], []>} : vector<256x128xf32>, vector<128x128xf32>, vector<256x128xf32> -> vector<256x128xf32>
    %86 = arith.addf %81, %85 : vector<256x128xf32>
    %87 = vector.extract_strided_slice %62 {offsets = [1, 2, 0], sizes = [16, 16, 128], strides = [1, 1, 1]} : vector<18x18x128xf32> to vector<16x16x128xf32>
    %88 = vector.shape_cast %87 : vector<16x16x128xf32> to vector<256x128xf32>
    %c640_54 = arith.constant 640 : index
    %c0_55 = arith.constant 0 : index
    %89 = vector.load %arg5[%c640_54, %c0_55] : memref<1152x128xf32, #tpu.memory_space<vmem>>, vector<128x128xf32>
    %cst_56 = arith.constant dense<0.000000e+00> : vector<256x128xf32>
    %90 = tpu.matmul %88, %89, %cst_56 {dimension_numbers = #tpu.dot_dimension_numbers<[1], [0], [0], [1], [0, 0, 1, 1], [], []>} : vector<256x128xf32>, vector<128x128xf32>, vector<256x128xf32> -> vector<256x128xf32>
    %91 = arith.addf %86, %90 : vector<256x128xf32>
    %92 = vector.extract_strided_slice %62 {offsets = [2, 0, 0], sizes = [16, 16, 128], strides = [1, 1, 1]} : vector<18x18x128xf32> to vector<16x16x128xf32>
    %93 = vector.shape_cast %92 : vector<16x16x128xf32> to vector<256x128xf32>
    %c768_57 = arith.constant 768 : index
    %c0_58 = arith.constant 0 : index
    %94 = vector.load %arg5[%c768_57, %c0_58] : memref<1152x128xf32, #tpu.memory_space<vmem>>, vector<128x128xf32>
    %cst_59 = arith.constant dense<0.000000e+00> : vector<256x128xf32>
    %95 = tpu.matmul %93, %94, %cst_59 {dimension_numbers = #tpu.dot_dimension_numbers<[1], [0], [0], [1], [0, 0, 1, 1], [], []>} : vector<256x128xf32>, vector<128x128xf32>, vector<256x128xf32> -> vector<256x128xf32>
    %96 = arith.addf %91, %95 : vector<256x128xf32>
    %97 = vector.extract_strided_slice %62 {offsets = [2, 1, 0], sizes = [16, 16, 128], strides = [1, 1, 1]} : vector<18x18x128xf32> to vector<16x16x128xf32>
    %98 = vector.shape_cast %97 : vector<16x16x128xf32> to vector<256x128xf32>
    %c896_60 = arith.constant 896 : index
    %c0_61 = arith.constant 0 : index
    %99 = vector.load %arg5[%c896_60, %c0_61] : memref<1152x128xf32, #tpu.memory_space<vmem>>, vector<128x128xf32>
    %cst_62 = arith.constant dense<0.000000e+00> : vector<256x128xf32>
    %100 = tpu.matmul %98, %99, %cst_62 {dimension_numbers = #tpu.dot_dimension_numbers<[1], [0], [0], [1], [0, 0, 1, 1], [], []>} : vector<256x128xf32>, vector<128x128xf32>, vector<256x128xf32> -> vector<256x128xf32>
    %101 = arith.addf %96, %100 : vector<256x128xf32>
    %102 = vector.extract_strided_slice %62 {offsets = [2, 2, 0], sizes = [16, 16, 128], strides = [1, 1, 1]} : vector<18x18x128xf32> to vector<16x16x128xf32>
    %103 = vector.shape_cast %102 : vector<16x16x128xf32> to vector<256x128xf32>
    %c1024_63 = arith.constant 1024 : index
    %c0_64 = arith.constant 0 : index
    %104 = vector.load %arg5[%c1024_63, %c0_64] : memref<1152x128xf32, #tpu.memory_space<vmem>>, vector<128x128xf32>
    %cst_65 = arith.constant dense<0.000000e+00> : vector<256x128xf32>
    %105 = tpu.matmul %103, %104, %cst_65 {dimension_numbers = #tpu.dot_dimension_numbers<[1], [0], [0], [1], [0, 0, 1, 1], [], []>} : vector<256x128xf32>, vector<128x128xf32>, vector<256x128xf32> -> vector<256x128xf32>
    %106 = arith.addf %101, %105 : vector<256x128xf32>
    %c0_66 = arith.constant 0 : index
    %c0_67 = arith.constant 0 : index
    %107 = vector.load %arg6[%c0_66, %c0_67] : memref<1x128xf32, #tpu.memory_space<vmem>>, vector<1x128xf32>
    %108 = vector.broadcast %107 : vector<1x128xf32> to vector<256x128xf32>
    %109 = arith.addf %106, %108 : vector<256x128xf32>
    %cst_68 = arith.constant 0.000000e+00 : f32
    %110 = vector.broadcast %cst_68 : f32 to vector<256x128xf32>
    %111 = arith.maximumf %109, %110 : vector<256x128xf32>
    %c0_69 = arith.constant 0 : index
    %c0_70 = arith.constant 0 : index
    %c0_71 = arith.constant 0 : index
    %c0_72 = arith.constant 0 : index
    %112 = vector.load %arg7[%c0_69, %c0_70, %c0_71, %c0_72] : memref<1x1x256x128xf32, #tpu.memory_space<vmem>>, vector<1x1x256x128xf32>
    %113 = vector.shape_cast %112 : vector<1x1x256x128xf32> to vector<256x128xf32>
    %114 = vector.shape_cast %111 : vector<256x128xf32> to vector<1x1x256x128xf32>
    tpu.vector_store %arg7[%c0_69, %c0_70, %c0_71, %c0_72], %114 {strides = array<i32>} : memref<1x1x256x128xf32, #tpu.memory_space<vmem>>, vector<1x1x256x128xf32>,
    return
  }
  func.func @transform_0(%arg0: i32, %arg1: i32) -> (i32, i32, i32, i32, i32) {
    %c0_i32 = arith.constant 0 : i32
    %c0_i32_0 = arith.constant 0 : i32
    %c0_i32_1 = arith.constant 0 : i32
    %c0_i32_2 = arith.constant 0 : i32
    return %arg0, %arg1, %c0_i32, %c0_i32_0, %c0_i32_1 : i32, i32, i32, i32, i32
  }
  func.func @transform_1(%arg0: i32, %arg1: i32) -> (i32, i32) {
    %c0_i32 = arith.constant 0 : i32
    %c0_i32_0 = arith.constant 0 : i32
    %c0_i32_1 = arith.constant 0 : i32
    return %c0_i32, %c0_i32_0 : i32, i32
  }
  func.func @transform_2(%arg0: i32, %arg1: i32) -> (i32, i32) {
    %c0_i32 = arith.constant 0 : i32
    %c0_i32_0 = arith.constant 0 : i32
    %c0_i32_1 = arith.constant 0 : i32
    return %c0_i32, %c0_i32_0 : i32, i32
  }
  func.func @transform_3(%arg0: i32, %arg1: i32) -> (i32, i32) {
    %c0_i32 = arith.constant 0 : i32
    %c0_i32_0 = arith.constant 0 : i32
    %c0_i32_1 = arith.constant 0 : i32
    return %c0_i32, %c0_i32_0 : i32, i32
  }
  func.func @transform_4(%arg0: i32, %arg1: i32) -> (i32, i32) {
    %c0_i32 = arith.constant 0 : i32
    %c0_i32_0 = arith.constant 0 : i32
    %c0_i32_1 = arith.constant 0 : i32
    return %c0_i32, %c0_i32_0 : i32, i32
  }
  func.func @transform_5(%arg0: i32, %arg1: i32) -> (i32, i32, i32, i32) {
    %c0_i32 = arith.constant 0 : i32
    %c0_i32_0 = arith.constant 0 : i32
    %c0_i32_1 = arith.constant 0 : i32
    return %arg0, %arg1, %c0_i32, %c0_i32_0 : i32, i32, i32, i32
  }
}

</mosaic_0001>

<llo_original>
// kernel: up_forward.1
$region0: #{up_forward.1}
  #allocation0 [shape = 'u32[]', space=smem, size = 0x4, offset = 0x4, fixed_abs, tag = 'smem constant byte address 0x4 - core index']
  #allocation1 [shape = 'u32[144,128]{1,0:T(1,128)}', space=vmem, size = 0x12000, scoped, tag = 'internal scratch']
  #allocation2 [shape = 'f32[18,18,128]{2,1,0:T(8,128)}', space=vmem, size = 0x36000, scoped, tag = 'scratch operand']
  %s0 = inlined_call_operand.vmem [shape: f32[2,1,20,18,128], index: 0, kind: input, shape index: {}]
  %s1 = inlined_call_operand.vmem [shape: f32[1152,128], index: 1, kind: input, shape index: {}]
  %s2 = inlined_call_operand.vmem [shape: f32[1,128], index: 2, kind: input, shape index: {}]
  %s3 = inlined_call_operand.vmem [shape: f32[1152,128], index: 3, kind: input, shape index: {}]
  %s4 = inlined_call_operand.vmem [shape: f32[1,128], index: 4, kind: input, shape index: {}]
  %s5 = inlined_call_operand.vmem [shape: f32[2,1,256,128], index: 5, kind: output, shape index: {}]
  %s6 = sld [smem:[#allocation0]]
  $region57: #{up_forward.1} parent=0
    _
  %s8 = ssub.s32 1, %s6
  %s9 = scalar_select 0, %s8, %s6
  loop: start=0, step=1, limit=4
  $region2: #{up_forward.1} parent=0 // loop_pre_header
    _
  $region3: #{up_forward.1} parent=0 // loop_header
    %s11 = sphi 0, %s15
    %p12 = scmp.ge.s32.totalorder %s11, 4
    %s18 = sphi 0, %s30
    %s19 = sphi 0, %s26
    %s20 = sphi 0, %s18
    %s21 = sphi 0, %s19
    %s22 = sphi 0, %s20
    %s23 = sphi 0, %s21
    %s35 = sphi 0, %s37
    %s38 = sphi 0, %s35
    %s39 = sphi 0, %s38
    %s55 = sphi 0, %s39
    %s59 = sphi 0, %s59
    %s61 = sphi 0, %s59
    %s62 = sphi 0, %s61
    %s76 = sphi 0, %s62
    %s80 = sphi 0, %s80
    %s82 = sphi 0, %s80
    %s83 = sphi 0, %s82
    %s97 = sphi 0, %s83
    %s101 = sphi 0, %s101
    %s103 = sphi 0, %s101
    %s104 = sphi 0, %s103
    %s118 = sphi 0, %s104
    %s122 = sphi 0, %s122
    %s124 = sphi 0, %s122
    %s125 = sphi 0, %s124
    %s139 = sphi 0, %s125
    %s147 = sphi 0, %s149
    %s150 = sphi 0, %s147
    %s151 = sphi 0, %s150
    %s167 = sphi 0, %s151
  $region4: #{up_forward.1} parent=0 // loop_header_branch
    %14 = sbr.rel (%p12) target = $region8
  $region5: #{up_forward.1} parent=0 // loop_body
    %s16 = ssub.s32 %s11, 1
    %s17 = ssub.s32 %s11, 2
    %s24 = sadd.s32 1, %s19
    %p25 = scmp.ge.s32.totalorder %s24, 1
    %s26 = scalar_select %p25, 0, %s24
    %s27 = sadd.s32 1, %s18
    %s28 = scalar_select %p25, %s27, %s18
    %p29 = scmp.ge.s32.totalorder %s28, 2
    %s30 = scalar_select %p29, 0, %s28
    %s31 = ssub.s32 %s18, %s30
    %s32 = ssub.s32 %s19, %s26
    %s33 = sor.u32 %s31, %s32
    %p34 = scmp.eq.s32.totalorder %s33, 0
    %s36 = sadd.s32 %s35, 1
    %s37 = scalar_select %p34, %s35, %s36
    %p40 = pneg %p34
    %p41 = scmp.eq.s32.totalorder %s11, 1
    %p42 = por %p40, %p41
    %p43 = scmp.ne.s32.totalorder %s35, %s38
    %p44 = scmp.eq.s32.totalorder %s11, 0
    %p45 = por %p43, %p44
    %p46 = scmp.ne.s32.totalorder %s35, %s38
    %p47 = scmp.eq.s32.totalorder %s16, 1
    %p48 = por %p46, %p47
    %p49 = scmp.ne.s32.totalorder %s38, %s39
    %p50 = scmp.eq.s32.totalorder %s16, 0
    %p51 = por %p49, %p50
    %p52 = scmp.ne.s32.totalorder %s38, %s39
    %p53 = scmp.eq.s32.totalorder %s17, 1
    %p54 = por %p52, %p53
    %p56 = scmp.ne.s32.totalorder %s39, %s55
    %p57 = scmp.eq.s32.totalorder %s17, 0
    %p58 = por %p56, %p57
    %s60 = sadd.s32 %s59, 1
    %p63 = scmp.eq.s32.totalorder %s11, 1
    %p64 = scmp.ne.s32.totalorder %s59, %s61
    %p65 = scmp.eq.s32.totalorder %s11, 0
    %p66 = por %p64, %p65
    %p67 = scmp.ne.s32.totalorder %s59, %s61
    %p68 = scmp.eq.s32.totalorder %s16, 1
    %p69 = por %p67, %p68
    %p70 = scmp.ne.s32.totalorder %s61, %s62
    %p71 = scmp.eq.s32.totalorder %s16, 0
    %p72 = por %p70, %p71
    %p73 = scmp.ne.s32.totalorder %s61, %s62
    %p74 = scmp.eq.s32.totalorder %s17, 1
    %p75 = por %p73, %p74
    %p77 = scmp.ne.s32.totalorder %s62, %s76
    %p78 = scmp.eq.s32.totalorder %s17, 0
    %p79 = por %p77, %p78
    %s81 = sadd.s32 %s80, 1
    %p84 = scmp.eq.s32.totalorder %s11, 1
    %p85 = scmp.ne.s32.totalorder %s80, %s82
    %p86 = scmp.eq.s32.totalorder %s11, 0
    %p87 = por %p85, %p86
    %p88 = scmp.ne.s32.totalorder %s80, %s82
    %p89 = scmp.eq.s32.totalorder %s16, 1
    %p90 = por %p88, %p89
    %p91 = scmp.ne.s32.totalorder %s82, %s83
    %p92 = scmp.eq.s32.totalorder %s16, 0
    %p93 = por %p91, %p92
    %p94 = scmp.ne.s32.totalorder %s82, %s83
    %p95 = scmp.eq.s32.totalorder %s17, 1
    %p96 = por %p94, %p95
    %p98 = scmp.ne.s32.totalorder %s83, %s97
    %p99 = scmp.eq.s32.totalorder %s17, 0
    %p100 = por %p98, %p99
    %s102 = sadd.s32 %s101, 1
    %p105 = scmp.eq.s32.totalorder %s11, 1
    %p106 = scmp.ne.s32.totalorder %s101, %s103
    %p107 = scmp.eq.s32.totalorder %s11, 0
    %p108 = por %p106, %p107
    %p109 = scmp.ne.s32.totalorder %s101, %s103
    %p110 = scmp.eq.s32.totalorder %s16, 1
    %p111 = por %p109, %p110
    %p112 = scmp.ne.s32.totalorder %s103, %s104
    %p113 = scmp.eq.s32.totalorder %s16, 0
    %p114 = por %p112, %p113
    %p115 = scmp.ne.s32.totalorder %s103, %s104
    %p116 = scmp.eq.s32.totalorder %s17, 1
    %p117 = por %p115, %p116
    %p119 = scmp.ne.s32.totalorder %s104, %s118
    %p120 = scmp.eq.s32.totalorder %s17, 0
    %p121 = por %p119, %p120
    %s123 = sadd.s32 %s122, 1
    %p126 = scmp.eq.s32.totalorder %s11, 1
    %p127 = scmp.ne.s32.totalorder %s122, %s124
    %p128 = scmp.eq.s32.totalorder %s11, 0
    %p129 = por %p127, %p128
    %p130 = scmp.ne.s32.totalorder %s122, %s124
    %p131 = scmp.eq.s32.totalorder %s16, 1
    %p132 = por %p130, %p131
    %p133 = scmp.ne.s32.totalorder %s124, %s125
    %p134 = scmp.eq.s32.totalorder %s16, 0
    %p135 = por %p133, %p134
    %p136 = scmp.ne.s32.totalorder %s124, %s125
    %p137 = scmp.eq.s32.totalorder %s17, 1
    %p138 = por %p136, %p137
    %p140 = scmp.ne.s32.totalorder %s125, %s139
    %p141 = scmp.eq.s32.totalorder %s17, 0
    %p142 = por %p140, %p141
    %s143 = ssub.s32 %s18, %s30
    %s144 = ssub.s32 %s19, %s26
    %s145 = sor.u32 %s143, %s144
    %p146 = scmp.eq.s32.totalorder %s145, 0
    %s148 = sadd.s32 %s147, 1
    %s149 = scalar_select %p146, %s147, %s148
    %p152 = pneg %p146
    %p153 = scmp.eq.s32.totalorder %s11, 1
    %p154 = por %p152, %p153
    %p155 = scmp.ne.s32.totalorder %s147, %s150
    %p156 = scmp.eq.s32.totalorder %s11, 0
    %p157 = por %p155, %p156
    %p158 = scmp.ne.s32.totalorder %s147, %s150
    %p159 = scmp.eq.s32.totalorder %s16, 1
    %p160 = por %p158, %p159
    %p161 = scmp.ne.s32.totalorder %s150, %s151
    %p162 = scmp.eq.s32.totalorder %s16, 0
    %p163 = por %p161, %p162
    %p164 = scmp.ne.s32.totalorder %s150, %s151
    %p165 = scmp.eq.s32.totalorder %s17, 1
    %p166 = por %p164, %p165
    %p168 = scmp.ne.s32.totalorder %s151, %s167
    %p169 = scmp.eq.s32.totalorder %s17, 0
    %p170 = por %p168, %p169
    %p171 = scmp.le.s32.totalorder 1, %s11
    %p172 = scmp.lt.s32.totalorder %s11, 3
    %p173 = pnand %p171, %p172
    %p174 = pneg %p173
    // Predicated region
    $region9: #{up_forward.1} parent=5 // pred_check
      _
    $region10: #{up_forward.1} parent=5 // pred_check_branch
      %176 = sbr.rel (%p173) target = $region12
    $region11: #{up_forward.1} parent=5 // pred_region
      %s177 = ssub.s32 %s11, 1
      // Predicated region
      $region13: #{up_forward.1} parent=11 // pred_check
        %p178 = pneg %p72
      $region14: #{up_forward.1} parent=11 // pred_check_branch
        %180 = sbr.rel (%p178) target = $region16
      $region15: #{up_forward.1} parent=11 // pred_region
        _
      $region16: #{up_forward.1} parent=11 // pred_fallthru
        _
      // Predicated region
      $region17: #{up_forward.1} parent=11 // pred_check
        %p181 = pneg %p93
      $region18: #{up_forward.1} parent=11 // pred_check_branch
        %183 = sbr.rel (%p181) target = $region20
      $region19: #{up_forward.1} parent=11 // pred_region
        _
      $region20: #{up_forward.1} parent=11 // pred_fallthru
        _
      // Predicated region
      $region21: #{up_forward.1} parent=11 // pred_check
        %p184 = pneg %p114
      $region22: #{up_forward.1} parent=11 // pred_check_branch
        %186 = sbr.rel (%p184) target = $region24
      $region23: #{up_forward.1} parent=11 // pred_region
        _
      $region24: #{up_forward.1} parent=11 // pred_fallthru
        _
      // Predicated region
      $region25: #{up_forward.1} parent=11 // pred_check
        %p187 = pneg %p135
      $region26: #{up_forward.1} parent=11 // pred_check_branch
        %189 = sbr.rel (%p187) target = $region28
      $region27: #{up_forward.1} parent=11 // pred_region
        _
      $region28: #{up_forward.1} parent=11 // pred_fallthru
        _
    $region12: #{up_forward.1} parent=5 // pred_fallthru
      _
    %p190 = scmp.lt.s32.totalorder %s11, 2
    // Predicated region
    $region29: #{up_forward.1} parent=5 // pred_check
      %p191 = pneg %p190
    $region30: #{up_forward.1} parent=5 // pred_check_branch
      %193 = sbr.rel (%p191) target = $region32
    $region31: #{up_forward.1} parent=5 // pred_region
      // Predicated region
      $region33: #{up_forward.1} parent=31 // pred_check
        %p194 = pneg %p45
      $region34: #{up_forward.1} parent=31 // pred_check_branch
        %196 = sbr.rel (%p194) target = $region36
      $region35: #{up_forward.1} parent=31 // pred_region
        %p197 = scmp.lt.s32.totalorder %s18, 1
        %s198 = scalar_select %p197, %s18, 1
        %p199 = scmp.lt.s32.totalorder %s19, 0
        %s200 = scalar_select %p199, %s19, 0
        %s201 = smul.addr %s200, 60
        %s202 = smul.addr %s198, 60
        %s203 = sadd.s32 %s201, %s202
        %s204 = smul.addr %s203, 8
        %s205 = scalar_lea.vmem %s0, %s204
      $region36: #{up_forward.1} parent=31 // pred_fallthru
        _
    $region32: #{up_forward.1} parent=5 // pred_fallthru
      _
    %p206 = scmp.le.s32.totalorder 1, %s11
    %p207 = scmp.lt.s32.totalorder %s11, 3
    %p208 = pnand %p206, %p207
    %p209 = pneg %p208
    // Predicated region
    $region37: #{up_forward.1} parent=5 // pred_check
      _
    $region38: #{up_forward.1} parent=5 // pred_check_branch
      %211 = sbr.rel (%p208) target = $region40
    $region39: #{up_forward.1} parent=5 // pred_region
      %s212 = ssub.s32 %s11, 1
      %p213 = scmp.lt.s32.totalorder %s20, 1
      %s214 = scalar_select %p213, %s20, 1
      %p215 = scmp.lt.s32.totalorder %s21, 0
      %s216 = scalar_select %p215, %s21, 0
      %s217 = smul.addr %s216, 60
      %s218 = smul.addr %s214, 60
      %s219 = sadd.s32 %s217, %s218
      %s220 = smul.addr %s219, 8
      %s221 = scalar_lea.vmem %s0, %s220
      %p222 = pneg %p51
      %p223 = pneg %p48
      %p224 = pneg %p72
      %p225 = pneg %p69
      %p226 = pneg %p93
      %p227 = pneg %p90
      %p228 = pneg %p114
      %p229 = pneg %p111
      %p230 = pneg %p135
      %p231 = pneg %p132
      %p232 = pneg %p163
      %p233 = pneg %p160
      %p234 = scmp.lt.s32.totalorder %s20, 1
      %s235 = scalar_select %p234, %s20, 1
      %p236 = scmp.lt.s32.totalorder %s21, 0
      %s237 = scalar_select %p236, %s21, 0
      %s238 = smul.addr %s237, 32
      %s239 = smul.addr %s235, 32
      %s240 = sadd.s32 %s238, %s239
      %s241 = smul.addr %s240, 8
      %s242 = scalar_lea.vmem %s5, %s241
      %p243 = scmp.lt.s32.totalorder %s20, 1
      %s244 = scalar_select %p243, %s20, 1
      %p245 = scmp.lt.s32.totalorder %s21, 0
      %s246 = scalar_select %p245, %s21, 0
      %s247 = smul.addr %s246, 60
      %s248 = smul.addr %s244, 60
      %s249 = sadd.s32 %s247, %s248
      %s250 = smul.addr %s249, 8
      %s251 = scalar_lea.vmem %s0, %s250
      %p252 = scmp.lt.s32.totalorder %s20, 1
      %s253 = scalar_select %p252, %s20, 1
      %p254 = scmp.lt.s32.totalorder %s21, 0
      %s255 = scalar_select %p254, %s21, 0
      %s256 = smul.addr %s255, 32
      %s257 = smul.addr %s253, 32
      %s258 = sadd.s32 %s256, %s257
      %s259 = smul.addr %s258, 8
      %s260 = scalar_lea.vmem %s5, %s259
      %v261 = vld [vmem:[%s251] sm:$0xff]
      %v262 = vld [vmem:[%s251 + $0x8] sm:$0xff]
      %v263 = vld [vmem:[%s251 + $0x10] sm:$0x3]
      %v264 = vld [vmem:[%s251 + $0x18] sm:$0xff]
      %v265 = vld [vmem:[%s251 + $0x20] sm:$0xff]
      %v266 = vld [vmem:[%s251 + $0x28] sm:$0x3]
      %v267 = vld [vmem:[%s251 + $0x30] sm:$0xff]
      %v268 = vld [vmem:[%s251 + $0x38] sm:$0xff]
      %v269 = vld [vmem:[%s251 + $0x40] sm:$0x3]
      %v270 = vld [vmem:[%s251 + $0x48] sm:$0xff]
      %v271 = vld [vmem:[%s251 + $0x50] sm:$0xff]
      %v272 = vld [vmem:[%s251 + $0x58] sm:$0x3]
      %v273 = vld [vmem:[%s251 + $0x60] sm:$0xff]
      %v274 = vld [vmem:[%s251 + $0x68] sm:$0xff]
      %v275 = vld [vmem:[%s251 + $0x70] sm:$0x3]
      %v276 = vld [vmem:[%s251 + $0x78] sm:$0xff]
      %v277 = vld [vmem:[%s251 + $0x80] sm:$0xff]
      %v278 = vld [vmem:[%s251 + $0x88] sm:$0x3]
      %v279 = vld [vmem:[%s251 + $0x90] sm:$0xff]
      %v280 = vld [vmem:[%s251 + $0x98] sm:$0xff]
      %v281 = vld [vmem:[%s251 + $0xa0] sm:$0x3]
      %v282 = vld [vmem:[%s251 + $0xa8] sm:$0xff]
      %v283 = vld [vmem:[%s251 + $0xb0] sm:$0xff]
      %v284 = vld [vmem:[%s251 + $0xb8] sm:$0x3]
      %v285 = vld [vmem:[%s251 + $0xc0] sm:$0xff]
      %v286 = vld [vmem:[%s251 + $0xc8] sm:$0xff]
      %v287 = vld [vmem:[%s251 + $0xd0] sm:$0x3]
      %v288 = vld [vmem:[%s251 + $0xd8] sm:$0xff]
      %v289 = vld [vmem:[%s251 + $0xe0] sm:$0xff]
      %v290 = vld [vmem:[%s251 + $0xe8] sm:$0x3]
      %v291 = vld [vmem:[%s251 + $0xf0] sm:$0xff]
      %v292 = vld [vmem:[%s251 + $0xf8] sm:$0xff]
      %v293 = vld [vmem:[%s251 + $0x100] sm:$0x3]
      %v294 = vld [vmem:[%s251 + $0x108] sm:$0xff]
      %v295 = vld [vmem:[%s251 + $0x110] sm:$0xff]
      %v296 = vld [vmem:[%s251 + $0x118] sm:$0x3]
      %v297 = vld [vmem:[%s251 + $0x120] sm:$0xff]
      %v298 = vld [vmem:[%s251 + $0x128] sm:$0xff]
      %v299 = vld [vmem:[%s251 + $0x130] sm:$0x3]
      %v300 = vld [vmem:[%s251 + $0x138] sm:$0xff]
      %v301 = vld [vmem:[%s251 + $0x140] sm:$0xff]
      %v302 = vld [vmem:[%s251 + $0x148] sm:$0x3]
      %v303 = vld [vmem:[%s251 + $0x150] sm:$0xff]
      %v304 = vld [vmem:[%s251 + $0x158] sm:$0xff]
      %v305 = vld [vmem:[%s251 + $0x160] sm:$0x3]
      %v306 = vld [vmem:[%s251 + $0x168] sm:$0xff]
      %v307 = vld [vmem:[%s251 + $0x170] sm:$0xff]
      %v308 = vld [vmem:[%s251 + $0x178] sm:$0x3]
      %v309 = vld [vmem:[%s251 + $0x180] sm:$0xff]
      %v310 = vld [vmem:[%s251 + $0x188] sm:$0xff]
      %v311 = vld [vmem:[%s251 + $0x190] sm:$0x3]
      %v312 = vld [vmem:[%s251 + $0x198] sm:$0xff]
      %v313 = vld [vmem:[%s251 + $0x1a0] sm:$0xff]
      %v314 = vld [vmem:[%s251 + $0x1a8] sm:$0x3]
      %v315 = vld [vmem:[%s251 + $0x1b0] sm:$0xff]
      %v316 = vld [vmem:[%s251 + $0x1b8] sm:$0xff]
      %v317 = vld [vmem:[%s251 + $0x1c0] sm:$0x3]
      %v318 = vld [vmem:[%s251 + $0x1c8] sm:$0xff]
      %v319 = vld [vmem:[%s251 + $0x1d0] sm:$0xff]
      %v320 = vld [vmem:[%s251 + $0x1d8] sm:$0x3]
      %v321 = vld [vmem:[%s1] sm:$0xff]
      %v322 = vld [vmem:[%s1 + $0x8] sm:$0xff]
      %v323 = vld [vmem:[%s1 + $0x10] sm:$0xff]
      %v324 = vld [vmem:[%s1 + $0x18] sm:$0xff]
      %v325 = vld [vmem:[%s1 + $0x20] sm:$0xff]
      %v326 = vld [vmem:[%s1 + $0x28] sm:$0xff]
      %v327 = vld [vmem:[%s1 + $0x30] sm:$0xff]
      %v328 = vld [vmem:[%s1 + $0x38] sm:$0xff]
      %v329 = vld [vmem:[%s1 + $0x40] sm:$0xff]
      %v330 = vld [vmem:[%s1 + $0x48] sm:$0xff]
      %v331 = vld [vmem:[%s1 + $0x50] sm:$0xff]
      %v332 = vld [vmem:[%s1 + $0x58] sm:$0xff]
      %v333 = vld [vmem:[%s1 + $0x60] sm:$0xff]
      %v334 = vld [vmem:[%s1 + $0x68] sm:$0xff]
      %v335 = vld [vmem:[%s1 + $0x70] sm:$0xff]
      %v336 = vld [vmem:[%s1 + $0x78] sm:$0xff]
      %vm391 = vcmask 1046528
      %v392 = vrot.slane %v261, 1
      %v393 = vrot.slane %v262, 1
      %v394 = vsel %vm391, %v392, %v393
      %v395 = vrot.slane %v263, 1
      %v396 = vsel %vm391, %v393, %v395
      %v397 = vrot.slane %v264, 1
      %v398 = vrot.slane %v265, 1
      %v399 = vsel %vm391, %v397, %v398
      %v400 = vrot.slane %v266, 1
      %v401 = vsel %vm391, %v398, %v400
      %v402 = vrot.slane %v267, 1
      %v403 = vrot.slane %v268, 1
      %v404 = vsel %vm391, %v402, %v403
      %v405 = vrot.slane %v269, 1
      %v406 = vsel %vm391, %v403, %v405
      %v407 = vrot.slane %v270, 1
      %v408 = vrot.slane %v271, 1
      %v409 = vsel %vm391, %v407, %v408
      %v410 = vrot.slane %v272, 1
      %v411 = vsel %vm391, %v408, %v410
      %v412 = vrot.slane %v273, 1
      %v413 = vrot.slane %v274, 1
      %v414 = vsel %vm391, %v412, %v413
      %v415 = vrot.slane %v275, 1
      %v416 = vsel %vm391, %v413, %v415
      %v417 = vrot.slane %v276, 1
      %v418 = vrot.slane %v277, 1
      %v419 = vsel %vm391, %v417, %v418
      %v420 = vrot.slane %v278, 1
      %v421 = vsel %vm391, %v418, %v420
      %v422 = vrot.slane %v279, 1
      %v423 = vrot.slane %v280, 1
      %v424 = vsel %vm391, %v422, %v423
      %v425 = vrot.slane %v281, 1
      %v426 = vsel %vm391, %v423, %v425
      %v427 = vrot.slane %v282, 1
      %v428 = vrot.slane %v283, 1
      %v429 = vsel %vm391, %v427, %v428
      %v430 = vrot.slane %v284, 1
      %v431 = vsel %vm391, %v428, %v430
      %v432 = vrot.slane %v285, 1
      %v433 = vrot.slane %v286, 1
      %v434 = vsel %vm391, %v432, %v433
      %v435 = vrot.slane %v287, 1
      %v436 = vsel %vm391, %v433, %v435
      %v437 = vrot.slane %v288, 1
      %v438 = vrot.slane %v289, 1
      %v439 = vsel %vm391, %v437, %v438
      %v440 = vrot.slane %v290, 1
      %v441 = vsel %vm391, %v438, %v440
      %v442 = vrot.slane %v291, 1
      %v443 = vrot.slane %v292, 1
      %v444 = vsel %vm391, %v442, %v443
      %v445 = vrot.slane %v293, 1
      %v446 = vsel %vm391, %v443, %v445
      %v447 = vrot.slane %v294, 1
      %v448 = vrot.slane %v295, 1
      %v449 = vsel %vm391, %v447, %v448
      %v450 = vrot.slane %v296, 1
      %v451 = vsel %vm391, %v448, %v450
      %v452 = vrot.slane %v297, 1
      %v453 = vrot.slane %v298, 1
      %v454 = vsel %vm391, %v452, %v453
      %v455 = vrot.slane %v299, 1
      %v456 = vsel %vm391, %v453, %v455
      %v457 = vrot.slane %v300, 1
      %v458 = vrot.slane %v301, 1
      %v459 = vsel %vm391, %v457, %v458
      %v460 = vrot.slane %v302, 1
      %v461 = vsel %vm391, %v458, %v460
      %v462 = vrot.slane %v303, 1
      %v463 = vrot.slane %v304, 1
      %v464 = vsel %vm391, %v462, %v463
      %v465 = vrot.slane %v305, 1
      %v466 = vsel %vm391, %v463, %v465
      %v467 = vrot.slane %v306, 1
      %v468 = vrot.slane %v307, 1
      %v469 = vsel %vm391, %v467, %v468
      %v470 = vrot.slane %v308, 1
      %v471 = vsel %vm391, %v468, %v470
      %v472 = vrot.slane %v309, 1
      %v473 = vrot.slane %v310, 1
      %v474 = vsel %vm391, %v472, %v473
      %v475 = vrot.slane %v311, 1
      %v476 = vsel %vm391, %v473, %v475
      %v477 = vrot.slane %v312, 1
      %v478 = vrot.slane %v313, 1
      %v479 = vsel %vm391, %v477, %v478
      %v480 = vrot.slane %v314, 1
      %v481 = vsel %vm391, %v478, %v480
      %v518 = vld [vmem:[%s1 + $0x80] sm:$0xff]
      %v519 = vld [vmem:[%s1 + $0x88] sm:$0xff]
      %v520 = vld [vmem:[%s1 + $0x90] sm:$0xff]
      %v521 = vld [vmem:[%s1 + $0x98] sm:$0xff]
      %v522 = vld [vmem:[%s1 + $0xa0] sm:$0xff]
      %v523 = vld [vmem:[%s1 + $0xa8] sm:$0xff]
      %v524 = vld [vmem:[%s1 + $0xb0] sm:$0xff]
      %v525 = vld [vmem:[%s1 + $0xb8] sm:$0xff]
      %v526 = vld [vmem:[%s1 + $0xc0] sm:$0xff]
      %v527 = vld [vmem:[%s1 + $0xc8] sm:$0xff]
      %v528 = vld [vmem:[%s1 + $0xd0] sm:$0xff]
      %v529 = vld [vmem:[%s1 + $0xd8] sm:$0xff]
      %v530 = vld [vmem:[%s1 + $0xe0] sm:$0xff]
      %v531 = vld [vmem:[%s1 + $0xe8] sm:$0xff]
      %v532 = vld [vmem:[%s1 + $0xf0] sm:$0xff]
      %v533 = vld [vmem:[%s1 + $0xf8] sm:$0xff]
      %534 = vmatprep.subr.mxu0 0.0
      %535 = vmatpush1.msra.mxu0 %v533
      %536 = vmatprep.subr.mxu0 0.0
      %537 = vmatpush1.msra.mxu0 %v532
      %538 = vmatprep.subr.mxu0 0.0
      %539 = vmatpush1.msra.mxu0 %v531
      %540 = vmatprep.subr.mxu0 0.0
      %541 = vmatpush1.msra.mxu0 %v530
      %542 = vmatprep.subr.mxu0 0.0
      %543 = vmatpush1.msra.mxu0 %v529
      %544 = vmatprep.subr.mxu0 0.0
      %545 = vmatpush1.msra.mxu0 %v528
      %546 = vmatprep.subr.mxu0 0.0
      %547 = vmatpush1.msra.mxu0 %v527
      %548 = vmatprep.subr.mxu0 0.0
      %549 = vmatpush1.msra.mxu0 %v526
      %550 = vmatprep.subr.mxu0 0.0
      %551 = vmatpush1.msra.mxu0 %v525
      %552 = vmatprep.subr.mxu0 0.0
      %553 = vmatpush1.msra.mxu0 %v524
      %554 = vmatprep.subr.mxu0 0.0
      %555 = vmatpush1.msra.mxu0 %v523
      %556 = vmatprep.subr.mxu0 0.0
      %557 = vmatpush1.msra.mxu0 %v522
      %558 = vmatprep.subr.mxu0 0.0
      %559 = vmatpush1.msra.mxu0 %v521
      %560 = vmatprep.subr.mxu0 0.0
      %561 = vmatpush1.msra.mxu0 %v520
      %562 = vmatprep.subr.mxu0 0.0
      %563 = vmatpush1.msra.mxu0 %v519
      %564 = vmatprep.subr.mxu0 0.0
      %565 = vmatpush1.msra.mxu0 %v518
      %566 = vmatprep.subr.mxu0 0.0
      %567 = vmatpush2.msra.mxu0 0.0
      %568 = vmatprep.subr.mxu0 0.0
      %569 = vmatpush2.msra.mxu0 0.0
      %570 = vmatprep.subr.mxu0 0.0
      %571 = vmatpush2.msra.mxu0 0.0
      %572 = vmatprep.subr.mxu0 0.0
      %573 = vmatpush2.msra.mxu0 0.0
      %574 = vmatprep.subr.mxu0 0.0
      %575 = vmatpush2.msra.mxu0 0.0
      %576 = vmatprep.subr.mxu0 0.0
      %577 = vmatpush2.msra.mxu0 0.0
      %578 = vmatprep.subr.mxu0 0.0
      %579 = vmatpush2.msra.mxu0 0.0
      %580 = vmatprep.subr.mxu0 0.0
      %581 = vmatpush2.msra.mxu0 0.0
      %582 = vmatprep.subr.mxu0 0.0
      %583 = vmatpush2.msra.mxu0 0.0
      %584 = vmatprep.subr.mxu0 0.0
      %585 = vmatpush2.msra.mxu0 0.0
      %586 = vmatprep.subr.mxu0 0.0
      %587 = vmatpush2.msra.mxu0 0.0
      %588 = vmatprep.subr.mxu0 0.0
      %589 = vmatpush2.msra.mxu0 0.0
      %590 = vmatprep.subr.mxu0 0.0
      %591 = vmatpush2.msra.mxu0 0.0
      %592 = vmatprep.subr.mxu0 0.0
      %593 = vmatpush2.msra.mxu0 0.0
      %594 = vmatprep.subr.mxu0 0.0
      %595 = vmatpush2.msra.mxu0 0.0
      %596 = vmatprep.subr.mxu0 0.0
      %597 = vmatpush2.msra.mxu0 0.0
      %598 = vmatprep.mubr.f32.mxu0 0.0
      %599 = vmatmul.mubr.f32.gmra.mxu0 %v394
      %v600 = vpop.f32.mrf.mxu0
      %v601 = vadd.f32 0.0, %v600
      %v602 = vpop.f32.mrf.mxu0
      %603 = vmatprep.mubr.f32.mxu0 0.0
      %604 = vmatmul.mubr.f32.gmra.mxu0 %v396
      %v605 = vpop.f32.mrf.mxu0
      %v606 = vadd.f32 0.0, %v605
      %v607 = vpop.f32.mrf.mxu0
      %608 = vmatprep.mubr.f32.mxu0 0.0
      %609 = vmatmul.mubr.f32.gmra.mxu0 %v399
      %v610 = vpop.f32.mrf.mxu0
      %v611 = vadd.f32 0.0, %v610
      %v612 = vpop.f32.mrf.mxu0
      %613 = vmatprep.mubr.f32.mxu0 0.0
      %614 = vmatmul.mubr.f32.gmra.mxu0 %v401
      %v615 = vpop.f32.mrf.mxu0
      %v616 = vadd.f32 0.0, %v615
      %v617 = vpop.f32.mrf.mxu0
      %618 = vmatprep.mubr.f32.mxu0 0.0
      %619 = vmatmul.mubr.f32.gmra.mxu0 %v404
      %v620 = vpop.f32.mrf.mxu0
      %v621 = vadd.f32 0.0, %v620
      %v622 = vpop.f32.mrf.mxu0
      %623 = vmatprep.mubr.f32.mxu0 0.0
      %624 = vmatmul.mubr.f32.gmra.mxu0 %v406
      %v625 = vpop.f32.mrf.mxu0
      %v626 = vadd.f32 0.0, %v625
      %v627 = vpop.f32.mrf.mxu0
      %628 = vmatprep.mubr.f32.mxu0 0.0
      %629 = vmatmul.mubr.f32.gmra.mxu0 %v409
      %v630 = vpop.f32.mrf.mxu0
      %v631 = vadd.f32 0.0, %v630
      %v632 = vpop.f32.mrf.mxu0
      %633 = vmatprep.mubr.f32.mxu0 0.0
      %634 = vmatmul.mubr.f32.gmra.mxu0 %v411
      %v635 = vpop.f32.mrf.mxu0
      %v636 = vadd.f32 0.0, %v635
      %v637 = vpop.f32.mrf.mxu0
      %638 = vmatprep.mubr.f32.mxu0 0.0
      %639 = vmatmul.mubr.f32.gmra.mxu0 %v414
      %v640 = vpop.f32.mrf.mxu0
      %v641 = vadd.f32 0.0, %v640
      %v642 = vpop.f32.mrf.mxu0
      %643 = vmatprep.mubr.f32.mxu0 0.0
      %644 = vmatmul.mubr.f32.gmra.mxu0 %v416
      %v645 = vpop.f32.mrf.mxu0
      %v646 = vadd.f32 0.0, %v645
      %v647 = vpop.f32.mrf.mxu0
      %648 = vmatprep.mubr.f32.mxu0 0.0
      %649 = vmatmul.mubr.f32.gmra.mxu0 %v419
      %v650 = vpop.f32.mrf.mxu0
      %v651 = vadd.f32 0.0, %v650
      %v652 = vpop.f32.mrf.mxu0
      %653 = vmatprep.mubr.f32.mxu0 0.0
      %654 = vmatmul.mubr.f32.gmra.mxu0 %v421
      %v655 = vpop.f32.mrf.mxu0
      %v656 = vadd.f32 0.0, %v655
      %v657 = vpop.f32.mrf.mxu0
      %658 = vmatprep.mubr.f32.mxu0 0.0
      %659 = vmatmul.mubr.f32.gmra.mxu0 %v424
      %v660 = vpop.f32.mrf.mxu0
      %v661 = vadd.f32 0.0, %v660
      %v662 = vpop.f32.mrf.mxu0
      %663 = vmatprep.mubr.f32.mxu0 0.0
      %664 = vmatmul.mubr.f32.gmra.mxu0 %v426
      %v665 = vpop.f32.mrf.mxu0
      %v666 = vadd.f32 0.0, %v665
      %v667 = vpop.f32.mrf.mxu0
      %668 = vmatprep.mubr.f32.mxu0 0.0
      %669 = vmatmul.mubr.f32.gmra.mxu0 %v429
      %v670 = vpop.f32.mrf.mxu0
      %v671 = vadd.f32 0.0, %v670
      %v672 = vpop.f32.mrf.mxu0
      %673 = vmatprep.mubr.f32.mxu0 0.0
      %674 = vmatmul.mubr.f32.gmra.mxu0 %v431
      %v675 = vpop.f32.mrf.mxu0
      %v676 = vadd.f32 0.0, %v675
      %v677 = vpop.f32.mrf.mxu0
      %678 = vmatprep.mubr.f32.mxu0 0.0
      %679 = vmatmul.mubr.f32.gmra.mxu0 %v434
      %v680 = vpop.f32.mrf.mxu0
      %v681 = vadd.f32 0.0, %v680
      %v682 = vpop.f32.mrf.mxu0
      %683 = vmatprep.mubr.f32.mxu0 0.0
      %684 = vmatmul.mubr.f32.gmra.mxu0 %v436
      %v685 = vpop.f32.mrf.mxu0
      %v686 = vadd.f32 0.0, %v685
      %v687 = vpop.f32.mrf.mxu0
      %688 = vmatprep.mubr.f32.mxu0 0.0
      %689 = vmatmul.mubr.f32.gmra.mxu0 %v439
      %v690 = vpop.f32.mrf.mxu0
      %v691 = vadd.f32 0.0, %v690
      %v692 = vpop.f32.mrf.mxu0
      %693 = vmatprep.mubr.f32.mxu0 0.0
      %694 = vmatmul.mubr.f32.gmra.mxu0 %v441
      %v695 = vpop.f32.mrf.mxu0
      %v696 = vadd.f32 0.0, %v695
      %v697 = vpop.f32.mrf.mxu0
      %698 = vmatprep.mubr.f32.mxu0 0.0
      %699 = vmatmul.mubr.f32.gmra.mxu0 %v444
      %v700 = vpop.f32.mrf.mxu0
      %v701 = vadd.f32 0.0, %v700
      %v702 = vpop.f32.mrf.mxu0
      %703 = vmatprep.mubr.f32.mxu0 0.0
      %704 = vmatmul.mubr.f32.gmra.mxu0 %v446
      %v705 = vpop.f32.mrf.mxu0
      %v706 = vadd.f32 0.0, %v705
      %v707 = vpop.f32.mrf.mxu0
      %708 = vmatprep.mubr.f32.mxu0 0.0
      %709 = vmatmul.mubr.f32.gmra.mxu0 %v449
      %v710 = vpop.f32.mrf.mxu0
      %v711 = vadd.f32 0.0, %v710
      %v712 = vpop.f32.mrf.mxu0
      %713 = vmatprep.mubr.f32.mxu0 0.0
      %714 = vmatmul.mubr.f32.gmra.mxu0 %v451
      %v715 = vpop.f32.mrf.mxu0
      %v716 = vadd.f32 0.0, %v715
      %v717 = vpop.f32.mrf.mxu0
      %718 = vmatprep.mubr.f32.mxu0 0.0
      %719 = vmatmul.mubr.f32.gmra.mxu0 %v454
      %v720 = vpop.f32.mrf.mxu0
      %v721 = vadd.f32 0.0, %v720
      %v722 = vpop.f32.mrf.mxu0
      %723 = vmatprep.mubr.f32.mxu0 0.0
      %724 = vmatmul.mubr.f32.gmra.mxu0 %v456
      %v725 = vpop.f32.mrf.mxu0
      %v726 = vadd.f32 0.0, %v725
      %v727 = vpop.f32.mrf.mxu0
      %728 = vmatprep.mubr.f32.mxu0 0.0
      %729 = vmatmul.mubr.f32.gmra.mxu0 %v459
      %v730 = vpop.f32.mrf.mxu0
      %v731 = vadd.f32 0.0, %v730
      %v732 = vpop.f32.mrf.mxu0
      %733 = vmatprep.mubr.f32.mxu0 0.0
      %734 = vmatmul.mubr.f32.gmra.mxu0 %v461
      %v735 = vpop.f32.mrf.mxu0
      %v736 = vadd.f32 0.0, %v735
      %v737 = vpop.f32.mrf.mxu0
      %738 = vmatprep.mubr.f32.mxu0 0.0
      %739 = vmatmul.mubr.f32.gmra.mxu0 %v464
      %v740 = vpop.f32.mrf.mxu0
      %v741 = vadd.f32 0.0, %v740
      %v742 = vpop.f32.mrf.mxu0
      %743 = vmatprep.mubr.f32.mxu0 0.0
      %744 = vmatmul.mubr.f32.gmra.mxu0 %v466
      %v745 = vpop.f32.mrf.mxu0
      %v746 = vadd.f32 0.0, %v745
      %v747 = vpop.f32.mrf.mxu0
      %748 = vmatprep.mubr.f32.mxu0 0.0
      %749 = vmatmul.mubr.f32.gmra.mxu0 %v469
      %v750 = vpop.f32.mrf.mxu0
      %v751 = vadd.f32 0.0, %v750
      %v752 = vpop.f32.mrf.mxu0
      %753 = vmatprep.mubr.f32.mxu0 0.0
      %754 = vmatmul.mubr.f32.gmra.mxu0 %v471
      %v755 = vpop.f32.mrf.mxu0
      %v756 = vadd.f32 0.0, %v755
      %v757 = vpop.f32.mrf.mxu0
      %758 = vmatprep.mubr.f32.mxu0 0.0
      %759 = vmatmul.mubr.f32.gmra.mxu0 %v474
      %v760 = vpop.f32.mrf.mxu0
      %v761 = vadd.f32 0.0, %v760
      %v762 = vpop.f32.mrf.mxu0
      %763 = vmatprep.mubr.f32.mxu0 0.0
      %764 = vmatmul.mubr.f32.gmra.mxu0 %v476
      %v765 = vpop.f32.mrf.mxu0
      %v766 = vadd.f32 0.0, %v765
      %v767 = vpop.f32.mrf.mxu0
      %768 = vmatprep.mubr.f32.mxu0 0.0
      %769 = vmatmul.mubr.f32.gmra.mxu0 %v479
      %v770 = vpop.f32.mrf.mxu0
      %v771 = vadd.f32 0.0, %v770
      %v772 = vpop.f32.mrf.mxu0
      %773 = vmatprep.mubr.f32.mxu0 0.0
      %774 = vmatmul.mubr.f32.gmra.mxu0 %v481
      %v775 = vpop.f32.mrf.mxu0
      %v776 = vadd.f32 0.0, %v775
      %v777 = vpop.f32.mrf.mxu0
      %778 = vdwg.mxu0
      %779 = vmatprep.subr.mxu0 0.0
      %780 = vmatpush1.msra.mxu0 %v336
      %781 = vmatprep.subr.mxu0 0.0
      %782 = vmatpush1.msra.mxu0 %v335
      %783 = vmatprep.subr.mxu0 0.0
      %784 = vmatpush1.msra.mxu0 %v334
      %785 = vmatprep.subr.mxu0 0.0
      %786 = vmatpush1.msra.mxu0 %v333
      %787 = vmatprep.subr.mxu0 0.0
      %788 = vmatpush1.msra.mxu0 %v332
      %789 = vmatprep.subr.mxu0 0.0
      %790 = vmatpush1.msra.mxu0 %v331
      %791 = vmatprep.subr.mxu0 0.0
      %792 = vmatpush1.msra.mxu0 %v330
      %793 = vmatprep.subr.mxu0 0.0
      %794 = vmatpush1.msra.mxu0 %v329
      %795 = vmatprep.subr.mxu0 0.0
      %796 = vmatpush1.msra.mxu0 %v328
      %797 = vmatprep.subr.mxu0 0.0
      %798 = vmatpush1.msra.mxu0 %v327
      %799 = vmatprep.subr.mxu0 0.0
      %800 = vmatpush1.msra.mxu0 %v326
      %801 = vmatprep.subr.mxu0 0.0
      %802 = vmatpush1.msra.mxu0 %v325
      %803 = vmatprep.subr.mxu0 0.0
      %804 = vmatpush1.msra.mxu0 %v324
      %805 = vmatprep.subr.mxu0 0.0
      %806 = vmatpush1.msra.mxu0 %v323
      %807 = vmatprep.subr.mxu0 0.0
      %808 = vmatpush1.msra.mxu0 %v322
      %809 = vmatprep.subr.mxu0 0.0
      %810 = vmatpush1.msra.mxu0 %v321
      %811 = vmatprep.subr.mxu0 0.0
      %812 = vmatpush2.msra.mxu0 0.0
      %813 = vmatprep.subr.mxu0 0.0
      %814 = vmatpush2.msra.mxu0 0.0
      %815 = vmatprep.subr.mxu0 0.0
      %816 = vmatpush2.msra.mxu0 0.0
      %817 = vmatprep.subr.mxu0 0.0
      %818 = vmatpush2.msra.mxu0 0.0
      %819 = vmatprep.subr.mxu0 0.0
      %820 = vmatpush2.msra.mxu0 0.0
      %821 = vmatprep.subr.mxu0 0.0
      %822 = vmatpush2.msra.mxu0 0.0
      %823 = vmatprep.subr.mxu0 0.0
      %824 = vmatpush2.msra.mxu0 0.0
      %825 = vmatprep.subr.mxu0 0.0
      %826 = vmatpush2.msra.mxu0 0.0
      %827 = vmatprep.subr.mxu0 0.0
      %828 = vmatpush2.msra.mxu0 0.0
      %829 = vmatprep.subr.mxu0 0.0
      %830 = vmatpush2.msra.mxu0 0.0
      %831 = vmatprep.subr.mxu0 0.0
      %832 = vmatpush2.msra.mxu0 0.0
      %833 = vmatprep.subr.mxu0 0.0
      %834 = vmatpush2.msra.mxu0 0.0
      %835 = vmatprep.subr.mxu0 0.0
      %836 = vmatpush2.msra.mxu0 0.0
      %837 = vmatprep.subr.mxu0 0.0
      %838 = vmatpush2.msra.mxu0 0.0
      %839 = vmatprep.subr.mxu0 0.0
      %840 = vmatpush2.msra.mxu0 0.0
      %841 = vmatprep.subr.mxu0 0.0
      %842 = vmatpush2.msra.mxu0 0.0
      %843 = vmatprep.mubr.f32.mxu0 0.0
      %844 = vmatmul.mubr.f32.gmra.mxu0 %v261
      %v845 = vpop.f32.mrf.mxu0
      %v846 = vadd.f32 %v601, %v845
      %v847 = vpop.f32.mrf.mxu0
      %848 = vmatprep.mubr.f32.mxu0 0.0
      %849 = vmatmul.mubr.f32.gmra.mxu0 %v262
      %v850 = vpop.f32.mrf.mxu0
      %v851 = vadd.f32 %v606, %v850
      %v852 = vpop.f32.mrf.mxu0
      %853 = vmatprep.mubr.f32.mxu0 0.0
      %854 = vmatmul.mubr.f32.gmra.mxu0 %v264
      %v855 = vpop.f32.mrf.mxu0
      %v856 = vadd.f32 %v611, %v855
      %v857 = vpop.f32.mrf.mxu0
      %858 = vmatprep.mubr.f32.mxu0 0.0
      %859 = vmatmul.mubr.f32.gmra.mxu0 %v265
      %v860 = vpop.f32.mrf.mxu0
      %v861 = vadd.f32 %v616, %v860
      %v862 = vpop.f32.mrf.mxu0
      %863 = vmatprep.mubr.f32.mxu0 0.0
      %864 = vmatmul.mubr.f32.gmra.mxu0 %v267
      %v865 = vpop.f32.mrf.mxu0
      %v866 = vadd.f32 %v621, %v865
      %v867 = vpop.f32.mrf.mxu0
      %868 = vmatprep.mubr.f32.mxu0 0.0
      %869 = vmatmul.mubr.f32.gmra.mxu0 %v268
      %v870 = vpop.f32.mrf.mxu0
      %v871 = vadd.f32 %v626, %v870
      %v872 = vpop.f32.mrf.mxu0
      %873 = vmatprep.mubr.f32.mxu0 0.0
      %874 = vmatmul.mubr.f32.gmra.mxu0 %v270
      %v875 = vpop.f32.mrf.mxu0
      %v876 = vadd.f32 %v631, %v875
      %v877 = vpop.f32.mrf.mxu0
      %878 = vmatprep.mubr.f32.mxu0 0.0
      %879 = vmatmul.mubr.f32.gmra.mxu0 %v271
      %v880 = vpop.f32.mrf.mxu0
      %v881 = vadd.f32 %v636, %v880
      %v882 = vpop.f32.mrf.mxu0
      %883 = vmatprep.mubr.f32.mxu0 0.0
      %884 = vmatmul.mubr.f32.gmra.mxu0 %v273
      %v885 = vpop.f32.mrf.mxu0
      %v886 = vadd.f32 %v641, %v885
      %v887 = vpop.f32.mrf.mxu0
      %888 = vmatprep.mubr.f32.mxu0 0.0
      %889 = vmatmul.mubr.f32.gmra.mxu0 %v274
      %v890 = vpop.f32.mrf.mxu0
      %v891 = vadd.f32 %v646, %v890
      %v892 = vpop.f32.mrf.mxu0
      %893 = vmatprep.mubr.f32.mxu0 0.0
      %894 = vmatmul.mubr.f32.gmra.mxu0 %v276
      %v895 = vpop.f32.mrf.mxu0
      %v896 = vadd.f32 %v651, %v895
      %v897 = vpop.f32.mrf.mxu0
      %898 = vmatprep.mubr.f32.mxu0 0.0
      %899 = vmatmul.mubr.f32.gmra.mxu0 %v277
      %v900 = vpop.f32.mrf.mxu0
      %v901 = vadd.f32 %v656, %v900
      %v902 = vpop.f32.mrf.mxu0
      %903 = vmatprep.mubr.f32.mxu0 0.0
      %904 = vmatmul.mubr.f32.gmra.mxu0 %v279
      %v905 = vpop.f32.mrf.mxu0
      %v906 = vadd.f32 %v661, %v905
      %v907 = vpop.f32.mrf.mxu0
      %908 = vmatprep.mubr.f32.mxu0 0.0
      %909 = vmatmul.mubr.f32.gmra.mxu0 %v280
      %v910 = vpop.f32.mrf.mxu0
      %v911 = vadd.f32 %v666, %v910
      %v912 = vpop.f32.mrf.mxu0
      %913 = vmatprep.mubr.f32.mxu0 0.0
      %914 = vmatmul.mubr.f32.gmra.mxu0 %v282
      %v915 = vpop.f32.mrf.mxu0
      %v916 = vadd.f32 %v671, %v915
      %v917 = vpop.f32.mrf.mxu0
      %918 = vmatprep.mubr.f32.mxu0 0.0
      %919 = vmatmul.mubr.f32.gmra.mxu0 %v283
      %v920 = vpop.f32.mrf.mxu0
      %v921 = vadd.f32 %v676, %v920
      %v922 = vpop.f32.mrf.mxu0
      %923 = vmatprep.mubr.f32.mxu0 0.0
      %924 = vmatmul.mubr.f32.gmra.mxu0 %v285
      %v925 = vpop.f32.mrf.mxu0
      %v926 = vadd.f32 %v681, %v925
      %v927 = vpop.f32.mrf.mxu0
      %928 = vmatprep.mubr.f32.mxu0 0.0
      %929 = vmatmul.mubr.f32.gmra.mxu0 %v286
      %v930 = vpop.f32.mrf.mxu0
      %v931 = vadd.f32 %v686, %v930
      %v932 = vpop.f32.mrf.mxu0
      %933 = vmatprep.mubr.f32.mxu0 0.0
      %934 = vmatmul.mubr.f32.gmra.mxu0 %v288
      %v935 = vpop.f32.mrf.mxu0
      %v936 = vadd.f32 %v691, %v935
      %v937 = vpop.f32.mrf.mxu0
      %938 = vmatprep.mubr.f32.mxu0 0.0
      %939 = vmatmul.mubr.f32.gmra.mxu0 %v289
      %v940 = vpop.f32.mrf.mxu0
      %v941 = vadd.f32 %v696, %v940
      %v942 = vpop.f32.mrf.mxu0
      %943 = vmatprep.mubr.f32.mxu0 0.0
      %944 = vmatmul.mubr.f32.gmra.mxu0 %v291
      %v945 = vpop.f32.mrf.mxu0
      %v946 = vadd.f32 %v701, %v945
      %v947 = vpop.f32.mrf.mxu0
      %948 = vmatprep.mubr.f32.mxu0 0.0
      %949 = vmatmul.mubr.f32.gmra.mxu0 %v292
      %v950 = vpop.f32.mrf.mxu0
      %v951 = vadd.f32 %v706, %v950
      %v952 = vpop.f32.mrf.mxu0
      %953 = vmatprep.mubr.f32.mxu0 0.0
      %954 = vmatmul.mubr.f32.gmra.mxu0 %v294
      %v955 = vpop.f32.mrf.mxu0
      %v956 = vadd.f32 %v711, %v955
      %v957 = vpop.f32.mrf.mxu0
      %958 = vmatprep.mubr.f32.mxu0 0.0
      %959 = vmatmul.mubr.f32.gmra.mxu0 %v295
      %v960 = vpop.f32.mrf.mxu0
      %v961 = vadd.f32 %v716, %v960
      %v962 = vpop.f32.mrf.mxu0
      %963 = vmatprep.mubr.f32.mxu0 0.0
      %964 = vmatmul.mubr.f32.gmra.mxu0 %v297
      %v965 = vpop.f32.mrf.mxu0
      %v966 = vadd.f32 %v721, %v965
      %v967 = vpop.f32.mrf.mxu0
      %968 = vmatprep.mubr.f32.mxu0 0.0
      %969 = vmatmul.mubr.f32.gmra.mxu0 %v298
      %v970 = vpop.f32.mrf.mxu0
      %v971 = vadd.f32 %v726, %v970
      %v972 = vpop.f32.mrf.mxu0
      %973 = vmatprep.mubr.f32.mxu0 0.0
      %974 = vmatmul.mubr.f32.gmra.mxu0 %v300
      %v975 = vpop.f32.mrf.mxu0
      %v976 = vadd.f32 %v731, %v975
      %v977 = vpop.f32.mrf.mxu0
      %978 = vmatprep.mubr.f32.mxu0 0.0
      %979 = vmatmul.mubr.f32.gmra.mxu0 %v301
      %v980 = vpop.f32.mrf.mxu0
      %v981 = vadd.f32 %v736, %v980
      %v982 = vpop.f32.mrf.mxu0
      %983 = vmatprep.mubr.f32.mxu0 0.0
      %984 = vmatmul.mubr.f32.gmra.mxu0 %v303
      %v985 = vpop.f32.mrf.mxu0
      %v986 = vadd.f32 %v741, %v985
      %v987 = vpop.f32.mrf.mxu0
      %988 = vmatprep.mubr.f32.mxu0 0.0
      %989 = vmatmul.mubr.f32.gmra.mxu0 %v304
      %v990 = vpop.f32.mrf.mxu0
      %v991 = vadd.f32 %v746, %v990
      %v992 = vpop.f32.mrf.mxu0
      %993 = vmatprep.mubr.f32.mxu0 0.0
      %994 = vmatmul.mubr.f32.gmra.mxu0 %v306
      %v995 = vpop.f32.mrf.mxu0
      %v996 = vadd.f32 %v751, %v995
      %v997 = vpop.f32.mrf.mxu0
      %998 = vmatprep.mubr.f32.mxu0 0.0
      %999 = vmatmul.mubr.f32.gmra.mxu0 %v307
      %v1000 = vpop.f32.mrf.mxu0
      %v1001 = vadd.f32 %v756, %v1000
      %v1002 = vpop.f32.mrf.mxu0
      %1003 = vmatprep.mubr.f32.mxu0 0.0
      %1004 = vmatmul.mubr.f32.gmra.mxu0 %v309
      %v1005 = vpop.f32.mrf.mxu0
      %v1006 = vadd.f32 %v761, %v1005
      %v1007 = vpop.f32.mrf.mxu0
      %1008 = vmatprep.mubr.f32.mxu0 0.0
      %1009 = vmatmul.mubr.f32.gmra.mxu0 %v310
      %v1010 = vpop.f32.mrf.mxu0
      %v1011 = vadd.f32 %v766, %v1010
      %v1012 = vpop.f32.mrf.mxu0
      %1013 = vmatprep.mubr.f32.mxu0 0.0
      %1014 = vmatmul.mubr.f32.gmra.mxu0 %v312
      %v1015 = vpop.f32.mrf.mxu0
      %v1016 = vadd.f32 %v771, %v1015
      %v1017 = vpop.f32.mrf.mxu0
      %1018 = vmatprep.mubr.f32.mxu0 0.0
      %1019 = vmatmul.mubr.f32.gmra.mxu0 %v313
      %v1020 = vpop.f32.mrf.mxu0
      %v1021 = vadd.f32 %v776, %v1020
      %v1022 = vpop.f32.mrf.mxu0
      %1023 = vdwg.mxu0
      %vm1024 = vcmask 1045504
      %v1025 = vrot.slane %v261, 2
      %v1026 = vrot.slane %v262, 2
      %v1027 = vsel %vm1024, %v1025, %v1026
      %v1028 = vrot.slane %v263, 2
      %v1029 = vsel %vm1024, %v1026, %v1028
      %v1030 = vrot.slane %v264, 2
      %v1031 = vrot.slane %v265, 2
      %v1032 = vsel %vm1024, %v1030, %v1031
      %v1033 = vrot.slane %v266, 2
      %v1034 = vsel %vm1024, %v1031, %v1033
      %v1035 = vrot.slane %v267, 2
      %v1036 = vrot.slane %v268, 2
      %v1037 = vsel %vm1024, %v1035, %v1036
      %v1038 = vrot.slane %v269, 2
      %v1039 = vsel %vm1024, %v1036, %v1038
      %v1040 = vrot.slane %v270, 2
      %v1041 = vrot.slane %v271, 2
      %v1042 = vsel %vm1024, %v1040, %v1041
      %v1043 = vrot.slane %v272, 2
      %v1044 = vsel %vm1024, %v1041, %v1043
      %v1045 = vrot.slane %v273, 2
      %v1046 = vrot.slane %v274, 2
      %v1047 = vsel %vm1024, %v1045, %v1046
      %v1048 = vrot.slane %v275, 2
      %v1049 = vsel %vm1024, %v1046, %v1048
      %v1050 = vrot.slane %v276, 2
      %v1051 = vrot.slane %v277, 2
      %v1052 = vsel %vm1024, %v1050, %v1051
      %v1053 = vrot.slane %v278, 2
      %v1054 = vsel %vm1024, %v1051, %v1053
      %v1055 = vrot.slane %v279, 2
      %v1056 = vrot.slane %v280, 2
      %v1057 = vsel %vm1024, %v1055, %v1056
      %v1058 = vrot.slane %v281, 2
      %v1059 = vsel %vm1024, %v1056, %v1058
      %v1060 = vrot.slane %v282, 2
      %v1061 = vrot.slane %v283, 2
      %v1062 = vsel %vm1024, %v1060, %v1061
      %v1063 = vrot.slane %v284, 2
      %v1064 = vsel %vm1024, %v1061, %v1063
      %v1065 = vrot.slane %v285, 2
      %v1066 = vrot.slane %v286, 2
      %v1067 = vsel %vm1024, %v1065, %v1066
      %v1068 = vrot.slane %v287, 2
      %v1069 = vsel %vm1024, %v1066, %v1068
      %v1070 = vrot.slane %v288, 2
      %v1071 = vrot.slane %v289, 2
      %v1072 = vsel %vm1024, %v1070, %v1071
      %v1073 = vrot.slane %v290, 2
      %v1074 = vsel %vm1024, %v1071, %v1073
      %v1075 = vrot.slane %v291, 2
      %v1076 = vrot.slane %v292, 2
      %v1077 = vsel %vm1024, %v1075, %v1076
      %v1078 = vrot.slane %v293, 2
      %v1079 = vsel %vm1024, %v1076, %v1078
      %v1080 = vrot.slane %v294, 2
      %v1081 = vrot.slane %v295, 2
      %v1082 = vsel %vm1024, %v1080, %v1081
      %v1083 = vrot.slane %v296, 2
      %v1084 = vsel %vm1024, %v1081, %v1083
      %v1085 = vrot.slane %v297, 2
      %v1086 = vrot.slane %v298, 2
      %v1087 = vsel %vm1024, %v1085, %v1086
      %v1088 = vrot.slane %v299, 2
      %v1089 = vsel %vm1024, %v1086, %v1088
      %v1090 = vrot.slane %v300, 2
      %v1091 = vrot.slane %v301, 2
      %v1092 = vsel %vm1024, %v1090, %v1091
      %v1093 = vrot.slane %v302, 2
      %v1094 = vsel %vm1024, %v1091, %v1093
      %v1095 = vrot.slane %v303, 2
      %v1096 = vrot.slane %v304, 2
      %v1097 = vsel %vm1024, %v1095, %v1096
      %v1098 = vrot.slane %v305, 2
      %v1099 = vsel %vm1024, %v1096, %v1098
      %v1100 = vrot.slane %v306, 2
      %v1101 = vrot.slane %v307, 2
      %v1102 = vsel %vm1024, %v1100, %v1101
      %v1103 = vrot.slane %v308, 2
      %v1104 = vsel %vm1024, %v1101, %v1103
      %v1105 = vrot.slane %v309, 2
      %v1106 = vrot.slane %v310, 2
      %v1107 = vsel %vm1024, %v1105, %v1106
      %v1108 = vrot.slane %v311, 2
      %v1109 = vsel %vm1024, %v1106, %v1108
      %v1110 = vrot.slane %v312, 2
      %v1111 = vrot.slane %v313, 2
      %v1112 = vsel %vm1024, %v1110, %v1111
      %v1113 = vrot.slane %v314, 2
      %v1114 = vsel %vm1024, %v1111, %v1113
      %v1151 = vld [vmem:[%s1 + $0x100] sm:$0xff]
      %v1152 = vld [vmem:[%s1 + $0x108] sm:$0xff]
      %v1153 = vld [vmem:[%s1 + $0x110] sm:$0xff]
      %v1154 = vld [vmem:[%s1 + $0x118] sm:$0xff]
      %v1155 = vld [vmem:[%s1 + $0x120] sm:$0xff]
      %v1156 = vld [vmem:[%s1 + $0x128] sm:$0xff]
      %v1157 = vld [vmem:[%s1 + $0x130] sm:$0xff]
      %v1158 = vld [vmem:[%s1 + $0x138] sm:$0xff]
      %v1159 = vld [vmem:[%s1 + $0x140] sm:$0xff]
      %v1160 = vld [vmem:[%s1 + $0x148] sm:$0xff]
      %v1161 = vld [vmem:[%s1 + $0x150] sm:$0xff]
      %v1162 = vld [vmem:[%s1 + $0x158] sm:$0xff]
      %v1163 = vld [vmem:[%s1 + $0x160] sm:$0xff]
      %v1164 = vld [vmem:[%s1 + $0x168] sm:$0xff]
      %v1165 = vld [vmem:[%s1 + $0x170] sm:$0xff]
      %v1166 = vld [vmem:[%s1 + $0x178] sm:$0xff]
      %1167 = vmatprep.subr.mxu0 0.0
      %1168 = vmatpush1.msra.mxu0 %v1166
      %1169 = vmatprep.subr.mxu0 0.0
      %1170 = vmatpush1.msra.mxu0 %v1165
      %1171 = vmatprep.subr.mxu0 0.0
      %1172 = vmatpush1.msra.mxu0 %v1164
      %1173 = vmatprep.subr.mxu0 0.0
      %1174 = vmatpush1.msra.mxu0 %v1163
      %1175 = vmatprep.subr.mxu0 0.0
      %1176 = vmatpush1.msra.mxu0 %v1162
      %1177 = vmatprep.subr.mxu0 0.0
      %1178 = vmatpush1.msra.mxu0 %v1161
      %1179 = vmatprep.subr.mxu0 0.0
      %1180 = vmatpush1.msra.mxu0 %v1160
      %1181 = vmatprep.subr.mxu0 0.0
      %1182 = vmatpush1.msra.mxu0 %v1159
      %1183 = vmatprep.subr.mxu0 0.0
      %1184 = vmatpush1.msra.mxu0 %v1158
      %1185 = vmatprep.subr.mxu0 0.0
      %1186 = vmatpush1.msra.mxu0 %v1157
      %1187 = vmatprep.subr.mxu0 0.0
      %1188 = vmatpush1.msra.mxu0 %v1156
      %1189 = vmatprep.subr.mxu0 0.0
      %1190 = vmatpush1.msra.mxu0 %v1155
      %1191 = vmatprep.subr.mxu0 0.0
      %1192 = vmatpush1.msra.mxu0 %v1154
      %1193 = vmatprep.subr.mxu0 0.0
      %1194 = vmatpush1.msra.mxu0 %v1153
      %1195 = vmatprep.subr.mxu0 0.0
      %1196 = vmatpush1.msra.mxu0 %v1152
      %1197 = vmatprep.subr.mxu0 0.0
      %1198 = vmatpush1.msra.mxu0 %v1151
      %1199 = vmatprep.subr.mxu0 0.0
      %1200 = vmatpush2.msra.mxu0 0.0
      %1201 = vmatprep.subr.mxu0 0.0
      %1202 = vmatpush2.msra.mxu0 0.0
      %1203 = vmatprep.subr.mxu0 0.0
      %1204 = vmatpush2.msra.mxu0 0.0
      %1205 = vmatprep.subr.mxu0 0.0
      %1206 = vmatpush2.msra.mxu0 0.0
      %1207 = vmatprep.subr.mxu0 0.0
      %1208 = vmatpush2.msra.mxu0 0.0
      %1209 = vmatprep.subr.mxu0 0.0
      %1210 = vmatpush2.msra.mxu0 0.0
      %1211 = vmatprep.subr.mxu0 0.0
      %1212 = vmatpush2.msra.mxu0 0.0
      %1213 = vmatprep.subr.mxu0 0.0
      %1214 = vmatpush2.msra.mxu0 0.0
      %1215 = vmatprep.subr.mxu0 0.0
      %1216 = vmatpush2.msra.mxu0 0.0
      %1217 = vmatprep.subr.mxu0 0.0
      %1218 = vmatpush2.msra.mxu0 0.0
      %1219 = vmatprep.subr.mxu0 0.0
      %1220 = vmatpush2.msra.mxu0 0.0
      %1221 = vmatprep.subr.mxu0 0.0
      %1222 = vmatpush2.msra.mxu0 0.0
      %1223 = vmatprep.subr.mxu0 0.0
      %1224 = vmatpush2.msra.mxu0 0.0
      %1225 = vmatprep.subr.mxu0 0.0
      %1226 = vmatpush2.msra.mxu0 0.0
      %1227 = vmatprep.subr.mxu0 0.0
      %1228 = vmatpush2.msra.mxu0 0.0
      %1229 = vmatprep.subr.mxu0 0.0
      %1230 = vmatpush2.msra.mxu0 0.0
      %1231 = vmatprep.mubr.f32.mxu0 0.0
      %1232 = vmatmul.mubr.f32.gmra.mxu0 %v1027
      %v1233 = vpop.f32.mrf.mxu0
      %v1234 = vadd.f32 0.0, %v1233
      %v1235 = vpop.f32.mrf.mxu0
      %1236 = vmatprep.mubr.f32.mxu0 0.0
      %1237 = vmatmul.mubr.f32.gmra.mxu0 %v1029
      %v1238 = vpop.f32.mrf.mxu0
      %v1239 = vadd.f32 0.0, %v1238
      %v1240 = vpop.f32.mrf.mxu0
      %1241 = vmatprep.mubr.f32.mxu0 0.0
      %1242 = vmatmul.mubr.f32.gmra.mxu0 %v1032
      %v1243 = vpop.f32.mrf.mxu0
      %v1244 = vadd.f32 0.0, %v1243
      %v1245 = vpop.f32.mrf.mxu0
      %1246 = vmatprep.mubr.f32.mxu0 0.0
      %1247 = vmatmul.mubr.f32.gmra.mxu0 %v1034
      %v1248 = vpop.f32.mrf.mxu0
      %v1249 = vadd.f32 0.0, %v1248
      %v1250 = vpop.f32.mrf.mxu0
      %1251 = vmatprep.mubr.f32.mxu0 0.0
      %1252 = vmatmul.mubr.f32.gmra.mxu0 %v1037
      %v1253 = vpop.f32.mrf.mxu0
      %v1254 = vadd.f32 0.0, %v1253
      %v1255 = vpop.f32.mrf.mxu0
      %1256 = vmatprep.mubr.f32.mxu0 0.0
      %1257 = vmatmul.mubr.f32.gmra.mxu0 %v1039
      %v1258 = vpop.f32.mrf.mxu0
      %v1259 = vadd.f32 0.0, %v1258
      %v1260 = vpop.f32.mrf.mxu0
      %1261 = vmatprep.mubr.f32.mxu0 0.0
      %1262 = vmatmul.mubr.f32.gmra.mxu0 %v1042
      %v1263 = vpop.f32.mrf.mxu0
      %v1264 = vadd.f32 0.0, %v1263
      %v1265 = vpop.f32.mrf.mxu0
      %1266 = vmatprep.mubr.f32.mxu0 0.0
      %1267 = vmatmul.mubr.f32.gmra.mxu0 %v1044
      %v1268 = vpop.f32.mrf.mxu0
      %v1269 = vadd.f32 0.0, %v1268
      %v1270 = vpop.f32.mrf.mxu0
      %1271 = vmatprep.mubr.f32.mxu0 0.0
      %1272 = vmatmul.mubr.f32.gmra.mxu0 %v1047
      %v1273 = vpop.f32.mrf.mxu0
      %v1274 = vadd.f32 0.0, %v1273
      %v1275 = vpop.f32.mrf.mxu0
      %1276 = vmatprep.mubr.f32.mxu0 0.0
      %1277 = vmatmul.mubr.f32.gmra.mxu0 %v1049
      %v1278 = vpop.f32.mrf.mxu0
      %v1279 = vadd.f32 0.0, %v1278
      %v1280 = vpop.f32.mrf.mxu0
      %1281 = vmatprep.mubr.f32.mxu0 0.0
      %1282 = vmatmul.mubr.f32.gmra.mxu0 %v1052
      %v1283 = vpop.f32.mrf.mxu0
      %v1284 = vadd.f32 0.0, %v1283
      %v1285 = vpop.f32.mrf.mxu0
      %1286 = vmatprep.mubr.f32.mxu0 0.0
      %1287 = vmatmul.mubr.f32.gmra.mxu0 %v1054
      %v1288 = vpop.f32.mrf.mxu0
      %v1289 = vadd.f32 0.0, %v1288
      %v1290 = vpop.f32.mrf.mxu0
      %1291 = vmatprep.mubr.f32.mxu0 0.0
      %1292 = vmatmul.mubr.f32.gmra.mxu0 %v1057
      %v1293 = vpop.f32.mrf.mxu0
      %v1294 = vadd.f32 0.0, %v1293
      %v1295 = vpop.f32.mrf.mxu0
      %1296 = vmatprep.mubr.f32.mxu0 0.0
      %1297 = vmatmul.mubr.f32.gmra.mxu0 %v1059
      %v1298 = vpop.f32.mrf.mxu0
      %v1299 = vadd.f32 0.0, %v1298
      %v1300 = vpop.f32.mrf.mxu0
      %1301 = vmatprep.mubr.f32.mxu0 0.0
      %1302 = vmatmul.mubr.f32.gmra.mxu0 %v1062
      %v1303 = vpop.f32.mrf.mxu0
      %v1304 = vadd.f32 0.0, %v1303
      %v1305 = vpop.f32.mrf.mxu0
      %1306 = vmatprep.mubr.f32.mxu0 0.0
      %1307 = vmatmul.mubr.f32.gmra.mxu0 %v1064
      %v1308 = vpop.f32.mrf.mxu0
      %v1309 = vadd.f32 0.0, %v1308
      %v1310 = vpop.f32.mrf.mxu0
      %1311 = vmatprep.mubr.f32.mxu0 0.0
      %1312 = vmatmul.mubr.f32.gmra.mxu0 %v1067
      %v1313 = vpop.f32.mrf.mxu0
      %v1314 = vadd.f32 0.0, %v1313
      %v1315 = vpop.f32.mrf.mxu0
      %1316 = vmatprep.mubr.f32.mxu0 0.0
      %1317 = vmatmul.mubr.f32.gmra.mxu0 %v1069
      %v1318 = vpop.f32.mrf.mxu0
      %v1319 = vadd.f32 0.0, %v1318
      %v1320 = vpop.f32.mrf.mxu0
      %1321 = vmatprep.mubr.f32.mxu0 0.0
      %1322 = vmatmul.mubr.f32.gmra.mxu0 %v1072
      %v1323 = vpop.f32.mrf.mxu0
      %v1324 = vadd.f32 0.0, %v1323
      %v1325 = vpop.f32.mrf.mxu0
      %1326 = vmatprep.mubr.f32.mxu0 0.0
      %1327 = vmatmul.mubr.f32.gmra.mxu0 %v1074
      %v1328 = vpop.f32.mrf.mxu0
      %v1329 = vadd.f32 0.0, %v1328
      %v1330 = vpop.f32.mrf.mxu0
      %1331 = vmatprep.mubr.f32.mxu0 0.0
      %1332 = vmatmul.mubr.f32.gmra.mxu0 %v1077
      %v1333 = vpop.f32.mrf.mxu0
      %v1334 = vadd.f32 0.0, %v1333
      %v1335 = vpop.f32.mrf.mxu0
      %1336 = vmatprep.mubr.f32.mxu0 0.0
      %1337 = vmatmul.mubr.f32.gmra.mxu0 %v1079
      %v1338 = vpop.f32.mrf.mxu0
      %v1339 = vadd.f32 0.0, %v1338
      %v1340 = vpop.f32.mrf.mxu0
      %1341 = vmatprep.mubr.f32.mxu0 0.0
      %1342 = vmatmul.mubr.f32.gmra.mxu0 %v1082
      %v1343 = vpop.f32.mrf.mxu0
      %v1344 = vadd.f32 0.0, %v1343
      %v1345 = vpop.f32.mrf.mxu0
      %1346 = vmatprep.mubr.f32.mxu0 0.0
      %1347 = vmatmul.mubr.f32.gmra.mxu0 %v1084
      %v1348 = vpop.f32.mrf.mxu0
      %v1349 = vadd.f32 0.0, %v1348
      %v1350 = vpop.f32.mrf.mxu0
      %1351 = vmatprep.mubr.f32.mxu0 0.0
      %1352 = vmatmul.mubr.f32.gmra.mxu0 %v1087
      %v1353 = vpop.f32.mrf.mxu0
      %v1354 = vadd.f32 0.0, %v1353
      %v1355 = vpop.f32.mrf.mxu0
      %1356 = vmatprep.mubr.f32.mxu0 0.0
      %1357 = vmatmul.mubr.f32.gmra.mxu0 %v1089
      %v1358 = vpop.f32.mrf.mxu0
      %v1359 = vadd.f32 0.0, %v1358
      %v1360 = vpop.f32.mrf.mxu0
      %1361 = vmatprep.mubr.f32.mxu0 0.0
      %1362 = vmatmul.mubr.f32.gmra.mxu0 %v1092
      %v1363 = vpop.f32.mrf.mxu0
      %v1364 = vadd.f32 0.0, %v1363
      %v1365 = vpop.f32.mrf.mxu0
      %1366 = vmatprep.mubr.f32.mxu0 0.0
      %1367 = vmatmul.mubr.f32.gmra.mxu0 %v1094
      %v1368 = vpop.f32.mrf.mxu0
      %v1369 = vadd.f32 0.0, %v1368
      %v1370 = vpop.f32.mrf.mxu0
      %1371 = vmatprep.mubr.f32.mxu0 0.0
      %1372 = vmatmul.mubr.f32.gmra.mxu0 %v1097
      %v1373 = vpop.f32.mrf.mxu0
      %v1374 = vadd.f32 0.0, %v1373
      %v1375 = vpop.f32.mrf.mxu0
      %1376 = vmatprep.mubr.f32.mxu0 0.0
      %1377 = vmatmul.mubr.f32.gmra.mxu0 %v1099
      %v1378 = vpop.f32.mrf.mxu0
      %v1379 = vadd.f32 0.0, %v1378
      %v1380 = vpop.f32.mrf.mxu0
      %1381 = vmatprep.mubr.f32.mxu0 0.0
      %1382 = vmatmul.mubr.f32.gmra.mxu0 %v1102
      %v1383 = vpop.f32.mrf.mxu0
      %v1384 = vadd.f32 0.0, %v1383
      %v1385 = vpop.f32.mrf.mxu0
      %1386 = vmatprep.mubr.f32.mxu0 0.0
      %1387 = vmatmul.mubr.f32.gmra.mxu0 %v1104
      %v1388 = vpop.f32.mrf.mxu0
      %v1389 = vadd.f32 0.0, %v1388
      %v1390 = vpop.f32.mrf.mxu0
      %1391 = vmatprep.mubr.f32.mxu0 0.0
      %1392 = vmatmul.mubr.f32.gmra.mxu0 %v1107
      %v1393 = vpop.f32.mrf.mxu0
      %v1394 = vadd.f32 0.0, %v1393
      %v1395 = vpop.f32.mrf.mxu0
      %1396 = vmatprep.mubr.f32.mxu0 0.0
      %1397 = vmatmul.mubr.f32.gmra.mxu0 %v1109
      %v1398 = vpop.f32.mrf.mxu0
      %v1399 = vadd.f32 0.0, %v1398
      %v1400 = vpop.f32.mrf.mxu0
      %1401 = vmatprep.mubr.f32.mxu0 0.0
      %1402 = vmatmul.mubr.f32.gmra.mxu0 %v1112
      %v1403 = vpop.f32.mrf.mxu0
      %v1404 = vadd.f32 0.0, %v1403
      %v1405 = vpop.f32.mrf.mxu0
      %1406 = vmatprep.mubr.f32.mxu0 0.0
      %1407 = vmatmul.mubr.f32.gmra.mxu0 %v1114
      %v1408 = vpop.f32.mrf.mxu0
      %v1409 = vadd.f32 0.0, %v1408
      %v1410 = vpop.f32.mrf.mxu0
      %1411 = vdwg.mxu0
      %v1412 = vadd.f32 %v846, %v1234
      %v1413 = vadd.f32 %v851, %v1239
      %v1414 = vadd.f32 %v856, %v1244
      %v1415 = vadd.f32 %v861, %v1249
      %v1416 = vadd.f32 %v866, %v1254
      %v1417 = vadd.f32 %v871, %v1259
      %v1418 = vadd.f32 %v876, %v1264
      %v1419 = vadd.f32 %v881, %v1269
      %v1420 = vadd.f32 %v886, %v1274
      %v1421 = vadd.f32 %v891, %v1279
      %v1422 = vadd.f32 %v896, %v1284
      %v1423 = vadd.f32 %v901, %v1289
      %v1424 = vadd.f32 %v906, %v1294
      %v1425 = vadd.f32 %v911, %v1299
      %v1426 = vadd.f32 %v916, %v1304
      %v1427 = vadd.f32 %v921, %v1309
      %v1428 = vadd.f32 %v926, %v1314
      %v1429 = vadd.f32 %v931, %v1319
      %v1430 = vadd.f32 %v936, %v1324
      %v1431 = vadd.f32 %v941, %v1329
      %v1432 = vadd.f32 %v946, %v1334
      %v1433 = vadd.f32 %v951, %v1339
      %v1434 = vadd.f32 %v956, %v1344
      %v1435 = vadd.f32 %v961, %v1349
      %v1436 = vadd.f32 %v966, %v1354
      %v1437 = vadd.f32 %v971, %v1359
      %v1438 = vadd.f32 %v976, %v1364
      %v1439 = vadd.f32 %v981, %v1369
      %v1440 = vadd.f32 %v986, %v1374
      %v1441 = vadd.f32 %v991, %v1379
      %v1442 = vadd.f32 %v996, %v1384
      %v1443 = vadd.f32 %v1001, %v1389
      %v1444 = vadd.f32 %v1006, %v1394
      %v1445 = vadd.f32 %v1011, %v1399
      %v1446 = vadd.f32 %v1016, %v1404
      %v1447 = vadd.f32 %v1021, %v1409
      %v1448 = vld [vmem:[%s1 + $0x180] sm:$0xff]
      %v1449 = vld [vmem:[%s1 + $0x188] sm:$0xff]
      %v1450 = vld [vmem:[%s1 + $0x190] sm:$0xff]
      %v1451 = vld [vmem:[%s1 + $0x198] sm:$0xff]
      %v1452 = vld [vmem:[%s1 + $0x1a0] sm:$0xff]
      %v1453 = vld [vmem:[%s1 + $0x1a8] sm:$0xff]
      %v1454 = vld [vmem:[%s1 + $0x1b0] sm:$0xff]
      %v1455 = vld [vmem:[%s1 + $0x1b8] sm:$0xff]
      %v1456 = vld [vmem:[%s1 + $0x1c0] sm:$0xff]
      %v1457 = vld [vmem:[%s1 + $0x1c8] sm:$0xff]
      %v1458 = vld [vmem:[%s1 + $0x1d0] sm:$0xff]
      %v1459 = vld [vmem:[%s1 + $0x1d8] sm:$0xff]
      %v1460 = vld [vmem:[%s1 + $0x1e0] sm:$0xff]
      %v1461 = vld [vmem:[%s1 + $0x1e8] sm:$0xff]
      %v1462 = vld [vmem:[%s1 + $0x1f0] sm:$0xff]
      %v1463 = vld [vmem:[%s1 + $0x1f8] sm:$0xff]
      %1464 = vmatprep.subr.mxu0 0.0
      %1465 = vmatpush1.msra.mxu0 %v1463
      %1466 = vmatprep.subr.mxu0 0.0
      %1467 = vmatpush1.msra.mxu0 %v1462
      %1468 = vmatprep.subr.mxu0 0.0
      %1469 = vmatpush1.msra.mxu0 %v1461
      %1470 = vmatprep.subr.mxu0 0.0
      %1471 = vmatpush1.msra.mxu0 %v1460
      %1472 = vmatprep.subr.mxu0 0.0
      %1473 = vmatpush1.msra.mxu0 %v1459
      %1474 = vmatprep.subr.mxu0 0.0
      %1475 = vmatpush1.msra.mxu0 %v1458
      %1476 = vmatprep.subr.mxu0 0.0
      %1477 = vmatpush1.msra.mxu0 %v1457
      %1478 = vmatprep.subr.mxu0 0.0
      %1479 = vmatpush1.msra.mxu0 %v1456
      %1480 = vmatprep.subr.mxu0 0.0
      %1481 = vmatpush1.msra.mxu0 %v1455
      %1482 = vmatprep.subr.mxu0 0.0
      %1483 = vmatpush1.msra.mxu0 %v1454
      %1484 = vmatprep.subr.mxu0 0.0
      %1485 = vmatpush1.msra.mxu0 %v1453
      %1486 = vmatprep.subr.mxu0 0.0
      %1487 = vmatpush1.msra.mxu0 %v1452
      %1488 = vmatprep.subr.mxu0 0.0
      %1489 = vmatpush1.msra.mxu0 %v1451
      %1490 = vmatprep.subr.mxu0 0.0
      %1491 = vmatpush1.msra.mxu0 %v1450
      %1492 = vmatprep.subr.mxu0 0.0
      %1493 = vmatpush1.msra.mxu0 %v1449
      %1494 = vmatprep.subr.mxu0 0.0
      %1495 = vmatpush1.msra.mxu0 %v1448
      %1496 = vmatprep.subr.mxu0 0.0
      %1497 = vmatpush2.msra.mxu0 0.0
      %1498 = vmatprep.subr.mxu0 0.0
      %1499 = vmatpush2.msra.mxu0 0.0
      %1500 = vmatprep.subr.mxu0 0.0
      %1501 = vmatpush2.msra.mxu0 0.0
      %1502 = vmatprep.subr.mxu0 0.0
      %1503 = vmatpush2.msra.mxu0 0.0
      %1504 = vmatprep.subr.mxu0 0.0
      %1505 = vmatpush2.msra.mxu0 0.0
      %1506 = vmatprep.subr.mxu0 0.0
      %1507 = vmatpush2.msra.mxu0 0.0
      %1508 = vmatprep.subr.mxu0 0.0
      %1509 = vmatpush2.msra.mxu0 0.0
      %1510 = vmatprep.subr.mxu0 0.0
      %1511 = vmatpush2.msra.mxu0 0.0
      %1512 = vmatprep.subr.mxu0 0.0
      %1513 = vmatpush2.msra.mxu0 0.0
      %1514 = vmatprep.subr.mxu0 0.0
      %1515 = vmatpush2.msra.mxu0 0.0
      %1516 = vmatprep.subr.mxu0 0.0
      %1517 = vmatpush2.msra.mxu0 0.0
      %1518 = vmatprep.subr.mxu0 0.0
      %1519 = vmatpush2.msra.mxu0 0.0
      %1520 = vmatprep.subr.mxu0 0.0
      %1521 = vmatpush2.msra.mxu0 0.0
      %1522 = vmatprep.subr.mxu0 0.0
      %1523 = vmatpush2.msra.mxu0 0.0
      %1524 = vmatprep.subr.mxu0 0.0
      %1525 = vmatpush2.msra.mxu0 0.0
      %1526 = vmatprep.subr.mxu0 0.0
      %1527 = vmatpush2.msra.mxu0 0.0
      %1528 = vmatprep.mubr.f32.mxu0 0.0
      %1529 = vmatmul.mubr.f32.gmra.mxu0 %v264
      %v1530 = vpop.f32.mrf.mxu0
      %v1531 = vadd.f32 0.0, %v1530
      %v1532 = vpop.f32.mrf.mxu0
      %1533 = vmatprep.mubr.f32.mxu0 0.0
      %1534 = vmatmul.mubr.f32.gmra.mxu0 %v265
      %v1535 = vpop.f32.mrf.mxu0
      %v1536 = vadd.f32 0.0, %v1535
      %v1537 = vpop.f32.mrf.mxu0
      %1538 = vmatprep.mubr.f32.mxu0 0.0
      %1539 = vmatmul.mubr.f32.gmra.mxu0 %v267
      %v1540 = vpop.f32.mrf.mxu0
      %v1541 = vadd.f32 0.0, %v1540
      %v1542 = vpop.f32.mrf.mxu0
      %1543 = vmatprep.mubr.f32.mxu0 0.0
      %1544 = vmatmul.mubr.f32.gmra.mxu0 %v268
      %v1545 = vpop.f32.mrf.mxu0
      %v1546 = vadd.f32 0.0, %v1545
      %v1547 = vpop.f32.mrf.mxu0
      %1548 = vmatprep.mubr.f32.mxu0 0.0
      %1549 = vmatmul.mubr.f32.gmra.mxu0 %v270
      %v1550 = vpop.f32.mrf.mxu0
      %v1551 = vadd.f32 0.0, %v1550
      %v1552 = vpop.f32.mrf.mxu0
      %1553 = vmatprep.mubr.f32.mxu0 0.0
      %1554 = vmatmul.mubr.f32.gmra.mxu0 %v271
      %v1555 = vpop.f32.mrf.mxu0
      %v1556 = vadd.f32 0.0, %v1555
      %v1557 = vpop.f32.mrf.mxu0
      %1558 = vmatprep.mubr.f32.mxu0 0.0
      %1559 = vmatmul.mubr.f32.gmra.mxu0 %v273
      %v1560 = vpop.f32.mrf.mxu0
      %v1561 = vadd.f32 0.0, %v1560
      %v1562 = vpop.f32.mrf.mxu0
      %1563 = vmatprep.mubr.f32.mxu0 0.0
      %1564 = vmatmul.mubr.f32.gmra.mxu0 %v274
      %v1565 = vpop.f32.mrf.mxu0
      %v1566 = vadd.f32 0.0, %v1565
      %v1567 = vpop.f32.mrf.mxu0
      %1568 = vmatprep.mubr.f32.mxu0 0.0
      %1569 = vmatmul.mubr.f32.gmra.mxu0 %v276
      %v1570 = vpop.f32.mrf.mxu0
      %v1571 = vadd.f32 0.0, %v1570
      %v1572 = vpop.f32.mrf.mxu0
      %1573 = vmatprep.mubr.f32.mxu0 0.0
      %1574 = vmatmul.mubr.f32.gmra.mxu0 %v277
      %v1575 = vpop.f32.mrf.mxu0
      %v1576 = vadd.f32 0.0, %v1575
      %v1577 = vpop.f32.mrf.mxu0
      %1578 = vmatprep.mubr.f32.mxu0 0.0
      %1579 = vmatmul.mubr.f32.gmra.mxu0 %v279
      %v1580 = vpop.f32.mrf.mxu0
      %v1581 = vadd.f32 0.0, %v1580
      %v1582 = vpop.f32.mrf.mxu0
      %1583 = vmatprep.mubr.f32.mxu0 0.0
      %1584 = vmatmul.mubr.f32.gmra.mxu0 %v280
      %v1585 = vpop.f32.mrf.mxu0
      %v1586 = vadd.f32 0.0, %v1585
      %v1587 = vpop.f32.mrf.mxu0
      %1588 = vmatprep.mubr.f32.mxu0 0.0
      %1589 = vmatmul.mubr.f32.gmra.mxu0 %v282
      %v1590 = vpop.f32.mrf.mxu0
      %v1591 = vadd.f32 0.0, %v1590
      %v1592 = vpop.f32.mrf.mxu0
      %1593 = vmatprep.mubr.f32.mxu0 0.0
      %1594 = vmatmul.mubr.f32.gmra.mxu0 %v283
      %v1595 = vpop.f32.mrf.mxu0
      %v1596 = vadd.f32 0.0, %v1595
      %v1597 = vpop.f32.mrf.mxu0
      %1598 = vmatprep.mubr.f32.mxu0 0.0
      %1599 = vmatmul.mubr.f32.gmra.mxu0 %v285
      %v1600 = vpop.f32.mrf.mxu0
      %v1601 = vadd.f32 0.0, %v1600
      %v1602 = vpop.f32.mrf.mxu0
      %1603 = vmatprep.mubr.f32.mxu0 0.0
      %1604 = vmatmul.mubr.f32.gmra.mxu0 %v286
      %v1605 = vpop.f32.mrf.mxu0
      %v1606 = vadd.f32 0.0, %v1605
      %v1607 = vpop.f32.mrf.mxu0
      %1608 = vmatprep.mubr.f32.mxu0 0.0
      %1609 = vmatmul.mubr.f32.gmra.mxu0 %v288
      %v1610 = vpop.f32.mrf.mxu0
      %v1611 = vadd.f32 0.0, %v1610
      %v1612 = vpop.f32.mrf.mxu0
      %1613 = vmatprep.mubr.f32.mxu0 0.0
      %1614 = vmatmul.mubr.f32.gmra.mxu0 %v289
      %v1615 = vpop.f32.mrf.mxu0
      %v1616 = vadd.f32 0.0, %v1615
      %v1617 = vpop.f32.mrf.mxu0
      %1618 = vmatprep.mubr.f32.mxu0 0.0
      %1619 = vmatmul.mubr.f32.gmra.mxu0 %v291
      %v1620 = vpop.f32.mrf.mxu0
      %v1621 = vadd.f32 0.0, %v1620
      %v1622 = vpop.f32.mrf.mxu0
      %1623 = vmatprep.mubr.f32.mxu0 0.0
      %1624 = vmatmul.mubr.f32.gmra.mxu0 %v292
      %v1625 = vpop.f32.mrf.mxu0
      %v1626 = vadd.f32 0.0, %v1625
      %v1627 = vpop.f32.mrf.mxu0
      %1628 = vmatprep.mubr.f32.mxu0 0.0
      %1629 = vmatmul.mubr.f32.gmra.mxu0 %v294
      %v1630 = vpop.f32.mrf.mxu0
      %v1631 = vadd.f32 0.0, %v1630
      %v1632 = vpop.f32.mrf.mxu0
      %1633 = vmatprep.mubr.f32.mxu0 0.0
      %1634 = vmatmul.mubr.f32.gmra.mxu0 %v295
      %v1635 = vpop.f32.mrf.mxu0
      %v1636 = vadd.f32 0.0, %v1635
      %v1637 = vpop.f32.mrf.mxu0
      %1638 = vmatprep.mubr.f32.mxu0 0.0
      %1639 = vmatmul.mubr.f32.gmra.mxu0 %v297
      %v1640 = vpop.f32.mrf.mxu0
      %v1641 = vadd.f32 0.0, %v1640
      %v1642 = vpop.f32.mrf.mxu0
      %1643 = vmatprep.mubr.f32.mxu0 0.0
      %1644 = vmatmul.mubr.f32.gmra.mxu0 %v298
      %v1645 = vpop.f32.mrf.mxu0
      %v1646 = vadd.f32 0.0, %v1645
      %v1647 = vpop.f32.mrf.mxu0
      %1648 = vmatprep.mubr.f32.mxu0 0.0
      %1649 = vmatmul.mubr.f32.gmra.mxu0 %v300
      %v1650 = vpop.f32.mrf.mxu0
      %v1651 = vadd.f32 0.0, %v1650
      %v1652 = vpop.f32.mrf.mxu0
      %1653 = vmatprep.mubr.f32.mxu0 0.0
      %1654 = vmatmul.mubr.f32.gmra.mxu0 %v301
      %v1655 = vpop.f32.mrf.mxu0
      %v1656 = vadd.f32 0.0, %v1655
      %v1657 = vpop.f32.mrf.mxu0
      %1658 = vmatprep.mubr.f32.mxu0 0.0
      %1659 = vmatmul.mubr.f32.gmra.mxu0 %v303
      %v1660 = vpop.f32.mrf.mxu0
      %v1661 = vadd.f32 0.0, %v1660
      %v1662 = vpop.f32.mrf.mxu0
      %1663 = vmatprep.mubr.f32.mxu0 0.0
      %1664 = vmatmul.mubr.f32.gmra.mxu0 %v304
      %v1665 = vpop.f32.mrf.mxu0
      %v1666 = vadd.f32 0.0, %v1665
      %v1667 = vpop.f32.mrf.mxu0
      %1668 = vmatprep.mubr.f32.mxu0 0.0
      %1669 = vmatmul.mubr.f32.gmra.mxu0 %v306
      %v1670 = vpop.f32.mrf.mxu0
      %v1671 = vadd.f32 0.0, %v1670
      %v1672 = vpop.f32.mrf.mxu0
      %1673 = vmatprep.mubr.f32.mxu0 0.0
      %1674 = vmatmul.mubr.f32.gmra.mxu0 %v307
      %v1675 = vpop.f32.mrf.mxu0
      %v1676 = vadd.f32 0.0, %v1675
      %v1677 = vpop.f32.mrf.mxu0
      %1678 = vmatprep.mubr.f32.mxu0 0.0
      %1679 = vmatmul.mubr.f32.gmra.mxu0 %v309
      %v1680 = vpop.f32.mrf.mxu0
      %v1681 = vadd.f32 0.0, %v1680
      %v1682 = vpop.f32.mrf.mxu0
      %1683 = vmatprep.mubr.f32.mxu0 0.0
      %1684 = vmatmul.mubr.f32.gmra.mxu0 %v310
      %v1685 = vpop.f32.mrf.mxu0
      %v1686 = vadd.f32 0.0, %v1685
      %v1687 = vpop.f32.mrf.mxu0
      %1688 = vmatprep.mubr.f32.mxu0 0.0
      %1689 = vmatmul.mubr.f32.gmra.mxu0 %v312
      %v1690 = vpop.f32.mrf.mxu0
      %v1691 = vadd.f32 0.0, %v1690
      %v1692 = vpop.f32.mrf.mxu0
      %1693 = vmatprep.mubr.f32.mxu0 0.0
      %1694 = vmatmul.mubr.f32.gmra.mxu0 %v313
      %v1695 = vpop.f32.mrf.mxu0
      %v1696 = vadd.f32 0.0, %v1695
      %v1697 = vpop.f32.mrf.mxu0
      %1698 = vmatprep.mubr.f32.mxu0 0.0
      %1699 = vmatmul.mubr.f32.gmra.mxu0 %v315
      %v1700 = vpop.f32.mrf.mxu0
      %v1701 = vadd.f32 0.0, %v1700
      %v1702 = vpop.f32.mrf.mxu0
      %1703 = vmatprep.mubr.f32.mxu0 0.0
      %1704 = vmatmul.mubr.f32.gmra.mxu0 %v316
      %v1705 = vpop.f32.mrf.mxu0
      %v1706 = vadd.f32 0.0, %v1705
      %v1707 = vpop.f32.mrf.mxu0
      %1708 = vdwg.mxu0
      %v1709 = vadd.f32 %v1412, %v1531
      %v1710 = vadd.f32 %v1413, %v1536
      %v1711 = vadd.f32 %v1414, %v1541
      %v1712 = vadd.f32 %v1415, %v1546
      %v1713 = vadd.f32 %v1416, %v1551
      %v1714 = vadd.f32 %v1417, %v1556
      %v1715 = vadd.f32 %v1418, %v1561
      %v1716 = vadd.f32 %v1419, %v1566
      %v1717 = vadd.f32 %v1420, %v1571
      %v1718 = vadd.f32 %v1421, %v1576
      %v1719 = vadd.f32 %v1422, %v1581
      %v1720 = vadd.f32 %v1423, %v1586
      %v1721 = vadd.f32 %v1424, %v1591
      %v1722 = vadd.f32 %v1425, %v1596
      %v1723 = vadd.f32 %v1426, %v1601
      %v1724 = vadd.f32 %v1427, %v1606
      %v1725 = vadd.f32 %v1428, %v1611
      %v1726 = vadd.f32 %v1429, %v1616
      %v1727 = vadd.f32 %v1430, %v1621
      %v1728 = vadd.f32 %v1431, %v1626
      %v1729 = vadd.f32 %v1432, %v1631
      %v1730 = vadd.f32 %v1433, %v1636
      %v1731 = vadd.f32 %v1434, %v1641
      %v1732 = vadd.f32 %v1435, %v1646
      %v1733 = vadd.f32 %v1436, %v1651
      %v1734 = vadd.f32 %v1437, %v1656
      %v1735 = vadd.f32 %v1438, %v1661
      %v1736 = vadd.f32 %v1439, %v1666
      %v1737 = vadd.f32 %v1440, %v1671
      %v1738 = vadd.f32 %v1441, %v1676
      %v1739 = vadd.f32 %v1442, %v1681
      %v1740 = vadd.f32 %v1443, %v1686
      %v1741 = vadd.f32 %v1444, %v1691
      %v1742 = vadd.f32 %v1445, %v1696
      %v1743 = vadd.f32 %v1446, %v1701
      %v1744 = vadd.f32 %v1447, %v1706
      %v1748 = vrot.slane %v315, 1
      %v1749 = vrot.slane %v316, 1
      %v1750 = vsel %vm391, %v1748, %v1749
      %v1751 = vrot.slane %v317, 1
      %v1752 = vsel %vm391, %v1749, %v1751
      %v1755 = vld [vmem:[%s1 + $0x200] sm:$0xff]
      %v1756 = vld [vmem:[%s1 + $0x208] sm:$0xff]
      %v1757 = vld [vmem:[%s1 + $0x210] sm:$0xff]
      %v1758 = vld [vmem:[%s1 + $0x218] sm:$0xff]
      %v1759 = vld [vmem:[%s1 + $0x220] sm:$0xff]
      %v1760 = vld [vmem:[%s1 + $0x228] sm:$0xff]
      %v1761 = vld [vmem:[%s1 + $0x230] sm:$0xff]
      %v1762 = vld [vmem:[%s1 + $0x238] sm:$0xff]
      %v1763 = vld [vmem:[%s1 + $0x240] sm:$0xff]
      %v1764 = vld [vmem:[%s1 + $0x248] sm:$0xff]
      %v1765 = vld [vmem:[%s1 + $0x250] sm:$0xff]
      %v1766 = vld [vmem:[%s1 + $0x258] sm:$0xff]
      %v1767 = vld [vmem:[%s1 + $0x260] sm:$0xff]
      %v1768 = vld [vmem:[%s1 + $0x268] sm:$0xff]
      %v1769 = vld [vmem:[%s1 + $0x270] sm:$0xff]
      %v1770 = vld [vmem:[%s1 + $0x278] sm:$0xff]
      %1771 = vmatprep.subr.mxu0 0.0
      %1772 = vmatpush1.msra.mxu0 %v1770
      %1773 = vmatprep.subr.mxu0 0.0
      %1774 = vmatpush1.msra.mxu0 %v1769
      %1775 = vmatprep.subr.mxu0 0.0
      %1776 = vmatpush1.msra.mxu0 %v1768
      %1777 = vmatprep.subr.mxu0 0.0
      %1778 = vmatpush1.msra.mxu0 %v1767
      %1779 = vmatprep.subr.mxu0 0.0
      %1780 = vmatpush1.msra.mxu0 %v1766
      %1781 = vmatprep.subr.mxu0 0.0
      %1782 = vmatpush1.msra.mxu0 %v1765
      %1783 = vmatprep.subr.mxu0 0.0
      %1784 = vmatpush1.msra.mxu0 %v1764
      %1785 = vmatprep.subr.mxu0 0.0
      %1786 = vmatpush1.msra.mxu0 %v1763
      %1787 = vmatprep.subr.mxu0 0.0
      %1788 = vmatpush1.msra.mxu0 %v1762
      %1789 = vmatprep.subr.mxu0 0.0
      %1790 = vmatpush1.msra.mxu0 %v1761
      %1791 = vmatprep.subr.mxu0 0.0
      %1792 = vmatpush1.msra.mxu0 %v1760
      %1793 = vmatprep.subr.mxu0 0.0
      %1794 = vmatpush1.msra.mxu0 %v1759
      %1795 = vmatprep.subr.mxu0 0.0
      %1796 = vmatpush1.msra.mxu0 %v1758
      %1797 = vmatprep.subr.mxu0 0.0
      %1798 = vmatpush1.msra.mxu0 %v1757
      %1799 = vmatprep.subr.mxu0 0.0
      %1800 = vmatpush1.msra.mxu0 %v1756
      %1801 = vmatprep.subr.mxu0 0.0
      %1802 = vmatpush1.msra.mxu0 %v1755
      %1803 = vmatprep.subr.mxu0 0.0
      %1804 = vmatpush2.msra.mxu0 0.0
      %1805 = vmatprep.subr.mxu0 0.0
      %1806 = vmatpush2.msra.mxu0 0.0
      %1807 = vmatprep.subr.mxu0 0.0
      %1808 = vmatpush2.msra.mxu0 0.0
      %1809 = vmatprep.subr.mxu0 0.0
      %1810 = vmatpush2.msra.mxu0 0.0
      %1811 = vmatprep.subr.mxu0 0.0
      %1812 = vmatpush2.msra.mxu0 0.0
      %1813 = vmatprep.subr.mxu0 0.0
      %1814 = vmatpush2.msra.mxu0 0.0
      %1815 = vmatprep.subr.mxu0 0.0
      %1816 = vmatpush2.msra.mxu0 0.0
      %1817 = vmatprep.subr.mxu0 0.0
      %1818 = vmatpush2.msra.mxu0 0.0
      %1819 = vmatprep.subr.mxu0 0.0
      %1820 = vmatpush2.msra.mxu0 0.0
      %1821 = vmatprep.subr.mxu0 0.0
      %1822 = vmatpush2.msra.mxu0 0.0
      %1823 = vmatprep.subr.mxu0 0.0
      %1824 = vmatpush2.msra.mxu0 0.0
      %1825 = vmatprep.subr.mxu0 0.0
      %1826 = vmatpush2.msra.mxu0 0.0
      %1827 = vmatprep.subr.mxu0 0.0
      %1828 = vmatpush2.msra.mxu0 0.0
      %1829 = vmatprep.subr.mxu0 0.0
      %1830 = vmatpush2.msra.mxu0 0.0
      %1831 = vmatprep.subr.mxu0 0.0
      %1832 = vmatpush2.msra.mxu0 0.0
      %1833 = vmatprep.subr.mxu0 0.0
      %1834 = vmatpush2.msra.mxu0 0.0
      %1835 = vmatprep.mubr.f32.mxu0 0.0
      %1836 = vmatmul.mubr.f32.gmra.mxu0 %v399
      %v1837 = vpop.f32.mrf.mxu0
      %v1838 = vadd.f32 0.0, %v1837
      %v1839 = vpop.f32.mrf.mxu0
      %1840 = vmatprep.mubr.f32.mxu0 0.0
      %1841 = vmatmul.mubr.f32.gmra.mxu0 %v401
      %v1842 = vpop.f32.mrf.mxu0
      %v1843 = vadd.f32 0.0, %v1842
      %v1844 = vpop.f32.mrf.mxu0
      %1845 = vmatprep.mubr.f32.mxu0 0.0
      %1846 = vmatmul.mubr.f32.gmra.mxu0 %v404
      %v1847 = vpop.f32.mrf.mxu0
      %v1848 = vadd.f32 0.0, %v1847
      %v1849 = vpop.f32.mrf.mxu0
      %1850 = vmatprep.mubr.f32.mxu0 0.0
      %1851 = vmatmul.mubr.f32.gmra.mxu0 %v406
      %v1852 = vpop.f32.mrf.mxu0
      %v1853 = vadd.f32 0.0, %v1852
      %v1854 = vpop.f32.mrf.mxu0
      %1855 = vmatprep.mubr.f32.mxu0 0.0
      %1856 = vmatmul.mubr.f32.gmra.mxu0 %v409
      %v1857 = vpop.f32.mrf.mxu0
      %v1858 = vadd.f32 0.0, %v1857
      %v1859 = vpop.f32.mrf.mxu0
      %1860 = vmatprep.mubr.f32.mxu0 0.0
      %1861 = vmatmul.mubr.f32.gmra.mxu0 %v411
      %v1862 = vpop.f32.mrf.mxu0
      %v1863 = vadd.f32 0.0, %v1862
      %v1864 = vpop.f32.mrf.mxu0
      %1865 = vmatprep.mubr.f32.mxu0 0.0
      %1866 = vmatmul.mubr.f32.gmra.mxu0 %v414
      %v1867 = vpop.f32.mrf.mxu0
      %v1868 = vadd.f32 0.0, %v1867
      %v1869 = vpop.f32.mrf.mxu0
      %1870 = vmatprep.mubr.f32.mxu0 0.0
      %1871 = vmatmul.mubr.f32.gmra.mxu0 %v416
      %v1872 = vpop.f32.mrf.mxu0
      %v1873 = vadd.f32 0.0, %v1872
      %v1874 = vpop.f32.mrf.mxu0
      %1875 = vmatprep.mubr.f32.mxu0 0.0
      %1876 = vmatmul.mubr.f32.gmra.mxu0 %v419
      %v1877 = vpop.f32.mrf.mxu0
      %v1878 = vadd.f32 0.0, %v1877
      %v1879 = vpop.f32.mrf.mxu0
      %1880 = vmatprep.mubr.f32.mxu0 0.0
      %1881 = vmatmul.mubr.f32.gmra.mxu0 %v421
      %v1882 = vpop.f32.mrf.mxu0
      %v1883 = vadd.f32 0.0, %v1882
      %v1884 = vpop.f32.mrf.mxu0
      %1885 = vmatprep.mubr.f32.mxu0 0.0
      %1886 = vmatmul.mubr.f32.gmra.mxu0 %v424
      %v1887 = vpop.f32.mrf.mxu0
      %v1888 = vadd.f32 0.0, %v1887
      %v1889 = vpop.f32.mrf.mxu0
      %1890 = vmatprep.mubr.f32.mxu0 0.0
      %1891 = vmatmul.mubr.f32.gmra.mxu0 %v426
      %v1892 = vpop.f32.mrf.mxu0
      %v1893 = vadd.f32 0.0, %v1892
      %v1894 = vpop.f32.mrf.mxu0
      %1895 = vmatprep.mubr.f32.mxu0 0.0
      %1896 = vmatmul.mubr.f32.gmra.mxu0 %v429
      %v1897 = vpop.f32.mrf.mxu0
      %v1898 = vadd.f32 0.0, %v1897
      %v1899 = vpop.f32.mrf.mxu0
      %1900 = vmatprep.mubr.f32.mxu0 0.0
      %1901 = vmatmul.mubr.f32.gmra.mxu0 %v431
      %v1902 = vpop.f32.mrf.mxu0
      %v1903 = vadd.f32 0.0, %v1902
      %v1904 = vpop.f32.mrf.mxu0
      %1905 = vmatprep.mubr.f32.mxu0 0.0
      %1906 = vmatmul.mubr.f32.gmra.mxu0 %v434
      %v1907 = vpop.f32.mrf.mxu0
      %v1908 = vadd.f32 0.0, %v1907
      %v1909 = vpop.f32.mrf.mxu0
      %1910 = vmatprep.mubr.f32.mxu0 0.0
      %1911 = vmatmul.mubr.f32.gmra.mxu0 %v436
      %v1912 = vpop.f32.mrf.mxu0
      %v1913 = vadd.f32 0.0, %v1912
      %v1914 = vpop.f32.mrf.mxu0
      %1915 = vmatprep.mubr.f32.mxu0 0.0
      %1916 = vmatmul.mubr.f32.gmra.mxu0 %v439
      %v1917 = vpop.f32.mrf.mxu0
      %v1918 = vadd.f32 0.0, %v1917
      %v1919 = vpop.f32.mrf.mxu0
      %1920 = vmatprep.mubr.f32.mxu0 0.0
      %1921 = vmatmul.mubr.f32.gmra.mxu0 %v441
      %v1922 = vpop.f32.mrf.mxu0
      %v1923 = vadd.f32 0.0, %v1922
      %v1924 = vpop.f32.mrf.mxu0
      %1925 = vmatprep.mubr.f32.mxu0 0.0
      %1926 = vmatmul.mubr.f32.gmra.mxu0 %v444
      %v1927 = vpop.f32.mrf.mxu0
      %v1928 = vadd.f32 0.0, %v1927
      %v1929 = vpop.f32.mrf.mxu0
      %1930 = vmatprep.mubr.f32.mxu0 0.0
      %1931 = vmatmul.mubr.f32.gmra.mxu0 %v446
      %v1932 = vpop.f32.mrf.mxu0
      %v1933 = vadd.f32 0.0, %v1932
      %v1934 = vpop.f32.mrf.mxu0
      %1935 = vmatprep.mubr.f32.mxu0 0.0
      %1936 = vmatmul.mubr.f32.gmra.mxu0 %v449
      %v1937 = vpop.f32.mrf.mxu0
      %v1938 = vadd.f32 0.0, %v1937
      %v1939 = vpop.f32.mrf.mxu0
      %1940 = vmatprep.mubr.f32.mxu0 0.0
      %1941 = vmatmul.mubr.f32.gmra.mxu0 %v451
      %v1942 = vpop.f32.mrf.mxu0
      %v1943 = vadd.f32 0.0, %v1942
      %v1944 = vpop.f32.mrf.mxu0
      %1945 = vmatprep.mubr.f32.mxu0 0.0
      %1946 = vmatmul.mubr.f32.gmra.mxu0 %v454
      %v1947 = vpop.f32.mrf.mxu0
      %v1948 = vadd.f32 0.0, %v1947
      %v1949 = vpop.f32.mrf.mxu0
      %1950 = vmatprep.mubr.f32.mxu0 0.0
      %1951 = vmatmul.mubr.f32.gmra.mxu0 %v456
      %v1952 = vpop.f32.mrf.mxu0
      %v1953 = vadd.f32 0.0, %v1952
      %v1954 = vpop.f32.mrf.mxu0
      %1955 = vmatprep.mubr.f32.mxu0 0.0
      %1956 = vmatmul.mubr.f32.gmra.mxu0 %v459
      %v1957 = vpop.f32.mrf.mxu0
      %v1958 = vadd.f32 0.0, %v1957
      %v1959 = vpop.f32.mrf.mxu0
      %1960 = vmatprep.mubr.f32.mxu0 0.0
      %1961 = vmatmul.mubr.f32.gmra.mxu0 %v461
      %v1962 = vpop.f32.mrf.mxu0
      %v1963 = vadd.f32 0.0, %v1962
      %v1964 = vpop.f32.mrf.mxu0
      %1965 = vmatprep.mubr.f32.mxu0 0.0
      %1966 = vmatmul.mubr.f32.gmra.mxu0 %v464
      %v1967 = vpop.f32.mrf.mxu0
      %v1968 = vadd.f32 0.0, %v1967
      %v1969 = vpop.f32.mrf.mxu0
      %1970 = vmatprep.mubr.f32.mxu0 0.0
      %1971 = vmatmul.mubr.f32.gmra.mxu0 %v466
      %v1972 = vpop.f32.mrf.mxu0
      %v1973 = vadd.f32 0.0, %v1972
      %v1974 = vpop.f32.mrf.mxu0
      %1975 = vmatprep.mubr.f32.mxu0 0.0
      %1976 = vmatmul.mubr.f32.gmra.mxu0 %v469
      %v1977 = vpop.f32.mrf.mxu0
      %v1978 = vadd.f32 0.0, %v1977
      %v1979 = vpop.f32.mrf.mxu0
      %1980 = vmatprep.mubr.f32.mxu0 0.0
      %1981 = vmatmul.mubr.f32.gmra.mxu0 %v471
      %v1982 = vpop.f32.mrf.mxu0
      %v1983 = vadd.f32 0.0, %v1982
      %v1984 = vpop.f32.mrf.mxu0
      %1985 = vmatprep.mubr.f32.mxu0 0.0
      %1986 = vmatmul.mubr.f32.gmra.mxu0 %v474
      %v1987 = vpop.f32.mrf.mxu0
      %v1988 = vadd.f32 0.0, %v1987
      %v1989 = vpop.f32.mrf.mxu0
      %1990 = vmatprep.mubr.f32.mxu0 0.0
      %1991 = vmatmul.mubr.f32.gmra.mxu0 %v476
      %v1992 = vpop.f32.mrf.mxu0
      %v1993 = vadd.f32 0.0, %v1992
      %v1994 = vpop.f32.mrf.mxu0
      %1995 = vmatprep.mubr.f32.mxu0 0.0
      %1996 = vmatmul.mubr.f32.gmra.mxu0 %v479
      %v1997 = vpop.f32.mrf.mxu0
      %v1998 = vadd.f32 0.0, %v1997
      %v1999 = vpop.f32.mrf.mxu0
      %2000 = vmatprep.mubr.f32.mxu0 0.0
      %2001 = vmatmul.mubr.f32.gmra.mxu0 %v481
      %v2002 = vpop.f32.mrf.mxu0
      %v2003 = vadd.f32 0.0, %v2002
      %v2004 = vpop.f32.mrf.mxu0
      %2005 = vmatprep.mubr.f32.mxu0 0.0
      %2006 = vmatmul.mubr.f32.gmra.mxu0 %v1750
      %v2007 = vpop.f32.mrf.mxu0
      %v2008 = vadd.f32 0.0, %v2007
      %v2009 = vpop.f32.mrf.mxu0
      %2010 = vmatprep.mubr.f32.mxu0 0.0
      %2011 = vmatmul.mubr.f32.gmra.mxu0 %v1752
      %v2012 = vpop.f32.mrf.mxu0
      %v2013 = vadd.f32 0.0, %v2012
      %v2014 = vpop.f32.mrf.mxu0
      %2015 = vdwg.mxu0
      %v2016 = vadd.f32 %v1709, %v1838
      %v2017 = vadd.f32 %v1710, %v1843
      %v2018 = vadd.f32 %v1711, %v1848
      %v2019 = vadd.f32 %v1712, %v1853
      %v2020 = vadd.f32 %v1713, %v1858
      %v2021 = vadd.f32 %v1714, %v1863
      %v2022 = vadd.f32 %v1715, %v1868
      %v2023 = vadd.f32 %v1716, %v1873
      %v2024 = vadd.f32 %v1717, %v1878
      %v2025 = vadd.f32 %v1718, %v1883
      %v2026 = vadd.f32 %v1719, %v1888
      %v2027 = vadd.f32 %v1720, %v1893
      %v2028 = vadd.f32 %v1721, %v1898
      %v2029 = vadd.f32 %v1722, %v1903
      %v2030 = vadd.f32 %v1723, %v1908
      %v2031 = vadd.f32 %v1724, %v1913
      %v2032 = vadd.f32 %v1725, %v1918
      %v2033 = vadd.f32 %v1726, %v1923
      %v2034 = vadd.f32 %v1727, %v1928
      %v2035 = vadd.f32 %v1728, %v1933
      %v2036 = vadd.f32 %v1729, %v1938
      %v2037 = vadd.f32 %v1730, %v1943
      %v2038 = vadd.f32 %v1731, %v1948
      %v2039 = vadd.f32 %v1732, %v1953
      %v2040 = vadd.f32 %v1733, %v1958
      %v2041 = vadd.f32 %v1734, %v1963
      %v2042 = vadd.f32 %v1735, %v1968
      %v2043 = vadd.f32 %v1736, %v1973
      %v2044 = vadd.f32 %v1737, %v1978
      %v2045 = vadd.f32 %v1738, %v1983
      %v2046 = vadd.f32 %v1739, %v1988
      %v2047 = vadd.f32 %v1740, %v1993
      %v2048 = vadd.f32 %v1741, %v1998
      %v2049 = vadd.f32 %v1742, %v2003
      %v2050 = vadd.f32 %v1743, %v2008
      %v2051 = vadd.f32 %v1744, %v2013
      %v2052 = vrot.slane %v315, 2
      %v2053 = vrot.slane %v316, 2
      %v2054 = vsel %vm1024, %v2052, %v2053
      %v2055 = vrot.slane %v317, 2
      %v2056 = vsel %vm1024, %v2053, %v2055
      %v2059 = vld [vmem:[%s1 + $0x280] sm:$0xff]
      %v2060 = vld [vmem:[%s1 + $0x288] sm:$0xff]
      %v2061 = vld [vmem:[%s1 + $0x290] sm:$0xff]
      %v2062 = vld [vmem:[%s1 + $0x298] sm:$0xff]
      %v2063 = vld [vmem:[%s1 + $0x2a0] sm:$0xff]
      %v2064 = vld [vmem:[%s1 + $0x2a8] sm:$0xff]
      %v2065 = vld [vmem:[%s1 + $0x2b0] sm:$0xff]
      %v2066 = vld [vmem:[%s1 + $0x2b8] sm:$0xff]
      %v2067 = vld [vmem:[%s1 + $0x2c0] sm:$0xff]
      %v2068 = vld [vmem:[%s1 + $0x2c8] sm:$0xff]
      %v2069 = vld [vmem:[%s1 + $0x2d0] sm:$0xff]
      %v2070 = vld [vmem:[%s1 + $0x2d8] sm:$0xff]
      %v2071 = vld [vmem:[%s1 + $0x2e0] sm:$0xff]
      %v2072 = vld [vmem:[%s1 + $0x2e8] sm:$0xff]
      %v2073 = vld [vmem:[%s1 + $0x2f0] sm:$0xff]
      %v2074 = vld [vmem:[%s1 + $0x2f8] sm:$0xff]
      %2075 = vmatprep.subr.mxu0 0.0
      %2076 = vmatpush1.msra.mxu0 %v2074
      %2077 = vmatprep.subr.mxu0 0.0
      %2078 = vmatpush1.msra.mxu0 %v2073
      %2079 = vmatprep.subr.mxu0 0.0
      %2080 = vmatpush1.msra.mxu0 %v2072
      %2081 = vmatprep.subr.mxu0 0.0
      %2082 = vmatpush1.msra.mxu0 %v2071
      %2083 = vmatprep.subr.mxu0 0.0
      %2084 = vmatpush1.msra.mxu0 %v2070
      %2085 = vmatprep.subr.mxu0 0.0
      %2086 = vmatpush1.msra.mxu0 %v2069
      %2087 = vmatprep.subr.mxu0 0.0
      %2088 = vmatpush1.msra.mxu0 %v2068
      %2089 = vmatprep.subr.mxu0 0.0
      %2090 = vmatpush1.msra.mxu0 %v2067
      %2091 = vmatprep.subr.mxu0 0.0
      %2092 = vmatpush1.msra.mxu0 %v2066
      %2093 = vmatprep.subr.mxu0 0.0
      %2094 = vmatpush1.msra.mxu0 %v2065
      %2095 = vmatprep.subr.mxu0 0.0
      %2096 = vmatpush1.msra.mxu0 %v2064
      %2097 = vmatprep.subr.mxu0 0.0
      %2098 = vmatpush1.msra.mxu0 %v2063
      %2099 = vmatprep.subr.mxu0 0.0
      %2100 = vmatpush1.msra.mxu0 %v2062
      %2101 = vmatprep.subr.mxu0 0.0
      %2102 = vmatpush1.msra.mxu0 %v2061
      %2103 = vmatprep.subr.mxu0 0.0
      %2104 = vmatpush1.msra.mxu0 %v2060
      %2105 = vmatprep.subr.mxu0 0.0
      %2106 = vmatpush1.msra.mxu0 %v2059
      %2107 = vmatprep.subr.mxu0 0.0
      %2108 = vmatpush2.msra.mxu0 0.0
      %2109 = vmatprep.subr.mxu0 0.0
      %2110 = vmatpush2.msra.mxu0 0.0
      %2111 = vmatprep.subr.mxu0 0.0
      %2112 = vmatpush2.msra.mxu0 0.0
      %2113 = vmatprep.subr.mxu0 0.0
      %2114 = vmatpush2.msra.mxu0 0.0
      %2115 = vmatprep.subr.mxu0 0.0
      %2116 = vmatpush2.msra.mxu0 0.0
      %2117 = vmatprep.subr.mxu0 0.0
      %2118 = vmatpush2.msra.mxu0 0.0
      %2119 = vmatprep.subr.mxu0 0.0
      %2120 = vmatpush2.msra.mxu0 0.0
      %2121 = vmatprep.subr.mxu0 0.0
      %2122 = vmatpush2.msra.mxu0 0.0
      %2123 = vmatprep.subr.mxu0 0.0
      %2124 = vmatpush2.msra.mxu0 0.0
      %2125 = vmatprep.subr.mxu0 0.0
      %2126 = vmatpush2.msra.mxu0 0.0
      %2127 = vmatprep.subr.mxu0 0.0
      %2128 = vmatpush2.msra.mxu0 0.0
      %2129 = vmatprep.subr.mxu0 0.0
      %2130 = vmatpush2.msra.mxu0 0.0
      %2131 = vmatprep.subr.mxu0 0.0
      %2132 = vmatpush2.msra.mxu0 0.0
      %2133 = vmatprep.subr.mxu0 0.0
      %2134 = vmatpush2.msra.mxu0 0.0
      %2135 = vmatprep.subr.mxu0 0.0
      %2136 = vmatpush2.msra.mxu0 0.0
      %2137 = vmatprep.subr.mxu0 0.0
      %2138 = vmatpush2.msra.mxu0 0.0
      %2139 = vmatprep.mubr.f32.mxu0 0.0
      %2140 = vmatmul.mubr.f32.gmra.mxu0 %v1032
      %v2141 = vpop.f32.mrf.mxu0
      %v2142 = vadd.f32 0.0, %v2141
      %v2143 = vpop.f32.mrf.mxu0
      %2144 = vmatprep.mubr.f32.mxu0 0.0
      %2145 = vmatmul.mubr.f32.gmra.mxu0 %v1034
      %v2146 = vpop.f32.mrf.mxu0
      %v2147 = vadd.f32 0.0, %v2146
      %v2148 = vpop.f32.mrf.mxu0
      %2149 = vmatprep.mubr.f32.mxu0 0.0
      %2150 = vmatmul.mubr.f32.gmra.mxu0 %v1037
      %v2151 = vpop.f32.mrf.mxu0
      %v2152 = vadd.f32 0.0, %v2151
      %v2153 = vpop.f32.mrf.mxu0
      %2154 = vmatprep.mubr.f32.mxu0 0.0
      %2155 = vmatmul.mubr.f32.gmra.mxu0 %v1039
      %v2156 = vpop.f32.mrf.mxu0
      %v2157 = vadd.f32 0.0, %v2156
      %v2158 = vpop.f32.mrf.mxu0
      %2159 = vmatprep.mubr.f32.mxu0 0.0
      %2160 = vmatmul.mubr.f32.gmra.mxu0 %v1042
      %v2161 = vpop.f32.mrf.mxu0
      %v2162 = vadd.f32 0.0, %v2161
      %v2163 = vpop.f32.mrf.mxu0
      %2164 = vmatprep.mubr.f32.mxu0 0.0
      %2165 = vmatmul.mubr.f32.gmra.mxu0 %v1044
      %v2166 = vpop.f32.mrf.mxu0
      %v2167 = vadd.f32 0.0, %v2166
      %v2168 = vpop.f32.mrf.mxu0
      %2169 = vmatprep.mubr.f32.mxu0 0.0
      %2170 = vmatmul.mubr.f32.gmra.mxu0 %v1047
      %v2171 = vpop.f32.mrf.mxu0
      %v2172 = vadd.f32 0.0, %v2171
      %v2173 = vpop.f32.mrf.mxu0
      %2174 = vmatprep.mubr.f32.mxu0 0.0
      %2175 = vmatmul.mubr.f32.gmra.mxu0 %v1049
      %v2176 = vpop.f32.mrf.mxu0
      %v2177 = vadd.f32 0.0, %v2176
      %v2178 = vpop.f32.mrf.mxu0
      %2179 = vmatprep.mubr.f32.mxu0 0.0
      %2180 = vmatmul.mubr.f32.gmra.mxu0 %v1052
      %v2181 = vpop.f32.mrf.mxu0
      %v2182 = vadd.f32 0.0, %v2181
      %v2183 = vpop.f32.mrf.mxu0
      %2184 = vmatprep.mubr.f32.mxu0 0.0
      %2185 = vmatmul.mubr.f32.gmra.mxu0 %v1054
      %v2186 = vpop.f32.mrf.mxu0
      %v2187 = vadd.f32 0.0, %v2186
      %v2188 = vpop.f32.mrf.mxu0
      %2189 = vmatprep.mubr.f32.mxu0 0.0
      %2190 = vmatmul.mubr.f32.gmra.mxu0 %v1057
      %v2191 = vpop.f32.mrf.mxu0
      %v2192 = vadd.f32 0.0, %v2191
      %v2193 = vpop.f32.mrf.mxu0
      %2194 = vmatprep.mubr.f32.mxu0 0.0
      %2195 = vmatmul.mubr.f32.gmra.mxu0 %v1059
      %v2196 = vpop.f32.mrf.mxu0
      %v2197 = vadd.f32 0.0, %v2196
      %v2198 = vpop.f32.mrf.mxu0
      %2199 = vmatprep.mubr.f32.mxu0 0.0
      %2200 = vmatmul.mubr.f32.gmra.mxu0 %v1062
      %v2201 = vpop.f32.mrf.mxu0
      %v2202 = vadd.f32 0.0, %v2201
      %v2203 = vpop.f32.mrf.mxu0
      %2204 = vmatprep.mubr.f32.mxu0 0.0
      %2205 = vmatmul.mubr.f32.gmra.mxu0 %v1064
      %v2206 = vpop.f32.mrf.mxu0
      %v2207 = vadd.f32 0.0, %v2206
      %v2208 = vpop.f32.mrf.mxu0
      %2209 = vmatprep.mubr.f32.mxu0 0.0
      %2210 = vmatmul.mubr.f32.gmra.mxu0 %v1067
      %v2211 = vpop.f32.mrf.mxu0
      %v2212 = vadd.f32 0.0, %v2211
      %v2213 = vpop.f32.mrf.mxu0
      %2214 = vmatprep.mubr.f32.mxu0 0.0
      %2215 = vmatmul.mubr.f32.gmra.mxu0 %v1069
      %v2216 = vpop.f32.mrf.mxu0
      %v2217 = vadd.f32 0.0, %v2216
      %v2218 = vpop.f32.mrf.mxu0
      %2219 = vmatprep.mubr.f32.mxu0 0.0
      %2220 = vmatmul.mubr.f32.gmra.mxu0 %v1072
      %v2221 = vpop.f32.mrf.mxu0
      %v2222 = vadd.f32 0.0, %v2221
      %v2223 = vpop.f32.mrf.mxu0
      %2224 = vmatprep.mubr.f32.mxu0 0.0
      %2225 = vmatmul.mubr.f32.gmra.mxu0 %v1074
      %v2226 = vpop.f32.mrf.mxu0
      %v2227 = vadd.f32 0.0, %v2226
      %v2228 = vpop.f32.mrf.mxu0
      %2229 = vmatprep.mubr.f32.mxu0 0.0
      %2230 = vmatmul.mubr.f32.gmra.mxu0 %v1077
      %v2231 = vpop.f32.mrf.mxu0
      %v2232 = vadd.f32 0.0, %v2231
      %v2233 = vpop.f32.mrf.mxu0
      %2234 = vmatprep.mubr.f32.mxu0 0.0
      %2235 = vmatmul.mubr.f32.gmra.mxu0 %v1079
      %v2236 = vpop.f32.mrf.mxu0
      %v2237 = vadd.f32 0.0, %v2236
      %v2238 = vpop.f32.mrf.mxu0
      %2239 = vmatprep.mubr.f32.mxu0 0.0
      %2240 = vmatmul.mubr.f32.gmra.mxu0 %v1082
      %v2241 = vpop.f32.mrf.mxu0
      %v2242 = vadd.f32 0.0, %v2241
      %v2243 = vpop.f32.mrf.mxu0
      %2244 = vmatprep.mubr.f32.mxu0 0.0
      %2245 = vmatmul.mubr.f32.gmra.mxu0 %v1084
      %v2246 = vpop.f32.mrf.mxu0
      %v2247 = vadd.f32 0.0, %v2246
      %v2248 = vpop.f32.mrf.mxu0
      %2249 = vmatprep.mubr.f32.mxu0 0.0
      %2250 = vmatmul.mubr.f32.gmra.mxu0 %v1087
      %v2251 = vpop.f32.mrf.mxu0
      %v2252 = vadd.f32 0.0, %v2251
      %v2253 = vpop.f32.mrf.mxu0
      %2254 = vmatprep.mubr.f32.mxu0 0.0
      %2255 = vmatmul.mubr.f32.gmra.mxu0 %v1089
      %v2256 = vpop.f32.mrf.mxu0
      %v2257 = vadd.f32 0.0, %v2256
      %v2258 = vpop.f32.mrf.mxu0
      %2259 = vmatprep.mubr.f32.mxu0 0.0
      %2260 = vmatmul.mubr.f32.gmra.mxu0 %v1092
      %v2261 = vpop.f32.mrf.mxu0
      %v2262 = vadd.f32 0.0, %v2261
      %v2263 = vpop.f32.mrf.mxu0
      %2264 = vmatprep.mubr.f32.mxu0 0.0
      %2265 = vmatmul.mubr.f32.gmra.mxu0 %v1094
      %v2266 = vpop.f32.mrf.mxu0
      %v2267 = vadd.f32 0.0, %v2266
      %v2268 = vpop.f32.mrf.mxu0
      %2269 = vmatprep.mubr.f32.mxu0 0.0
      %2270 = vmatmul.mubr.f32.gmra.mxu0 %v1097
      %v2271 = vpop.f32.mrf.mxu0
      %v2272 = vadd.f32 0.0, %v2271
      %v2273 = vpop.f32.mrf.mxu0
      %2274 = vmatprep.mubr.f32.mxu0 0.0
      %2275 = vmatmul.mubr.f32.gmra.mxu0 %v1099
      %v2276 = vpop.f32.mrf.mxu0
      %v2277 = vadd.f32 0.0, %v2276
      %v2278 = vpop.f32.mrf.mxu0
      %2279 = vmatprep.mubr.f32.mxu0 0.0
      %2280 = vmatmul.mubr.f32.gmra.mxu0 %v1102
      %v2281 = vpop.f32.mrf.mxu0
      %v2282 = vadd.f32 0.0, %v2281
      %v2283 = vpop.f32.mrf.mxu0
      %2284 = vmatprep.mubr.f32.mxu0 0.0
      %2285 = vmatmul.mubr.f32.gmra.mxu0 %v1104
      %v2286 = vpop.f32.mrf.mxu0
      %v2287 = vadd.f32 0.0, %v2286
      %v2288 = vpop.f32.mrf.mxu0
      %2289 = vmatprep.mubr.f32.mxu0 0.0
      %2290 = vmatmul.mubr.f32.gmra.mxu0 %v1107
      %v2291 = vpop.f32.mrf.mxu0
      %v2292 = vadd.f32 0.0, %v2291
      %v2293 = vpop.f32.mrf.mxu0
      %2294 = vmatprep.mubr.f32.mxu0 0.0
      %2295 = vmatmul.mubr.f32.gmra.mxu0 %v1109
      %v2296 = vpop.f32.mrf.mxu0
      %v2297 = vadd.f32 0.0, %v2296
      %v2298 = vpop.f32.mrf.mxu0
      %2299 = vmatprep.mubr.f32.mxu0 0.0
      %2300 = vmatmul.mubr.f32.gmra.mxu0 %v1112
      %v2301 = vpop.f32.mrf.mxu0
      %v2302 = vadd.f32 0.0, %v2301
      %v2303 = vpop.f32.mrf.mxu0
      %2304 = vmatprep.mubr.f32.mxu0 0.0
      %2305 = vmatmul.mubr.f32.gmra.mxu0 %v1114
      %v2306 = vpop.f32.mrf.mxu0
      %v2307 = vadd.f32 0.0, %v2306
      %v2308 = vpop.f32.mrf.mxu0
      %2309 = vmatprep.mubr.f32.mxu0 0.0
      %2310 = vmatmul.mubr.f32.gmra.mxu0 %v2054
      %v2311 = vpop.f32.mrf.mxu0
      %v2312 = vadd.f32 0.0, %v2311
      %v2313 = vpop.f32.mrf.mxu0
      %2314 = vmatprep.mubr.f32.mxu0 0.0
      %2315 = vmatmul.mubr.f32.gmra.mxu0 %v2056
      %v2316 = vpop.f32.mrf.mxu0
      %v2317 = vadd.f32 0.0, %v2316
      %v2318 = vpop.f32.mrf.mxu0
      %2319 = vdwg.mxu0
      %v2320 = vadd.f32 %v2016, %v2142
      %v2321 = vadd.f32 %v2017, %v2147
      %v2322 = vadd.f32 %v2018, %v2152
      %v2323 = vadd.f32 %v2019, %v2157
      %v2324 = vadd.f32 %v2020, %v2162
      %v2325 = vadd.f32 %v2021, %v2167
      %v2326 = vadd.f32 %v2022, %v2172
      %v2327 = vadd.f32 %v2023, %v2177
      %v2328 = vadd.f32 %v2024, %v2182
      %v2329 = vadd.f32 %v2025, %v2187
      %v2330 = vadd.f32 %v2026, %v2192
      %v2331 = vadd.f32 %v2027, %v2197
      %v2332 = vadd.f32 %v2028, %v2202
      %v2333 = vadd.f32 %v2029, %v2207
      %v2334 = vadd.f32 %v2030, %v2212
      %v2335 = vadd.f32 %v2031, %v2217
      %v2336 = vadd.f32 %v2032, %v2222
      %v2337 = vadd.f32 %v2033, %v2227
      %v2338 = vadd.f32 %v2034, %v2232
      %v2339 = vadd.f32 %v2035, %v2237
      %v2340 = vadd.f32 %v2036, %v2242
      %v2341 = vadd.f32 %v2037, %v2247
      %v2342 = vadd.f32 %v2038, %v2252
      %v2343 = vadd.f32 %v2039, %v2257
      %v2344 = vadd.f32 %v2040, %v2262
      %v2345 = vadd.f32 %v2041, %v2267
      %v2346 = vadd.f32 %v2042, %v2272
      %v2347 = vadd.f32 %v2043, %v2277
      %v2348 = vadd.f32 %v2044, %v2282
      %v2349 = vadd.f32 %v2045, %v2287
      %v2350 = vadd.f32 %v2046, %v2292
      %v2351 = vadd.f32 %v2047, %v2297
      %v2352 = vadd.f32 %v2048, %v2302
      %v2353 = vadd.f32 %v2049, %v2307
      %v2354 = vadd.f32 %v2050, %v2312
      %v2355 = vadd.f32 %v2051, %v2317
      %v2356 = vld [vmem:[%s1 + $0x300] sm:$0xff]
      %v2357 = vld [vmem:[%s1 + $0x308] sm:$0xff]
      %v2358 = vld [vmem:[%s1 + $0x310] sm:$0xff]
      %v2359 = vld [vmem:[%s1 + $0x318] sm:$0xff]
      %v2360 = vld [vmem:[%s1 + $0x320] sm:$0xff]
      %v2361 = vld [vmem:[%s1 + $0x328] sm:$0xff]
      %v2362 = vld [vmem:[%s1 + $0x330] sm:$0xff]
      %v2363 = vld [vmem:[%s1 + $0x338] sm:$0xff]
      %v2364 = vld [vmem:[%s1 + $0x340] sm:$0xff]
      %v2365 = vld [vmem:[%s1 + $0x348] sm:$0xff]
      %v2366 = vld [vmem:[%s1 + $0x350] sm:$0xff]
      %v2367 = vld [vmem:[%s1 + $0x358] sm:$0xff]
      %v2368 = vld [vmem:[%s1 + $0x360] sm:$0xff]
      %v2369 = vld [vmem:[%s1 + $0x368] sm:$0xff]
      %v2370 = vld [vmem:[%s1 + $0x370] sm:$0xff]
      %v2371 = vld [vmem:[%s1 + $0x378] sm:$0xff]
      %2372 = vmatprep.subr.mxu0 0.0
      %2373 = vmatpush1.msra.mxu0 %v2371
      %2374 = vmatprep.subr.mxu0 0.0
      %2375 = vmatpush1.msra.mxu0 %v2370
      %2376 = vmatprep.subr.mxu0 0.0
      %2377 = vmatpush1.msra.mxu0 %v2369
      %2378 = vmatprep.subr.mxu0 0.0
      %2379 = vmatpush1.msra.mxu0 %v2368
      %2380 = vmatprep.subr.mxu0 0.0
      %2381 = vmatpush1.msra.mxu0 %v2367
      %2382 = vmatprep.subr.mxu0 0.0
      %2383 = vmatpush1.msra.mxu0 %v2366
      %2384 = vmatprep.subr.mxu0 0.0
      %2385 = vmatpush1.msra.mxu0 %v2365
      %2386 = vmatprep.subr.mxu0 0.0
      %2387 = vmatpush1.msra.mxu0 %v2364
      %2388 = vmatprep.subr.mxu0 0.0
      %2389 = vmatpush1.msra.mxu0 %v2363
      %2390 = vmatprep.subr.mxu0 0.0
      %2391 = vmatpush1.msra.mxu0 %v2362
      %2392 = vmatprep.subr.mxu0 0.0
      %2393 = vmatpush1.msra.mxu0 %v2361
      %2394 = vmatprep.subr.mxu0 0.0
      %2395 = vmatpush1.msra.mxu0 %v2360
      %2396 = vmatprep.subr.mxu0 0.0
      %2397 = vmatpush1.msra.mxu0 %v2359
      %2398 = vmatprep.subr.mxu0 0.0
      %2399 = vmatpush1.msra.mxu0 %v2358
      %2400 = vmatprep.subr.mxu0 0.0
      %2401 = vmatpush1.msra.mxu0 %v2357
      %2402 = vmatprep.subr.mxu0 0.0
      %2403 = vmatpush1.msra.mxu0 %v2356
      %2404 = vmatprep.subr.mxu0 0.0
      %2405 = vmatpush2.msra.mxu0 0.0
      %2406 = vmatprep.subr.mxu0 0.0
      %2407 = vmatpush2.msra.mxu0 0.0
      %2408 = vmatprep.subr.mxu0 0.0
      %2409 = vmatpush2.msra.mxu0 0.0
      %2410 = vmatprep.subr.mxu0 0.0
      %2411 = vmatpush2.msra.mxu0 0.0
      %2412 = vmatprep.subr.mxu0 0.0
      %2413 = vmatpush2.msra.mxu0 0.0
      %2414 = vmatprep.subr.mxu0 0.0
      %2415 = vmatpush2.msra.mxu0 0.0
      %2416 = vmatprep.subr.mxu0 0.0
      %2417 = vmatpush2.msra.mxu0 0.0
      %2418 = vmatprep.subr.mxu0 0.0
      %2419 = vmatpush2.msra.mxu0 0.0
      %2420 = vmatprep.subr.mxu0 0.0
      %2421 = vmatpush2.msra.mxu0 0.0
      %2422 = vmatprep.subr.mxu0 0.0
      %2423 = vmatpush2.msra.mxu0 0.0
      %2424 = vmatprep.subr.mxu0 0.0
      %2425 = vmatpush2.msra.mxu0 0.0
      %2426 = vmatprep.subr.mxu0 0.0
      %2427 = vmatpush2.msra.mxu0 0.0
      %2428 = vmatprep.subr.mxu0 0.0
      %2429 = vmatpush2.msra.mxu0 0.0
      %2430 = vmatprep.subr.mxu0 0.0
      %2431 = vmatpush2.msra.mxu0 0.0
      %2432 = vmatprep.subr.mxu0 0.0
      %2433 = vmatpush2.msra.mxu0 0.0
      %2434 = vmatprep.subr.mxu0 0.0
      %2435 = vmatpush2.msra.mxu0 0.0
      %2436 = vmatprep.mubr.f32.mxu0 0.0
      %2437 = vmatmul.mubr.f32.gmra.mxu0 %v267
      %v2438 = vpop.f32.mrf.mxu0
      %v2439 = vadd.f32 0.0, %v2438
      %v2440 = vpop.f32.mrf.mxu0
      %2441 = vmatprep.mubr.f32.mxu0 0.0
      %2442 = vmatmul.mubr.f32.gmra.mxu0 %v268
      %v2443 = vpop.f32.mrf.mxu0
      %v2444 = vadd.f32 0.0, %v2443
      %v2445 = vpop.f32.mrf.mxu0
      %2446 = vmatprep.mubr.f32.mxu0 0.0
      %2447 = vmatmul.mubr.f32.gmra.mxu0 %v270
      %v2448 = vpop.f32.mrf.mxu0
      %v2449 = vadd.f32 0.0, %v2448
      %v2450 = vpop.f32.mrf.mxu0
      %2451 = vmatprep.mubr.f32.mxu0 0.0
      %2452 = vmatmul.mubr.f32.gmra.mxu0 %v271
      %v2453 = vpop.f32.mrf.mxu0
      %v2454 = vadd.f32 0.0, %v2453
      %v2455 = vpop.f32.mrf.mxu0
      %2456 = vmatprep.mubr.f32.mxu0 0.0
      %2457 = vmatmul.mubr.f32.gmra.mxu0 %v273
      %v2458 = vpop.f32.mrf.mxu0
      %v2459 = vadd.f32 0.0, %v2458
      %v2460 = vpop.f32.mrf.mxu0
      %2461 = vmatprep.mubr.f32.mxu0 0.0
      %2462 = vmatmul.mubr.f32.gmra.mxu0 %v274
      %v2463 = vpop.f32.mrf.mxu0
      %v2464 = vadd.f32 0.0, %v2463
      %v2465 = vpop.f32.mrf.mxu0
      %2466 = vmatprep.mubr.f32.mxu0 0.0
      %2467 = vmatmul.mubr.f32.gmra.mxu0 %v276
      %v2468 = vpop.f32.mrf.mxu0
      %v2469 = vadd.f32 0.0, %v2468
      %v2470 = vpop.f32.mrf.mxu0
      %2471 = vmatprep.mubr.f32.mxu0 0.0
      %2472 = vmatmul.mubr.f32.gmra.mxu0 %v277
      %v2473 = vpop.f32.mrf.mxu0
      %v2474 = vadd.f32 0.0, %v2473
      %v2475 = vpop.f32.mrf.mxu0
      %2476 = vmatprep.mubr.f32.mxu0 0.0
      %2477 = vmatmul.mubr.f32.gmra.mxu0 %v279
      %v2478 = vpop.f32.mrf.mxu0
      %v2479 = vadd.f32 0.0, %v2478
      %v2480 = vpop.f32.mrf.mxu0
      %2481 = vmatprep.mubr.f32.mxu0 0.0
      %2482 = vmatmul.mubr.f32.gmra.mxu0 %v280
      %v2483 = vpop.f32.mrf.mxu0
      %v2484 = vadd.f32 0.0, %v2483
      %v2485 = vpop.f32.mrf.mxu0
      %2486 = vmatprep.mubr.f32.mxu0 0.0
      %2487 = vmatmul.mubr.f32.gmra.mxu0 %v282
      %v2488 = vpop.f32.mrf.mxu0
      %v2489 = vadd.f32 0.0, %v2488
      %v2490 = vpop.f32.mrf.mxu0
      %2491 = vmatprep.mubr.f32.mxu0 0.0
      %2492 = vmatmul.mubr.f32.gmra.mxu0 %v283
      %v2493 = vpop.f32.mrf.mxu0
      %v2494 = vadd.f32 0.0, %v2493
      %v2495 = vpop.f32.mrf.mxu0
      %2496 = vmatprep.mubr.f32.mxu0 0.0
      %2497 = vmatmul.mubr.f32.gmra.mxu0 %v285
      %v2498 = vpop.f32.mrf.mxu0
      %v2499 = vadd.f32 0.0, %v2498
      %v2500 = vpop.f32.mrf.mxu0
      %2501 = vmatprep.mubr.f32.mxu0 0.0
      %2502 = vmatmul.mubr.f32.gmra.mxu0 %v286
      %v2503 = vpop.f32.mrf.mxu0
      %v2504 = vadd.f32 0.0, %v2503
      %v2505 = vpop.f32.mrf.mxu0
      %2506 = vmatprep.mubr.f32.mxu0 0.0
      %2507 = vmatmul.mubr.f32.gmra.mxu0 %v288
      %v2508 = vpop.f32.mrf.mxu0
      %v2509 = vadd.f32 0.0, %v2508
      %v2510 = vpop.f32.mrf.mxu0
      %2511 = vmatprep.mubr.f32.mxu0 0.0
      %2512 = vmatmul.mubr.f32.gmra.mxu0 %v289
      %v2513 = vpop.f32.mrf.mxu0
      %v2514 = vadd.f32 0.0, %v2513
      %v2515 = vpop.f32.mrf.mxu0
      %2516 = vmatprep.mubr.f32.mxu0 0.0
      %2517 = vmatmul.mubr.f32.gmra.mxu0 %v291
      %v2518 = vpop.f32.mrf.mxu0
      %v2519 = vadd.f32 0.0, %v2518
      %v2520 = vpop.f32.mrf.mxu0
      %2521 = vmatprep.mubr.f32.mxu0 0.0
      %2522 = vmatmul.mubr.f32.gmra.mxu0 %v292
      %v2523 = vpop.f32.mrf.mxu0
      %v2524 = vadd.f32 0.0, %v2523
      %v2525 = vpop.f32.mrf.mxu0
      %2526 = vmatprep.mubr.f32.mxu0 0.0
      %2527 = vmatmul.mubr.f32.gmra.mxu0 %v294
      %v2528 = vpop.f32.mrf.mxu0
      %v2529 = vadd.f32 0.0, %v2528
      %v2530 = vpop.f32.mrf.mxu0
      %2531 = vmatprep.mubr.f32.mxu0 0.0
      %2532 = vmatmul.mubr.f32.gmra.mxu0 %v295
      %v2533 = vpop.f32.mrf.mxu0
      %v2534 = vadd.f32 0.0, %v2533
      %v2535 = vpop.f32.mrf.mxu0
      %2536 = vmatprep.mubr.f32.mxu0 0.0
      %2537 = vmatmul.mubr.f32.gmra.mxu0 %v297
      %v2538 = vpop.f32.mrf.mxu0
      %v2539 = vadd.f32 0.0, %v2538
      %v2540 = vpop.f32.mrf.mxu0
      %2541 = vmatprep.mubr.f32.mxu0 0.0
      %2542 = vmatmul.mubr.f32.gmra.mxu0 %v298
      %v2543 = vpop.f32.mrf.mxu0
      %v2544 = vadd.f32 0.0, %v2543
      %v2545 = vpop.f32.mrf.mxu0
      %2546 = vmatprep.mubr.f32.mxu0 0.0
      %2547 = vmatmul.mubr.f32.gmra.mxu0 %v300
      %v2548 = vpop.f32.mrf.mxu0
      %v2549 = vadd.f32 0.0, %v2548
      %v2550 = vpop.f32.mrf.mxu0
      %2551 = vmatprep.mubr.f32.mxu0 0.0
      %2552 = vmatmul.mubr.f32.gmra.mxu0 %v301
      %v2553 = vpop.f32.mrf.mxu0
      %v2554 = vadd.f32 0.0, %v2553
      %v2555 = vpop.f32.mrf.mxu0
      %2556 = vmatprep.mubr.f32.mxu0 0.0
      %2557 = vmatmul.mubr.f32.gmra.mxu0 %v303
      %v2558 = vpop.f32.mrf.mxu0
      %v2559 = vadd.f32 0.0, %v2558
      %v2560 = vpop.f32.mrf.mxu0
      %2561 = vmatprep.mubr.f32.mxu0 0.0
      %2562 = vmatmul.mubr.f32.gmra.mxu0 %v304
      %v2563 = vpop.f32.mrf.mxu0
      %v2564 = vadd.f32 0.0, %v2563
      %v2565 = vpop.f32.mrf.mxu0
      %2566 = vmatprep.mubr.f32.mxu0 0.0
      %2567 = vmatmul.mubr.f32.gmra.mxu0 %v306
      %v2568 = vpop.f32.mrf.mxu0
      %v2569 = vadd.f32 0.0, %v2568
      %v2570 = vpop.f32.mrf.mxu0
      %2571 = vmatprep.mubr.f32.mxu0 0.0
      %2572 = vmatmul.mubr.f32.gmra.mxu0 %v307
      %v2573 = vpop.f32.mrf.mxu0
      %v2574 = vadd.f32 0.0, %v2573
      %v2575 = vpop.f32.mrf.mxu0
      %2576 = vmatprep.mubr.f32.mxu0 0.0
      %2577 = vmatmul.mubr.f32.gmra.mxu0 %v309
      %v2578 = vpop.f32.mrf.mxu0
      %v2579 = vadd.f32 0.0, %v2578
      %v2580 = vpop.f32.mrf.mxu0
      %2581 = vmatprep.mubr.f32.mxu0 0.0
      %2582 = vmatmul.mubr.f32.gmra.mxu0 %v310
      %v2583 = vpop.f32.mrf.mxu0
      %v2584 = vadd.f32 0.0, %v2583
      %v2585 = vpop.f32.mrf.mxu0
      %2586 = vmatprep.mubr.f32.mxu0 0.0
      %2587 = vmatmul.mubr.f32.gmra.mxu0 %v312
      %v2588 = vpop.f32.mrf.mxu0
      %v2589 = vadd.f32 0.0, %v2588
      %v2590 = vpop.f32.mrf.mxu0
      %2591 = vmatprep.mubr.f32.mxu0 0.0
      %2592 = vmatmul.mubr.f32.gmra.mxu0 %v313
      %v2593 = vpop.f32.mrf.mxu0
      %v2594 = vadd.f32 0.0, %v2593
      %v2595 = vpop.f32.mrf.mxu0
      %2596 = vmatprep.mubr.f32.mxu0 0.0
      %2597 = vmatmul.mubr.f32.gmra.mxu0 %v315
      %v2598 = vpop.f32.mrf.mxu0
      %v2599 = vadd.f32 0.0, %v2598
      %v2600 = vpop.f32.mrf.mxu0
      %2601 = vmatprep.mubr.f32.mxu0 0.0
      %2602 = vmatmul.mubr.f32.gmra.mxu0 %v316
      %v2603 = vpop.f32.mrf.mxu0
      %v2604 = vadd.f32 0.0, %v2603
      %v2605 = vpop.f32.mrf.mxu0
      %2606 = vmatprep.mubr.f32.mxu0 0.0
      %2607 = vmatmul.mubr.f32.gmra.mxu0 %v318
      %v2608 = vpop.f32.mrf.mxu0
      %v2609 = vadd.f32 0.0, %v2608
      %v2610 = vpop.f32.mrf.mxu0
      %2611 = vmatprep.mubr.f32.mxu0 0.0
      %2612 = vmatmul.mubr.f32.gmra.mxu0 %v319
      %v2613 = vpop.f32.mrf.mxu0
      %v2614 = vadd.f32 0.0, %v2613
      %v2615 = vpop.f32.mrf.mxu0
      %2616 = vdwg.mxu0
      %v2617 = vadd.f32 %v2320, %v2439
      %v2618 = vadd.f32 %v2321, %v2444
      %v2619 = vadd.f32 %v2322, %v2449
      %v2620 = vadd.f32 %v2323, %v2454
      %v2621 = vadd.f32 %v2324, %v2459
      %v2622 = vadd.f32 %v2325, %v2464
      %v2623 = vadd.f32 %v2326, %v2469
      %v2624 = vadd.f32 %v2327, %v2474
      %v2625 = vadd.f32 %v2328, %v2479
      %v2626 = vadd.f32 %v2329, %v2484
      %v2627 = vadd.f32 %v2330, %v2489
      %v2628 = vadd.f32 %v2331, %v2494
      %v2629 = vadd.f32 %v2332, %v2499
      %v2630 = vadd.f32 %v2333, %v2504
      %v2631 = vadd.f32 %v2334, %v2509
      %v2632 = vadd.f32 %v2335, %v2514
      %v2633 = vadd.f32 %v2336, %v2519
      %v2634 = vadd.f32 %v2337, %v2524
      %v2635 = vadd.f32 %v2338, %v2529
      %v2636 = vadd.f32 %v2339, %v2534
      %v2637 = vadd.f32 %v2340, %v2539
      %v2638 = vadd.f32 %v2341, %v2544
      %v2639 = vadd.f32 %v2342, %v2549
      %v2640 = vadd.f32 %v2343, %v2554
      %v2641 = vadd.f32 %v2344, %v2559
      %v2642 = vadd.f32 %v2345, %v2564
      %v2643 = vadd.f32 %v2346, %v2569
      %v2644 = vadd.f32 %v2347, %v2574
      %v2645 = vadd.f32 %v2348, %v2579
      %v2646 = vadd.f32 %v2349, %v2584
      %v2647 = vadd.f32 %v2350, %v2589
      %v2648 = vadd.f32 %v2351, %v2594
      %v2649 = vadd.f32 %v2352, %v2599
      %v2650 = vadd.f32 %v2353, %v2604
      %v2651 = vadd.f32 %v2354, %v2609
      %v2652 = vadd.f32 %v2355, %v2614
      %v2656 = vrot.slane %v318, 1
      %v2657 = vrot.slane %v319, 1
      %v2658 = vsel %vm391, %v2656, %v2657
      %v2659 = vrot.slane %v320, 1
      %v2660 = vsel %vm391, %v2657, %v2659
      %v2663 = vld [vmem:[%s1 + $0x380] sm:$0xff]
      %v2664 = vld [vmem:[%s1 + $0x388] sm:$0xff]
      %v2665 = vld [vmem:[%s1 + $0x390] sm:$0xff]
      %v2666 = vld [vmem:[%s1 + $0x398] sm:$0xff]
      %v2667 = vld [vmem:[%s1 + $0x3a0] sm:$0xff]
      %v2668 = vld [vmem:[%s1 + $0x3a8] sm:$0xff]
      %v2669 = vld [vmem:[%s1 + $0x3b0] sm:$0xff]
      %v2670 = vld [vmem:[%s1 + $0x3b8] sm:$0xff]
      %v2671 = vld [vmem:[%s1 + $0x3c0] sm:$0xff]
      %v2672 = vld [vmem:[%s1 + $0x3c8] sm:$0xff]
      %v2673 = vld [vmem:[%s1 + $0x3d0] sm:$0xff]
      %v2674 = vld [vmem:[%s1 + $0x3d8] sm:$0xff]
      %v2675 = vld [vmem:[%s1 + $0x3e0] sm:$0xff]
      %v2676 = vld [vmem:[%s1 + $0x3e8] sm:$0xff]
      %v2677 = vld [vmem:[%s1 + $0x3f0] sm:$0xff]
      %v2678 = vld [vmem:[%s1 + $0x3f8] sm:$0xff]
      %2679 = vmatprep.subr.mxu0 0.0
      %2680 = vmatpush1.msra.mxu0 %v2678
      %2681 = vmatprep.subr.mxu0 0.0
      %2682 = vmatpush1.msra.mxu0 %v2677
      %2683 = vmatprep.subr.mxu0 0.0
      %2684 = vmatpush1.msra.mxu0 %v2676
      %2685 = vmatprep.subr.mxu0 0.0
      %2686 = vmatpush1.msra.mxu0 %v2675
      %2687 = vmatprep.subr.mxu0 0.0
      %2688 = vmatpush1.msra.mxu0 %v2674
      %2689 = vmatprep.subr.mxu0 0.0
      %2690 = vmatpush1.msra.mxu0 %v2673
      %2691 = vmatprep.subr.mxu0 0.0
      %2692 = vmatpush1.msra.mxu0 %v2672
      %2693 = vmatprep.subr.mxu0 0.0
      %2694 = vmatpush1.msra.mxu0 %v2671
      %2695 = vmatprep.subr.mxu0 0.0
      %2696 = vmatpush1.msra.mxu0 %v2670
      %2697 = vmatprep.subr.mxu0 0.0
      %2698 = vmatpush1.msra.mxu0 %v2669
      %2699 = vmatprep.subr.mxu0 0.0
      %2700 = vmatpush1.msra.mxu0 %v2668
      %2701 = vmatprep.subr.mxu0 0.0
      %2702 = vmatpush1.msra.mxu0 %v2667
      %2703 = vmatprep.subr.mxu0 0.0
      %2704 = vmatpush1.msra.mxu0 %v2666
      %2705 = vmatprep.subr.mxu0 0.0
      %2706 = vmatpush1.msra.mxu0 %v2665
      %2707 = vmatprep.subr.mxu0 0.0
      %2708 = vmatpush1.msra.mxu0 %v2664
      %2709 = vmatprep.subr.mxu0 0.0
      %2710 = vmatpush1.msra.mxu0 %v2663
      %2711 = vmatprep.subr.mxu0 0.0
      %2712 = vmatpush2.msra.mxu0 0.0
      %2713 = vmatprep.subr.mxu0 0.0
      %2714 = vmatpush2.msra.mxu0 0.0
      %2715 = vmatprep.subr.mxu0 0.0
      %2716 = vmatpush2.msra.mxu0 0.0
      %2717 = vmatprep.subr.mxu0 0.0
      %2718 = vmatpush2.msra.mxu0 0.0
      %2719 = vmatprep.subr.mxu0 0.0
      %2720 = vmatpush2.msra.mxu0 0.0
      %2721 = vmatprep.subr.mxu0 0.0
      %2722 = vmatpush2.msra.mxu0 0.0
      %2723 = vmatprep.subr.mxu0 0.0
      %2724 = vmatpush2.msra.mxu0 0.0
      %2725 = vmatprep.subr.mxu0 0.0
      %2726 = vmatpush2.msra.mxu0 0.0
      %2727 = vmatprep.subr.mxu0 0.0
      %2728 = vmatpush2.msra.mxu0 0.0
      %2729 = vmatprep.subr.mxu0 0.0
      %2730 = vmatpush2.msra.mxu0 0.0
      %2731 = vmatprep.subr.mxu0 0.0
      %2732 = vmatpush2.msra.mxu0 0.0
      %2733 = vmatprep.subr.mxu0 0.0
      %2734 = vmatpush2.msra.mxu0 0.0
      %2735 = vmatprep.subr.mxu0 0.0
      %2736 = vmatpush2.msra.mxu0 0.0
      %2737 = vmatprep.subr.mxu0 0.0
      %2738 = vmatpush2.msra.mxu0 0.0
      %2739 = vmatprep.subr.mxu0 0.0
      %2740 = vmatpush2.msra.mxu0 0.0
      %2741 = vmatprep.subr.mxu0 0.0
      %2742 = vmatpush2.msra.mxu0 0.0
      %2743 = vmatprep.mubr.f32.mxu0 0.0
      %2744 = vmatmul.mubr.f32.gmra.mxu0 %v404
      %v2745 = vpop.f32.mrf.mxu0
      %v2746 = vadd.f32 0.0, %v2745
      %v2747 = vpop.f32.mrf.mxu0
      %2748 = vmatprep.mubr.f32.mxu0 0.0
      %2749 = vmatmul.mubr.f32.gmra.mxu0 %v406
      %v2750 = vpop.f32.mrf.mxu0
      %v2751 = vadd.f32 0.0, %v2750
      %v2752 = vpop.f32.mrf.mxu0
      %2753 = vmatprep.mubr.f32.mxu0 0.0
      %2754 = vmatmul.mubr.f32.gmra.mxu0 %v409
      %v2755 = vpop.f32.mrf.mxu0
      %v2756 = vadd.f32 0.0, %v2755
      %v2757 = vpop.f32.mrf.mxu0
      %2758 = vmatprep.mubr.f32.mxu0 0.0
      %2759 = vmatmul.mubr.f32.gmra.mxu0 %v411
      %v2760 = vpop.f32.mrf.mxu0
      %v2761 = vadd.f32 0.0, %v2760
      %v2762 = vpop.f32.mrf.mxu0
      %2763 = vmatprep.mubr.f32.mxu0 0.0
      %2764 = vmatmul.mubr.f32.gmra.mxu0 %v414
      %v2765 = vpop.f32.mrf.mxu0
      %v2766 = vadd.f32 0.0, %v2765
      %v2767 = vpop.f32.mrf.mxu0
      %2768 = vmatprep.mubr.f32.mxu0 0.0
      %2769 = vmatmul.mubr.f32.gmra.mxu0 %v416
      %v2770 = vpop.f32.mrf.mxu0
      %v2771 = vadd.f32 0.0, %v2770
      %v2772 = vpop.f32.mrf.mxu0
      %2773 = vmatprep.mubr.f32.mxu0 0.0
      %2774 = vmatmul.mubr.f32.gmra.mxu0 %v419
      %v2775 = vpop.f32.mrf.mxu0
      %v2776 = vadd.f32 0.0, %v2775
      %v2777 = vpop.f32.mrf.mxu0
      %2778 = vmatprep.mubr.f32.mxu0 0.0
      %2779 = vmatmul.mubr.f32.gmra.mxu0 %v421
      %v2780 = vpop.f32.mrf.mxu0
      %v2781 = vadd.f32 0.0, %v2780
      %v2782 = vpop.f32.mrf.mxu0
      %2783 = vmatprep.mubr.f32.mxu0 0.0
      %2784 = vmatmul.mubr.f32.gmra.mxu0 %v424
      %v2785 = vpop.f32.mrf.mxu0
      %v2786 = vadd.f32 0.0, %v2785
      %v2787 = vpop.f32.mrf.mxu0
      %2788 = vmatprep.mubr.f32.mxu0 0.0
      %2789 = vmatmul.mubr.f32.gmra.mxu0 %v426
      %v2790 = vpop.f32.mrf.mxu0
      %v2791 = vadd.f32 0.0, %v2790
      %v2792 = vpop.f32.mrf.mxu0
      %2793 = vmatprep.mubr.f32.mxu0 0.0
      %2794 = vmatmul.mubr.f32.gmra.mxu0 %v429
      %v2795 = vpop.f32.mrf.mxu0
      %v2796 = vadd.f32 0.0, %v2795
      %v2797 = vpop.f32.mrf.mxu0
      %2798 = vmatprep.mubr.f32.mxu0 0.0
      %2799 = vmatmul.mubr.f32.gmra.mxu0 %v431
      %v2800 = vpop.f32.mrf.mxu0
      %v2801 = vadd.f32 0.0, %v2800
      %v2802 = vpop.f32.mrf.mxu0
      %2803 = vmatprep.mubr.f32.mxu0 0.0
      %2804 = vmatmul.mubr.f32.gmra.mxu0 %v434
      %v2805 = vpop.f32.mrf.mxu0
      %v2806 = vadd.f32 0.0, %v2805
      %v2807 = vpop.f32.mrf.mxu0
      %2808 = vmatprep.mubr.f32.mxu0 0.0
      %2809 = vmatmul.mubr.f32.gmra.mxu0 %v436
      %v2810 = vpop.f32.mrf.mxu0
      %v2811 = vadd.f32 0.0, %v2810
      %v2812 = vpop.f32.mrf.mxu0
      %2813 = vmatprep.mubr.f32.mxu0 0.0
      %2814 = vmatmul.mubr.f32.gmra.mxu0 %v439
      %v2815 = vpop.f32.mrf.mxu0
      %v2816 = vadd.f32 0.0, %v2815
      %v2817 = vpop.f32.mrf.mxu0
      %2818 = vmatprep.mubr.f32.mxu0 0.0
      %2819 = vmatmul.mubr.f32.gmra.mxu0 %v441
      %v2820 = vpop.f32.mrf.mxu0
      %v2821 = vadd.f32 0.0, %v2820
      %v2822 = vpop.f32.mrf.mxu0
      %2823 = vmatprep.mubr.f32.mxu0 0.0
      %2824 = vmatmul.mubr.f32.gmra.mxu0 %v444
      %v2825 = vpop.f32.mrf.mxu0
      %v2826 = vadd.f32 0.0, %v2825
      %v2827 = vpop.f32.mrf.mxu0
      %2828 = vmatprep.mubr.f32.mxu0 0.0
      %2829 = vmatmul.mubr.f32.gmra.mxu0 %v446
      %v2830 = vpop.f32.mrf.mxu0
      %v2831 = vadd.f32 0.0, %v2830
      %v2832 = vpop.f32.mrf.mxu0
      %2833 = vmatprep.mubr.f32.mxu0 0.0
      %2834 = vmatmul.mubr.f32.gmra.mxu0 %v449
      %v2835 = vpop.f32.mrf.mxu0
      %v2836 = vadd.f32 0.0, %v2835
      %v2837 = vpop.f32.mrf.mxu0
      %2838 = vmatprep.mubr.f32.mxu0 0.0
      %2839 = vmatmul.mubr.f32.gmra.mxu0 %v451
      %v2840 = vpop.f32.mrf.mxu0
      %v2841 = vadd.f32 0.0, %v2840
      %v2842 = vpop.f32.mrf.mxu0
      %2843 = vmatprep.mubr.f32.mxu0 0.0
      %2844 = vmatmul.mubr.f32.gmra.mxu0 %v454
      %v2845 = vpop.f32.mrf.mxu0
      %v2846 = vadd.f32 0.0, %v2845
      %v2847 = vpop.f32.mrf.mxu0
      %2848 = vmatprep.mubr.f32.mxu0 0.0
      %2849 = vmatmul.mubr.f32.gmra.mxu0 %v456
      %v2850 = vpop.f32.mrf.mxu0
      %v2851 = vadd.f32 0.0, %v2850
      %v2852 = vpop.f32.mrf.mxu0
      %2853 = vmatprep.mubr.f32.mxu0 0.0
      %2854 = vmatmul.mubr.f32.gmra.mxu0 %v459
      %v2855 = vpop.f32.mrf.mxu0
      %v2856 = vadd.f32 0.0, %v2855
      %v2857 = vpop.f32.mrf.mxu0
      %2858 = vmatprep.mubr.f32.mxu0 0.0
      %2859 = vmatmul.mubr.f32.gmra.mxu0 %v461
      %v2860 = vpop.f32.mrf.mxu0
      %v2861 = vadd.f32 0.0, %v2860
      %v2862 = vpop.f32.mrf.mxu0
      %2863 = vmatprep.mubr.f32.mxu0 0.0
      %2864 = vmatmul.mubr.f32.gmra.mxu0 %v464
      %v2865 = vpop.f32.mrf.mxu0
      %v2866 = vadd.f32 0.0, %v2865
      %v2867 = vpop.f32.mrf.mxu0
      %2868 = vmatprep.mubr.f32.mxu0 0.0
      %2869 = vmatmul.mubr.f32.gmra.mxu0 %v466
      %v2870 = vpop.f32.mrf.mxu0
      %v2871 = vadd.f32 0.0, %v2870
      %v2872 = vpop.f32.mrf.mxu0
      %2873 = vmatprep.mubr.f32.mxu0 0.0
      %2874 = vmatmul.mubr.f32.gmra.mxu0 %v469
      %v2875 = vpop.f32.mrf.mxu0
      %v2876 = vadd.f32 0.0, %v2875
      %v2877 = vpop.f32.mrf.mxu0
      %2878 = vmatprep.mubr.f32.mxu0 0.0
      %2879 = vmatmul.mubr.f32.gmra.mxu0 %v471
      %v2880 = vpop.f32.mrf.mxu0
      %v2881 = vadd.f32 0.0, %v2880
      %v2882 = vpop.f32.mrf.mxu0
      %2883 = vmatprep.mubr.f32.mxu0 0.0
      %2884 = vmatmul.mubr.f32.gmra.mxu0 %v474
      %v2885 = vpop.f32.mrf.mxu0
      %v2886 = vadd.f32 0.0, %v2885
      %v2887 = vpop.f32.mrf.mxu0
      %2888 = vmatprep.mubr.f32.mxu0 0.0
      %2889 = vmatmul.mubr.f32.gmra.mxu0 %v476
      %v2890 = vpop.f32.mrf.mxu0
      %v2891 = vadd.f32 0.0, %v2890
      %v2892 = vpop.f32.mrf.mxu0
      %2893 = vmatprep.mubr.f32.mxu0 0.0
      %2894 = vmatmul.mubr.f32.gmra.mxu0 %v479
      %v2895 = vpop.f32.mrf.mxu0
      %v2896 = vadd.f32 0.0, %v2895
      %v2897 = vpop.f32.mrf.mxu0
      %2898 = vmatprep.mubr.f32.mxu0 0.0
      %2899 = vmatmul.mubr.f32.gmra.mxu0 %v481
      %v2900 = vpop.f32.mrf.mxu0
      %v2901 = vadd.f32 0.0, %v2900
      %v2902 = vpop.f32.mrf.mxu0
      %2903 = vmatprep.mubr.f32.mxu0 0.0
      %2904 = vmatmul.mubr.f32.gmra.mxu0 %v1750
      %v2905 = vpop.f32.mrf.mxu0
      %v2906 = vadd.f32 0.0, %v2905
      %v2907 = vpop.f32.mrf.mxu0
      %2908 = vmatprep.mubr.f32.mxu0 0.0
      %2909 = vmatmul.mubr.f32.gmra.mxu0 %v1752
      %v2910 = vpop.f32.mrf.mxu0
      %v2911 = vadd.f32 0.0, %v2910
      %v2912 = vpop.f32.mrf.mxu0
      %2913 = vmatprep.mubr.f32.mxu0 0.0
      %2914 = vmatmul.mubr.f32.gmra.mxu0 %v2658
      %v2915 = vpop.f32.mrf.mxu0
      %v2916 = vadd.f32 0.0, %v2915
      %v2917 = vpop.f32.mrf.mxu0
      %2918 = vmatprep.mubr.f32.mxu0 0.0
      %2919 = vmatmul.mubr.f32.gmra.mxu0 %v2660
      %v2920 = vpop.f32.mrf.mxu0
      %v2921 = vadd.f32 0.0, %v2920
      %v2922 = vpop.f32.mrf.mxu0
      %2923 = vdwg.mxu0
      %v2924 = vadd.f32 %v2617, %v2746
      %v2925 = vadd.f32 %v2618, %v2751
      %v2926 = vadd.f32 %v2619, %v2756
      %v2927 = vadd.f32 %v2620, %v2761
      %v2928 = vadd.f32 %v2621, %v2766
      %v2929 = vadd.f32 %v2622, %v2771
      %v2930 = vadd.f32 %v2623, %v2776
      %v2931 = vadd.f32 %v2624, %v2781
      %v2932 = vadd.f32 %v2625, %v2786
      %v2933 = vadd.f32 %v2626, %v2791
      %v2934 = vadd.f32 %v2627, %v2796
      %v2935 = vadd.f32 %v2628, %v2801
      %v2936 = vadd.f32 %v2629, %v2806
      %v2937 = vadd.f32 %v2630, %v2811
      %v2938 = vadd.f32 %v2631, %v2816
      %v2939 = vadd.f32 %v2632, %v2821
      %v2940 = vadd.f32 %v2633, %v2826
      %v2941 = vadd.f32 %v2634, %v2831
      %v2942 = vadd.f32 %v2635, %v2836
      %v2943 = vadd.f32 %v2636, %v2841
      %v2944 = vadd.f32 %v2637, %v2846
      %v2945 = vadd.f32 %v2638, %v2851
      %v2946 = vadd.f32 %v2639, %v2856
      %v2947 = vadd.f32 %v2640, %v2861
      %v2948 = vadd.f32 %v2641, %v2866
      %v2949 = vadd.f32 %v2642, %v2871
      %v2950 = vadd.f32 %v2643, %v2876
      %v2951 = vadd.f32 %v2644, %v2881
      %v2952 = vadd.f32 %v2645, %v2886
      %v2953 = vadd.f32 %v2646, %v2891
      %v2954 = vadd.f32 %v2647, %v2896
      %v2955 = vadd.f32 %v2648, %v2901
      %v2956 = vadd.f32 %v2649, %v2906
      %v2957 = vadd.f32 %v2650, %v2911
      %v2958 = vadd.f32 %v2651, %v2916
      %v2959 = vadd.f32 %v2652, %v2921
      %v2960 = vrot.slane %v318, 2
      %v2961 = vrot.slane %v319, 2
      %v2962 = vsel %vm1024, %v2960, %v2961
      %v2963 = vrot.slane %v320, 2
      %v2964 = vsel %vm1024, %v2961, %v2963
      %v2967 = vld [vmem:[%s1 + $0x400] sm:$0xff]
      %v2968 = vld [vmem:[%s1 + $0x408] sm:$0xff]
      %v2969 = vld [vmem:[%s1 + $0x410] sm:$0xff]
      %v2970 = vld [vmem:[%s1 + $0x418] sm:$0xff]
      %v2971 = vld [vmem:[%s1 + $0x420] sm:$0xff]
      %v2972 = vld [vmem:[%s1 + $0x428] sm:$0xff]
      %v2973 = vld [vmem:[%s1 + $0x430] sm:$0xff]
      %v2974 = vld [vmem:[%s1 + $0x438] sm:$0xff]
      %v2975 = vld [vmem:[%s1 + $0x440] sm:$0xff]
      %v2976 = vld [vmem:[%s1 + $0x448] sm:$0xff]
      %v2977 = vld [vmem:[%s1 + $0x450] sm:$0xff]
      %v2978 = vld [vmem:[%s1 + $0x458] sm:$0xff]
      %v2979 = vld [vmem:[%s1 + $0x460] sm:$0xff]
      %v2980 = vld [vmem:[%s1 + $0x468] sm:$0xff]
      %v2981 = vld [vmem:[%s1 + $0x470] sm:$0xff]
      %v2982 = vld [vmem:[%s1 + $0x478] sm:$0xff]
      %2983 = vmatprep.subr.mxu0 0.0
      %2984 = vmatpush1.msra.mxu0 %v2982
      %2985 = vmatprep.subr.mxu0 0.0
      %2986 = vmatpush1.msra.mxu0 %v2981
      %2987 = vmatprep.subr.mxu0 0.0
      %2988 = vmatpush1.msra.mxu0 %v2980
      %2989 = vmatprep.subr.mxu0 0.0
      %2990 = vmatpush1.msra.mxu0 %v2979
      %2991 = vmatprep.subr.mxu0 0.0
      %2992 = vmatpush1.msra.mxu0 %v2978
      %2993 = vmatprep.subr.mxu0 0.0
      %2994 = vmatpush1.msra.mxu0 %v2977
      %2995 = vmatprep.subr.mxu0 0.0
      %2996 = vmatpush1.msra.mxu0 %v2976
      %2997 = vmatprep.subr.mxu0 0.0
      %2998 = vmatpush1.msra.mxu0 %v2975
      %2999 = vmatprep.subr.mxu0 0.0
      %3000 = vmatpush1.msra.mxu0 %v2974
      %3001 = vmatprep.subr.mxu0 0.0
      %3002 = vmatpush1.msra.mxu0 %v2973
      %3003 = vmatprep.subr.mxu0 0.0
      %3004 = vmatpush1.msra.mxu0 %v2972
      %3005 = vmatprep.subr.mxu0 0.0
      %3006 = vmatpush1.msra.mxu0 %v2971
      %3007 = vmatprep.subr.mxu0 0.0
      %3008 = vmatpush1.msra.mxu0 %v2970
      %3009 = vmatprep.subr.mxu0 0.0
      %3010 = vmatpush1.msra.mxu0 %v2969
      %3011 = vmatprep.subr.mxu0 0.0
      %3012 = vmatpush1.msra.mxu0 %v2968
      %3013 = vmatprep.subr.mxu0 0.0
      %3014 = vmatpush1.msra.mxu0 %v2967
      %3015 = vmatprep.subr.mxu0 0.0
      %3016 = vmatpush2.msra.mxu0 0.0
      %3017 = vmatprep.subr.mxu0 0.0
      %3018 = vmatpush2.msra.mxu0 0.0
      %3019 = vmatprep.subr.mxu0 0.0
      %3020 = vmatpush2.msra.mxu0 0.0
      %3021 = vmatprep.subr.mxu0 0.0
      %3022 = vmatpush2.msra.mxu0 0.0
      %3023 = vmatprep.subr.mxu0 0.0
      %3024 = vmatpush2.msra.mxu0 0.0
      %3025 = vmatprep.subr.mxu0 0.0
      %3026 = vmatpush2.msra.mxu0 0.0
      %3027 = vmatprep.subr.mxu0 0.0
      %3028 = vmatpush2.msra.mxu0 0.0
      %3029 = vmatprep.subr.mxu0 0.0
      %3030 = vmatpush2.msra.mxu0 0.0
      %3031 = vmatprep.subr.mxu0 0.0
      %3032 = vmatpush2.msra.mxu0 0.0
      %3033 = vmatprep.subr.mxu0 0.0
      %3034 = vmatpush2.msra.mxu0 0.0
      %3035 = vmatprep.subr.mxu0 0.0
      %3036 = vmatpush2.msra.mxu0 0.0
      %3037 = vmatprep.subr.mxu0 0.0
      %3038 = vmatpush2.msra.mxu0 0.0
      %3039 = vmatprep.subr.mxu0 0.0
      %3040 = vmatpush2.msra.mxu0 0.0
      %3041 = vmatprep.subr.mxu0 0.0
      %3042 = vmatpush2.msra.mxu0 0.0
      %3043 = vmatprep.subr.mxu0 0.0
      %3044 = vmatpush2.msra.mxu0 0.0
      %3045 = vmatprep.subr.mxu0 0.0
      %3046 = vmatpush2.msra.mxu0 0.0
      %3047 = vmatprep.mubr.f32.mxu0 0.0
      %3048 = vmatmul.mubr.f32.gmra.mxu0 %v1037
      %v3049 = vpop.f32.mrf.mxu0
      %v3050 = vadd.f32 0.0, %v3049
      %v3051 = vpop.f32.mrf.mxu0
      %3052 = vmatprep.mubr.f32.mxu0 0.0
      %3053 = vmatmul.mubr.f32.gmra.mxu0 %v1039
      %v3054 = vpop.f32.mrf.mxu0
      %v3055 = vadd.f32 0.0, %v3054
      %v3056 = vpop.f32.mrf.mxu0
      %3057 = vmatprep.mubr.f32.mxu0 0.0
      %3058 = vmatmul.mubr.f32.gmra.mxu0 %v1042
      %v3059 = vpop.f32.mrf.mxu0
      %v3060 = vadd.f32 0.0, %v3059
      %v3061 = vpop.f32.mrf.mxu0
      %3062 = vmatprep.mubr.f32.mxu0 0.0
      %3063 = vmatmul.mubr.f32.gmra.mxu0 %v1044
      %v3064 = vpop.f32.mrf.mxu0
      %v3065 = vadd.f32 0.0, %v3064
      %v3066 = vpop.f32.mrf.mxu0
      %3067 = vmatprep.mubr.f32.mxu0 0.0
      %3068 = vmatmul.mubr.f32.gmra.mxu0 %v1047
      %v3069 = vpop.f32.mrf.mxu0
      %v3070 = vadd.f32 0.0, %v3069
      %v3071 = vpop.f32.mrf.mxu0
      %3072 = vmatprep.mubr.f32.mxu0 0.0
      %3073 = vmatmul.mubr.f32.gmra.mxu0 %v1049
      %v3074 = vpop.f32.mrf.mxu0
      %v3075 = vadd.f32 0.0, %v3074
      %v3076 = vpop.f32.mrf.mxu0
      %3077 = vmatprep.mubr.f32.mxu0 0.0
      %3078 = vmatmul.mubr.f32.gmra.mxu0 %v1052
      %v3079 = vpop.f32.mrf.mxu0
      %v3080 = vadd.f32 0.0, %v3079
      %v3081 = vpop.f32.mrf.mxu0
      %3082 = vmatprep.mubr.f32.mxu0 0.0
      %3083 = vmatmul.mubr.f32.gmra.mxu0 %v1054
      %v3084 = vpop.f32.mrf.mxu0
      %v3085 = vadd.f32 0.0, %v3084
      %v3086 = vpop.f32.mrf.mxu0
      %3087 = vmatprep.mubr.f32.mxu0 0.0
      %3088 = vmatmul.mubr.f32.gmra.mxu0 %v1057
      %v3089 = vpop.f32.mrf.mxu0
      %v3090 = vadd.f32 0.0, %v3089
      %v3091 = vpop.f32.mrf.mxu0
      %3092 = vmatprep.mubr.f32.mxu0 0.0
      %3093 = vmatmul.mubr.f32.gmra.mxu0 %v1059
      %v3094 = vpop.f32.mrf.mxu0
      %v3095 = vadd.f32 0.0, %v3094
      %v3096 = vpop.f32.mrf.mxu0
      %3097 = vmatprep.mubr.f32.mxu0 0.0
      %3098 = vmatmul.mubr.f32.gmra.mxu0 %v1062
      %v3099 = vpop.f32.mrf.mxu0
      %v3100 = vadd.f32 0.0, %v3099
      %v3101 = vpop.f32.mrf.mxu0
      %3102 = vmatprep.mubr.f32.mxu0 0.0
      %3103 = vmatmul.mubr.f32.gmra.mxu0 %v1064
      %v3104 = vpop.f32.mrf.mxu0
      %v3105 = vadd.f32 0.0, %v3104
      %v3106 = vpop.f32.mrf.mxu0
      %3107 = vmatprep.mubr.f32.mxu0 0.0
      %3108 = vmatmul.mubr.f32.gmra.mxu0 %v1067
      %v3109 = vpop.f32.mrf.mxu0
      %v3110 = vadd.f32 0.0, %v3109
      %v3111 = vpop.f32.mrf.mxu0
      %3112 = vmatprep.mubr.f32.mxu0 0.0
      %3113 = vmatmul.mubr.f32.gmra.mxu0 %v1069
      %v3114 = vpop.f32.mrf.mxu0
      %v3115 = vadd.f32 0.0, %v3114
      %v3116 = vpop.f32.mrf.mxu0
      %3117 = vmatprep.mubr.f32.mxu0 0.0
      %3118 = vmatmul.mubr.f32.gmra.mxu0 %v1072
      %v3119 = vpop.f32.mrf.mxu0
      %v3120 = vadd.f32 0.0, %v3119
      %v3121 = vpop.f32.mrf.mxu0
      %3122 = vmatprep.mubr.f32.mxu0 0.0
      %3123 = vmatmul.mubr.f32.gmra.mxu0 %v1074
      %v3124 = vpop.f32.mrf.mxu0
      %v3125 = vadd.f32 0.0, %v3124
      %v3126 = vpop.f32.mrf.mxu0
      %3127 = vmatprep.mubr.f32.mxu0 0.0
      %3128 = vmatmul.mubr.f32.gmra.mxu0 %v1077
      %v3129 = vpop.f32.mrf.mxu0
      %v3130 = vadd.f32 0.0, %v3129
      %v3131 = vpop.f32.mrf.mxu0
      %3132 = vmatprep.mubr.f32.mxu0 0.0
      %3133 = vmatmul.mubr.f32.gmra.mxu0 %v1079
      %v3134 = vpop.f32.mrf.mxu0
      %v3135 = vadd.f32 0.0, %v3134
      %v3136 = vpop.f32.mrf.mxu0
      %3137 = vmatprep.mubr.f32.mxu0 0.0
      %3138 = vmatmul.mubr.f32.gmra.mxu0 %v1082
      %v3139 = vpop.f32.mrf.mxu0
      %v3140 = vadd.f32 0.0, %v3139
      %v3141 = vpop.f32.mrf.mxu0
      %3142 = vmatprep.mubr.f32.mxu0 0.0
      %3143 = vmatmul.mubr.f32.gmra.mxu0 %v1084
      %v3144 = vpop.f32.mrf.mxu0
      %v3145 = vadd.f32 0.0, %v3144
      %v3146 = vpop.f32.mrf.mxu0
      %3147 = vmatprep.mubr.f32.mxu0 0.0
      %3148 = vmatmul.mubr.f32.gmra.mxu0 %v1087
      %v3149 = vpop.f32.mrf.mxu0
      %v3150 = vadd.f32 0.0, %v3149
      %v3151 = vpop.f32.mrf.mxu0
      %3152 = vmatprep.mubr.f32.mxu0 0.0
      %3153 = vmatmul.mubr.f32.gmra.mxu0 %v1089
      %v3154 = vpop.f32.mrf.mxu0
      %v3155 = vadd.f32 0.0, %v3154
      %v3156 = vpop.f32.mrf.mxu0
      %3157 = vmatprep.mubr.f32.mxu0 0.0
      %3158 = vmatmul.mubr.f32.gmra.mxu0 %v1092
      %v3159 = vpop.f32.mrf.mxu0
      %v3160 = vadd.f32 0.0, %v3159
      %v3161 = vpop.f32.mrf.mxu0
      %3162 = vmatprep.mubr.f32.mxu0 0.0
      %3163 = vmatmul.mubr.f32.gmra.mxu0 %v1094
      %v3164 = vpop.f32.mrf.mxu0
      %v3165 = vadd.f32 0.0, %v3164
      %v3166 = vpop.f32.mrf.mxu0
      %3167 = vmatprep.mubr.f32.mxu0 0.0
      %3168 = vmatmul.mubr.f32.gmra.mxu0 %v1097
      %v3169 = vpop.f32.mrf.mxu0
      %v3170 = vadd.f32 0.0, %v3169
      %v3171 = vpop.f32.mrf.mxu0
      %3172 = vmatprep.mubr.f32.mxu0 0.0
      %3173 = vmatmul.mubr.f32.gmra.mxu0 %v1099
      %v3174 = vpop.f32.mrf.mxu0
      %v3175 = vadd.f32 0.0, %v3174
      %v3176 = vpop.f32.mrf.mxu0
      %3177 = vmatprep.mubr.f32.mxu0 0.0
      %3178 = vmatmul.mubr.f32.gmra.mxu0 %v1102
      %v3179 = vpop.f32.mrf.mxu0
      %v3180 = vadd.f32 0.0, %v3179
      %v3181 = vpop.f32.mrf.mxu0
      %3182 = vmatprep.mubr.f32.mxu0 0.0
      %3183 = vmatmul.mubr.f32.gmra.mxu0 %v1104
      %v3184 = vpop.f32.mrf.mxu0
      %v3185 = vadd.f32 0.0, %v3184
      %v3186 = vpop.f32.mrf.mxu0
      %3187 = vmatprep.mubr.f32.mxu0 0.0
      %3188 = vmatmul.mubr.f32.gmra.mxu0 %v1107
      %v3189 = vpop.f32.mrf.mxu0
      %v3190 = vadd.f32 0.0, %v3189
      %v3191 = vpop.f32.mrf.mxu0
      %3192 = vmatprep.mubr.f32.mxu0 0.0
      %3193 = vmatmul.mubr.f32.gmra.mxu0 %v1109
      %v3194 = vpop.f32.mrf.mxu0
      %v3195 = vadd.f32 0.0, %v3194
      %v3196 = vpop.f32.mrf.mxu0
      %3197 = vmatprep.mubr.f32.mxu0 0.0
      %3198 = vmatmul.mubr.f32.gmra.mxu0 %v1112
      %v3199 = vpop.f32.mrf.mxu0
      %v3200 = vadd.f32 0.0, %v3199
      %v3201 = vpop.f32.mrf.mxu0
      %3202 = vmatprep.mubr.f32.mxu0 0.0
      %3203 = vmatmul.mubr.f32.gmra.mxu0 %v1114
      %v3204 = vpop.f32.mrf.mxu0
      %v3205 = vadd.f32 0.0, %v3204
      %v3206 = vpop.f32.mrf.mxu0
      %3207 = vmatprep.mubr.f32.mxu0 0.0
      %3208 = vmatmul.mubr.f32.gmra.mxu0 %v2054
      %v3209 = vpop.f32.mrf.mxu0
      %v3210 = vadd.f32 0.0, %v3209
      %v3211 = vpop.f32.mrf.mxu0
      %3212 = vmatprep.mubr.f32.mxu0 0.0
      %3213 = vmatmul.mubr.f32.gmra.mxu0 %v2056
      %v3214 = vpop.f32.mrf.mxu0
      %v3215 = vadd.f32 0.0, %v3214
      %v3216 = vpop.f32.mrf.mxu0
      %3217 = vmatprep.mubr.f32.mxu0 0.0
      %3218 = vmatmul.mubr.f32.gmra.mxu0 %v2962
      %v3219 = vpop.f32.mrf.mxu0
      %v3220 = vadd.f32 0.0, %v3219
      %v3221 = vpop.f32.mrf.mxu0
      %3222 = vmatprep.mubr.f32.mxu0 0.0
      %3223 = vmatmul.mubr.f32.gmra.mxu0 %v2964
      %v3224 = vpop.f32.mrf.mxu0
      %v3225 = vadd.f32 0.0, %v3224
      %v3226 = vpop.f32.mrf.mxu0
      %3227 = vdwg.mxu0
      %v3228 = vadd.f32 %v2924, %v3050
      %v3229 = vadd.f32 %v2925, %v3055
      %v3230 = vadd.f32 %v2926, %v3060
      %v3231 = vadd.f32 %v2927, %v3065
      %v3232 = vadd.f32 %v2928, %v3070
      %v3233 = vadd.f32 %v2929, %v3075
      %v3234 = vadd.f32 %v2930, %v3080
      %v3235 = vadd.f32 %v2931, %v3085
      %v3236 = vadd.f32 %v2932, %v3090
      %v3237 = vadd.f32 %v2933, %v3095
      %v3238 = vadd.f32 %v2934, %v3100
      %v3239 = vadd.f32 %v2935, %v3105
      %v3240 = vadd.f32 %v2936, %v3110
      %v3241 = vadd.f32 %v2937, %v3115
      %v3242 = vadd.f32 %v2938, %v3120
      %v3243 = vadd.f32 %v2939, %v3125
      %v3244 = vadd.f32 %v2940, %v3130
      %v3245 = vadd.f32 %v2941, %v3135
      %v3246 = vadd.f32 %v2942, %v3140
      %v3247 = vadd.f32 %v2943, %v3145
      %v3248 = vadd.f32 %v2944, %v3150
      %v3249 = vadd.f32 %v2945, %v3155
      %v3250 = vadd.f32 %v2946, %v3160
      %v3251 = vadd.f32 %v2947, %v3165
      %v3252 = vadd.f32 %v2948, %v3170
      %v3253 = vadd.f32 %v2949, %v3175
      %v3254 = vadd.f32 %v2950, %v3180
      %v3255 = vadd.f32 %v2951, %v3185
      %v3256 = vadd.f32 %v2952, %v3190
      %v3257 = vadd.f32 %v2953, %v3195
      %v3258 = vadd.f32 %v2954, %v3200
      %v3259 = vadd.f32 %v2955, %v3205
      %v3260 = vadd.f32 %v2956, %v3210
      %v3261 = vadd.f32 %v2957, %v3215
      %v3262 = vadd.f32 %v2958, %v3220
      %v3263 = vadd.f32 %v2959, %v3225
      %v3264 = vld [vmem:[%s2] sm:$0x1]
      %v3266 = vlaneseq
      %v3267 = vshrl.u32 %v3266, 7
      %v3268 = vsub.s32 0, %v3267
      %v3269 = vrot.slane %v3264, %v3268
      %v3271 = vadd.f32 %v3228, %v3269
      %v3272 = vadd.f32 %v3229, %v3269
      %v3273 = vadd.f32 %v3230, %v3269
      %v3274 = vadd.f32 %v3231, %v3269
      %v3275 = vadd.f32 %v3232, %v3269
      %v3276 = vadd.f32 %v3233, %v3269
      %v3277 = vadd.f32 %v3234, %v3269
      %v3278 = vadd.f32 %v3235, %v3269
      %v3279 = vadd.f32 %v3236, %v3269
      %v3280 = vadd.f32 %v3237, %v3269
      %v3281 = vadd.f32 %v3238, %v3269
      %v3282 = vadd.f32 %v3239, %v3269
      %v3283 = vadd.f32 %v3240, %v3269
      %v3284 = vadd.f32 %v3241, %v3269
      %v3285 = vadd.f32 %v3242, %v3269
      %v3286 = vadd.f32 %v3243, %v3269
      %v3287 = vadd.f32 %v3244, %v3269
      %v3288 = vadd.f32 %v3245, %v3269
      %v3289 = vadd.f32 %v3246, %v3269
      %v3290 = vadd.f32 %v3247, %v3269
      %v3291 = vadd.f32 %v3248, %v3269
      %v3292 = vadd.f32 %v3249, %v3269
      %v3293 = vadd.f32 %v3250, %v3269
      %v3294 = vadd.f32 %v3251, %v3269
      %v3295 = vadd.f32 %v3252, %v3269
      %v3296 = vadd.f32 %v3253, %v3269
      %v3297 = vadd.f32 %v3254, %v3269
      %v3298 = vadd.f32 %v3255, %v3269
      %v3299 = vadd.f32 %v3256, %v3269
      %v3300 = vadd.f32 %v3257, %v3269
      %v3301 = vadd.f32 %v3258, %v3269
      %v3302 = vadd.f32 %v3259, %v3269
      %v3303 = vadd.f32 %v3260, %v3269
      %v3304 = vadd.f32 %v3261, %v3269
      %v3305 = vadd.f32 %v3262, %v3269
      %v3306 = vadd.f32 %v3263, %v3269
      %v3307 = vmax.f32 %v3271, 0.0
      %v3308 = vmax.f32 %v3272, 0.0
      %v3309 = vmax.f32 %v3273, 0.0
      %v3310 = vmax.f32 %v3274, 0.0
      %v3311 = vmax.f32 %v3275, 0.0
      %v3312 = vmax.f32 %v3276, 0.0
      %v3313 = vmax.f32 %v3277, 0.0
      %v3314 = vmax.f32 %v3278, 0.0
      %v3315 = vmax.f32 %v3279, 0.0
      %v3316 = vmax.f32 %v3280, 0.0
      %v3317 = vmax.f32 %v3281, 0.0
      %v3318 = vmax.f32 %v3282, 0.0
      %v3319 = vmax.f32 %v3283, 0.0
      %v3320 = vmax.f32 %v3284, 0.0
      %v3321 = vmax.f32 %v3285, 0.0
      %v3322 = vmax.f32 %v3286, 0.0
      %v3323 = vmax.f32 %v3287, 0.0
      %v3324 = vmax.f32 %v3288, 0.0
      %v3325 = vmax.f32 %v3289, 0.0
      %v3326 = vmax.f32 %v3290, 0.0
      %v3327 = vmax.f32 %v3291, 0.0
      %v3328 = vmax.f32 %v3292, 0.0
      %v3329 = vmax.f32 %v3293, 0.0
      %v3330 = vmax.f32 %v3294, 0.0
      %v3331 = vmax.f32 %v3295, 0.0
      %v3332 = vmax.f32 %v3296, 0.0
      %v3333 = vmax.f32 %v3297, 0.0
      %v3334 = vmax.f32 %v3298, 0.0
      %v3335 = vmax.f32 %v3299, 0.0
      %v3336 = vmax.f32 %v3300, 0.0
      %v3337 = vmax.f32 %v3301, 0.0
      %v3338 = vmax.f32 %v3302, 0.0
      %v3339 = vmax.f32 %v3303, 0.0
      %v3340 = vmax.f32 %v3304, 0.0
      %v3341 = vmax.f32 %v3305, 0.0
      %v3342 = vmax.f32 %v3306, 0.0
      %3343 = vst [vmem:[#allocation2 + $0x1] sm:$0xff] %v3307
      %3344 = vst [vmem:[#allocation2 + $0x9] sm:$0xff] %v3308
      %3345 = vst [vmem:[#allocation2 + $0x19] sm:$0xff] %v3309
      %3346 = vst [vmem:[#allocation2 + $0x21] sm:$0xff] %v3310
      %3347 = vst [vmem:[#allocation2 + $0x31] sm:$0xff] %v3311
      %3348 = vst [vmem:[#allocation2 + $0x39] sm:$0xff] %v3312
      %3349 = vst [vmem:[#allocation2 + $0x49] sm:$0xff] %v3313
      %3350 = vst [vmem:[#allocation2 + $0x51] sm:$0xff] %v3314
      %3351 = vst [vmem:[#allocation2 + $0x61] sm:$0xff] %v3315
      %3352 = vst [vmem:[#allocation2 + $0x69] sm:$0xff] %v3316
      %3353 = vst [vmem:[#allocation2 + $0x79] sm:$0xff] %v3317
      %3354 = vst [vmem:[#allocation2 + $0x81] sm:$0xff] %v3318
      %3355 = vst [vmem:[#allocation2 + $0x91] sm:$0xff] %v3319
      %3356 = vst [vmem:[#allocation2 + $0x99] sm:$0xff] %v3320
      %3357 = vst [vmem:[#allocation2 + $0xa9] sm:$0xff] %v3321
      %3358 = vst [vmem:[#allocation2 + $0xb1] sm:$0xff] %v3322
      %3359 = vst [vmem:[#allocation2 + $0xc1] sm:$0xff] %v3323
      %3360 = vst [vmem:[#allocation2 + $0xc9] sm:$0xff] %v3324
      %3361 = vst [vmem:[#allocation2 + $0xd9] sm:$0xff] %v3325
      %3362 = vst [vmem:[#allocation2 + $0xe1] sm:$0xff] %v3326
      %3363 = vst [vmem:[#allocation2 + $0xf1] sm:$0xff] %v3327
      %3364 = vst [vmem:[#allocation2 + $0xf9] sm:$0xff] %v3328
      %3365 = vst [vmem:[#allocation2 + $0x109] sm:$0xff] %v3329
      %3366 = vst [vmem:[#allocation2 + $0x111] sm:$0xff] %v3330
      %3367 = vst [vmem:[#allocation2 + $0x121] sm:$0xff] %v3331
      %3368 = vst [vmem:[#allocation2 + $0x129] sm:$0xff] %v3332
      %3369 = vst [vmem:[#allocation2 + $0x139] sm:$0xff] %v3333
      %3370 = vst [vmem:[#allocation2 + $0x141] sm:$0xff] %v3334
      %3371 = vst [vmem:[#allocation2 + $0x151] sm:$0xff] %v3335
      %3372 = vst [vmem:[#allocation2 + $0x159] sm:$0xff] %v3336
      %3373 = vst [vmem:[#allocation2 + $0x169] sm:$0xff] %v3337
      %3374 = vst [vmem:[#allocation2 + $0x171] sm:$0xff] %v3338
      %3375 = vst [vmem:[#allocation2 + $0x181] sm:$0xff] %v3339
      %3376 = vst [vmem:[#allocation2 + $0x189] sm:$0xff] %v3340
      %3377 = vst [vmem:[#allocation2 + $0x199] sm:$0xff] %v3341
      %3378 = vst [vmem:[#allocation2 + $0x1a1] sm:$0xff] %v3342
      %3379 = vst [vmem:[#allocation2] sm:$0x1] 0.0
      %3380 = vst [vmem:[#allocation2 + $0x18] sm:$0x1] 0.0
      %3381 = vst [vmem:[#allocation2 + $0x30] sm:$0x1] 0.0
      %3382 = vst [vmem:[#allocation2 + $0x48] sm:$0x1] 0.0
      %3383 = vst [vmem:[#allocation2 + $0x60] sm:$0x1] 0.0
      %3384 = vst [vmem:[#allocation2 + $0x78] sm:$0x1] 0.0
      %3385 = vst [vmem:[#allocation2 + $0x90] sm:$0x1] 0.0
      %3386 = vst [vmem:[#allocation2 + $0xa8] sm:$0x1] 0.0
      %3387 = vst [vmem:[#allocation2 + $0xc0] sm:$0x1] 0.0
      %3388 = vst [vmem:[#allocation2 + $0xd8] sm:$0x1] 0.0
      %3389 = vst [vmem:[#allocation2 + $0xf0] sm:$0x1] 0.0
      %3390 = vst [vmem:[#allocation2 + $0x108] sm:$0x1] 0.0
      %3391 = vst [vmem:[#allocation2 + $0x120] sm:$0x1] 0.0
      %3392 = vst [vmem:[#allocation2 + $0x138] sm:$0x1] 0.0
      %3393 = vst [vmem:[#allocation2 + $0x150] sm:$0x1] 0.0
      %3394 = vst [vmem:[#allocation2 + $0x168] sm:$0x1] 0.0
      %3395 = vst [vmem:[#allocation2 + $0x180] sm:$0x1] 0.0
      %3396 = vst [vmem:[#allocation2 + $0x198] sm:$0x1] 0.0
      %3397 = vst [vmem:[#allocation2 + $0x11] sm:$0x1] 0.0
      %3398 = vst [vmem:[#allocation2 + $0x29] sm:$0x1] 0.0
      %3399 = vst [vmem:[#allocation2 + $0x41] sm:$0x1] 0.0
      %3400 = vst [vmem:[#allocation2 + $0x59] sm:$0x1] 0.0
      %3401 = vst [vmem:[#allocation2 + $0x71] sm:$0x1] 0.0
      %3402 = vst [vmem:[#allocation2 + $0x89] sm:$0x1] 0.0
      %3403 = vst [vmem:[#allocation2 + $0xa1] sm:$0x1] 0.0
      %3404 = vst [vmem:[#allocation2 + $0xb9] sm:$0x1] 0.0
      %3405 = vst [vmem:[#allocation2 + $0xd1] sm:$0x1] 0.0
      %3406 = vst [vmem:[#allocation2 + $0xe9] sm:$0x1] 0.0
      %3407 = vst [vmem:[#allocation2 + $0x101] sm:$0x1] 0.0
      %3408 = vst [vmem:[#allocation2 + $0x119] sm:$0x1] 0.0
      %3409 = vst [vmem:[#allocation2 + $0x131] sm:$0x1] 0.0
      %3410 = vst [vmem:[#allocation2 + $0x149] sm:$0x1] 0.0
      %3411 = vst [vmem:[#allocation2 + $0x161] sm:$0x1] 0.0
      %3412 = vst [vmem:[#allocation2 + $0x179] sm:$0x1] 0.0
      %3413 = vst [vmem:[#allocation2 + $0x191] sm:$0x1] 0.0
      %3414 = vst [vmem:[#allocation2 + $0x1a9] sm:$0x1] 0.0
      %p3415 = scmp.eq.s32.totalorder %s21, 0
      // Predicated region
      $region41: #{up_forward.1} parent=39 // pred_check
        %p3416 = pneg %p3415
      $region42: #{up_forward.1} parent=39 // pred_check_branch
        %3418 = sbr.rel (%p3416) target = $region44
      $region43: #{up_forward.1} parent=39 // pred_region
        %3419 = vst [vmem:[#allocation2] sm:$0xff] 0.0
        %3420 = vst [vmem:[#allocation2 + $0x8] sm:$0xff] 0.0
        %3421 = vst [vmem:[#allocation2 + $0x10] sm:$0x3] 0.0
        %s3422 = scalar_lea.vmem [#allocation2], 408
        %3423 = vst [vmem:[%s3422] sm:$0xff] 0.0
        %3424 = vst [vmem:[%s3422 + $0x8] sm:$0xff] 0.0
        %3425 = vst [vmem:[%s3422 + $0x10] sm:$0x3] 0.0
      $region44: #{up_forward.1} parent=39 // pred_fallthru
        _
      %v3426 = vld [vmem:[#allocation2] sm:$0xff]
      %v3427 = vld [vmem:[#allocation2 + $0x8] sm:$0xff]
      %v3428 = vld [vmem:[#allocation2 + $0x10] sm:$0x3]
      %v3429 = vld [vmem:[#allocation2 + $0x18] sm:$0xff]
      %v3430 = vld [vmem:[#allocation2 + $0x20] sm:$0xff]
      %v3431 = vld [vmem:[#allocation2 + $0x28] sm:$0x3]
      %v3432 = vld [vmem:[#allocation2 + $0x30] sm:$0xff]
      %v3433 = vld [vmem:[#allocation2 + $0x38] sm:$0xff]
      %v3434 = vld [vmem:[#allocation2 + $0x40] sm:$0x3]
      %v3435 = vld [vmem:[#allocation2 + $0x48] sm:$0xff]
      %v3436 = vld [vmem:[#allocation2 + $0x50] sm:$0xff]
      %v3437 = vld [vmem:[#allocation2 + $0x58] sm:$0x3]
      %v3438 = vld [vmem:[#allocation2 + $0x60] sm:$0xff]
      %v3439 = vld [vmem:[#allocation2 + $0x68] sm:$0xff]
      %v3440 = vld [vmem:[#allocation2 + $0x70] sm:$0x3]
      %v3441 = vld [vmem:[#allocation2 + $0x78] sm:$0xff]
      %v3442 = vld [vmem:[#allocation2 + $0x80] sm:$0xff]
      %v3443 = vld [vmem:[#allocation2 + $0x88] sm:$0x3]
      %v3444 = vld [vmem:[#allocation2 + $0x90] sm:$0xff]
      %v3445 = vld [vmem:[#allocation2 + $0x98] sm:$0xff]
      %v3446 = vld [vmem:[#allocation2 + $0xa0] sm:$0x3]
      %v3447 = vld [vmem:[#allocation2 + $0xa8] sm:$0xff]
      %v3448 = vld [vmem:[#allocation2 + $0xb0] sm:$0xff]
      %v3449 = vld [vmem:[#allocation2 + $0xb8] sm:$0x3]
      %v3450 = vld [vmem:[#allocation2 + $0xc0] sm:$0xff]
      %v3451 = vld [vmem:[#allocation2 + $0xc8] sm:$0xff]
      %v3452 = vld [vmem:[#allocation2 + $0xd0] sm:$0x3]
      %v3453 = vld [vmem:[#allocation2 + $0xd8] sm:$0xff]
      %v3454 = vld [vmem:[#allocation2 + $0xe0] sm:$0xff]
      %v3455 = vld [vmem:[#allocation2 + $0xe8] sm:$0x3]
      %v3456 = vld [vmem:[#allocation2 + $0xf0] sm:$0xff]
      %v3457 = vld [vmem:[#allocation2 + $0xf8] sm:$0xff]
      %v3458 = vld [vmem:[#allocation2 + $0x100] sm:$0x3]
      %v3459 = vld [vmem:[#allocation2 + $0x108] sm:$0xff]
      %v3460 = vld [vmem:[#allocation2 + $0x110] sm:$0xff]
      %v3461 = vld [vmem:[#allocation2 + $0x118] sm:$0x3]
      %v3462 = vld [vmem:[#allocation2 + $0x120] sm:$0xff]
      %v3463 = vld [vmem:[#allocation2 + $0x128] sm:$0xff]
      %v3464 = vld [vmem:[#allocation2 + $0x130] sm:$0x3]
      %v3465 = vld [vmem:[#allocation2 + $0x138] sm:$0xff]
      %v3466 = vld [vmem:[#allocation2 + $0x140] sm:$0xff]
      %v3467 = vld [vmem:[#allocation2 + $0x148] sm:$0x3]
      %v3468 = vld [vmem:[#allocation2 + $0x150] sm:$0xff]
      %v3469 = vld [vmem:[#allocation2 + $0x158] sm:$0xff]
      %v3470 = vld [vmem:[#allocation2 + $0x160] sm:$0x3]
      %v3471 = vld [vmem:[#allocation2 + $0x168] sm:$0xff]
      %v3472 = vld [vmem:[#allocation2 + $0x170] sm:$0xff]
      %v3473 = vld [vmem:[#allocation2 + $0x178] sm:$0x3]
      %v3474 = vld [vmem:[#allocation2 + $0x180] sm:$0xff]
      %v3475 = vld [vmem:[#allocation2 + $0x188] sm:$0xff]
      %v3476 = vld [vmem:[#allocation2 + $0x190] sm:$0x3]
      %v3477 = vld [vmem:[#allocation2 + $0x198] sm:$0xff]
      %v3478 = vld [vmem:[#allocation2 + $0x1a0] sm:$0xff]
      %v3479 = vld [vmem:[#allocation2 + $0x1a8] sm:$0x3]
      %v3480 = vld [vmem:[%s3] sm:$0xff]
      %v3481 = vld [vmem:[%s3 + $0x8] sm:$0xff]
      %v3482 = vld [vmem:[%s3 + $0x10] sm:$0xff]
      %v3483 = vld [vmem:[%s3 + $0x18] sm:$0xff]
      %v3484 = vld [vmem:[%s3 + $0x20] sm:$0xff]
      %v3485 = vld [vmem:[%s3 + $0x28] sm:$0xff]
      %v3486 = vld [vmem:[%s3 + $0x30] sm:$0xff]
      %v3487 = vld [vmem:[%s3 + $0x38] sm:$0xff]
      %v3488 = vld [vmem:[%s3 + $0x40] sm:$0xff]
      %v3489 = vld [vmem:[%s3 + $0x48] sm:$0xff]
      %v3490 = vld [vmem:[%s3 + $0x50] sm:$0xff]
      %v3491 = vld [vmem:[%s3 + $0x58] sm:$0xff]
      %v3492 = vld [vmem:[%s3 + $0x60] sm:$0xff]
      %v3493 = vld [vmem:[%s3 + $0x68] sm:$0xff]
      %v3494 = vld [vmem:[%s3 + $0x70] sm:$0xff]
      %v3495 = vld [vmem:[%s3 + $0x78] sm:$0xff]
      %v3544 = vrot.slane %v3426, 1
      %v3545 = vrot.slane %v3427, 1
      %v3546 = vsel %vm391, %v3544, %v3545
      %v3547 = vrot.slane %v3428, 1
      %v3548 = vsel %vm391, %v3545, %v3547
      %v3549 = vrot.slane %v3429, 1
      %v3550 = vrot.slane %v3430, 1
      %v3551 = vsel %vm391, %v3549, %v3550
      %v3552 = vrot.slane %v3431, 1
      %v3553 = vsel %vm391, %v3550, %v3552
      %v3554 = vrot.slane %v3432, 1
      %v3555 = vrot.slane %v3433, 1
      %v3556 = vsel %vm391, %v3554, %v3555
      %v3557 = vrot.slane %v3434, 1
      %v3558 = vsel %vm391, %v3555, %v3557
      %v3559 = vrot.slane %v3435, 1
      %v3560 = vrot.slane %v3436, 1
      %v3561 = vsel %vm391, %v3559, %v3560
      %v3562 = vrot.slane %v3437, 1
      %v3563 = vsel %vm391, %v3560, %v3562
      %v3564 = vrot.slane %v3438, 1
      %v3565 = vrot.slane %v3439, 1
      %v3566 = vsel %vm391, %v3564, %v3565
      %v3567 = vrot.slane %v3440, 1
      %v3568 = vsel %vm391, %v3565, %v3567
      %v3569 = vrot.slane %v3441, 1
      %v3570 = vrot.slane %v3442, 1
      %v3571 = vsel %vm391, %v3569, %v3570
      %v3572 = vrot.slane %v3443, 1
      %v3573 = vsel %vm391, %v3570, %v3572
      %v3574 = vrot.slane %v3444, 1
      %v3575 = vrot.slane %v3445, 1
      %v3576 = vsel %vm391, %v3574, %v3575
      %v3577 = vrot.slane %v3446, 1
      %v3578 = vsel %vm391, %v3575, %v3577
      %v3579 = vrot.slane %v3447, 1
      %v3580 = vrot.slane %v3448, 1
      %v3581 = vsel %vm391, %v3579, %v3580
      %v3582 = vrot.slane %v3449, 1
      %v3583 = vsel %vm391, %v3580, %v3582
      %v3584 = vrot.slane %v3450, 1
      %v3585 = vrot.slane %v3451, 1
      %v3586 = vsel %vm391, %v3584, %v3585
      %v3587 = vrot.slane %v3452, 1
      %v3588 = vsel %vm391, %v3585, %v3587
      %v3589 = vrot.slane %v3453, 1
      %v3590 = vrot.slane %v3454, 1
      %v3591 = vsel %vm391, %v3589, %v3590
      %v3592 = vrot.slane %v3455, 1
      %v3593 = vsel %vm391, %v3590, %v3592
      %v3594 = vrot.slane %v3456, 1
      %v3595 = vrot.slane %v3457, 1
      %v3596 = vsel %vm391, %v3594, %v3595
      %v3597 = vrot.slane %v3458, 1
      %v3598 = vsel %vm391, %v3595, %v3597
      %v3599 = vrot.slane %v3459, 1
      %v3600 = vrot.slane %v3460, 1
      %v3601 = vsel %vm391, %v3599, %v3600
      %v3602 = vrot.slane %v3461, 1
      %v3603 = vsel %vm391, %v3600, %v3602
      %v3604 = vrot.slane %v3462, 1
      %v3605 = vrot.slane %v3463, 1
      %v3606 = vsel %vm391, %v3604, %v3605
      %v3607 = vrot.slane %v3464, 1
      %v3608 = vsel %vm391, %v3605, %v3607
      %v3609 = vrot.slane %v3465, 1
      %v3610 = vrot.slane %v3466, 1
      %v3611 = vsel %vm391, %v3609, %v3610
      %v3612 = vrot.slane %v3467, 1
      %v3613 = vsel %vm391, %v3610, %v3612
      %v3614 = vrot.slane %v3468, 1
      %v3615 = vrot.slane %v3469, 1
      %v3616 = vsel %vm391, %v3614, %v3615
      %v3617 = vrot.slane %v3470, 1
      %v3618 = vsel %vm391, %v3615, %v3617
      %v3619 = vrot.slane %v3471, 1
      %v3620 = vrot.slane %v3472, 1
      %v3621 = vsel %vm391, %v3619, %v3620
      %v3622 = vrot.slane %v3473, 1
      %v3623 = vsel %vm391, %v3620, %v3622
      %v3656 = vld [vmem:[%s3 + $0x80] sm:$0xff]
      %v3657 = vld [vmem:[%s3 + $0x88] sm:$0xff]
      %v3658 = vld [vmem:[%s3 + $0x90] sm:$0xff]
      %v3659 = vld [vmem:[%s3 + $0x98] sm:$0xff]
      %v3660 = vld [vmem:[%s3 + $0xa0] sm:$0xff]
      %v3661 = vld [vmem:[%s3 + $0xa8] sm:$0xff]
      %v3662 = vld [vmem:[%s3 + $0xb0] sm:$0xff]
      %v3663 = vld [vmem:[%s3 + $0xb8] sm:$0xff]
      %v3664 = vld [vmem:[%s3 + $0xc0] sm:$0xff]
      %v3665 = vld [vmem:[%s3 + $0xc8] sm:$0xff]
      %v3666 = vld [vmem:[%s3 + $0xd0] sm:$0xff]
      %v3667 = vld [vmem:[%s3 + $0xd8] sm:$0xff]
      %v3668 = vld [vmem:[%s3 + $0xe0] sm:$0xff]
      %v3669 = vld [vmem:[%s3 + $0xe8] sm:$0xff]
      %v3670 = vld [vmem:[%s3 + $0xf0] sm:$0xff]
      %v3671 = vld [vmem:[%s3 + $0xf8] sm:$0xff]
      %3672 = vmatprep.subr.mxu0 0.0
      %3673 = vmatpush1.msra.mxu0 %v3671
      %3674 = vmatprep.subr.mxu0 0.0
      %3675 = vmatpush1.msra.mxu0 %v3670
      %3676 = vmatprep.subr.mxu0 0.0
      %3677 = vmatpush1.msra.mxu0 %v3669
      %3678 = vmatprep.subr.mxu0 0.0
      %3679 = vmatpush1.msra.mxu0 %v3668
      %3680 = vmatprep.subr.mxu0 0.0
      %3681 = vmatpush1.msra.mxu0 %v3667
      %3682 = vmatprep.subr.mxu0 0.0
      %3683 = vmatpush1.msra.mxu0 %v3666
      %3684 = vmatprep.subr.mxu0 0.0
      %3685 = vmatpush1.msra.mxu0 %v3665
      %3686 = vmatprep.subr.mxu0 0.0
      %3687 = vmatpush1.msra.mxu0 %v3664
      %3688 = vmatprep.subr.mxu0 0.0
      %3689 = vmatpush1.msra.mxu0 %v3663
      %3690 = vmatprep.subr.mxu0 0.0
      %3691 = vmatpush1.msra.mxu0 %v3662
      %3692 = vmatprep.subr.mxu0 0.0
      %3693 = vmatpush1.msra.mxu0 %v3661
      %3694 = vmatprep.subr.mxu0 0.0
      %3695 = vmatpush1.msra.mxu0 %v3660
      %3696 = vmatprep.subr.mxu0 0.0
      %3697 = vmatpush1.msra.mxu0 %v3659
      %3698 = vmatprep.subr.mxu0 0.0
      %3699 = vmatpush1.msra.mxu0 %v3658
      %3700 = vmatprep.subr.mxu0 0.0
      %3701 = vmatpush1.msra.mxu0 %v3657
      %3702 = vmatprep.subr.mxu0 0.0
      %3703 = vmatpush1.msra.mxu0 %v3656
      %3704 = vmatprep.subr.mxu0 0.0
      %3705 = vmatpush2.msra.mxu0 0.0
      %3706 = vmatprep.subr.mxu0 0.0
      %3707 = vmatpush2.msra.mxu0 0.0
      %3708 = vmatprep.subr.mxu0 0.0
      %3709 = vmatpush2.msra.mxu0 0.0
      %3710 = vmatprep.subr.mxu0 0.0
      %3711 = vmatpush2.msra.mxu0 0.0
      %3712 = vmatprep.subr.mxu0 0.0
      %3713 = vmatpush2.msra.mxu0 0.0
      %3714 = vmatprep.subr.mxu0 0.0
      %3715 = vmatpush2.msra.mxu0 0.0
      %3716 = vmatprep.subr.mxu0 0.0
      %3717 = vmatpush2.msra.mxu0 0.0
      %3718 = vmatprep.subr.mxu0 0.0
      %3719 = vmatpush2.msra.mxu0 0.0
      %3720 = vmatprep.subr.mxu0 0.0
      %3721 = vmatpush2.msra.mxu0 0.0
      %3722 = vmatprep.subr.mxu0 0.0
      %3723 = vmatpush2.msra.mxu0 0.0
      %3724 = vmatprep.subr.mxu0 0.0
      %3725 = vmatpush2.msra.mxu0 0.0
      %3726 = vmatprep.subr.mxu0 0.0
      %3727 = vmatpush2.msra.mxu0 0.0
      %3728 = vmatprep.subr.mxu0 0.0
      %3729 = vmatpush2.msra.mxu0 0.0
      %3730 = vmatprep.subr.mxu0 0.0
      %3731 = vmatpush2.msra.mxu0 0.0
      %3732 = vmatprep.subr.mxu0 0.0
      %3733 = vmatpush2.msra.mxu0 0.0
      %3734 = vmatprep.subr.mxu0 0.0
      %3735 = vmatpush2.msra.mxu0 0.0
      %3736 = vmatprep.mubr.f32.mxu0 0.0
      %3737 = vmatmul.mubr.f32.gmra.mxu0 %v3546
      %v3738 = vpop.f32.mrf.mxu0
      %v3739 = vadd.f32 0.0, %v3738
      %v3740 = vpop.f32.mrf.mxu0
      %3741 = vmatprep.mubr.f32.mxu0 0.0
      %3742 = vmatmul.mubr.f32.gmra.mxu0 %v3548
      %v3743 = vpop.f32.mrf.mxu0
      %v3744 = vadd.f32 0.0, %v3743
      %v3745 = vpop.f32.mrf.mxu0
      %3746 = vmatprep.mubr.f32.mxu0 0.0
      %3747 = vmatmul.mubr.f32.gmra.mxu0 %v3551
      %v3748 = vpop.f32.mrf.mxu0
      %v3749 = vadd.f32 0.0, %v3748
      %v3750 = vpop.f32.mrf.mxu0
      %3751 = vmatprep.mubr.f32.mxu0 0.0
      %3752 = vmatmul.mubr.f32.gmra.mxu0 %v3553
      %v3753 = vpop.f32.mrf.mxu0
      %v3754 = vadd.f32 0.0, %v3753
      %v3755 = vpop.f32.mrf.mxu0
      %3756 = vmatprep.mubr.f32.mxu0 0.0
      %3757 = vmatmul.mubr.f32.gmra.mxu0 %v3556
      %v3758 = vpop.f32.mrf.mxu0
      %v3759 = vadd.f32 0.0, %v3758
      %v3760 = vpop.f32.mrf.mxu0
      %3761 = vmatprep.mubr.f32.mxu0 0.0
      %3762 = vmatmul.mubr.f32.gmra.mxu0 %v3558
      %v3763 = vpop.f32.mrf.mxu0
      %v3764 = vadd.f32 0.0, %v3763
      %v3765 = vpop.f32.mrf.mxu0
      %3766 = vmatprep.mubr.f32.mxu0 0.0
      %3767 = vmatmul.mubr.f32.gmra.mxu0 %v3561
      %v3768 = vpop.f32.mrf.mxu0
      %v3769 = vadd.f32 0.0, %v3768
      %v3770 = vpop.f32.mrf.mxu0
      %3771 = vmatprep.mubr.f32.mxu0 0.0
      %3772 = vmatmul.mubr.f32.gmra.mxu0 %v3563
      %v3773 = vpop.f32.mrf.mxu0
      %v3774 = vadd.f32 0.0, %v3773
      %v3775 = vpop.f32.mrf.mxu0
      %3776 = vmatprep.mubr.f32.mxu0 0.0
      %3777 = vmatmul.mubr.f32.gmra.mxu0 %v3566
      %v3778 = vpop.f32.mrf.mxu0
      %v3779 = vadd.f32 0.0, %v3778
      %v3780 = vpop.f32.mrf.mxu0
      %3781 = vmatprep.mubr.f32.mxu0 0.0
      %3782 = vmatmul.mubr.f32.gmra.mxu0 %v3568
      %v3783 = vpop.f32.mrf.mxu0
      %v3784 = vadd.f32 0.0, %v3783
      %v3785 = vpop.f32.mrf.mxu0
      %3786 = vmatprep.mubr.f32.mxu0 0.0
      %3787 = vmatmul.mubr.f32.gmra.mxu0 %v3571
      %v3788 = vpop.f32.mrf.mxu0
      %v3789 = vadd.f32 0.0, %v3788
      %v3790 = vpop.f32.mrf.mxu0
      %3791 = vmatprep.mubr.f32.mxu0 0.0
      %3792 = vmatmul.mubr.f32.gmra.mxu0 %v3573
      %v3793 = vpop.f32.mrf.mxu0
      %v3794 = vadd.f32 0.0, %v3793
      %v3795 = vpop.f32.mrf.mxu0
      %3796 = vmatprep.mubr.f32.mxu0 0.0
      %3797 = vmatmul.mubr.f32.gmra.mxu0 %v3576
      %v3798 = vpop.f32.mrf.mxu0
      %v3799 = vadd.f32 0.0, %v3798
      %v3800 = vpop.f32.mrf.mxu0
      %3801 = vmatprep.mubr.f32.mxu0 0.0
      %3802 = vmatmul.mubr.f32.gmra.mxu0 %v3578
      %v3803 = vpop.f32.mrf.mxu0
      %v3804 = vadd.f32 0.0, %v3803
      %v3805 = vpop.f32.mrf.mxu0
      %3806 = vmatprep.mubr.f32.mxu0 0.0
      %3807 = vmatmul.mubr.f32.gmra.mxu0 %v3581
      %v3808 = vpop.f32.mrf.mxu0
      %v3809 = vadd.f32 0.0, %v3808
      %v3810 = vpop.f32.mrf.mxu0
      %3811 = vmatprep.mubr.f32.mxu0 0.0
      %3812 = vmatmul.mubr.f32.gmra.mxu0 %v3583
      %v3813 = vpop.f32.mrf.mxu0
      %v3814 = vadd.f32 0.0, %v3813
      %v3815 = vpop.f32.mrf.mxu0
      %3816 = vmatprep.mubr.f32.mxu0 0.0
      %3817 = vmatmul.mubr.f32.gmra.mxu0 %v3586
      %v3818 = vpop.f32.mrf.mxu0
      %v3819 = vadd.f32 0.0, %v3818
      %v3820 = vpop.f32.mrf.mxu0
      %3821 = vmatprep.mubr.f32.mxu0 0.0
      %3822 = vmatmul.mubr.f32.gmra.mxu0 %v3588
      %v3823 = vpop.f32.mrf.mxu0
      %v3824 = vadd.f32 0.0, %v3823
      %v3825 = vpop.f32.mrf.mxu0
      %3826 = vmatprep.mubr.f32.mxu0 0.0
      %3827 = vmatmul.mubr.f32.gmra.mxu0 %v3591
      %v3828 = vpop.f32.mrf.mxu0
      %v3829 = vadd.f32 0.0, %v3828
      %v3830 = vpop.f32.mrf.mxu0
      %3831 = vmatprep.mubr.f32.mxu0 0.0
      %3832 = vmatmul.mubr.f32.gmra.mxu0 %v3593
      %v3833 = vpop.f32.mrf.mxu0
      %v3834 = vadd.f32 0.0, %v3833
      %v3835 = vpop.f32.mrf.mxu0
      %3836 = vmatprep.mubr.f32.mxu0 0.0
      %3837 = vmatmul.mubr.f32.gmra.mxu0 %v3596
      %v3838 = vpop.f32.mrf.mxu0
      %v3839 = vadd.f32 0.0, %v3838
      %v3840 = vpop.f32.mrf.mxu0
      %3841 = vmatprep.mubr.f32.mxu0 0.0
      %3842 = vmatmul.mubr.f32.gmra.mxu0 %v3598
      %v3843 = vpop.f32.mrf.mxu0
      %v3844 = vadd.f32 0.0, %v3843
      %v3845 = vpop.f32.mrf.mxu0
      %3846 = vmatprep.mubr.f32.mxu0 0.0
      %3847 = vmatmul.mubr.f32.gmra.mxu0 %v3601
      %v3848 = vpop.f32.mrf.mxu0
      %v3849 = vadd.f32 0.0, %v3848
      %v3850 = vpop.f32.mrf.mxu0
      %3851 = vmatprep.mubr.f32.mxu0 0.0
      %3852 = vmatmul.mubr.f32.gmra.mxu0 %v3603
      %v3853 = vpop.f32.mrf.mxu0
      %v3854 = vadd.f32 0.0, %v3853
      %v3855 = vpop.f32.mrf.mxu0
      %3856 = vmatprep.mubr.f32.mxu0 0.0
      %3857 = vmatmul.mubr.f32.gmra.mxu0 %v3606
      %v3858 = vpop.f32.mrf.mxu0
      %v3859 = vadd.f32 0.0, %v3858
      %v3860 = vpop.f32.mrf.mxu0
      %3861 = vmatprep.mubr.f32.mxu0 0.0
      %3862 = vmatmul.mubr.f32.gmra.mxu0 %v3608
      %v3863 = vpop.f32.mrf.mxu0
      %v3864 = vadd.f32 0.0, %v3863
      %v3865 = vpop.f32.mrf.mxu0
      %3866 = vmatprep.mubr.f32.mxu0 0.0
      %3867 = vmatmul.mubr.f32.gmra.mxu0 %v3611
      %v3868 = vpop.f32.mrf.mxu0
      %v3869 = vadd.f32 0.0, %v3868
      %v3870 = vpop.f32.mrf.mxu0
      %3871 = vmatprep.mubr.f32.mxu0 0.0
      %3872 = vmatmul.mubr.f32.gmra.mxu0 %v3613
      %v3873 = vpop.f32.mrf.mxu0
      %v3874 = vadd.f32 0.0, %v3873
      %v3875 = vpop.f32.mrf.mxu0
      %3876 = vmatprep.mubr.f32.mxu0 0.0
      %3877 = vmatmul.mubr.f32.gmra.mxu0 %v3616
      %v3878 = vpop.f32.mrf.mxu0
      %v3879 = vadd.f32 0.0, %v3878
      %v3880 = vpop.f32.mrf.mxu0
      %3881 = vmatprep.mubr.f32.mxu0 0.0
      %3882 = vmatmul.mubr.f32.gmra.mxu0 %v3618
      %v3883 = vpop.f32.mrf.mxu0
      %v3884 = vadd.f32 0.0, %v3883
      %v3885 = vpop.f32.mrf.mxu0
      %3886 = vmatprep.mubr.f32.mxu0 0.0
      %3887 = vmatmul.mubr.f32.gmra.mxu0 %v3621
      %v3888 = vpop.f32.mrf.mxu0
      %v3889 = vadd.f32 0.0, %v3888
      %v3890 = vpop.f32.mrf.mxu0
      %3891 = vmatprep.mubr.f32.mxu0 0.0
      %3892 = vmatmul.mubr.f32.gmra.mxu0 %v3623
      %v3893 = vpop.f32.mrf.mxu0
      %v3894 = vadd.f32 0.0, %v3893
      %v3895 = vpop.f32.mrf.mxu0
      %3896 = vdwg.mxu0
      %3897 = vmatprep.subr.mxu0 0.0
      %3898 = vmatpush1.msra.mxu0 %v3495
      %3899 = vmatprep.subr.mxu0 0.0
      %3900 = vmatpush1.msra.mxu0 %v3494
      %3901 = vmatprep.subr.mxu0 0.0
      %3902 = vmatpush1.msra.mxu0 %v3493
      %3903 = vmatprep.subr.mxu0 0.0
      %3904 = vmatpush1.msra.mxu0 %v3492
      %3905 = vmatprep.subr.mxu0 0.0
      %3906 = vmatpush1.msra.mxu0 %v3491
      %3907 = vmatprep.subr.mxu0 0.0
      %3908 = vmatpush1.msra.mxu0 %v3490
      %3909 = vmatprep.subr.mxu0 0.0
      %3910 = vmatpush1.msra.mxu0 %v3489
      %3911 = vmatprep.subr.mxu0 0.0
      %3912 = vmatpush1.msra.mxu0 %v3488
      %3913 = vmatprep.subr.mxu0 0.0
      %3914 = vmatpush1.msra.mxu0 %v3487
      %3915 = vmatprep.subr.mxu0 0.0
      %3916 = vmatpush1.msra.mxu0 %v3486
      %3917 = vmatprep.subr.mxu0 0.0
      %3918 = vmatpush1.msra.mxu0 %v3485
      %3919 = vmatprep.subr.mxu0 0.0
      %3920 = vmatpush1.msra.mxu0 %v3484
      %3921 = vmatprep.subr.mxu0 0.0
      %3922 = vmatpush1.msra.mxu0 %v3483
      %3923 = vmatprep.subr.mxu0 0.0
      %3924 = vmatpush1.msra.mxu0 %v3482
      %3925 = vmatprep.subr.mxu0 0.0
      %3926 = vmatpush1.msra.mxu0 %v3481
      %3927 = vmatprep.subr.mxu0 0.0
      %3928 = vmatpush1.msra.mxu0 %v3480
      %3929 = vmatprep.subr.mxu0 0.0
      %3930 = vmatpush2.msra.mxu0 0.0
      %3931 = vmatprep.subr.mxu0 0.0
      %3932 = vmatpush2.msra.mxu0 0.0
      %3933 = vmatprep.subr.mxu0 0.0
      %3934 = vmatpush2.msra.mxu0 0.0
      %3935 = vmatprep.subr.mxu0 0.0
      %3936 = vmatpush2.msra.mxu0 0.0
      %3937 = vmatprep.subr.mxu0 0.0
      %3938 = vmatpush2.msra.mxu0 0.0
      %3939 = vmatprep.subr.mxu0 0.0
      %3940 = vmatpush2.msra.mxu0 0.0
      %3941 = vmatprep.subr.mxu0 0.0
      %3942 = vmatpush2.msra.mxu0 0.0
      %3943 = vmatprep.subr.mxu0 0.0
      %3944 = vmatpush2.msra.mxu0 0.0
      %3945 = vmatprep.subr.mxu0 0.0
      %3946 = vmatpush2.msra.mxu0 0.0
      %3947 = vmatprep.subr.mxu0 0.0
      %3948 = vmatpush2.msra.mxu0 0.0
      %3949 = vmatprep.subr.mxu0 0.0
      %3950 = vmatpush2.msra.mxu0 0.0
      %3951 = vmatprep.subr.mxu0 0.0
      %3952 = vmatpush2.msra.mxu0 0.0
      %3953 = vmatprep.subr.mxu0 0.0
      %3954 = vmatpush2.msra.mxu0 0.0
      %3955 = vmatprep.subr.mxu0 0.0
      %3956 = vmatpush2.msra.mxu0 0.0
      %3957 = vmatprep.subr.mxu0 0.0
      %3958 = vmatpush2.msra.mxu0 0.0
      %3959 = vmatprep.subr.mxu0 0.0
      %3960 = vmatpush2.msra.mxu0 0.0
      %3961 = vmatprep.mubr.f32.mxu0 0.0
      %3962 = vmatmul.mubr.f32.gmra.mxu0 %v3426
      %v3963 = vpop.f32.mrf.mxu0
      %v3964 = vadd.f32 %v3739, %v3963
      %v3965 = vpop.f32.mrf.mxu0
      %3966 = vmatprep.mubr.f32.mxu0 0.0
      %3967 = vmatmul.mubr.f32.gmra.mxu0 %v3427
      %v3968 = vpop.f32.mrf.mxu0
      %v3969 = vadd.f32 %v3744, %v3968
      %v3970 = vpop.f32.mrf.mxu0
      %3971 = vmatprep.mubr.f32.mxu0 0.0
      %3972 = vmatmul.mubr.f32.gmra.mxu0 %v3429
      %v3973 = vpop.f32.mrf.mxu0
      %v3974 = vadd.f32 %v3749, %v3973
      %v3975 = vpop.f32.mrf.mxu0
      %3976 = vmatprep.mubr.f32.mxu0 0.0
      %3977 = vmatmul.mubr.f32.gmra.mxu0 %v3430
      %v3978 = vpop.f32.mrf.mxu0
      %v3979 = vadd.f32 %v3754, %v3978
      %v3980 = vpop.f32.mrf.mxu0
      %3981 = vmatprep.mubr.f32.mxu0 0.0
      %3982 = vmatmul.mubr.f32.gmra.mxu0 %v3432
      %v3983 = vpop.f32.mrf.mxu0
      %v3984 = vadd.f32 %v3759, %v3983
      %v3985 = vpop.f32.mrf.mxu0
      %3986 = vmatprep.mubr.f32.mxu0 0.0
      %3987 = vmatmul.mubr.f32.gmra.mxu0 %v3433
      %v3988 = vpop.f32.mrf.mxu0
      %v3989 = vadd.f32 %v3764, %v3988
      %v3990 = vpop.f32.mrf.mxu0
      %3991 = vmatprep.mubr.f32.mxu0 0.0
      %3992 = vmatmul.mubr.f32.gmra.mxu0 %v3435
      %v3993 = vpop.f32.mrf.mxu0
      %v3994 = vadd.f32 %v3769, %v3993
      %v3995 = vpop.f32.mrf.mxu0
      %3996 = vmatprep.mubr.f32.mxu0 0.0
      %3997 = vmatmul.mubr.f32.gmra.mxu0 %v3436
      %v3998 = vpop.f32.mrf.mxu0
      %v3999 = vadd.f32 %v3774, %v3998
      %v4000 = vpop.f32.mrf.mxu0
      %4001 = vmatprep.mubr.f32.mxu0 0.0
      %4002 = vmatmul.mubr.f32.gmra.mxu0 %v3438
      %v4003 = vpop.f32.mrf.mxu0
      %v4004 = vadd.f32 %v3779, %v4003
      %v4005 = vpop.f32.mrf.mxu0
      %4006 = vmatprep.mubr.f32.mxu0 0.0
      %4007 = vmatmul.mubr.f32.gmra.mxu0 %v3439
      %v4008 = vpop.f32.mrf.mxu0
      %v4009 = vadd.f32 %v3784, %v4008
      %v4010 = vpop.f32.mrf.mxu0
      %4011 = vmatprep.mubr.f32.mxu0 0.0
      %4012 = vmatmul.mubr.f32.gmra.mxu0 %v3441
      %v4013 = vpop.f32.mrf.mxu0
      %v4014 = vadd.f32 %v3789, %v4013
      %v4015 = vpop.f32.mrf.mxu0
      %4016 = vmatprep.mubr.f32.mxu0 0.0
      %4017 = vmatmul.mubr.f32.gmra.mxu0 %v3442
      %v4018 = vpop.f32.mrf.mxu0
      %v4019 = vadd.f32 %v3794, %v4018
      %v4020 = vpop.f32.mrf.mxu0
      %4021 = vmatprep.mubr.f32.mxu0 0.0
      %4022 = vmatmul.mubr.f32.gmra.mxu0 %v3444
      %v4023 = vpop.f32.mrf.mxu0
      %v4024 = vadd.f32 %v3799, %v4023
      %v4025 = vpop.f32.mrf.mxu0
      %4026 = vmatprep.mubr.f32.mxu0 0.0
      %4027 = vmatmul.mubr.f32.gmra.mxu0 %v3445
      %v4028 = vpop.f32.mrf.mxu0
      %v4029 = vadd.f32 %v3804, %v4028
      %v4030 = vpop.f32.mrf.mxu0
      %4031 = vmatprep.mubr.f32.mxu0 0.0
      %4032 = vmatmul.mubr.f32.gmra.mxu0 %v3447
      %v4033 = vpop.f32.mrf.mxu0
      %v4034 = vadd.f32 %v3809, %v4033
      %v4035 = vpop.f32.mrf.mxu0
      %4036 = vmatprep.mubr.f32.mxu0 0.0
      %4037 = vmatmul.mubr.f32.gmra.mxu0 %v3448
      %v4038 = vpop.f32.mrf.mxu0
      %v4039 = vadd.f32 %v3814, %v4038
      %v4040 = vpop.f32.mrf.mxu0
      %4041 = vmatprep.mubr.f32.mxu0 0.0
      %4042 = vmatmul.mubr.f32.gmra.mxu0 %v3450
      %v4043 = vpop.f32.mrf.mxu0
      %v4044 = vadd.f32 %v3819, %v4043
      %v4045 = vpop.f32.mrf.mxu0
      %4046 = vmatprep.mubr.f32.mxu0 0.0
      %4047 = vmatmul.mubr.f32.gmra.mxu0 %v3451
      %v4048 = vpop.f32.mrf.mxu0
      %v4049 = vadd.f32 %v3824, %v4048
      %v4050 = vpop.f32.mrf.mxu0
      %4051 = vmatprep.mubr.f32.mxu0 0.0
      %4052 = vmatmul.mubr.f32.gmra.mxu0 %v3453
      %v4053 = vpop.f32.mrf.mxu0
      %v4054 = vadd.f32 %v3829, %v4053
      %v4055 = vpop.f32.mrf.mxu0
      %4056 = vmatprep.mubr.f32.mxu0 0.0
      %4057 = vmatmul.mubr.f32.gmra.mxu0 %v3454
      %v4058 = vpop.f32.mrf.mxu0
      %v4059 = vadd.f32 %v3834, %v4058
      %v4060 = vpop.f32.mrf.mxu0
      %4061 = vmatprep.mubr.f32.mxu0 0.0
      %4062 = vmatmul.mubr.f32.gmra.mxu0 %v3456
      %v4063 = vpop.f32.mrf.mxu0
      %v4064 = vadd.f32 %v3839, %v4063
      %v4065 = vpop.f32.mrf.mxu0
      %4066 = vmatprep.mubr.f32.mxu0 0.0
      %4067 = vmatmul.mubr.f32.gmra.mxu0 %v3457
      %v4068 = vpop.f32.mrf.mxu0
      %v4069 = vadd.f32 %v3844, %v4068
      %v4070 = vpop.f32.mrf.mxu0
      %4071 = vmatprep.mubr.f32.mxu0 0.0
      %4072 = vmatmul.mubr.f32.gmra.mxu0 %v3459
      %v4073 = vpop.f32.mrf.mxu0
      %v4074 = vadd.f32 %v3849, %v4073
      %v4075 = vpop.f32.mrf.mxu0
      %4076 = vmatprep.mubr.f32.mxu0 0.0
      %4077 = vmatmul.mubr.f32.gmra.mxu0 %v3460
      %v4078 = vpop.f32.mrf.mxu0
      %v4079 = vadd.f32 %v3854, %v4078
      %v4080 = vpop.f32.mrf.mxu0
      %4081 = vmatprep.mubr.f32.mxu0 0.0
      %4082 = vmatmul.mubr.f32.gmra.mxu0 %v3462
      %v4083 = vpop.f32.mrf.mxu0
      %v4084 = vadd.f32 %v3859, %v4083
      %v4085 = vpop.f32.mrf.mxu0
      %4086 = vmatprep.mubr.f32.mxu0 0.0
      %4087 = vmatmul.mubr.f32.gmra.mxu0 %v3463
      %v4088 = vpop.f32.mrf.mxu0
      %v4089 = vadd.f32 %v3864, %v4088
      %v4090 = vpop.f32.mrf.mxu0
      %4091 = vmatprep.mubr.f32.mxu0 0.0
      %4092 = vmatmul.mubr.f32.gmra.mxu0 %v3465
      %v4093 = vpop.f32.mrf.mxu0
      %v4094 = vadd.f32 %v3869, %v4093
      %v4095 = vpop.f32.mrf.mxu0
      %4096 = vmatprep.mubr.f32.mxu0 0.0
      %4097 = vmatmul.mubr.f32.gmra.mxu0 %v3466
      %v4098 = vpop.f32.mrf.mxu0
      %v4099 = vadd.f32 %v3874, %v4098
      %v4100 = vpop.f32.mrf.mxu0
      %4101 = vmatprep.mubr.f32.mxu0 0.0
      %4102 = vmatmul.mubr.f32.gmra.mxu0 %v3468
      %v4103 = vpop.f32.mrf.mxu0
      %v4104 = vadd.f32 %v3879, %v4103
      %v4105 = vpop.f32.mrf.mxu0
      %4106 = vmatprep.mubr.f32.mxu0 0.0
      %4107 = vmatmul.mubr.f32.gmra.mxu0 %v3469
      %v4108 = vpop.f32.mrf.mxu0
      %v4109 = vadd.f32 %v3884, %v4108
      %v4110 = vpop.f32.mrf.mxu0
      %4111 = vmatprep.mubr.f32.mxu0 0.0
      %4112 = vmatmul.mubr.f32.gmra.mxu0 %v3471
      %v4113 = vpop.f32.mrf.mxu0
      %v4114 = vadd.f32 %v3889, %v4113
      %v4115 = vpop.f32.mrf.mxu0
      %4116 = vmatprep.mubr.f32.mxu0 0.0
      %4117 = vmatmul.mubr.f32.gmra.mxu0 %v3472
      %v4118 = vpop.f32.mrf.mxu0
      %v4119 = vadd.f32 %v3894, %v4118
      %v4120 = vpop.f32.mrf.mxu0
      %4121 = vdwg.mxu0
      %v4122 = vrot.slane %v3426, 2
      %v4123 = vrot.slane %v3427, 2
      %v4124 = vsel %vm1024, %v4122, %v4123
      %v4125 = vrot.slane %v3428, 2
      %v4126 = vsel %vm1024, %v4123, %v4125
      %v4127 = vrot.slane %v3429, 2
      %v4128 = vrot.slane %v3430, 2
      %v4129 = vsel %vm1024, %v4127, %v4128
      %v4130 = vrot.slane %v3431, 2
      %v4131 = vsel %vm1024, %v4128, %v4130
      %v4132 = vrot.slane %v3432, 2
      %v4133 = vrot.slane %v3433, 2
      %v4134 = vsel %vm1024, %v4132, %v4133
      %v4135 = vrot.slane %v3434, 2
      %v4136 = vsel %vm1024, %v4133, %v4135
      %v4137 = vrot.slane %v3435, 2
      %v4138 = vrot.slane %v3436, 2
      %v4139 = vsel %vm1024, %v4137, %v4138
      %v4140 = vrot.slane %v3437, 2
      %v4141 = vsel %vm1024, %v4138, %v4140
      %v4142 = vrot.slane %v3438, 2
      %v4143 = vrot.slane %v3439, 2
      %v4144 = vsel %vm1024, %v4142, %v4143
      %v4145 = vrot.slane %v3440, 2
      %v4146 = vsel %vm1024, %v4143, %v4145
      %v4147 = vrot.slane %v3441, 2
      %v4148 = vrot.slane %v3442, 2
      %v4149 = vsel %vm1024, %v4147, %v4148
      %v4150 = vrot.slane %v3443, 2
      %v4151 = vsel %vm1024, %v4148, %v4150
      %v4152 = vrot.slane %v3444, 2
      %v4153 = vrot.slane %v3445, 2
      %v4154 = vsel %vm1024, %v4152, %v4153
      %v4155 = vrot.slane %v3446, 2
      %v4156 = vsel %vm1024, %v4153, %v4155
      %v4157 = vrot.slane %v3447, 2
      %v4158 = vrot.slane %v3448, 2
      %v4159 = vsel %vm1024, %v4157, %v4158
      %v4160 = vrot.slane %v3449, 2
      %v4161 = vsel %vm1024, %v4158, %v4160
      %v4162 = vrot.slane %v3450, 2
      %v4163 = vrot.slane %v3451, 2
      %v4164 = vsel %vm1024, %v4162, %v4163
      %v4165 = vrot.slane %v3452, 2
      %v4166 = vsel %vm1024, %v4163, %v4165
      %v4167 = vrot.slane %v3453, 2
      %v4168 = vrot.slane %v3454, 2
      %v4169 = vsel %vm1024, %v4167, %v4168
      %v4170 = vrot.slane %v3455, 2
      %v4171 = vsel %vm1024, %v4168, %v4170
      %v4172 = vrot.slane %v3456, 2
      %v4173 = vrot.slane %v3457, 2
      %v4174 = vsel %vm1024, %v4172, %v4173
      %v4175 = vrot.slane %v3458, 2
      %v4176 = vsel %vm1024, %v4173, %v4175
      %v4177 = vrot.slane %v3459, 2
      %v4178 = vrot.slane %v3460, 2
      %v4179 = vsel %vm1024, %v4177, %v4178
      %v4180 = vrot.slane %v3461, 2
      %v4181 = vsel %vm1024, %v4178, %v4180
      %v4182 = vrot.slane %v3462, 2
      %v4183 = vrot.slane %v3463, 2
      %v4184 = vsel %vm1024, %v4182, %v4183
      %v4185 = vrot.slane %v3464, 2
      %v4186 = vsel %vm1024, %v4183, %v4185
      %v4187 = vrot.slane %v3465, 2
      %v4188 = vrot.slane %v3466, 2
      %v4189 = vsel %vm1024, %v4187, %v4188
      %v4190 = vrot.slane %v3467, 2
      %v4191 = vsel %vm1024, %v4188, %v4190
      %v4192 = vrot.slane %v3468, 2
      %v4193 = vrot.slane %v3469, 2
      %v4194 = vsel %vm1024, %v4192, %v4193
      %v4195 = vrot.slane %v3470, 2
      %v4196 = vsel %vm1024, %v4193, %v4195
      %v4197 = vrot.slane %v3471, 2
      %v4198 = vrot.slane %v3472, 2
      %v4199 = vsel %vm1024, %v4197, %v4198
      %v4200 = vrot.slane %v3473, 2
      %v4201 = vsel %vm1024, %v4198, %v4200
      %v4234 = vld [vmem:[%s3 + $0x100] sm:$0xff]
      %v4235 = vld [vmem:[%s3 + $0x108] sm:$0xff]
      %v4236 = vld [vmem:[%s3 + $0x110] sm:$0xff]
      %v4237 = vld [vmem:[%s3 + $0x118] sm:$0xff]
      %v4238 = vld [vmem:[%s3 + $0x120] sm:$0xff]
      %v4239 = vld [vmem:[%s3 + $0x128] sm:$0xff]
      %v4240 = vld [vmem:[%s3 + $0x130] sm:$0xff]
      %v4241 = vld [vmem:[%s3 + $0x138] sm:$0xff]
      %v4242 = vld [vmem:[%s3 + $0x140] sm:$0xff]
      %v4243 = vld [vmem:[%s3 + $0x148] sm:$0xff]
      %v4244 = vld [vmem:[%s3 + $0x150] sm:$0xff]
      %v4245 = vld [vmem:[%s3 + $0x158] sm:$0xff]
      %v4246 = vld [vmem:[%s3 + $0x160] sm:$0xff]
      %v4247 = vld [vmem:[%s3 + $0x168] sm:$0xff]
      %v4248 = vld [vmem:[%s3 + $0x170] sm:$0xff]
      %v4249 = vld [vmem:[%s3 + $0x178] sm:$0xff]
      %4250 = vmatprep.subr.mxu0 0.0
      %4251 = vmatpush1.msra.mxu0 %v4249
      %4252 = vmatprep.subr.mxu0 0.0
      %4253 = vmatpush1.msra.mxu0 %v4248
      %4254 = vmatprep.subr.mxu0 0.0
      %4255 = vmatpush1.msra.mxu0 %v4247
      %4256 = vmatprep.subr.mxu0 0.0
      %4257 = vmatpush1.msra.mxu0 %v4246
      %4258 = vmatprep.subr.mxu0 0.0
      %4259 = vmatpush1.msra.mxu0 %v4245
      %4260 = vmatprep.subr.mxu0 0.0
      %4261 = vmatpush1.msra.mxu0 %v4244
      %4262 = vmatprep.subr.mxu0 0.0
      %4263 = vmatpush1.msra.mxu0 %v4243
      %4264 = vmatprep.subr.mxu0 0.0
      %4265 = vmatpush1.msra.mxu0 %v4242
      %4266 = vmatprep.subr.mxu0 0.0
      %4267 = vmatpush1.msra.mxu0 %v4241
      %4268 = vmatprep.subr.mxu0 0.0
      %4269 = vmatpush1.msra.mxu0 %v4240
      %4270 = vmatprep.subr.mxu0 0.0
      %4271 = vmatpush1.msra.mxu0 %v4239
      %4272 = vmatprep.subr.mxu0 0.0
      %4273 = vmatpush1.msra.mxu0 %v4238
      %4274 = vmatprep.subr.mxu0 0.0
      %4275 = vmatpush1.msra.mxu0 %v4237
      %4276 = vmatprep.subr.mxu0 0.0
      %4277 = vmatpush1.msra.mxu0 %v4236
      %4278 = vmatprep.subr.mxu0 0.0
      %4279 = vmatpush1.msra.mxu0 %v4235
      %4280 = vmatprep.subr.mxu0 0.0
      %4281 = vmatpush1.msra.mxu0 %v4234
      %4282 = vmatprep.subr.mxu0 0.0
      %4283 = vmatpush2.msra.mxu0 0.0
      %4284 = vmatprep.subr.mxu0 0.0
      %4285 = vmatpush2.msra.mxu0 0.0
      %4286 = vmatprep.subr.mxu0 0.0
      %4287 = vmatpush2.msra.mxu0 0.0
      %4288 = vmatprep.subr.mxu0 0.0
      %4289 = vmatpush2.msra.mxu0 0.0
      %4290 = vmatprep.subr.mxu0 0.0
      %4291 = vmatpush2.msra.mxu0 0.0
      %4292 = vmatprep.subr.mxu0 0.0
      %4293 = vmatpush2.msra.mxu0 0.0
      %4294 = vmatprep.subr.mxu0 0.0
      %4295 = vmatpush2.msra.mxu0 0.0
      %4296 = vmatprep.subr.mxu0 0.0
      %4297 = vmatpush2.msra.mxu0 0.0
      %4298 = vmatprep.subr.mxu0 0.0
      %4299 = vmatpush2.msra.mxu0 0.0
      %4300 = vmatprep.subr.mxu0 0.0
      %4301 = vmatpush2.msra.mxu0 0.0
      %4302 = vmatprep.subr.mxu0 0.0
      %4303 = vmatpush2.msra.mxu0 0.0
      %4304 = vmatprep.subr.mxu0 0.0
      %4305 = vmatpush2.msra.mxu0 0.0
      %4306 = vmatprep.subr.mxu0 0.0
      %4307 = vmatpush2.msra.mxu0 0.0
      %4308 = vmatprep.subr.mxu0 0.0
      %4309 = vmatpush2.msra.mxu0 0.0
      %4310 = vmatprep.subr.mxu0 0.0
      %4311 = vmatpush2.msra.mxu0 0.0
      %4312 = vmatprep.subr.mxu0 0.0
      %4313 = vmatpush2.msra.mxu0 0.0
      %4314 = vmatprep.mubr.f32.mxu0 0.0
      %4315 = vmatmul.mubr.f32.gmra.mxu0 %v4124
      %v4316 = vpop.f32.mrf.mxu0
      %v4317 = vadd.f32 0.0, %v4316
      %v4318 = vpop.f32.mrf.mxu0
      %4319 = vmatprep.mubr.f32.mxu0 0.0
      %4320 = vmatmul.mubr.f32.gmra.mxu0 %v4126
      %v4321 = vpop.f32.mrf.mxu0
      %v4322 = vadd.f32 0.0, %v4321
      %v4323 = vpop.f32.mrf.mxu0
      %4324 = vmatprep.mubr.f32.mxu0 0.0
      %4325 = vmatmul.mubr.f32.gmra.mxu0 %v4129
      %v4326 = vpop.f32.mrf.mxu0
      %v4327 = vadd.f32 0.0, %v4326
      %v4328 = vpop.f32.mrf.mxu0
      %4329 = vmatprep.mubr.f32.mxu0 0.0
      %4330 = vmatmul.mubr.f32.gmra.mxu0 %v4131
      %v4331 = vpop.f32.mrf.mxu0
      %v4332 = vadd.f32 0.0, %v4331
      %v4333 = vpop.f32.mrf.mxu0
      %4334 = vmatprep.mubr.f32.mxu0 0.0
      %4335 = vmatmul.mubr.f32.gmra.mxu0 %v4134
      %v4336 = vpop.f32.mrf.mxu0
      %v4337 = vadd.f32 0.0, %v4336
      %v4338 = vpop.f32.mrf.mxu0
      %4339 = vmatprep.mubr.f32.mxu0 0.0
      %4340 = vmatmul.mubr.f32.gmra.mxu0 %v4136
      %v4341 = vpop.f32.mrf.mxu0
      %v4342 = vadd.f32 0.0, %v4341
      %v4343 = vpop.f32.mrf.mxu0
      %4344 = vmatprep.mubr.f32.mxu0 0.0
      %4345 = vmatmul.mubr.f32.gmra.mxu0 %v4139
      %v4346 = vpop.f32.mrf.mxu0
      %v4347 = vadd.f32 0.0, %v4346
      %v4348 = vpop.f32.mrf.mxu0
      %4349 = vmatprep.mubr.f32.mxu0 0.0
      %4350 = vmatmul.mubr.f32.gmra.mxu0 %v4141
      %v4351 = vpop.f32.mrf.mxu0
      %v4352 = vadd.f32 0.0, %v4351
      %v4353 = vpop.f32.mrf.mxu0
      %4354 = vmatprep.mubr.f32.mxu0 0.0
      %4355 = vmatmul.mubr.f32.gmra.mxu0 %v4144
      %v4356 = vpop.f32.mrf.mxu0
      %v4357 = vadd.f32 0.0, %v4356
      %v4358 = vpop.f32.mrf.mxu0
      %4359 = vmatprep.mubr.f32.mxu0 0.0
      %4360 = vmatmul.mubr.f32.gmra.mxu0 %v4146
      %v4361 = vpop.f32.mrf.mxu0
      %v4362 = vadd.f32 0.0, %v4361
      %v4363 = vpop.f32.mrf.mxu0
      %4364 = vmatprep.mubr.f32.mxu0 0.0
      %4365 = vmatmul.mubr.f32.gmra.mxu0 %v4149
      %v4366 = vpop.f32.mrf.mxu0
      %v4367 = vadd.f32 0.0, %v4366
      %v4368 = vpop.f32.mrf.mxu0
      %4369 = vmatprep.mubr.f32.mxu0 0.0
      %4370 = vmatmul.mubr.f32.gmra.mxu0 %v4151
      %v4371 = vpop.f32.mrf.mxu0
      %v4372 = vadd.f32 0.0, %v4371
      %v4373 = vpop.f32.mrf.mxu0
      %4374 = vmatprep.mubr.f32.mxu0 0.0
      %4375 = vmatmul.mubr.f32.gmra.mxu0 %v4154
      %v4376 = vpop.f32.mrf.mxu0
      %v4377 = vadd.f32 0.0, %v4376
      %v4378 = vpop.f32.mrf.mxu0
      %4379 = vmatprep.mubr.f32.mxu0 0.0
      %4380 = vmatmul.mubr.f32.gmra.mxu0 %v4156
      %v4381 = vpop.f32.mrf.mxu0
      %v4382 = vadd.f32 0.0, %v4381
      %v4383 = vpop.f32.mrf.mxu0
      %4384 = vmatprep.mubr.f32.mxu0 0.0
      %4385 = vmatmul.mubr.f32.gmra.mxu0 %v4159
      %v4386 = vpop.f32.mrf.mxu0
      %v4387 = vadd.f32 0.0, %v4386
      %v4388 = vpop.f32.mrf.mxu0
      %4389 = vmatprep.mubr.f32.mxu0 0.0
      %4390 = vmatmul.mubr.f32.gmra.mxu0 %v4161
      %v4391 = vpop.f32.mrf.mxu0
      %v4392 = vadd.f32 0.0, %v4391
      %v4393 = vpop.f32.mrf.mxu0
      %4394 = vmatprep.mubr.f32.mxu0 0.0
      %4395 = vmatmul.mubr.f32.gmra.mxu0 %v4164
      %v4396 = vpop.f32.mrf.mxu0
      %v4397 = vadd.f32 0.0, %v4396
      %v4398 = vpop.f32.mrf.mxu0
      %4399 = vmatprep.mubr.f32.mxu0 0.0
      %4400 = vmatmul.mubr.f32.gmra.mxu0 %v4166
      %v4401 = vpop.f32.mrf.mxu0
      %v4402 = vadd.f32 0.0, %v4401
      %v4403 = vpop.f32.mrf.mxu0
      %4404 = vmatprep.mubr.f32.mxu0 0.0
      %4405 = vmatmul.mubr.f32.gmra.mxu0 %v4169
      %v4406 = vpop.f32.mrf.mxu0
      %v4407 = vadd.f32 0.0, %v4406
      %v4408 = vpop.f32.mrf.mxu0
      %4409 = vmatprep.mubr.f32.mxu0 0.0
      %4410 = vmatmul.mubr.f32.gmra.mxu0 %v4171
      %v4411 = vpop.f32.mrf.mxu0
      %v4412 = vadd.f32 0.0, %v4411
      %v4413 = vpop.f32.mrf.mxu0
      %4414 = vmatprep.mubr.f32.mxu0 0.0
      %4415 = vmatmul.mubr.f32.gmra.mxu0 %v4174
      %v4416 = vpop.f32.mrf.mxu0
      %v4417 = vadd.f32 0.0, %v4416
      %v4418 = vpop.f32.mrf.mxu0
      %4419 = vmatprep.mubr.f32.mxu0 0.0
      %4420 = vmatmul.mubr.f32.gmra.mxu0 %v4176
      %v4421 = vpop.f32.mrf.mxu0
      %v4422 = vadd.f32 0.0, %v4421
      %v4423 = vpop.f32.mrf.mxu0
      %4424 = vmatprep.mubr.f32.mxu0 0.0
      %4425 = vmatmul.mubr.f32.gmra.mxu0 %v4179
      %v4426 = vpop.f32.mrf.mxu0
      %v4427 = vadd.f32 0.0, %v4426
      %v4428 = vpop.f32.mrf.mxu0
      %4429 = vmatprep.mubr.f32.mxu0 0.0
      %4430 = vmatmul.mubr.f32.gmra.mxu0 %v4181
      %v4431 = vpop.f32.mrf.mxu0
      %v4432 = vadd.f32 0.0, %v4431
      %v4433 = vpop.f32.mrf.mxu0
      %4434 = vmatprep.mubr.f32.mxu0 0.0
      %4435 = vmatmul.mubr.f32.gmra.mxu0 %v4184
      %v4436 = vpop.f32.mrf.mxu0
      %v4437 = vadd.f32 0.0, %v4436
      %v4438 = vpop.f32.mrf.mxu0
      %4439 = vmatprep.mubr.f32.mxu0 0.0
      %4440 = vmatmul.mubr.f32.gmra.mxu0 %v4186
      %v4441 = vpop.f32.mrf.mxu0
      %v4442 = vadd.f32 0.0, %v4441
      %v4443 = vpop.f32.mrf.mxu0
      %4444 = vmatprep.mubr.f32.mxu0 0.0
      %4445 = vmatmul.mubr.f32.gmra.mxu0 %v4189
      %v4446 = vpop.f32.mrf.mxu0
      %v4447 = vadd.f32 0.0, %v4446
      %v4448 = vpop.f32.mrf.mxu0
      %4449 = vmatprep.mubr.f32.mxu0 0.0
      %4450 = vmatmul.mubr.f32.gmra.mxu0 %v4191
      %v4451 = vpop.f32.mrf.mxu0
      %v4452 = vadd.f32 0.0, %v4451
      %v4453 = vpop.f32.mrf.mxu0
      %4454 = vmatprep.mubr.f32.mxu0 0.0
      %4455 = vmatmul.mubr.f32.gmra.mxu0 %v4194
      %v4456 = vpop.f32.mrf.mxu0
      %v4457 = vadd.f32 0.0, %v4456
      %v4458 = vpop.f32.mrf.mxu0
      %4459 = vmatprep.mubr.f32.mxu0 0.0
      %4460 = vmatmul.mubr.f32.gmra.mxu0 %v4196
      %v4461 = vpop.f32.mrf.mxu0
      %v4462 = vadd.f32 0.0, %v4461
      %v4463 = vpop.f32.mrf.mxu0
      %4464 = vmatprep.mubr.f32.mxu0 0.0
      %4465 = vmatmul.mubr.f32.gmra.mxu0 %v4199
      %v4466 = vpop.f32.mrf.mxu0
      %v4467 = vadd.f32 0.0, %v4466
      %v4468 = vpop.f32.mrf.mxu0
      %4469 = vmatprep.mubr.f32.mxu0 0.0
      %4470 = vmatmul.mubr.f32.gmra.mxu0 %v4201
      %v4471 = vpop.f32.mrf.mxu0
      %v4472 = vadd.f32 0.0, %v4471
      %v4473 = vpop.f32.mrf.mxu0
      %4474 = vdwg.mxu0
      %v4475 = vadd.f32 %v3964, %v4317
      %v4476 = vadd.f32 %v3969, %v4322
      %v4477 = vadd.f32 %v3974, %v4327
      %v4478 = vadd.f32 %v3979, %v4332
      %v4479 = vadd.f32 %v3984, %v4337
      %v4480 = vadd.f32 %v3989, %v4342
      %v4481 = vadd.f32 %v3994, %v4347
      %v4482 = vadd.f32 %v3999, %v4352
      %v4483 = vadd.f32 %v4004, %v4357
      %v4484 = vadd.f32 %v4009, %v4362
      %v4485 = vadd.f32 %v4014, %v4367
      %v4486 = vadd.f32 %v4019, %v4372
      %v4487 = vadd.f32 %v4024, %v4377
      %v4488 = vadd.f32 %v4029, %v4382
      %v4489 = vadd.f32 %v4034, %v4387
      %v4490 = vadd.f32 %v4039, %v4392
      %v4491 = vadd.f32 %v4044, %v4397
      %v4492 = vadd.f32 %v4049, %v4402
      %v4493 = vadd.f32 %v4054, %v4407
      %v4494 = vadd.f32 %v4059, %v4412
      %v4495 = vadd.f32 %v4064, %v4417
      %v4496 = vadd.f32 %v4069, %v4422
      %v4497 = vadd.f32 %v4074, %v4427
      %v4498 = vadd.f32 %v4079, %v4432
      %v4499 = vadd.f32 %v4084, %v4437
      %v4500 = vadd.f32 %v4089, %v4442
      %v4501 = vadd.f32 %v4094, %v4447
      %v4502 = vadd.f32 %v4099, %v4452
      %v4503 = vadd.f32 %v4104, %v4457
      %v4504 = vadd.f32 %v4109, %v4462
      %v4505 = vadd.f32 %v4114, %v4467
      %v4506 = vadd.f32 %v4119, %v4472
      %v4507 = vld [vmem:[%s3 + $0x180] sm:$0xff]
      %v4508 = vld [vmem:[%s3 + $0x188] sm:$0xff]
      %v4509 = vld [vmem:[%s3 + $0x190] sm:$0xff]
      %v4510 = vld [vmem:[%s3 + $0x198] sm:$0xff]
      %v4511 = vld [vmem:[%s3 + $0x1a0] sm:$0xff]
      %v4512 = vld [vmem:[%s3 + $0x1a8] sm:$0xff]
      %v4513 = vld [vmem:[%s3 + $0x1b0] sm:$0xff]
      %v4514 = vld [vmem:[%s3 + $0x1b8] sm:$0xff]
      %v4515 = vld [vmem:[%s3 + $0x1c0] sm:$0xff]
      %v4516 = vld [vmem:[%s3 + $0x1c8] sm:$0xff]
      %v4517 = vld [vmem:[%s3 + $0x1d0] sm:$0xff]
      %v4518 = vld [vmem:[%s3 + $0x1d8] sm:$0xff]
      %v4519 = vld [vmem:[%s3 + $0x1e0] sm:$0xff]
      %v4520 = vld [vmem:[%s3 + $0x1e8] sm:$0xff]
      %v4521 = vld [vmem:[%s3 + $0x1f0] sm:$0xff]
      %v4522 = vld [vmem:[%s3 + $0x1f8] sm:$0xff]
      %4523 = vmatprep.subr.mxu0 0.0
      %4524 = vmatpush1.msra.mxu0 %v4522
      %4525 = vmatprep.subr.mxu0 0.0
      %4526 = vmatpush1.msra.mxu0 %v4521
      %4527 = vmatprep.subr.mxu0 0.0
      %4528 = vmatpush1.msra.mxu0 %v4520
      %4529 = vmatprep.subr.mxu0 0.0
      %4530 = vmatpush1.msra.mxu0 %v4519
      %4531 = vmatprep.subr.mxu0 0.0
      %4532 = vmatpush1.msra.mxu0 %v4518
      %4533 = vmatprep.subr.mxu0 0.0
      %4534 = vmatpush1.msra.mxu0 %v4517
      %4535 = vmatprep.subr.mxu0 0.0
      %4536 = vmatpush1.msra.mxu0 %v4516
      %4537 = vmatprep.subr.mxu0 0.0
      %4538 = vmatpush1.msra.mxu0 %v4515
      %4539 = vmatprep.subr.mxu0 0.0
      %4540 = vmatpush1.msra.mxu0 %v4514
      %4541 = vmatprep.subr.mxu0 0.0
      %4542 = vmatpush1.msra.mxu0 %v4513
      %4543 = vmatprep.subr.mxu0 0.0
      %4544 = vmatpush1.msra.mxu0 %v4512
      %4545 = vmatprep.subr.mxu0 0.0
      %4546 = vmatpush1.msra.mxu0 %v4511
      %4547 = vmatprep.subr.mxu0 0.0
      %4548 = vmatpush1.msra.mxu0 %v4510
      %4549 = vmatprep.subr.mxu0 0.0
      %4550 = vmatpush1.msra.mxu0 %v4509
      %4551 = vmatprep.subr.mxu0 0.0
      %4552 = vmatpush1.msra.mxu0 %v4508
      %4553 = vmatprep.subr.mxu0 0.0
      %4554 = vmatpush1.msra.mxu0 %v4507
      %4555 = vmatprep.subr.mxu0 0.0
      %4556 = vmatpush2.msra.mxu0 0.0
      %4557 = vmatprep.subr.mxu0 0.0
      %4558 = vmatpush2.msra.mxu0 0.0
      %4559 = vmatprep.subr.mxu0 0.0
      %4560 = vmatpush2.msra.mxu0 0.0
      %4561 = vmatprep.subr.mxu0 0.0
      %4562 = vmatpush2.msra.mxu0 0.0
      %4563 = vmatprep.subr.mxu0 0.0
      %4564 = vmatpush2.msra.mxu0 0.0
      %4565 = vmatprep.subr.mxu0 0.0
      %4566 = vmatpush2.msra.mxu0 0.0
      %4567 = vmatprep.subr.mxu0 0.0
      %4568 = vmatpush2.msra.mxu0 0.0
      %4569 = vmatprep.subr.mxu0 0.0
      %4570 = vmatpush2.msra.mxu0 0.0
      %4571 = vmatprep.subr.mxu0 0.0
      %4572 = vmatpush2.msra.mxu0 0.0
      %4573 = vmatprep.subr.mxu0 0.0
      %4574 = vmatpush2.msra.mxu0 0.0
      %4575 = vmatprep.subr.mxu0 0.0
      %4576 = vmatpush2.msra.mxu0 0.0
      %4577 = vmatprep.subr.mxu0 0.0
      %4578 = vmatpush2.msra.mxu0 0.0
      %4579 = vmatprep.subr.mxu0 0.0
      %4580 = vmatpush2.msra.mxu0 0.0
      %4581 = vmatprep.subr.mxu0 0.0
      %4582 = vmatpush2.msra.mxu0 0.0
      %4583 = vmatprep.subr.mxu0 0.0
      %4584 = vmatpush2.msra.mxu0 0.0
      %4585 = vmatprep.subr.mxu0 0.0
      %4586 = vmatpush2.msra.mxu0 0.0
      %4587 = vmatprep.mubr.f32.mxu0 0.0
      %4588 = vmatmul.mubr.f32.gmra.mxu0 %v3429
      %v4589 = vpop.f32.mrf.mxu0
      %v4590 = vadd.f32 0.0, %v4589
      %v4591 = vpop.f32.mrf.mxu0
      %4592 = vmatprep.mubr.f32.mxu0 0.0
      %4593 = vmatmul.mubr.f32.gmra.mxu0 %v3430
      %v4594 = vpop.f32.mrf.mxu0
      %v4595 = vadd.f32 0.0, %v4594
      %v4596 = vpop.f32.mrf.mxu0
      %4597 = vmatprep.mubr.f32.mxu0 0.0
      %4598 = vmatmul.mubr.f32.gmra.mxu0 %v3432
      %v4599 = vpop.f32.mrf.mxu0
      %v4600 = vadd.f32 0.0, %v4599
      %v4601 = vpop.f32.mrf.mxu0
      %4602 = vmatprep.mubr.f32.mxu0 0.0
      %4603 = vmatmul.mubr.f32.gmra.mxu0 %v3433
      %v4604 = vpop.f32.mrf.mxu0
      %v4605 = vadd.f32 0.0, %v4604
      %v4606 = vpop.f32.mrf.mxu0
      %4607 = vmatprep.mubr.f32.mxu0 0.0
      %4608 = vmatmul.mubr.f32.gmra.mxu0 %v3435
      %v4609 = vpop.f32.mrf.mxu0
      %v4610 = vadd.f32 0.0, %v4609
      %v4611 = vpop.f32.mrf.mxu0
      %4612 = vmatprep.mubr.f32.mxu0 0.0
      %4613 = vmatmul.mubr.f32.gmra.mxu0 %v3436
      %v4614 = vpop.f32.mrf.mxu0
      %v4615 = vadd.f32 0.0, %v4614
      %v4616 = vpop.f32.mrf.mxu0
      %4617 = vmatprep.mubr.f32.mxu0 0.0
      %4618 = vmatmul.mubr.f32.gmra.mxu0 %v3438
      %v4619 = vpop.f32.mrf.mxu0
      %v4620 = vadd.f32 0.0, %v4619
      %v4621 = vpop.f32.mrf.mxu0
      %4622 = vmatprep.mubr.f32.mxu0 0.0
      %4623 = vmatmul.mubr.f32.gmra.mxu0 %v3439
      %v4624 = vpop.f32.mrf.mxu0
      %v4625 = vadd.f32 0.0, %v4624
      %v4626 = vpop.f32.mrf.mxu0
      %4627 = vmatprep.mubr.f32.mxu0 0.0
      %4628 = vmatmul.mubr.f32.gmra.mxu0 %v3441
      %v4629 = vpop.f32.mrf.mxu0
      %v4630 = vadd.f32 0.0, %v4629
      %v4631 = vpop.f32.mrf.mxu0
      %4632 = vmatprep.mubr.f32.mxu0 0.0
      %4633 = vmatmul.mubr.f32.gmra.mxu0 %v3442
      %v4634 = vpop.f32.mrf.mxu0
      %v4635 = vadd.f32 0.0, %v4634
      %v4636 = vpop.f32.mrf.mxu0
      %4637 = vmatprep.mubr.f32.mxu0 0.0
      %4638 = vmatmul.mubr.f32.gmra.mxu0 %v3444
      %v4639 = vpop.f32.mrf.mxu0
      %v4640 = vadd.f32 0.0, %v4639
      %v4641 = vpop.f32.mrf.mxu0
      %4642 = vmatprep.mubr.f32.mxu0 0.0
      %4643 = vmatmul.mubr.f32.gmra.mxu0 %v3445
      %v4644 = vpop.f32.mrf.mxu0
      %v4645 = vadd.f32 0.0, %v4644
      %v4646 = vpop.f32.mrf.mxu0
      %4647 = vmatprep.mubr.f32.mxu0 0.0
      %4648 = vmatmul.mubr.f32.gmra.mxu0 %v3447
      %v4649 = vpop.f32.mrf.mxu0
      %v4650 = vadd.f32 0.0, %v4649
      %v4651 = vpop.f32.mrf.mxu0
      %4652 = vmatprep.mubr.f32.mxu0 0.0
      %4653 = vmatmul.mubr.f32.gmra.mxu0 %v3448
      %v4654 = vpop.f32.mrf.mxu0
      %v4655 = vadd.f32 0.0, %v4654
      %v4656 = vpop.f32.mrf.mxu0
      %4657 = vmatprep.mubr.f32.mxu0 0.0
      %4658 = vmatmul.mubr.f32.gmra.mxu0 %v3450
      %v4659 = vpop.f32.mrf.mxu0
      %v4660 = vadd.f32 0.0, %v4659
      %v4661 = vpop.f32.mrf.mxu0
      %4662 = vmatprep.mubr.f32.mxu0 0.0
      %4663 = vmatmul.mubr.f32.gmra.mxu0 %v3451
      %v4664 = vpop.f32.mrf.mxu0
      %v4665 = vadd.f32 0.0, %v4664
      %v4666 = vpop.f32.mrf.mxu0
      %4667 = vmatprep.mubr.f32.mxu0 0.0
      %4668 = vmatmul.mubr.f32.gmra.mxu0 %v3453
      %v4669 = vpop.f32.mrf.mxu0
      %v4670 = vadd.f32 0.0, %v4669
      %v4671 = vpop.f32.mrf.mxu0
      %4672 = vmatprep.mubr.f32.mxu0 0.0
      %4673 = vmatmul.mubr.f32.gmra.mxu0 %v3454
      %v4674 = vpop.f32.mrf.mxu0
      %v4675 = vadd.f32 0.0, %v4674
      %v4676 = vpop.f32.mrf.mxu0
      %4677 = vmatprep.mubr.f32.mxu0 0.0
      %4678 = vmatmul.mubr.f32.gmra.mxu0 %v3456
      %v4679 = vpop.f32.mrf.mxu0
      %v4680 = vadd.f32 0.0, %v4679
      %v4681 = vpop.f32.mrf.mxu0
      %4682 = vmatprep.mubr.f32.mxu0 0.0
      %4683 = vmatmul.mubr.f32.gmra.mxu0 %v3457
      %v4684 = vpop.f32.mrf.mxu0
      %v4685 = vadd.f32 0.0, %v4684
      %v4686 = vpop.f32.mrf.mxu0
      %4687 = vmatprep.mubr.f32.mxu0 0.0
      %4688 = vmatmul.mubr.f32.gmra.mxu0 %v3459
      %v4689 = vpop.f32.mrf.mxu0
      %v4690 = vadd.f32 0.0, %v4689
      %v4691 = vpop.f32.mrf.mxu0
      %4692 = vmatprep.mubr.f32.mxu0 0.0
      %4693 = vmatmul.mubr.f32.gmra.mxu0 %v3460
      %v4694 = vpop.f32.mrf.mxu0
      %v4695 = vadd.f32 0.0, %v4694
      %v4696 = vpop.f32.mrf.mxu0
      %4697 = vmatprep.mubr.f32.mxu0 0.0
      %4698 = vmatmul.mubr.f32.gmra.mxu0 %v3462
      %v4699 = vpop.f32.mrf.mxu0
      %v4700 = vadd.f32 0.0, %v4699
      %v4701 = vpop.f32.mrf.mxu0
      %4702 = vmatprep.mubr.f32.mxu0 0.0
      %4703 = vmatmul.mubr.f32.gmra.mxu0 %v3463
      %v4704 = vpop.f32.mrf.mxu0
      %v4705 = vadd.f32 0.0, %v4704
      %v4706 = vpop.f32.mrf.mxu0
      %4707 = vmatprep.mubr.f32.mxu0 0.0
      %4708 = vmatmul.mubr.f32.gmra.mxu0 %v3465
      %v4709 = vpop.f32.mrf.mxu0
      %v4710 = vadd.f32 0.0, %v4709
      %v4711 = vpop.f32.mrf.mxu0
      %4712 = vmatprep.mubr.f32.mxu0 0.0
      %4713 = vmatmul.mubr.f32.gmra.mxu0 %v3466
      %v4714 = vpop.f32.mrf.mxu0
      %v4715 = vadd.f32 0.0, %v4714
      %v4716 = vpop.f32.mrf.mxu0
      %4717 = vmatprep.mubr.f32.mxu0 0.0
      %4718 = vmatmul.mubr.f32.gmra.mxu0 %v3468
      %v4719 = vpop.f32.mrf.mxu0
      %v4720 = vadd.f32 0.0, %v4719
      %v4721 = vpop.f32.mrf.mxu0
      %4722 = vmatprep.mubr.f32.mxu0 0.0
      %4723 = vmatmul.mubr.f32.gmra.mxu0 %v3469
      %v4724 = vpop.f32.mrf.mxu0
      %v4725 = vadd.f32 0.0, %v4724
      %v4726 = vpop.f32.mrf.mxu0
      %4727 = vmatprep.mubr.f32.mxu0 0.0
      %4728 = vmatmul.mubr.f32.gmra.mxu0 %v3471
      %v4729 = vpop.f32.mrf.mxu0
      %v4730 = vadd.f32 0.0, %v4729
      %v4731 = vpop.f32.mrf.mxu0
      %4732 = vmatprep.mubr.f32.mxu0 0.0
      %4733 = vmatmul.mubr.f32.gmra.mxu0 %v3472
      %v4734 = vpop.f32.mrf.mxu0
      %v4735 = vadd.f32 0.0, %v4734
      %v4736 = vpop.f32.mrf.mxu0
      %4737 = vmatprep.mubr.f32.mxu0 0.0
      %4738 = vmatmul.mubr.f32.gmra.mxu0 %v3474
      %v4739 = vpop.f32.mrf.mxu0
      %v4740 = vadd.f32 0.0, %v4739
      %v4741 = vpop.f32.mrf.mxu0
      %4742 = vmatprep.mubr.f32.mxu0 0.0
      %4743 = vmatmul.mubr.f32.gmra.mxu0 %v3475
      %v4744 = vpop.f32.mrf.mxu0
      %v4745 = vadd.f32 0.0, %v4744
      %v4746 = vpop.f32.mrf.mxu0
      %4747 = vdwg.mxu0
      %v4748 = vadd.f32 %v4475, %v4590
      %v4749 = vadd.f32 %v4476, %v4595
      %v4750 = vadd.f32 %v4477, %v4600
      %v4751 = vadd.f32 %v4478, %v4605
      %v4752 = vadd.f32 %v4479, %v4610
      %v4753 = vadd.f32 %v4480, %v4615
      %v4754 = vadd.f32 %v4481, %v4620
      %v4755 = vadd.f32 %v4482, %v4625
      %v4756 = vadd.f32 %v4483, %v4630
      %v4757 = vadd.f32 %v4484, %v4635
      %v4758 = vadd.f32 %v4485, %v4640
      %v4759 = vadd.f32 %v4486, %v4645
      %v4760 = vadd.f32 %v4487, %v4650
      %v4761 = vadd.f32 %v4488, %v4655
      %v4762 = vadd.f32 %v4489, %v4660
      %v4763 = vadd.f32 %v4490, %v4665
      %v4764 = vadd.f32 %v4491, %v4670
      %v4765 = vadd.f32 %v4492, %v4675
      %v4766 = vadd.f32 %v4493, %v4680
      %v4767 = vadd.f32 %v4494, %v4685
      %v4768 = vadd.f32 %v4495, %v4690
      %v4769 = vadd.f32 %v4496, %v4695
      %v4770 = vadd.f32 %v4497, %v4700
      %v4771 = vadd.f32 %v4498, %v4705
      %v4772 = vadd.f32 %v4499, %v4710
      %v4773 = vadd.f32 %v4500, %v4715
      %v4774 = vadd.f32 %v4501, %v4720
      %v4775 = vadd.f32 %v4502, %v4725
      %v4776 = vadd.f32 %v4503, %v4730
      %v4777 = vadd.f32 %v4504, %v4735
      %v4778 = vadd.f32 %v4505, %v4740
      %v4779 = vadd.f32 %v4506, %v4745
      %v4783 = vrot.slane %v3474, 1
      %v4784 = vrot.slane %v3475, 1
      %v4785 = vsel %vm391, %v4783, %v4784
      %v4786 = vrot.slane %v3476, 1
      %v4787 = vsel %vm391, %v4784, %v4786
      %v4790 = vld [vmem:[%s3 + $0x200] sm:$0xff]
      %v4791 = vld [vmem:[%s3 + $0x208] sm:$0xff]
      %v4792 = vld [vmem:[%s3 + $0x210] sm:$0xff]
      %v4793 = vld [vmem:[%s3 + $0x218] sm:$0xff]
      %v4794 = vld [vmem:[%s3 + $0x220] sm:$0xff]
      %v4795 = vld [vmem:[%s3 + $0x228] sm:$0xff]
      %v4796 = vld [vmem:[%s3 + $0x230] sm:$0xff]
      %v4797 = vld [vmem:[%s3 + $0x238] sm:$0xff]
      %v4798 = vld [vmem:[%s3 + $0x240] sm:$0xff]
      %v4799 = vld [vmem:[%s3 + $0x248] sm:$0xff]
      %v4800 = vld [vmem:[%s3 + $0x250] sm:$0xff]
      %v4801 = vld [vmem:[%s3 + $0x258] sm:$0xff]
      %v4802 = vld [vmem:[%s3 + $0x260] sm:$0xff]
      %v4803 = vld [vmem:[%s3 + $0x268] sm:$0xff]
      %v4804 = vld [vmem:[%s3 + $0x270] sm:$0xff]
      %v4805 = vld [vmem:[%s3 + $0x278] sm:$0xff]
      %4806 = vmatprep.subr.mxu0 0.0
      %4807 = vmatpush1.msra.mxu0 %v4805
      %4808 = vmatprep.subr.mxu0 0.0
      %4809 = vmatpush1.msra.mxu0 %v4804
      %4810 = vmatprep.subr.mxu0 0.0
      %4811 = vmatpush1.msra.mxu0 %v4803
      %4812 = vmatprep.subr.mxu0 0.0
      %4813 = vmatpush1.msra.mxu0 %v4802
      %4814 = vmatprep.subr.mxu0 0.0
      %4815 = vmatpush1.msra.mxu0 %v4801
      %4816 = vmatprep.subr.mxu0 0.0
      %4817 = vmatpush1.msra.mxu0 %v4800
      %4818 = vmatprep.subr.mxu0 0.0
      %4819 = vmatpush1.msra.mxu0 %v4799
      %4820 = vmatprep.subr.mxu0 0.0
      %4821 = vmatpush1.msra.mxu0 %v4798
      %4822 = vmatprep.subr.mxu0 0.0
      %4823 = vmatpush1.msra.mxu0 %v4797
      %4824 = vmatprep.subr.mxu0 0.0
      %4825 = vmatpush1.msra.mxu0 %v4796
      %4826 = vmatprep.subr.mxu0 0.0
      %4827 = vmatpush1.msra.mxu0 %v4795
      %4828 = vmatprep.subr.mxu0 0.0
      %4829 = vmatpush1.msra.mxu0 %v4794
      %4830 = vmatprep.subr.mxu0 0.0
      %4831 = vmatpush1.msra.mxu0 %v4793
      %4832 = vmatprep.subr.mxu0 0.0
      %4833 = vmatpush1.msra.mxu0 %v4792
      %4834 = vmatprep.subr.mxu0 0.0
      %4835 = vmatpush1.msra.mxu0 %v4791
      %4836 = vmatprep.subr.mxu0 0.0
      %4837 = vmatpush1.msra.mxu0 %v4790
      %4838 = vmatprep.subr.mxu0 0.0
      %4839 = vmatpush2.msra.mxu0 0.0
      %4840 = vmatprep.subr.mxu0 0.0
      %4841 = vmatpush2.msra.mxu0 0.0
      %4842 = vmatprep.subr.mxu0 0.0
      %4843 = vmatpush2.msra.mxu0 0.0
      %4844 = vmatprep.subr.mxu0 0.0
      %4845 = vmatpush2.msra.mxu0 0.0
      %4846 = vmatprep.subr.mxu0 0.0
      %4847 = vmatpush2.msra.mxu0 0.0
      %4848 = vmatprep.subr.mxu0 0.0
      %4849 = vmatpush2.msra.mxu0 0.0
      %4850 = vmatprep.subr.mxu0 0.0
      %4851 = vmatpush2.msra.mxu0 0.0
      %4852 = vmatprep.subr.mxu0 0.0
      %4853 = vmatpush2.msra.mxu0 0.0
      %4854 = vmatprep.subr.mxu0 0.0
      %4855 = vmatpush2.msra.mxu0 0.0
      %4856 = vmatprep.subr.mxu0 0.0
      %4857 = vmatpush2.msra.mxu0 0.0
      %4858 = vmatprep.subr.mxu0 0.0
      %4859 = vmatpush2.msra.mxu0 0.0
      %4860 = vmatprep.subr.mxu0 0.0
      %4861 = vmatpush2.msra.mxu0 0.0
      %4862 = vmatprep.subr.mxu0 0.0
      %4863 = vmatpush2.msra.mxu0 0.0
      %4864 = vmatprep.subr.mxu0 0.0
      %4865 = vmatpush2.msra.mxu0 0.0
      %4866 = vmatprep.subr.mxu0 0.0
      %4867 = vmatpush2.msra.mxu0 0.0
      %4868 = vmatprep.subr.mxu0 0.0
      %4869 = vmatpush2.msra.mxu0 0.0
      %4870 = vmatprep.mubr.f32.mxu0 0.0
      %4871 = vmatmul.mubr.f32.gmra.mxu0 %v3551
      %v4872 = vpop.f32.mrf.mxu0
      %v4873 = vadd.f32 0.0, %v4872
      %v4874 = vpop.f32.mrf.mxu0
      %4875 = vmatprep.mubr.f32.mxu0 0.0
      %4876 = vmatmul.mubr.f32.gmra.mxu0 %v3553
      %v4877 = vpop.f32.mrf.mxu0
      %v4878 = vadd.f32 0.0, %v4877
      %v4879 = vpop.f32.mrf.mxu0
      %4880 = vmatprep.mubr.f32.mxu0 0.0
      %4881 = vmatmul.mubr.f32.gmra.mxu0 %v3556
      %v4882 = vpop.f32.mrf.mxu0
      %v4883 = vadd.f32 0.0, %v4882
      %v4884 = vpop.f32.mrf.mxu0
      %4885 = vmatprep.mubr.f32.mxu0 0.0
      %4886 = vmatmul.mubr.f32.gmra.mxu0 %v3558
      %v4887 = vpop.f32.mrf.mxu0
      %v4888 = vadd.f32 0.0, %v4887
      %v4889 = vpop.f32.mrf.mxu0
      %4890 = vmatprep.mubr.f32.mxu0 0.0
      %4891 = vmatmul.mubr.f32.gmra.mxu0 %v3561
      %v4892 = vpop.f32.mrf.mxu0
      %v4893 = vadd.f32 0.0, %v4892
      %v4894 = vpop.f32.mrf.mxu0
      %4895 = vmatprep.mubr.f32.mxu0 0.0
      %4896 = vmatmul.mubr.f32.gmra.mxu0 %v3563
      %v4897 = vpop.f32.mrf.mxu0
      %v4898 = vadd.f32 0.0, %v4897
      %v4899 = vpop.f32.mrf.mxu0
      %4900 = vmatprep.mubr.f32.mxu0 0.0
      %4901 = vmatmul.mubr.f32.gmra.mxu0 %v3566
      %v4902 = vpop.f32.mrf.mxu0
      %v4903 = vadd.f32 0.0, %v4902
      %v4904 = vpop.f32.mrf.mxu0
      %4905 = vmatprep.mubr.f32.mxu0 0.0
      %4906 = vmatmul.mubr.f32.gmra.mxu0 %v3568
      %v4907 = vpop.f32.mrf.mxu0
      %v4908 = vadd.f32 0.0, %v4907
      %v4909 = vpop.f32.mrf.mxu0
      %4910 = vmatprep.mubr.f32.mxu0 0.0
      %4911 = vmatmul.mubr.f32.gmra.mxu0 %v3571
      %v4912 = vpop.f32.mrf.mxu0
      %v4913 = vadd.f32 0.0, %v4912
      %v4914 = vpop.f32.mrf.mxu0
      %4915 = vmatprep.mubr.f32.mxu0 0.0
      %4916 = vmatmul.mubr.f32.gmra.mxu0 %v3573
      %v4917 = vpop.f32.mrf.mxu0
      %v4918 = vadd.f32 0.0, %v4917
      %v4919 = vpop.f32.mrf.mxu0
      %4920 = vmatprep.mubr.f32.mxu0 0.0
      %4921 = vmatmul.mubr.f32.gmra.mxu0 %v3576
      %v4922 = vpop.f32.mrf.mxu0
      %v4923 = vadd.f32 0.0, %v4922
      %v4924 = vpop.f32.mrf.mxu0
      %4925 = vmatprep.mubr.f32.mxu0 0.0
      %4926 = vmatmul.mubr.f32.gmra.mxu0 %v3578
      %v4927 = vpop.f32.mrf.mxu0
      %v4928 = vadd.f32 0.0, %v4927
      %v4929 = vpop.f32.mrf.mxu0
      %4930 = vmatprep.mubr.f32.mxu0 0.0
      %4931 = vmatmul.mubr.f32.gmra.mxu0 %v3581
      %v4932 = vpop.f32.mrf.mxu0
      %v4933 = vadd.f32 0.0, %v4932
      %v4934 = vpop.f32.mrf.mxu0
      %4935 = vmatprep.mubr.f32.mxu0 0.0
      %4936 = vmatmul.mubr.f32.gmra.mxu0 %v3583
      %v4937 = vpop.f32.mrf.mxu0
      %v4938 = vadd.f32 0.0, %v4937
      %v4939 = vpop.f32.mrf.mxu0
      %4940 = vmatprep.mubr.f32.mxu0 0.0
      %4941 = vmatmul.mubr.f32.gmra.mxu0 %v3586
      %v4942 = vpop.f32.mrf.mxu0
      %v4943 = vadd.f32 0.0, %v4942
      %v4944 = vpop.f32.mrf.mxu0
      %4945 = vmatprep.mubr.f32.mxu0 0.0
      %4946 = vmatmul.mubr.f32.gmra.mxu0 %v3588
      %v4947 = vpop.f32.mrf.mxu0
      %v4948 = vadd.f32 0.0, %v4947
      %v4949 = vpop.f32.mrf.mxu0
      %4950 = vmatprep.mubr.f32.mxu0 0.0
      %4951 = vmatmul.mubr.f32.gmra.mxu0 %v3591
      %v4952 = vpop.f32.mrf.mxu0
      %v4953 = vadd.f32 0.0, %v4952
      %v4954 = vpop.f32.mrf.mxu0
      %4955 = vmatprep.mubr.f32.mxu0 0.0
      %4956 = vmatmul.mubr.f32.gmra.mxu0 %v3593
      %v4957 = vpop.f32.mrf.mxu0
      %v4958 = vadd.f32 0.0, %v4957
      %v4959 = vpop.f32.mrf.mxu0
      %4960 = vmatprep.mubr.f32.mxu0 0.0
      %4961 = vmatmul.mubr.f32.gmra.mxu0 %v3596
      %v4962 = vpop.f32.mrf.mxu0
      %v4963 = vadd.f32 0.0, %v4962
      %v4964 = vpop.f32.mrf.mxu0
      %4965 = vmatprep.mubr.f32.mxu0 0.0
      %4966 = vmatmul.mubr.f32.gmra.mxu0 %v3598
      %v4967 = vpop.f32.mrf.mxu0
      %v4968 = vadd.f32 0.0, %v4967
      %v4969 = vpop.f32.mrf.mxu0
      %4970 = vmatprep.mubr.f32.mxu0 0.0
      %4971 = vmatmul.mubr.f32.gmra.mxu0 %v3601
      %v4972 = vpop.f32.mrf.mxu0
      %v4973 = vadd.f32 0.0, %v4972
      %v4974 = vpop.f32.mrf.mxu0
      %4975 = vmatprep.mubr.f32.mxu0 0.0
      %4976 = vmatmul.mubr.f32.gmra.mxu0 %v3603
      %v4977 = vpop.f32.mrf.mxu0
      %v4978 = vadd.f32 0.0, %v4977
      %v4979 = vpop.f32.mrf.mxu0
      %4980 = vmatprep.mubr.f32.mxu0 0.0
      %4981 = vmatmul.mubr.f32.gmra.mxu0 %v3606
      %v4982 = vpop.f32.mrf.mxu0
      %v4983 = vadd.f32 0.0, %v4982
      %v4984 = vpop.f32.mrf.mxu0
      %4985 = vmatprep.mubr.f32.mxu0 0.0
      %4986 = vmatmul.mubr.f32.gmra.mxu0 %v3608
      %v4987 = vpop.f32.mrf.mxu0
      %v4988 = vadd.f32 0.0, %v4987
      %v4989 = vpop.f32.mrf.mxu0
      %4990 = vmatprep.mubr.f32.mxu0 0.0
      %4991 = vmatmul.mubr.f32.gmra.mxu0 %v3611
      %v4992 = vpop.f32.mrf.mxu0
      %v4993 = vadd.f32 0.0, %v4992
      %v4994 = vpop.f32.mrf.mxu0
      %4995 = vmatprep.mubr.f32.mxu0 0.0
      %4996 = vmatmul.mubr.f32.gmra.mxu0 %v3613
      %v4997 = vpop.f32.mrf.mxu0
      %v4998 = vadd.f32 0.0, %v4997
      %v4999 = vpop.f32.mrf.mxu0
      %5000 = vmatprep.mubr.f32.mxu0 0.0
      %5001 = vmatmul.mubr.f32.gmra.mxu0 %v3616
      %v5002 = vpop.f32.mrf.mxu0
      %v5003 = vadd.f32 0.0, %v5002
      %v5004 = vpop.f32.mrf.mxu0
      %5005 = vmatprep.mubr.f32.mxu0 0.0
      %5006 = vmatmul.mubr.f32.gmra.mxu0 %v3618
      %v5007 = vpop.f32.mrf.mxu0
      %v5008 = vadd.f32 0.0, %v5007
      %v5009 = vpop.f32.mrf.mxu0
      %5010 = vmatprep.mubr.f32.mxu0 0.0
      %5011 = vmatmul.mubr.f32.gmra.mxu0 %v3621
      %v5012 = vpop.f32.mrf.mxu0
      %v5013 = vadd.f32 0.0, %v5012
      %v5014 = vpop.f32.mrf.mxu0
      %5015 = vmatprep.mubr.f32.mxu0 0.0
      %5016 = vmatmul.mubr.f32.gmra.mxu0 %v3623
      %v5017 = vpop.f32.mrf.mxu0
      %v5018 = vadd.f32 0.0, %v5017
      %v5019 = vpop.f32.mrf.mxu0
      %5020 = vmatprep.mubr.f32.mxu0 0.0
      %5021 = vmatmul.mubr.f32.gmra.mxu0 %v4785
      %v5022 = vpop.f32.mrf.mxu0
      %v5023 = vadd.f32 0.0, %v5022
      %v5024 = vpop.f32.mrf.mxu0
      %5025 = vmatprep.mubr.f32.mxu0 0.0
      %5026 = vmatmul.mubr.f32.gmra.mxu0 %v4787
      %v5027 = vpop.f32.mrf.mxu0
      %v5028 = vadd.f32 0.0, %v5027
      %v5029 = vpop.f32.mrf.mxu0
      %5030 = vdwg.mxu0
      %v5031 = vadd.f32 %v4748, %v4873
      %v5032 = vadd.f32 %v4749, %v4878
      %v5033 = vadd.f32 %v4750, %v4883
      %v5034 = vadd.f32 %v4751, %v4888
      %v5035 = vadd.f32 %v4752, %v4893
      %v5036 = vadd.f32 %v4753, %v4898
      %v5037 = vadd.f32 %v4754, %v4903
      %v5038 = vadd.f32 %v4755, %v4908
      %v5039 = vadd.f32 %v4756, %v4913
      %v5040 = vadd.f32 %v4757, %v4918
      %v5041 = vadd.f32 %v4758, %v4923
      %v5042 = vadd.f32 %v4759, %v4928
      %v5043 = vadd.f32 %v4760, %v4933
      %v5044 = vadd.f32 %v4761, %v4938
      %v5045 = vadd.f32 %v4762, %v4943
      %v5046 = vadd.f32 %v4763, %v4948
      %v5047 = vadd.f32 %v4764, %v4953
      %v5048 = vadd.f32 %v4765, %v4958
      %v5049 = vadd.f32 %v4766, %v4963
      %v5050 = vadd.f32 %v4767, %v4968
      %v5051 = vadd.f32 %v4768, %v4973
      %v5052 = vadd.f32 %v4769, %v4978
      %v5053 = vadd.f32 %v4770, %v4983
      %v5054 = vadd.f32 %v4771, %v4988
      %v5055 = vadd.f32 %v4772, %v4993
      %v5056 = vadd.f32 %v4773, %v4998
      %v5057 = vadd.f32 %v4774, %v5003
      %v5058 = vadd.f32 %v4775, %v5008
      %v5059 = vadd.f32 %v4776, %v5013
      %v5060 = vadd.f32 %v4777, %v5018
      %v5061 = vadd.f32 %v4778, %v5023
      %v5062 = vadd.f32 %v4779, %v5028
      %v5063 = vrot.slane %v3474, 2
      %v5064 = vrot.slane %v3475, 2
      %v5065 = vsel %vm1024, %v5063, %v5064
      %v5066 = vrot.slane %v3476, 2
      %v5067 = vsel %vm1024, %v5064, %v5066
      %v5070 = vld [vmem:[%s3 + $0x280] sm:$0xff]
      %v5071 = vld [vmem:[%s3 + $0x288] sm:$0xff]
      %v5072 = vld [vmem:[%s3 + $0x290] sm:$0xff]
      %v5073 = vld [vmem:[%s3 + $0x298] sm:$0xff]
      %v5074 = vld [vmem:[%s3 + $0x2a0] sm:$0xff]
      %v5075 = vld [vmem:[%s3 + $0x2a8] sm:$0xff]
      %v5076 = vld [vmem:[%s3 + $0x2b0] sm:$0xff]
      %v5077 = vld [vmem:[%s3 + $0x2b8] sm:$0xff]
      %v5078 = vld [vmem:[%s3 + $0x2c0] sm:$0xff]
      %v5079 = vld [vmem:[%s3 + $0x2c8] sm:$0xff]
      %v5080 = vld [vmem:[%s3 + $0x2d0] sm:$0xff]
      %v5081 = vld [vmem:[%s3 + $0x2d8] sm:$0xff]
      %v5082 = vld [vmem:[%s3 + $0x2e0] sm:$0xff]
      %v5083 = vld [vmem:[%s3 + $0x2e8] sm:$0xff]
      %v5084 = vld [vmem:[%s3 + $0x2f0] sm:$0xff]
      %v5085 = vld [vmem:[%s3 + $0x2f8] sm:$0xff]
      %5086 = vmatprep.subr.mxu0 0.0
      %5087 = vmatpush1.msra.mxu0 %v5085
      %5088 = vmatprep.subr.mxu0 0.0
      %5089 = vmatpush1.msra.mxu0 %v5084
      %5090 = vmatprep.subr.mxu0 0.0
      %5091 = vmatpush1.msra.mxu0 %v5083
      %5092 = vmatprep.subr.mxu0 0.0
      %5093 = vmatpush1.msra.mxu0 %v5082
      %5094 = vmatprep.subr.mxu0 0.0
      %5095 = vmatpush1.msra.mxu0 %v5081
      %5096 = vmatprep.subr.mxu0 0.0
      %5097 = vmatpush1.msra.mxu0 %v5080
      %5098 = vmatprep.subr.mxu0 0.0
      %5099 = vmatpush1.msra.mxu0 %v5079
      %5100 = vmatprep.subr.mxu0 0.0
      %5101 = vmatpush1.msra.mxu0 %v5078
      %5102 = vmatprep.subr.mxu0 0.0
      %5103 = vmatpush1.msra.mxu0 %v5077
      %5104 = vmatprep.subr.mxu0 0.0
      %5105 = vmatpush1.msra.mxu0 %v5076
      %5106 = vmatprep.subr.mxu0 0.0
      %5107 = vmatpush1.msra.mxu0 %v5075
      %5108 = vmatprep.subr.mxu0 0.0
      %5109 = vmatpush1.msra.mxu0 %v5074
      %5110 = vmatprep.subr.mxu0 0.0
      %5111 = vmatpush1.msra.mxu0 %v5073
      %5112 = vmatprep.subr.mxu0 0.0
      %5113 = vmatpush1.msra.mxu0 %v5072
      %5114 = vmatprep.subr.mxu0 0.0
      %5115 = vmatpush1.msra.mxu0 %v5071
      %5116 = vmatprep.subr.mxu0 0.0
      %5117 = vmatpush1.msra.mxu0 %v5070
      %5118 = vmatprep.subr.mxu0 0.0
      %5119 = vmatpush2.msra.mxu0 0.0
      %5120 = vmatprep.subr.mxu0 0.0
      %5121 = vmatpush2.msra.mxu0 0.0
      %5122 = vmatprep.subr.mxu0 0.0
      %5123 = vmatpush2.msra.mxu0 0.0
      %5124 = vmatprep.subr.mxu0 0.0
      %5125 = vmatpush2.msra.mxu0 0.0
      %5126 = vmatprep.subr.mxu0 0.0
      %5127 = vmatpush2.msra.mxu0 0.0
      %5128 = vmatprep.subr.mxu0 0.0
      %5129 = vmatpush2.msra.mxu0 0.0
      %5130 = vmatprep.subr.mxu0 0.0
      %5131 = vmatpush2.msra.mxu0 0.0
      %5132 = vmatprep.subr.mxu0 0.0
      %5133 = vmatpush2.msra.mxu0 0.0
      %5134 = vmatprep.subr.mxu0 0.0
      %5135 = vmatpush2.msra.mxu0 0.0
      %5136 = vmatprep.subr.mxu0 0.0
      %5137 = vmatpush2.msra.mxu0 0.0
      %5138 = vmatprep.subr.mxu0 0.0
      %5139 = vmatpush2.msra.mxu0 0.0
      %5140 = vmatprep.subr.mxu0 0.0
      %5141 = vmatpush2.msra.mxu0 0.0
      %5142 = vmatprep.subr.mxu0 0.0
      %5143 = vmatpush2.msra.mxu0 0.0
      %5144 = vmatprep.subr.mxu0 0.0
      %5145 = vmatpush2.msra.mxu0 0.0
      %5146 = vmatprep.subr.mxu0 0.0
      %5147 = vmatpush2.msra.mxu0 0.0
      %5148 = vmatprep.subr.mxu0 0.0
      %5149 = vmatpush2.msra.mxu0 0.0
      %5150 = vmatprep.mubr.f32.mxu0 0.0
      %5151 = vmatmul.mubr.f32.gmra.mxu0 %v4129
      %v5152 = vpop.f32.mrf.mxu0
      %v5153 = vadd.f32 0.0, %v5152
      %v5154 = vpop.f32.mrf.mxu0
      %5155 = vmatprep.mubr.f32.mxu0 0.0
      %5156 = vmatmul.mubr.f32.gmra.mxu0 %v4131
      %v5157 = vpop.f32.mrf.mxu0
      %v5158 = vadd.f32 0.0, %v5157
      %v5159 = vpop.f32.mrf.mxu0
      %5160 = vmatprep.mubr.f32.mxu0 0.0
      %5161 = vmatmul.mubr.f32.gmra.mxu0 %v4134
      %v5162 = vpop.f32.mrf.mxu0
      %v5163 = vadd.f32 0.0, %v5162
      %v5164 = vpop.f32.mrf.mxu0
      %5165 = vmatprep.mubr.f32.mxu0 0.0
      %5166 = vmatmul.mubr.f32.gmra.mxu0 %v4136
      %v5167 = vpop.f32.mrf.mxu0
      %v5168 = vadd.f32 0.0, %v5167
      %v5169 = vpop.f32.mrf.mxu0
      %5170 = vmatprep.mubr.f32.mxu0 0.0
      %5171 = vmatmul.mubr.f32.gmra.mxu0 %v4139
      %v5172 = vpop.f32.mrf.mxu0
      %v5173 = vadd.f32 0.0, %v5172
      %v5174 = vpop.f32.mrf.mxu0
      %5175 = vmatprep.mubr.f32.mxu0 0.0
      %5176 = vmatmul.mubr.f32.gmra.mxu0 %v4141
      %v5177 = vpop.f32.mrf.mxu0
      %v5178 = vadd.f32 0.0, %v5177
      %v5179 = vpop.f32.mrf.mxu0
      %5180 = vmatprep.mubr.f32.mxu0 0.0
      %5181 = vmatmul.mubr.f32.gmra.mxu0 %v4144
      %v5182 = vpop.f32.mrf.mxu0
      %v5183 = vadd.f32 0.0, %v5182
      %v5184 = vpop.f32.mrf.mxu0
      %5185 = vmatprep.mubr.f32.mxu0 0.0
      %5186 = vmatmul.mubr.f32.gmra.mxu0 %v4146
      %v5187 = vpop.f32.mrf.mxu0
      %v5188 = vadd.f32 0.0, %v5187
      %v5189 = vpop.f32.mrf.mxu0
      %5190 = vmatprep.mubr.f32.mxu0 0.0
      %5191 = vmatmul.mubr.f32.gmra.mxu0 %v4149
      %v5192 = vpop.f32.mrf.mxu0
      %v5193 = vadd.f32 0.0, %v5192
      %v5194 = vpop.f32.mrf.mxu0
      %5195 = vmatprep.mubr.f32.mxu0 0.0
      %5196 = vmatmul.mubr.f32.gmra.mxu0 %v4151
      %v5197 = vpop.f32.mrf.mxu0
      %v5198 = vadd.f32 0.0, %v5197
      %v5199 = vpop.f32.mrf.mxu0
      %5200 = vmatprep.mubr.f32.mxu0 0.0
      %5201 = vmatmul.mubr.f32.gmra.mxu0 %v4154
      %v5202 = vpop.f32.mrf.mxu0
      %v5203 = vadd.f32 0.0, %v5202
      %v5204 = vpop.f32.mrf.mxu0
      %5205 = vmatprep.mubr.f32.mxu0 0.0
      %5206 = vmatmul.mubr.f32.gmra.mxu0 %v4156
      %v5207 = vpop.f32.mrf.mxu0
      %v5208 = vadd.f32 0.0, %v5207
      %v5209 = vpop.f32.mrf.mxu0
      %5210 = vmatprep.mubr.f32.mxu0 0.0
      %5211 = vmatmul.mubr.f32.gmra.mxu0 %v4159
      %v5212 = vpop.f32.mrf.mxu0
      %v5213 = vadd.f32 0.0, %v5212
      %v5214 = vpop.f32.mrf.mxu0
      %5215 = vmatprep.mubr.f32.mxu0 0.0
      %5216 = vmatmul.mubr.f32.gmra.mxu0 %v4161
      %v5217 = vpop.f32.mrf.mxu0
      %v5218 = vadd.f32 0.0, %v5217
      %v5219 = vpop.f32.mrf.mxu0
      %5220 = vmatprep.mubr.f32.mxu0 0.0
      %5221 = vmatmul.mubr.f32.gmra.mxu0 %v4164
      %v5222 = vpop.f32.mrf.mxu0
      %v5223 = vadd.f32 0.0, %v5222
      %v5224 = vpop.f32.mrf.mxu0
      %5225 = vmatprep.mubr.f32.mxu0 0.0
      %5226 = vmatmul.mubr.f32.gmra.mxu0 %v4166
      %v5227 = vpop.f32.mrf.mxu0
      %v5228 = vadd.f32 0.0, %v5227
      %v5229 = vpop.f32.mrf.mxu0
      %5230 = vmatprep.mubr.f32.mxu0 0.0
      %5231 = vmatmul.mubr.f32.gmra.mxu0 %v4169
      %v5232 = vpop.f32.mrf.mxu0
      %v5233 = vadd.f32 0.0, %v5232
      %v5234 = vpop.f32.mrf.mxu0
      %5235 = vmatprep.mubr.f32.mxu0 0.0
      %5236 = vmatmul.mubr.f32.gmra.mxu0 %v4171
      %v5237 = vpop.f32.mrf.mxu0
      %v5238 = vadd.f32 0.0, %v5237
      %v5239 = vpop.f32.mrf.mxu0
      %5240 = vmatprep.mubr.f32.mxu0 0.0
      %5241 = vmatmul.mubr.f32.gmra.mxu0 %v4174
      %v5242 = vpop.f32.mrf.mxu0
      %v5243 = vadd.f32 0.0, %v5242
      %v5244 = vpop.f32.mrf.mxu0
      %5245 = vmatprep.mubr.f32.mxu0 0.0
      %5246 = vmatmul.mubr.f32.gmra.mxu0 %v4176
      %v5247 = vpop.f32.mrf.mxu0
      %v5248 = vadd.f32 0.0, %v5247
      %v5249 = vpop.f32.mrf.mxu0
      %5250 = vmatprep.mubr.f32.mxu0 0.0
      %5251 = vmatmul.mubr.f32.gmra.mxu0 %v4179
      %v5252 = vpop.f32.mrf.mxu0
      %v5253 = vadd.f32 0.0, %v5252
      %v5254 = vpop.f32.mrf.mxu0
      %5255 = vmatprep.mubr.f32.mxu0 0.0
      %5256 = vmatmul.mubr.f32.gmra.mxu0 %v4181
      %v5257 = vpop.f32.mrf.mxu0
      %v5258 = vadd.f32 0.0, %v5257
      %v5259 = vpop.f32.mrf.mxu0
      %5260 = vmatprep.mubr.f32.mxu0 0.0
      %5261 = vmatmul.mubr.f32.gmra.mxu0 %v4184
      %v5262 = vpop.f32.mrf.mxu0
      %v5263 = vadd.f32 0.0, %v5262
      %v5264 = vpop.f32.mrf.mxu0
      %5265 = vmatprep.mubr.f32.mxu0 0.0
      %5266 = vmatmul.mubr.f32.gmra.mxu0 %v4186
      %v5267 = vpop.f32.mrf.mxu0
      %v5268 = vadd.f32 0.0, %v5267
      %v5269 = vpop.f32.mrf.mxu0
      %5270 = vmatprep.mubr.f32.mxu0 0.0
      %5271 = vmatmul.mubr.f32.gmra.mxu0 %v4189
      %v5272 = vpop.f32.mrf.mxu0
      %v5273 = vadd.f32 0.0, %v5272
      %v5274 = vpop.f32.mrf.mxu0
      %5275 = vmatprep.mubr.f32.mxu0 0.0
      %5276 = vmatmul.mubr.f32.gmra.mxu0 %v4191
      %v5277 = vpop.f32.mrf.mxu0
      %v5278 = vadd.f32 0.0, %v5277
      %v5279 = vpop.f32.mrf.mxu0
      %5280 = vmatprep.mubr.f32.mxu0 0.0
      %5281 = vmatmul.mubr.f32.gmra.mxu0 %v4194
      %v5282 = vpop.f32.mrf.mxu0
      %v5283 = vadd.f32 0.0, %v5282
      %v5284 = vpop.f32.mrf.mxu0
      %5285 = vmatprep.mubr.f32.mxu0 0.0
      %5286 = vmatmul.mubr.f32.gmra.mxu0 %v4196
      %v5287 = vpop.f32.mrf.mxu0
      %v5288 = vadd.f32 0.0, %v5287
      %v5289 = vpop.f32.mrf.mxu0
      %5290 = vmatprep.mubr.f32.mxu0 0.0
      %5291 = vmatmul.mubr.f32.gmra.mxu0 %v4199
      %v5292 = vpop.f32.mrf.mxu0
      %v5293 = vadd.f32 0.0, %v5292
      %v5294 = vpop.f32.mrf.mxu0
      %5295 = vmatprep.mubr.f32.mxu0 0.0
      %5296 = vmatmul.mubr.f32.gmra.mxu0 %v4201
      %v5297 = vpop.f32.mrf.mxu0
      %v5298 = vadd.f32 0.0, %v5297
      %v5299 = vpop.f32.mrf.mxu0
      %5300 = vmatprep.mubr.f32.mxu0 0.0
      %5301 = vmatmul.mubr.f32.gmra.mxu0 %v5065
      %v5302 = vpop.f32.mrf.mxu0
      %v5303 = vadd.f32 0.0, %v5302
      %v5304 = vpop.f32.mrf.mxu0
      %5305 = vmatprep.mubr.f32.mxu0 0.0
      %5306 = vmatmul.mubr.f32.gmra.mxu0 %v5067
      %v5307 = vpop.f32.mrf.mxu0
      %v5308 = vadd.f32 0.0, %v5307
      %v5309 = vpop.f32.mrf.mxu0
      %5310 = vdwg.mxu0
      %v5311 = vadd.f32 %v5031, %v5153
      %v5312 = vadd.f32 %v5032, %v5158
      %v5313 = vadd.f32 %v5033, %v5163
      %v5314 = vadd.f32 %v5034, %v5168
      %v5315 = vadd.f32 %v5035, %v5173
      %v5316 = vadd.f32 %v5036, %v5178
      %v5317 = vadd.f32 %v5037, %v5183
      %v5318 = vadd.f32 %v5038, %v5188
      %v5319 = vadd.f32 %v5039, %v5193
      %v5320 = vadd.f32 %v5040, %v5198
      %v5321 = vadd.f32 %v5041, %v5203
      %v5322 = vadd.f32 %v5042, %v5208
      %v5323 = vadd.f32 %v5043, %v5213
      %v5324 = vadd.f32 %v5044, %v5218
      %v5325 = vadd.f32 %v5045, %v5223
      %v5326 = vadd.f32 %v5046, %v5228
      %v5327 = vadd.f32 %v5047, %v5233
      %v5328 = vadd.f32 %v5048, %v5238
      %v5329 = vadd.f32 %v5049, %v5243
      %v5330 = vadd.f32 %v5050, %v5248
      %v5331 = vadd.f32 %v5051, %v5253
      %v5332 = vadd.f32 %v5052, %v5258
      %v5333 = vadd.f32 %v5053, %v5263
      %v5334 = vadd.f32 %v5054, %v5268
      %v5335 = vadd.f32 %v5055, %v5273
      %v5336 = vadd.f32 %v5056, %v5278
      %v5337 = vadd.f32 %v5057, %v5283
      %v5338 = vadd.f32 %v5058, %v5288
      %v5339 = vadd.f32 %v5059, %v5293
      %v5340 = vadd.f32 %v5060, %v5298
      %v5341 = vadd.f32 %v5061, %v5303
      %v5342 = vadd.f32 %v5062, %v5308
      %v5343 = vld [vmem:[%s3 + $0x300] sm:$0xff]
      %v5344 = vld [vmem:[%s3 + $0x308] sm:$0xff]
      %v5345 = vld [vmem:[%s3 + $0x310] sm:$0xff]
      %v5346 = vld [vmem:[%s3 + $0x318] sm:$0xff]
      %v5347 = vld [vmem:[%s3 + $0x320] sm:$0xff]
      %v5348 = vld [vmem:[%s3 + $0x328] sm:$0xff]
      %v5349 = vld [vmem:[%s3 + $0x330] sm:$0xff]
      %v5350 = vld [vmem:[%s3 + $0x338] sm:$0xff]
      %v5351 = vld [vmem:[%s3 + $0x340] sm:$0xff]
      %v5352 = vld [vmem:[%s3 + $0x348] sm:$0xff]
      %v5353 = vld [vmem:[%s3 + $0x350] sm:$0xff]
      %v5354 = vld [vmem:[%s3 + $0x358] sm:$0xff]
      %v5355 = vld [vmem:[%s3 + $0x360] sm:$0xff]
      %v5356 = vld [vmem:[%s3 + $0x368] sm:$0xff]
      %v5357 = vld [vmem:[%s3 + $0x370] sm:$0xff]
      %v5358 = vld [vmem:[%s3 + $0x378] sm:$0xff]
      %5359 = vmatprep.subr.mxu0 0.0
      %5360 = vmatpush1.msra.mxu0 %v5358
      %5361 = vmatprep.subr.mxu0 0.0
      %5362 = vmatpush1.msra.mxu0 %v5357
      %5363 = vmatprep.subr.mxu0 0.0
      %5364 = vmatpush1.msra.mxu0 %v5356
      %5365 = vmatprep.subr.mxu0 0.0
      %5366 = vmatpush1.msra.mxu0 %v5355
      %5367 = vmatprep.subr.mxu0 0.0
      %5368 = vmatpush1.msra.mxu0 %v5354
      %5369 = vmatprep.subr.mxu0 0.0
      %5370 = vmatpush1.msra.mxu0 %v5353
      %5371 = vmatprep.subr.mxu0 0.0
      %5372 = vmatpush1.msra.mxu0 %v5352
      %5373 = vmatprep.subr.mxu0 0.0
      %5374 = vmatpush1.msra.mxu0 %v5351
      %5375 = vmatprep.subr.mxu0 0.0
      %5376 = vmatpush1.msra.mxu0 %v5350
      %5377 = vmatprep.subr.mxu0 0.0
      %5378 = vmatpush1.msra.mxu0 %v5349
      %5379 = vmatprep.subr.mxu0 0.0
      %5380 = vmatpush1.msra.mxu0 %v5348
      %5381 = vmatprep.subr.mxu0 0.0
      %5382 = vmatpush1.msra.mxu0 %v5347
      %5383 = vmatprep.subr.mxu0 0.0
      %5384 = vmatpush1.msra.mxu0 %v5346
      %5385 = vmatprep.subr.mxu0 0.0
      %5386 = vmatpush1.msra.mxu0 %v5345
      %5387 = vmatprep.subr.mxu0 0.0
      %5388 = vmatpush1.msra.mxu0 %v5344
      %5389 = vmatprep.subr.mxu0 0.0
      %5390 = vmatpush1.msra.mxu0 %v5343
      %5391 = vmatprep.subr.mxu0 0.0
      %5392 = vmatpush2.msra.mxu0 0.0
      %5393 = vmatprep.subr.mxu0 0.0
      %5394 = vmatpush2.msra.mxu0 0.0
      %5395 = vmatprep.subr.mxu0 0.0
      %5396 = vmatpush2.msra.mxu0 0.0
      %5397 = vmatprep.subr.mxu0 0.0
      %5398 = vmatpush2.msra.mxu0 0.0
      %5399 = vmatprep.subr.mxu0 0.0
      %5400 = vmatpush2.msra.mxu0 0.0
      %5401 = vmatprep.subr.mxu0 0.0
      %5402 = vmatpush2.msra.mxu0 0.0
      %5403 = vmatprep.subr.mxu0 0.0
      %5404 = vmatpush2.msra.mxu0 0.0
      %5405 = vmatprep.subr.mxu0 0.0
      %5406 = vmatpush2.msra.mxu0 0.0
      %5407 = vmatprep.subr.mxu0 0.0
      %5408 = vmatpush2.msra.mxu0 0.0
      %5409 = vmatprep.subr.mxu0 0.0
      %5410 = vmatpush2.msra.mxu0 0.0
      %5411 = vmatprep.subr.mxu0 0.0
      %5412 = vmatpush2.msra.mxu0 0.0
      %5413 = vmatprep.subr.mxu0 0.0
      %5414 = vmatpush2.msra.mxu0 0.0
      %5415 = vmatprep.subr.mxu0 0.0
      %5416 = vmatpush2.msra.mxu0 0.0
      %5417 = vmatprep.subr.mxu0 0.0
      %5418 = vmatpush2.msra.mxu0 0.0
      %5419 = vmatprep.subr.mxu0 0.0
      %5420 = vmatpush2.msra.mxu0 0.0
      %5421 = vmatprep.subr.mxu0 0.0
      %5422 = vmatpush2.msra.mxu0 0.0
      %5423 = vmatprep.mubr.f32.mxu0 0.0
      %5424 = vmatmul.mubr.f32.gmra.mxu0 %v3432
      %v5425 = vpop.f32.mrf.mxu0
      %v5426 = vadd.f32 0.0, %v5425
      %v5427 = vpop.f32.mrf.mxu0
      %5428 = vmatprep.mubr.f32.mxu0 0.0
      %5429 = vmatmul.mubr.f32.gmra.mxu0 %v3433
      %v5430 = vpop.f32.mrf.mxu0
      %v5431 = vadd.f32 0.0, %v5430
      %v5432 = vpop.f32.mrf.mxu0
      %5433 = vmatprep.mubr.f32.mxu0 0.0
      %5434 = vmatmul.mubr.f32.gmra.mxu0 %v3435
      %v5435 = vpop.f32.mrf.mxu0
      %v5436 = vadd.f32 0.0, %v5435
      %v5437 = vpop.f32.mrf.mxu0
      %5438 = vmatprep.mubr.f32.mxu0 0.0
      %5439 = vmatmul.mubr.f32.gmra.mxu0 %v3436
      %v5440 = vpop.f32.mrf.mxu0
      %v5441 = vadd.f32 0.0, %v5440
      %v5442 = vpop.f32.mrf.mxu0
      %5443 = vmatprep.mubr.f32.mxu0 0.0
      %5444 = vmatmul.mubr.f32.gmra.mxu0 %v3438
      %v5445 = vpop.f32.mrf.mxu0
      %v5446 = vadd.f32 0.0, %v5445
      %v5447 = vpop.f32.mrf.mxu0
      %5448 = vmatprep.mubr.f32.mxu0 0.0
      %5449 = vmatmul.mubr.f32.gmra.mxu0 %v3439
      %v5450 = vpop.f32.mrf.mxu0
      %v5451 = vadd.f32 0.0, %v5450
      %v5452 = vpop.f32.mrf.mxu0
      %5453 = vmatprep.mubr.f32.mxu0 0.0
      %5454 = vmatmul.mubr.f32.gmra.mxu0 %v3441
      %v5455 = vpop.f32.mrf.mxu0
      %v5456 = vadd.f32 0.0, %v5455
      %v5457 = vpop.f32.mrf.mxu0
      %5458 = vmatprep.mubr.f32.mxu0 0.0
      %5459 = vmatmul.mubr.f32.gmra.mxu0 %v3442
      %v5460 = vpop.f32.mrf.mxu0
      %v5461 = vadd.f32 0.0, %v5460
      %v5462 = vpop.f32.mrf.mxu0
      %5463 = vmatprep.mubr.f32.mxu0 0.0
      %5464 = vmatmul.mubr.f32.gmra.mxu0 %v3444
      %v5465 = vpop.f32.mrf.mxu0
      %v5466 = vadd.f32 0.0, %v5465
      %v5467 = vpop.f32.mrf.mxu0
      %5468 = vmatprep.mubr.f32.mxu0 0.0
      %5469 = vmatmul.mubr.f32.gmra.mxu0 %v3445
      %v5470 = vpop.f32.mrf.mxu0
      %v5471 = vadd.f32 0.0, %v5470
      %v5472 = vpop.f32.mrf.mxu0
      %5473 = vmatprep.mubr.f32.mxu0 0.0
      %5474 = vmatmul.mubr.f32.gmra.mxu0 %v3447
      %v5475 = vpop.f32.mrf.mxu0
      %v5476 = vadd.f32 0.0, %v5475
      %v5477 = vpop.f32.mrf.mxu0
      %5478 = vmatprep.mubr.f32.mxu0 0.0
      %5479 = vmatmul.mubr.f32.gmra.mxu0 %v3448
      %v5480 = vpop.f32.mrf.mxu0
      %v5481 = vadd.f32 0.0, %v5480
      %v5482 = vpop.f32.mrf.mxu0
      %5483 = vmatprep.mubr.f32.mxu0 0.0
      %5484 = vmatmul.mubr.f32.gmra.mxu0 %v3450
      %v5485 = vpop.f32.mrf.mxu0
      %v5486 = vadd.f32 0.0, %v5485
      %v5487 = vpop.f32.mrf.mxu0
      %5488 = vmatprep.mubr.f32.mxu0 0.0
      %5489 = vmatmul.mubr.f32.gmra.mxu0 %v3451
      %v5490 = vpop.f32.mrf.mxu0
      %v5491 = vadd.f32 0.0, %v5490
      %v5492 = vpop.f32.mrf.mxu0
      %5493 = vmatprep.mubr.f32.mxu0 0.0
      %5494 = vmatmul.mubr.f32.gmra.mxu0 %v3453
      %v5495 = vpop.f32.mrf.mxu0
      %v5496 = vadd.f32 0.0, %v5495
      %v5497 = vpop.f32.mrf.mxu0
      %5498 = vmatprep.mubr.f32.mxu0 0.0
      %5499 = vmatmul.mubr.f32.gmra.mxu0 %v3454
      %v5500 = vpop.f32.mrf.mxu0
      %v5501 = vadd.f32 0.0, %v5500
      %v5502 = vpop.f32.mrf.mxu0
      %5503 = vmatprep.mubr.f32.mxu0 0.0
      %5504 = vmatmul.mubr.f32.gmra.mxu0 %v3456
      %v5505 = vpop.f32.mrf.mxu0
      %v5506 = vadd.f32 0.0, %v5505
      %v5507 = vpop.f32.mrf.mxu0
      %5508 = vmatprep.mubr.f32.mxu0 0.0
      %5509 = vmatmul.mubr.f32.gmra.mxu0 %v3457
      %v5510 = vpop.f32.mrf.mxu0
      %v5511 = vadd.f32 0.0, %v5510
      %v5512 = vpop.f32.mrf.mxu0
      %5513 = vmatprep.mubr.f32.mxu0 0.0
      %5514 = vmatmul.mubr.f32.gmra.mxu0 %v3459
      %v5515 = vpop.f32.mrf.mxu0
      %v5516 = vadd.f32 0.0, %v5515
      %v5517 = vpop.f32.mrf.mxu0
      %5518 = vmatprep.mubr.f32.mxu0 0.0
      %5519 = vmatmul.mubr.f32.gmra.mxu0 %v3460
      %v5520 = vpop.f32.mrf.mxu0
      %v5521 = vadd.f32 0.0, %v5520
      %v5522 = vpop.f32.mrf.mxu0
      %5523 = vmatprep.mubr.f32.mxu0 0.0
      %5524 = vmatmul.mubr.f32.gmra.mxu0 %v3462
      %v5525 = vpop.f32.mrf.mxu0
      %v5526 = vadd.f32 0.0, %v5525
      %v5527 = vpop.f32.mrf.mxu0
      %5528 = vmatprep.mubr.f32.mxu0 0.0
      %5529 = vmatmul.mubr.f32.gmra.mxu0 %v3463
      %v5530 = vpop.f32.mrf.mxu0
      %v5531 = vadd.f32 0.0, %v5530
      %v5532 = vpop.f32.mrf.mxu0
      %5533 = vmatprep.mubr.f32.mxu0 0.0
      %5534 = vmatmul.mubr.f32.gmra.mxu0 %v3465
      %v5535 = vpop.f32.mrf.mxu0
      %v5536 = vadd.f32 0.0, %v5535
      %v5537 = vpop.f32.mrf.mxu0
      %5538 = vmatprep.mubr.f32.mxu0 0.0
      %5539 = vmatmul.mubr.f32.gmra.mxu0 %v3466
      %v5540 = vpop.f32.mrf.mxu0
      %v5541 = vadd.f32 0.0, %v5540
      %v5542 = vpop.f32.mrf.mxu0
      %5543 = vmatprep.mubr.f32.mxu0 0.0
      %5544 = vmatmul.mubr.f32.gmra.mxu0 %v3468
      %v5545 = vpop.f32.mrf.mxu0
      %v5546 = vadd.f32 0.0, %v5545
      %v5547 = vpop.f32.mrf.mxu0
      %5548 = vmatprep.mubr.f32.mxu0 0.0
      %5549 = vmatmul.mubr.f32.gmra.mxu0 %v3469
      %v5550 = vpop.f32.mrf.mxu0
      %v5551 = vadd.f32 0.0, %v5550
      %v5552 = vpop.f32.mrf.mxu0
      %5553 = vmatprep.mubr.f32.mxu0 0.0
      %5554 = vmatmul.mubr.f32.gmra.mxu0 %v3471
      %v5555 = vpop.f32.mrf.mxu0
      %v5556 = vadd.f32 0.0, %v5555
      %v5557 = vpop.f32.mrf.mxu0
      %5558 = vmatprep.mubr.f32.mxu0 0.0
      %5559 = vmatmul.mubr.f32.gmra.mxu0 %v3472
      %v5560 = vpop.f32.mrf.mxu0
      %v5561 = vadd.f32 0.0, %v5560
      %v5562 = vpop.f32.mrf.mxu0
      %5563 = vmatprep.mubr.f32.mxu0 0.0
      %5564 = vmatmul.mubr.f32.gmra.mxu0 %v3474
      %v5565 = vpop.f32.mrf.mxu0
      %v5566 = vadd.f32 0.0, %v5565
      %v5567 = vpop.f32.mrf.mxu0
      %5568 = vmatprep.mubr.f32.mxu0 0.0
      %5569 = vmatmul.mubr.f32.gmra.mxu0 %v3475
      %v5570 = vpop.f32.mrf.mxu0
      %v5571 = vadd.f32 0.0, %v5570
      %v5572 = vpop.f32.mrf.mxu0
      %5573 = vmatprep.mubr.f32.mxu0 0.0
      %5574 = vmatmul.mubr.f32.gmra.mxu0 %v3477
      %v5575 = vpop.f32.mrf.mxu0
      %v5576 = vadd.f32 0.0, %v5575
      %v5577 = vpop.f32.mrf.mxu0
      %5578 = vmatprep.mubr.f32.mxu0 0.0
      %5579 = vmatmul.mubr.f32.gmra.mxu0 %v3478
      %v5580 = vpop.f32.mrf.mxu0
      %v5581 = vadd.f32 0.0, %v5580
      %v5582 = vpop.f32.mrf.mxu0
      %5583 = vdwg.mxu0
      %v5584 = vadd.f32 %v5311, %v5426
      %v5585 = vadd.f32 %v5312, %v5431
      %v5586 = vadd.f32 %v5313, %v5436
      %v5587 = vadd.f32 %v5314, %v5441
      %v5588 = vadd.f32 %v5315, %v5446
      %v5589 = vadd.f32 %v5316, %v5451
      %v5590 = vadd.f32 %v5317, %v5456
      %v5591 = vadd.f32 %v5318, %v5461
      %v5592 = vadd.f32 %v5319, %v5466
      %v5593 = vadd.f32 %v5320, %v5471
      %v5594 = vadd.f32 %v5321, %v5476
      %v5595 = vadd.f32 %v5322, %v5481
      %v5596 = vadd.f32 %v5323, %v5486
      %v5597 = vadd.f32 %v5324, %v5491
      %v5598 = vadd.f32 %v5325, %v5496
      %v5599 = vadd.f32 %v5326, %v5501
      %v5600 = vadd.f32 %v5327, %v5506
      %v5601 = vadd.f32 %v5328, %v5511
      %v5602 = vadd.f32 %v5329, %v5516
      %v5603 = vadd.f32 %v5330, %v5521
      %v5604 = vadd.f32 %v5331, %v5526
      %v5605 = vadd.f32 %v5332, %v5531
      %v5606 = vadd.f32 %v5333, %v5536
      %v5607 = vadd.f32 %v5334, %v5541
      %v5608 = vadd.f32 %v5335, %v5546
      %v5609 = vadd.f32 %v5336, %v5551
      %v5610 = vadd.f32 %v5337, %v5556
      %v5611 = vadd.f32 %v5338, %v5561
      %v5612 = vadd.f32 %v5339, %v5566
      %v5613 = vadd.f32 %v5340, %v5571
      %v5614 = vadd.f32 %v5341, %v5576
      %v5615 = vadd.f32 %v5342, %v5581
      %v5619 = vrot.slane %v3477, 1
      %v5620 = vrot.slane %v3478, 1
      %v5621 = vsel %vm391, %v5619, %v5620
      %v5622 = vrot.slane %v3479, 1
      %v5623 = vsel %vm391, %v5620, %v5622
      %v5626 = vld [vmem:[%s3 + $0x380] sm:$0xff]
      %v5627 = vld [vmem:[%s3 + $0x388] sm:$0xff]
      %v5628 = vld [vmem:[%s3 + $0x390] sm:$0xff]
      %v5629 = vld [vmem:[%s3 + $0x398] sm:$0xff]
      %v5630 = vld [vmem:[%s3 + $0x3a0] sm:$0xff]
      %v5631 = vld [vmem:[%s3 + $0x3a8] sm:$0xff]
      %v5632 = vld [vmem:[%s3 + $0x3b0] sm:$0xff]
      %v5633 = vld [vmem:[%s3 + $0x3b8] sm:$0xff]
      %v5634 = vld [vmem:[%s3 + $0x3c0] sm:$0xff]
      %v5635 = vld [vmem:[%s3 + $0x3c8] sm:$0xff]
      %v5636 = vld [vmem:[%s3 + $0x3d0] sm:$0xff]
      %v5637 = vld [vmem:[%s3 + $0x3d8] sm:$0xff]
      %v5638 = vld [vmem:[%s3 + $0x3e0] sm:$0xff]
      %v5639 = vld [vmem:[%s3 + $0x3e8] sm:$0xff]
      %v5640 = vld [vmem:[%s3 + $0x3f0] sm:$0xff]
      %v5641 = vld [vmem:[%s3 + $0x3f8] sm:$0xff]
      %5642 = vmatprep.subr.mxu0 0.0
      %5643 = vmatpush1.msra.mxu0 %v5641
      %5644 = vmatprep.subr.mxu0 0.0
      %5645 = vmatpush1.msra.mxu0 %v5640
      %5646 = vmatprep.subr.mxu0 0.0
      %5647 = vmatpush1.msra.mxu0 %v5639
      %5648 = vmatprep.subr.mxu0 0.0
      %5649 = vmatpush1.msra.mxu0 %v5638
      %5650 = vmatprep.subr.mxu0 0.0
      %5651 = vmatpush1.msra.mxu0 %v5637
      %5652 = vmatprep.subr.mxu0 0.0
      %5653 = vmatpush1.msra.mxu0 %v5636
      %5654 = vmatprep.subr.mxu0 0.0
      %5655 = vmatpush1.msra.mxu0 %v5635
      %5656 = vmatprep.subr.mxu0 0.0
      %5657 = vmatpush1.msra.mxu0 %v5634
      %5658 = vmatprep.subr.mxu0 0.0
      %5659 = vmatpush1.msra.mxu0 %v5633
      %5660 = vmatprep.subr.mxu0 0.0
      %5661 = vmatpush1.msra.mxu0 %v5632
      %5662 = vmatprep.subr.mxu0 0.0
      %5663 = vmatpush1.msra.mxu0 %v5631
      %5664 = vmatprep.subr.mxu0 0.0
      %5665 = vmatpush1.msra.mxu0 %v5630
      %5666 = vmatprep.subr.mxu0 0.0
      %5667 = vmatpush1.msra.mxu0 %v5629
      %5668 = vmatprep.subr.mxu0 0.0
      %5669 = vmatpush1.msra.mxu0 %v5628
      %5670 = vmatprep.subr.mxu0 0.0
      %5671 = vmatpush1.msra.mxu0 %v5627
      %5672 = vmatprep.subr.mxu0 0.0
      %5673 = vmatpush1.msra.mxu0 %v5626
      %5674 = vmatprep.subr.mxu0 0.0
      %5675 = vmatpush2.msra.mxu0 0.0
      %5676 = vmatprep.subr.mxu0 0.0
      %5677 = vmatpush2.msra.mxu0 0.0
      %5678 = vmatprep.subr.mxu0 0.0
      %5679 = vmatpush2.msra.mxu0 0.0
      %5680 = vmatprep.subr.mxu0 0.0
      %5681 = vmatpush2.msra.mxu0 0.0
      %5682 = vmatprep.subr.mxu0 0.0
      %5683 = vmatpush2.msra.mxu0 0.0
      %5684 = vmatprep.subr.mxu0 0.0
      %5685 = vmatpush2.msra.mxu0 0.0
      %5686 = vmatprep.subr.mxu0 0.0
      %5687 = vmatpush2.msra.mxu0 0.0
      %5688 = vmatprep.subr.mxu0 0.0
      %5689 = vmatpush2.msra.mxu0 0.0
      %5690 = vmatprep.subr.mxu0 0.0
      %5691 = vmatpush2.msra.mxu0 0.0
      %5692 = vmatprep.subr.mxu0 0.0
      %5693 = vmatpush2.msra.mxu0 0.0
      %5694 = vmatprep.subr.mxu0 0.0
      %5695 = vmatpush2.msra.mxu0 0.0
      %5696 = vmatprep.subr.mxu0 0.0
      %5697 = vmatpush2.msra.mxu0 0.0
      %5698 = vmatprep.subr.mxu0 0.0
      %5699 = vmatpush2.msra.mxu0 0.0
      %5700 = vmatprep.subr.mxu0 0.0
      %5701 = vmatpush2.msra.mxu0 0.0
      %5702 = vmatprep.subr.mxu0 0.0
      %5703 = vmatpush2.msra.mxu0 0.0
      %5704 = vmatprep.subr.mxu0 0.0
      %5705 = vmatpush2.msra.mxu0 0.0
      %5706 = vmatprep.mubr.f32.mxu0 0.0
      %5707 = vmatmul.mubr.f32.gmra.mxu0 %v3556
      %v5708 = vpop.f32.mrf.mxu0
      %v5709 = vadd.f32 0.0, %v5708
      %v5710 = vpop.f32.mrf.mxu0
      %5711 = vmatprep.mubr.f32.mxu0 0.0
      %5712 = vmatmul.mubr.f32.gmra.mxu0 %v3558
      %v5713 = vpop.f32.mrf.mxu0
      %v5714 = vadd.f32 0.0, %v5713
      %v5715 = vpop.f32.mrf.mxu0
      %5716 = vmatprep.mubr.f32.mxu0 0.0
      %5717 = vmatmul.mubr.f32.gmra.mxu0 %v3561
      %v5718 = vpop.f32.mrf.mxu0
      %v5719 = vadd.f32 0.0, %v5718
      %v5720 = vpop.f32.mrf.mxu0
      %5721 = vmatprep.mubr.f32.mxu0 0.0
      %5722 = vmatmul.mubr.f32.gmra.mxu0 %v3563
      %v5723 = vpop.f32.mrf.mxu0
      %v5724 = vadd.f32 0.0, %v5723
      %v5725 = vpop.f32.mrf.mxu0
      %5726 = vmatprep.mubr.f32.mxu0 0.0
      %5727 = vmatmul.mubr.f32.gmra.mxu0 %v3566
      %v5728 = vpop.f32.mrf.mxu0
      %v5729 = vadd.f32 0.0, %v5728
      %v5730 = vpop.f32.mrf.mxu0
      %5731 = vmatprep.mubr.f32.mxu0 0.0
      %5732 = vmatmul.mubr.f32.gmra.mxu0 %v3568
      %v5733 = vpop.f32.mrf.mxu0
      %v5734 = vadd.f32 0.0, %v5733
      %v5735 = vpop.f32.mrf.mxu0
      %5736 = vmatprep.mubr.f32.mxu0 0.0
      %5737 = vmatmul.mubr.f32.gmra.mxu0 %v3571
      %v5738 = vpop.f32.mrf.mxu0
      %v5739 = vadd.f32 0.0, %v5738
      %v5740 = vpop.f32.mrf.mxu0
      %5741 = vmatprep.mubr.f32.mxu0 0.0
      %5742 = vmatmul.mubr.f32.gmra.mxu0 %v3573
      %v5743 = vpop.f32.mrf.mxu0
      %v5744 = vadd.f32 0.0, %v5743
      %v5745 = vpop.f32.mrf.mxu0
      %5746 = vmatprep.mubr.f32.mxu0 0.0
      %5747 = vmatmul.mubr.f32.gmra.mxu0 %v3576
      %v5748 = vpop.f32.mrf.mxu0
      %v5749 = vadd.f32 0.0, %v5748
      %v5750 = vpop.f32.mrf.mxu0
      %5751 = vmatprep.mubr.f32.mxu0 0.0
      %5752 = vmatmul.mubr.f32.gmra.mxu0 %v3578
      %v5753 = vpop.f32.mrf.mxu0
      %v5754 = vadd.f32 0.0, %v5753
      %v5755 = vpop.f32.mrf.mxu0
      %5756 = vmatprep.mubr.f32.mxu0 0.0
      %5757 = vmatmul.mubr.f32.gmra.mxu0 %v3581
      %v5758 = vpop.f32.mrf.mxu0
      %v5759 = vadd.f32 0.0, %v5758
      %v5760 = vpop.f32.mrf.mxu0
      %5761 = vmatprep.mubr.f32.mxu0 0.0
      %5762 = vmatmul.mubr.f32.gmra.mxu0 %v3583
      %v5763 = vpop.f32.mrf.mxu0
      %v5764 = vadd.f32 0.0, %v5763
      %v5765 = vpop.f32.mrf.mxu0
      %5766 = vmatprep.mubr.f32.mxu0 0.0
      %5767 = vmatmul.mubr.f32.gmra.mxu0 %v3586
      %v5768 = vpop.f32.mrf.mxu0
      %v5769 = vadd.f32 0.0, %v5768
      %v5770 = vpop.f32.mrf.mxu0
      %5771 = vmatprep.mubr.f32.mxu0 0.0
      %5772 = vmatmul.mubr.f32.gmra.mxu0 %v3588
      %v5773 = vpop.f32.mrf.mxu0
      %v5774 = vadd.f32 0.0, %v5773
      %v5775 = vpop.f32.mrf.mxu0
      %5776 = vmatprep.mubr.f32.mxu0 0.0
      %5777 = vmatmul.mubr.f32.gmra.mxu0 %v3591
      %v5778 = vpop.f32.mrf.mxu0
      %v5779 = vadd.f32 0.0, %v5778
      %v5780 = vpop.f32.mrf.mxu0
      %5781 = vmatprep.mubr.f32.mxu0 0.0
      %5782 = vmatmul.mubr.f32.gmra.mxu0 %v3593
      %v5783 = vpop.f32.mrf.mxu0
      %v5784 = vadd.f32 0.0, %v5783
      %v5785 = vpop.f32.mrf.mxu0
      %5786 = vmatprep.mubr.f32.mxu0 0.0
      %5787 = vmatmul.mubr.f32.gmra.mxu0 %v3596
      %v5788 = vpop.f32.mrf.mxu0
      %v5789 = vadd.f32 0.0, %v5788
      %v5790 = vpop.f32.mrf.mxu0
      %5791 = vmatprep.mubr.f32.mxu0 0.0
      %5792 = vmatmul.mubr.f32.gmra.mxu0 %v3598
      %v5793 = vpop.f32.mrf.mxu0
      %v5794 = vadd.f32 0.0, %v5793
      %v5795 = vpop.f32.mrf.mxu0
      %5796 = vmatprep.mubr.f32.mxu0 0.0
      %5797 = vmatmul.mubr.f32.gmra.mxu0 %v3601
      %v5798 = vpop.f32.mrf.mxu0
      %v5799 = vadd.f32 0.0, %v5798
      %v5800 = vpop.f32.mrf.mxu0
      %5801 = vmatprep.mubr.f32.mxu0 0.0
      %5802 = vmatmul.mubr.f32.gmra.mxu0 %v3603
      %v5803 = vpop.f32.mrf.mxu0
      %v5804 = vadd.f32 0.0, %v5803
      %v5805 = vpop.f32.mrf.mxu0
      %5806 = vmatprep.mubr.f32.mxu0 0.0
      %5807 = vmatmul.mubr.f32.gmra.mxu0 %v3606
      %v5808 = vpop.f32.mrf.mxu0
      %v5809 = vadd.f32 0.0, %v5808
      %v5810 = vpop.f32.mrf.mxu0
      %5811 = vmatprep.mubr.f32.mxu0 0.0
      %5812 = vmatmul.mubr.f32.gmra.mxu0 %v3608
      %v5813 = vpop.f32.mrf.mxu0
      %v5814 = vadd.f32 0.0, %v5813
      %v5815 = vpop.f32.mrf.mxu0
      %5816 = vmatprep.mubr.f32.mxu0 0.0
      %5817 = vmatmul.mubr.f32.gmra.mxu0 %v3611
      %v5818 = vpop.f32.mrf.mxu0
      %v5819 = vadd.f32 0.0, %v5818
      %v5820 = vpop.f32.mrf.mxu0
      %5821 = vmatprep.mubr.f32.mxu0 0.0
      %5822 = vmatmul.mubr.f32.gmra.mxu0 %v3613
      %v5823 = vpop.f32.mrf.mxu0
      %v5824 = vadd.f32 0.0, %v5823
      %v5825 = vpop.f32.mrf.mxu0
      %5826 = vmatprep.mubr.f32.mxu0 0.0
      %5827 = vmatmul.mubr.f32.gmra.mxu0 %v3616
      %v5828 = vpop.f32.mrf.mxu0
      %v5829 = vadd.f32 0.0, %v5828
      %v5830 = vpop.f32.mrf.mxu0
      %5831 = vmatprep.mubr.f32.mxu0 0.0
      %5832 = vmatmul.mubr.f32.gmra.mxu0 %v3618
      %v5833 = vpop.f32.mrf.mxu0
      %v5834 = vadd.f32 0.0, %v5833
      %v5835 = vpop.f32.mrf.mxu0
      %5836 = vmatprep.mubr.f32.mxu0 0.0
      %5837 = vmatmul.mubr.f32.gmra.mxu0 %v3621
      %v5838 = vpop.f32.mrf.mxu0
      %v5839 = vadd.f32 0.0, %v5838
      %v5840 = vpop.f32.mrf.mxu0
      %5841 = vmatprep.mubr.f32.mxu0 0.0
      %5842 = vmatmul.mubr.f32.gmra.mxu0 %v3623
      %v5843 = vpop.f32.mrf.mxu0
      %v5844 = vadd.f32 0.0, %v5843
      %v5845 = vpop.f32.mrf.mxu0
      %5846 = vmatprep.mubr.f32.mxu0 0.0
      %5847 = vmatmul.mubr.f32.gmra.mxu0 %v4785
      %v5848 = vpop.f32.mrf.mxu0
      %v5849 = vadd.f32 0.0, %v5848
      %v5850 = vpop.f32.mrf.mxu0
      %5851 = vmatprep.mubr.f32.mxu0 0.0
      %5852 = vmatmul.mubr.f32.gmra.mxu0 %v4787
      %v5853 = vpop.f32.mrf.mxu0
      %v5854 = vadd.f32 0.0, %v5853
      %v5855 = vpop.f32.mrf.mxu0
      %5856 = vmatprep.mubr.f32.mxu0 0.0
      %5857 = vmatmul.mubr.f32.gmra.mxu0 %v5621
      %v5858 = vpop.f32.mrf.mxu0
      %v5859 = vadd.f32 0.0, %v5858
      %v5860 = vpop.f32.mrf.mxu0
      %5861 = vmatprep.mubr.f32.mxu0 0.0
      %5862 = vmatmul.mubr.f32.gmra.mxu0 %v5623
      %v5863 = vpop.f32.mrf.mxu0
      %v5864 = vadd.f32 0.0, %v5863
      %v5865 = vpop.f32.mrf.mxu0
      %5866 = vdwg.mxu0
      %v5867 = vadd.f32 %v5584, %v5709
      %v5868 = vadd.f32 %v5585, %v5714
      %v5869 = vadd.f32 %v5586, %v5719
      %v5870 = vadd.f32 %v5587, %v5724
      %v5871 = vadd.f32 %v5588, %v5729
      %v5872 = vadd.f32 %v5589, %v5734
      %v5873 = vadd.f32 %v5590, %v5739
      %v5874 = vadd.f32 %v5591, %v5744
      %v5875 = vadd.f32 %v5592, %v5749
      %v5876 = vadd.f32 %v5593, %v5754
      %v5877 = vadd.f32 %v5594, %v5759
      %v5878 = vadd.f32 %v5595, %v5764
      %v5879 = vadd.f32 %v5596, %v5769
      %v5880 = vadd.f32 %v5597, %v5774
      %v5881 = vadd.f32 %v5598, %v5779
      %v5882 = vadd.f32 %v5599, %v5784
      %v5883 = vadd.f32 %v5600, %v5789
      %v5884 = vadd.f32 %v5601, %v5794
      %v5885 = vadd.f32 %v5602, %v5799
      %v5886 = vadd.f32 %v5603, %v5804
      %v5887 = vadd.f32 %v5604, %v5809
      %v5888 = vadd.f32 %v5605, %v5814
      %v5889 = vadd.f32 %v5606, %v5819
      %v5890 = vadd.f32 %v5607, %v5824
      %v5891 = vadd.f32 %v5608, %v5829
      %v5892 = vadd.f32 %v5609, %v5834
      %v5893 = vadd.f32 %v5610, %v5839
      %v5894 = vadd.f32 %v5611, %v5844
      %v5895 = vadd.f32 %v5612, %v5849
      %v5896 = vadd.f32 %v5613, %v5854
      %v5897 = vadd.f32 %v5614, %v5859
      %v5898 = vadd.f32 %v5615, %v5864
      %v5899 = vrot.slane %v3477, 2
      %v5900 = vrot.slane %v3478, 2
      %v5901 = vsel %vm1024, %v5899, %v5900
      %v5902 = vrot.slane %v3479, 2
      %v5903 = vsel %vm1024, %v5900, %v5902
      %v5906 = vld [vmem:[%s3 + $0x400] sm:$0xff]
      %v5907 = vld [vmem:[%s3 + $0x408] sm:$0xff]
      %v5908 = vld [vmem:[%s3 + $0x410] sm:$0xff]
      %v5909 = vld [vmem:[%s3 + $0x418] sm:$0xff]
      %v5910 = vld [vmem:[%s3 + $0x420] sm:$0xff]
      %v5911 = vld [vmem:[%s3 + $0x428] sm:$0xff]
      %v5912 = vld [vmem:[%s3 + $0x430] sm:$0xff]
      %v5913 = vld [vmem:[%s3 + $0x438] sm:$0xff]
      %v5914 = vld [vmem:[%s3 + $0x440] sm:$0xff]
      %v5915 = vld [vmem:[%s3 + $0x448] sm:$0xff]
      %v5916 = vld [vmem:[%s3 + $0x450] sm:$0xff]
      %v5917 = vld [vmem:[%s3 + $0x458] sm:$0xff]
      %v5918 = vld [vmem:[%s3 + $0x460] sm:$0xff]
      %v5919 = vld [vmem:[%s3 + $0x468] sm:$0xff]
      %v5920 = vld [vmem:[%s3 + $0x470] sm:$0xff]
      %v5921 = vld [vmem:[%s3 + $0x478] sm:$0xff]
      %5922 = vmatprep.subr.mxu0 0.0
      %5923 = vmatpush1.msra.mxu0 %v5921
      %5924 = vmatprep.subr.mxu0 0.0
      %5925 = vmatpush1.msra.mxu0 %v5920
      %5926 = vmatprep.subr.mxu0 0.0
      %5927 = vmatpush1.msra.mxu0 %v5919
      %5928 = vmatprep.subr.mxu0 0.0
      %5929 = vmatpush1.msra.mxu0 %v5918
      %5930 = vmatprep.subr.mxu0 0.0
      %5931 = vmatpush1.msra.mxu0 %v5917
      %5932 = vmatprep.subr.mxu0 0.0
      %5933 = vmatpush1.msra.mxu0 %v5916
      %5934 = vmatprep.subr.mxu0 0.0
      %5935 = vmatpush1.msra.mxu0 %v5915
      %5936 = vmatprep.subr.mxu0 0.0
      %5937 = vmatpush1.msra.mxu0 %v5914
      %5938 = vmatprep.subr.mxu0 0.0
      %5939 = vmatpush1.msra.mxu0 %v5913
      %5940 = vmatprep.subr.mxu0 0.0
      %5941 = vmatpush1.msra.mxu0 %v5912
      %5942 = vmatprep.subr.mxu0 0.0
      %5943 = vmatpush1.msra.mxu0 %v5911
      %5944 = vmatprep.subr.mxu0 0.0
      %5945 = vmatpush1.msra.mxu0 %v5910
      %5946 = vmatprep.subr.mxu0 0.0
      %5947 = vmatpush1.msra.mxu0 %v5909
      %5948 = vmatprep.subr.mxu0 0.0
      %5949 = vmatpush1.msra.mxu0 %v5908
      %5950 = vmatprep.subr.mxu0 0.0
      %5951 = vmatpush1.msra.mxu0 %v5907
      %5952 = vmatprep.subr.mxu0 0.0
      %5953 = vmatpush1.msra.mxu0 %v5906
      %5954 = vmatprep.subr.mxu0 0.0
      %5955 = vmatpush2.msra.mxu0 0.0
      %5956 = vmatprep.subr.mxu0 0.0
      %5957 = vmatpush2.msra.mxu0 0.0
      %5958 = vmatprep.subr.mxu0 0.0
      %5959 = vmatpush2.msra.mxu0 0.0
      %5960 = vmatprep.subr.mxu0 0.0
      %5961 = vmatpush2.msra.mxu0 0.0
      %5962 = vmatprep.subr.mxu0 0.0
      %5963 = vmatpush2.msra.mxu0 0.0
      %5964 = vmatprep.subr.mxu0 0.0
      %5965 = vmatpush2.msra.mxu0 0.0
      %5966 = vmatprep.subr.mxu0 0.0
      %5967 = vmatpush2.msra.mxu0 0.0
      %5968 = vmatprep.subr.mxu0 0.0
      %5969 = vmatpush2.msra.mxu0 0.0
      %5970 = vmatprep.subr.mxu0 0.0
      %5971 = vmatpush2.msra.mxu0 0.0
      %5972 = vmatprep.subr.mxu0 0.0
      %5973 = vmatpush2.msra.mxu0 0.0
      %5974 = vmatprep.subr.mxu0 0.0
      %5975 = vmatpush2.msra.mxu0 0.0
      %5976 = vmatprep.subr.mxu0 0.0
      %5977 = vmatpush2.msra.mxu0 0.0
      %5978 = vmatprep.subr.mxu0 0.0
      %5979 = vmatpush2.msra.mxu0 0.0
      %5980 = vmatprep.subr.mxu0 0.0
      %5981 = vmatpush2.msra.mxu0 0.0
      %5982 = vmatprep.subr.mxu0 0.0
      %5983 = vmatpush2.msra.mxu0 0.0
      %5984 = vmatprep.subr.mxu0 0.0
      %5985 = vmatpush2.msra.mxu0 0.0
      %5986 = vmatprep.mubr.f32.mxu0 0.0
      %5987 = vmatmul.mubr.f32.gmra.mxu0 %v4134
      %v5988 = vpop.f32.mrf.mxu0
      %v5989 = vadd.f32 0.0, %v5988
      %v5990 = vpop.f32.mrf.mxu0
      %5991 = vmatprep.mubr.f32.mxu0 0.0
      %5992 = vmatmul.mubr.f32.gmra.mxu0 %v4136
      %v5993 = vpop.f32.mrf.mxu0
      %v5994 = vadd.f32 0.0, %v5993
      %v5995 = vpop.f32.mrf.mxu0
      %5996 = vmatprep.mubr.f32.mxu0 0.0
      %5997 = vmatmul.mubr.f32.gmra.mxu0 %v4139
      %v5998 = vpop.f32.mrf.mxu0
      %v5999 = vadd.f32 0.0, %v5998
      %v6000 = vpop.f32.mrf.mxu0
      %6001 = vmatprep.mubr.f32.mxu0 0.0
      %6002 = vmatmul.mubr.f32.gmra.mxu0 %v4141
      %v6003 = vpop.f32.mrf.mxu0
      %v6004 = vadd.f32 0.0, %v6003
      %v6005 = vpop.f32.mrf.mxu0
      %6006 = vmatprep.mubr.f32.mxu0 0.0
      %6007 = vmatmul.mubr.f32.gmra.mxu0 %v4144
      %v6008 = vpop.f32.mrf.mxu0
      %v6009 = vadd.f32 0.0, %v6008
      %v6010 = vpop.f32.mrf.mxu0
      %6011 = vmatprep.mubr.f32.mxu0 0.0
      %6012 = vmatmul.mubr.f32.gmra.mxu0 %v4146
      %v6013 = vpop.f32.mrf.mxu0
      %v6014 = vadd.f32 0.0, %v6013
      %v6015 = vpop.f32.mrf.mxu0
      %6016 = vmatprep.mubr.f32.mxu0 0.0
      %6017 = vmatmul.mubr.f32.gmra.mxu0 %v4149
      %v6018 = vpop.f32.mrf.mxu0
      %v6019 = vadd.f32 0.0, %v6018
      %v6020 = vpop.f32.mrf.mxu0
      %6021 = vmatprep.mubr.f32.mxu0 0.0
      %6022 = vmatmul.mubr.f32.gmra.mxu0 %v4151
      %v6023 = vpop.f32.mrf.mxu0
      %v6024 = vadd.f32 0.0, %v6023
      %v6025 = vpop.f32.mrf.mxu0
      %6026 = vmatprep.mubr.f32.mxu0 0.0
      %6027 = vmatmul.mubr.f32.gmra.mxu0 %v4154
      %v6028 = vpop.f32.mrf.mxu0
      %v6029 = vadd.f32 0.0, %v6028
      %v6030 = vpop.f32.mrf.mxu0
      %6031 = vmatprep.mubr.f32.mxu0 0.0
      %6032 = vmatmul.mubr.f32.gmra.mxu0 %v4156
      %v6033 = vpop.f32.mrf.mxu0
      %v6034 = vadd.f32 0.0, %v6033
      %v6035 = vpop.f32.mrf.mxu0
      %6036 = vmatprep.mubr.f32.mxu0 0.0
      %6037 = vmatmul.mubr.f32.gmra.mxu0 %v4159
      %v6038 = vpop.f32.mrf.mxu0
      %v6039 = vadd.f32 0.0, %v6038
      %v6040 = vpop.f32.mrf.mxu0
      %6041 = vmatprep.mubr.f32.mxu0 0.0
      %6042 = vmatmul.mubr.f32.gmra.mxu0 %v4161
      %v6043 = vpop.f32.mrf.mxu0
      %v6044 = vadd.f32 0.0, %v6043
      %v6045 = vpop.f32.mrf.mxu0
      %6046 = vmatprep.mubr.f32.mxu0 0.0
      %6047 = vmatmul.mubr.f32.gmra.mxu0 %v4164
      %v6048 = vpop.f32.mrf.mxu0
      %v6049 = vadd.f32 0.0, %v6048
      %v6050 = vpop.f32.mrf.mxu0
      %6051 = vmatprep.mubr.f32.mxu0 0.0
      %6052 = vmatmul.mubr.f32.gmra.mxu0 %v4166
      %v6053 = vpop.f32.mrf.mxu0
      %v6054 = vadd.f32 0.0, %v6053
      %v6055 = vpop.f32.mrf.mxu0
      %6056 = vmatprep.mubr.f32.mxu0 0.0
      %6057 = vmatmul.mubr.f32.gmra.mxu0 %v4169
      %v6058 = vpop.f32.mrf.mxu0
      %v6059 = vadd.f32 0.0, %v6058
      %v6060 = vpop.f32.mrf.mxu0
      %6061 = vmatprep.mubr.f32.mxu0 0.0
      %6062 = vmatmul.mubr.f32.gmra.mxu0 %v4171
      %v6063 = vpop.f32.mrf.mxu0
      %v6064 = vadd.f32 0.0, %v6063
      %v6065 = vpop.f32.mrf.mxu0
      %6066 = vmatprep.mubr.f32.mxu0 0.0
      %6067 = vmatmul.mubr.f32.gmra.mxu0 %v4174
      %v6068 = vpop.f32.mrf.mxu0
      %v6069 = vadd.f32 0.0, %v6068
      %v6070 = vpop.f32.mrf.mxu0
      %6071 = vmatprep.mubr.f32.mxu0 0.0
      %6072 = vmatmul.mubr.f32.gmra.mxu0 %v4176
      %v6073 = vpop.f32.mrf.mxu0
      %v6074 = vadd.f32 0.0, %v6073
      %v6075 = vpop.f32.mrf.mxu0
      %6076 = vmatprep.mubr.f32.mxu0 0.0
      %6077 = vmatmul.mubr.f32.gmra.mxu0 %v4179
      %v6078 = vpop.f32.mrf.mxu0
      %v6079 = vadd.f32 0.0, %v6078
      %v6080 = vpop.f32.mrf.mxu0
      %6081 = vmatprep.mubr.f32.mxu0 0.0
      %6082 = vmatmul.mubr.f32.gmra.mxu0 %v4181
      %v6083 = vpop.f32.mrf.mxu0
      %v6084 = vadd.f32 0.0, %v6083
      %v6085 = vpop.f32.mrf.mxu0
      %6086 = vmatprep.mubr.f32.mxu0 0.0
      %6087 = vmatmul.mubr.f32.gmra.mxu0 %v4184
      %v6088 = vpop.f32.mrf.mxu0
      %v6089 = vadd.f32 0.0, %v6088
      %v6090 = vpop.f32.mrf.mxu0
      %6091 = vmatprep.mubr.f32.mxu0 0.0
      %6092 = vmatmul.mubr.f32.gmra.mxu0 %v4186
      %v6093 = vpop.f32.mrf.mxu0
      %v6094 = vadd.f32 0.0, %v6093
      %v6095 = vpop.f32.mrf.mxu0
      %6096 = vmatprep.mubr.f32.mxu0 0.0
      %6097 = vmatmul.mubr.f32.gmra.mxu0 %v4189
      %v6098 = vpop.f32.mrf.mxu0
      %v6099 = vadd.f32 0.0, %v6098
      %v6100 = vpop.f32.mrf.mxu0
      %6101 = vmatprep.mubr.f32.mxu0 0.0
      %6102 = vmatmul.mubr.f32.gmra.mxu0 %v4191
      %v6103 = vpop.f32.mrf.mxu0
      %v6104 = vadd.f32 0.0, %v6103
      %v6105 = vpop.f32.mrf.mxu0
      %6106 = vmatprep.mubr.f32.mxu0 0.0
      %6107 = vmatmul.mubr.f32.gmra.mxu0 %v4194
      %v6108 = vpop.f32.mrf.mxu0
      %v6109 = vadd.f32 0.0, %v6108
      %v6110 = vpop.f32.mrf.mxu0
      %6111 = vmatprep.mubr.f32.mxu0 0.0
      %6112 = vmatmul.mubr.f32.gmra.mxu0 %v4196
      %v6113 = vpop.f32.mrf.mxu0
      %v6114 = vadd.f32 0.0, %v6113
      %v6115 = vpop.f32.mrf.mxu0
      %6116 = vmatprep.mubr.f32.mxu0 0.0
      %6117 = vmatmul.mubr.f32.gmra.mxu0 %v4199
      %v6118 = vpop.f32.mrf.mxu0
      %v6119 = vadd.f32 0.0, %v6118
      %v6120 = vpop.f32.mrf.mxu0
      %6121 = vmatprep.mubr.f32.mxu0 0.0
      %6122 = vmatmul.mubr.f32.gmra.mxu0 %v4201
      %v6123 = vpop.f32.mrf.mxu0
      %v6124 = vadd.f32 0.0, %v6123
      %v6125 = vpop.f32.mrf.mxu0
      %6126 = vmatprep.mubr.f32.mxu0 0.0
      %6127 = vmatmul.mubr.f32.gmra.mxu0 %v5065
      %v6128 = vpop.f32.mrf.mxu0
      %v6129 = vadd.f32 0.0, %v6128
      %v6130 = vpop.f32.mrf.mxu0
      %6131 = vmatprep.mubr.f32.mxu0 0.0
      %6132 = vmatmul.mubr.f32.gmra.mxu0 %v5067
      %v6133 = vpop.f32.mrf.mxu0
      %v6134 = vadd.f32 0.0, %v6133
      %v6135 = vpop.f32.mrf.mxu0
      %6136 = vmatprep.mubr.f32.mxu0 0.0
      %6137 = vmatmul.mubr.f32.gmra.mxu0 %v5901
      %v6138 = vpop.f32.mrf.mxu0
      %v6139 = vadd.f32 0.0, %v6138
      %v6140 = vpop.f32.mrf.mxu0
      %6141 = vmatprep.mubr.f32.mxu0 0.0
      %6142 = vmatmul.mubr.f32.gmra.mxu0 %v5903
      %v6143 = vpop.f32.mrf.mxu0
      %v6144 = vadd.f32 0.0, %v6143
      %v6145 = vpop.f32.mrf.mxu0
      %6146 = vdwg.mxu0
      %v6147 = vadd.f32 %v5867, %v5989
      %v6148 = vadd.f32 %v5868, %v5994
      %v6149 = vadd.f32 %v5869, %v5999
      %v6150 = vadd.f32 %v5870, %v6004
      %v6151 = vadd.f32 %v5871, %v6009
      %v6152 = vadd.f32 %v5872, %v6014
      %v6153 = vadd.f32 %v5873, %v6019
      %v6154 = vadd.f32 %v5874, %v6024
      %v6155 = vadd.f32 %v5875, %v6029
      %v6156 = vadd.f32 %v5876, %v6034
      %v6157 = vadd.f32 %v5877, %v6039
      %v6158 = vadd.f32 %v5878, %v6044
      %v6159 = vadd.f32 %v5879, %v6049
      %v6160 = vadd.f32 %v5880, %v6054
      %v6161 = vadd.f32 %v5881, %v6059
      %v6162 = vadd.f32 %v5882, %v6064
      %v6163 = vadd.f32 %v5883, %v6069
      %v6164 = vadd.f32 %v5884, %v6074
      %v6165 = vadd.f32 %v5885, %v6079
      %v6166 = vadd.f32 %v5886, %v6084
      %v6167 = vadd.f32 %v5887, %v6089
      %v6168 = vadd.f32 %v5888, %v6094
      %v6169 = vadd.f32 %v5889, %v6099
      %v6170 = vadd.f32 %v5890, %v6104
      %v6171 = vadd.f32 %v5891, %v6109
      %v6172 = vadd.f32 %v5892, %v6114
      %v6173 = vadd.f32 %v5893, %v6119
      %v6174 = vadd.f32 %v5894, %v6124
      %v6175 = vadd.f32 %v5895, %v6129
      %v6176 = vadd.f32 %v5896, %v6134
      %v6177 = vadd.f32 %v5897, %v6139
      %v6178 = vadd.f32 %v5898, %v6144
      %v6179 = vld [vmem:[%s4] sm:$0x1]
      %v6181 = vlaneseq
      %v6182 = vshrl.u32 %v6181, 7
      %v6183 = vsub.s32 0, %v6182
      %v6184 = vrot.slane %v6179, %v6183
      %v6186 = vadd.f32 %v6147, %v6184
      %v6187 = vadd.f32 %v6148, %v6184
      %v6188 = vadd.f32 %v6149, %v6184
      %v6189 = vadd.f32 %v6150, %v6184
      %v6190 = vadd.f32 %v6151, %v6184
      %v6191 = vadd.f32 %v6152, %v6184
      %v6192 = vadd.f32 %v6153, %v6184
      %v6193 = vadd.f32 %v6154, %v6184
      %v6194 = vadd.f32 %v6155, %v6184
      %v6195 = vadd.f32 %v6156, %v6184
      %v6196 = vadd.f32 %v6157, %v6184
      %v6197 = vadd.f32 %v6158, %v6184
      %v6198 = vadd.f32 %v6159, %v6184
      %v6199 = vadd.f32 %v6160, %v6184
      %v6200 = vadd.f32 %v6161, %v6184
      %v6201 = vadd.f32 %v6162, %v6184
      %v6202 = vadd.f32 %v6163, %v6184
      %v6203 = vadd.f32 %v6164, %v6184
      %v6204 = vadd.f32 %v6165, %v6184
      %v6205 = vadd.f32 %v6166, %v6184
      %v6206 = vadd.f32 %v6167, %v6184
      %v6207 = vadd.f32 %v6168, %v6184
      %v6208 = vadd.f32 %v6169, %v6184
      %v6209 = vadd.f32 %v6170, %v6184
      %v6210 = vadd.f32 %v6171, %v6184
      %v6211 = vadd.f32 %v6172, %v6184
      %v6212 = vadd.f32 %v6173, %v6184
      %v6213 = vadd.f32 %v6174, %v6184
      %v6214 = vadd.f32 %v6175, %v6184
      %v6215 = vadd.f32 %v6176, %v6184
      %v6216 = vadd.f32 %v6177, %v6184
      %v6217 = vadd.f32 %v6178, %v6184
      %v6218 = vmax.f32 %v6186, 0.0
      %v6219 = vmax.f32 %v6187, 0.0
      %v6220 = vmax.f32 %v6188, 0.0
      %v6221 = vmax.f32 %v6189, 0.0
      %v6222 = vmax.f32 %v6190, 0.0
      %v6223 = vmax.f32 %v6191, 0.0
      %v6224 = vmax.f32 %v6192, 0.0
      %v6225 = vmax.f32 %v6193, 0.0
      %v6226 = vmax.f32 %v6194, 0.0
      %v6227 = vmax.f32 %v6195, 0.0
      %v6228 = vmax.f32 %v6196, 0.0
      %v6229 = vmax.f32 %v6197, 0.0
      %v6230 = vmax.f32 %v6198, 0.0
      %v6231 = vmax.f32 %v6199, 0.0
      %v6232 = vmax.f32 %v6200, 0.0
      %v6233 = vmax.f32 %v6201, 0.0
      %v6234 = vmax.f32 %v6202, 0.0
      %v6235 = vmax.f32 %v6203, 0.0
      %v6236 = vmax.f32 %v6204, 0.0
      %v6237 = vmax.f32 %v6205, 0.0
      %v6238 = vmax.f32 %v6206, 0.0
      %v6239 = vmax.f32 %v6207, 0.0
      %v6240 = vmax.f32 %v6208, 0.0
      %v6241 = vmax.f32 %v6209, 0.0
      %v6242 = vmax.f32 %v6210, 0.0
      %v6243 = vmax.f32 %v6211, 0.0
      %v6244 = vmax.f32 %v6212, 0.0
      %v6245 = vmax.f32 %v6213, 0.0
      %v6246 = vmax.f32 %v6214, 0.0
      %v6247 = vmax.f32 %v6215, 0.0
      %v6248 = vmax.f32 %v6216, 0.0
      %v6249 = vmax.f32 %v6217, 0.0
      %6250 = vst [vmem:[%s260] sm:$0xff] %v6218
      %6251 = vst [vmem:[%s260 + $0x8] sm:$0xff] %v6219
      %6252 = vst [vmem:[%s260 + $0x10] sm:$0xff] %v6220
      %6253 = vst [vmem:[%s260 + $0x18] sm:$0xff] %v6221
      %6254 = vst [vmem:[%s260 + $0x20] sm:$0xff] %v6222
      %6255 = vst [vmem:[%s260 + $0x28] sm:$0xff] %v6223
      %6256 = vst [vmem:[%s260 + $0x30] sm:$0xff] %v6224
      %6257 = vst [vmem:[%s260 + $0x38] sm:$0xff] %v6225
      %6258 = vst [vmem:[%s260 + $0x40] sm:$0xff] %v6226
      %6259 = vst [vmem:[%s260 + $0x48] sm:$0xff] %v6227
      %6260 = vst [vmem:[%s260 + $0x50] sm:$0xff] %v6228
      %6261 = vst [vmem:[%s260 + $0x58] sm:$0xff] %v6229
      %6262 = vst [vmem:[%s260 + $0x60] sm:$0xff] %v6230
      %6263 = vst [vmem:[%s260 + $0x68] sm:$0xff] %v6231
      %6264 = vst [vmem:[%s260 + $0x70] sm:$0xff] %v6232
      %6265 = vst [vmem:[%s260 + $0x78] sm:$0xff] %v6233
      %6266 = vst [vmem:[%s260 + $0x80] sm:$0xff] %v6234
      %6267 = vst [vmem:[%s260 + $0x88] sm:$0xff] %v6235
      %6268 = vst [vmem:[%s260 + $0x90] sm:$0xff] %v6236
      %6269 = vst [vmem:[%s260 + $0x98] sm:$0xff] %v6237
      %6270 = vst [vmem:[%s260 + $0xa0] sm:$0xff] %v6238
      %6271 = vst [vmem:[%s260 + $0xa8] sm:$0xff] %v6239
      %6272 = vst [vmem:[%s260 + $0xb0] sm:$0xff] %v6240
      %6273 = vst [vmem:[%s260 + $0xb8] sm:$0xff] %v6241
      %6274 = vst [vmem:[%s260 + $0xc0] sm:$0xff] %v6242
      %6275 = vst [vmem:[%s260 + $0xc8] sm:$0xff] %v6243
      %6276 = vst [vmem:[%s260 + $0xd0] sm:$0xff] %v6244
      %6277 = vst [vmem:[%s260 + $0xd8] sm:$0xff] %v6245
      %6278 = vst [vmem:[%s260 + $0xe0] sm:$0xff] %v6246
      %6279 = vst [vmem:[%s260 + $0xe8] sm:$0xff] %v6247
      %6280 = vst [vmem:[%s260 + $0xf0] sm:$0xff] %v6248
      %6281 = vst [vmem:[%s260 + $0xf8] sm:$0xff] %v6249
      %p6282 = scmp.lt.s32.totalorder %s20, 1
      %s6283 = scalar_select %p6282, %s20, 1
      %p6284 = scmp.lt.s32.totalorder %s21, 0
      %s6285 = scalar_select %p6284, %s21, 0
      %s6286 = smul.addr %s6285, 32
      %s6287 = smul.addr %s6283, 32
      %s6288 = sadd.s32 %s6286, %s6287
      %s6289 = smul.addr %s6288, 8
      %s6290 = scalar_lea.vmem %s5, %s6289
      // Predicated region
      $region45: #{up_forward.1} parent=39 // pred_check
        %p6291 = pneg %p160
      $region46: #{up_forward.1} parent=39 // pred_check_branch
        %6293 = sbr.rel (%p6291) target = $region48
      $region47: #{up_forward.1} parent=39 // pred_region
        _
      $region48: #{up_forward.1} parent=39 // pred_fallthru
        _
    $region40: #{up_forward.1} parent=5 // pred_fallthru
      _
    %p6294 = scmp.le.s32.totalorder 2, %s11
    // Predicated region
    $region49: #{up_forward.1} parent=5 // pred_check
      %p6295 = pneg %p6294
    $region50: #{up_forward.1} parent=5 // pred_check_branch
      %6297 = sbr.rel (%p6295) target = $region52
    $region51: #{up_forward.1} parent=5 // pred_region
      %s6298 = ssub.s32 %s11, 2
      // Predicated region
      $region53: #{up_forward.1} parent=51 // pred_check
        %p6299 = pneg %p166
      $region54: #{up_forward.1} parent=51 // pred_check_branch
        %6301 = sbr.rel (%p6299) target = $region56
      $region55: #{up_forward.1} parent=51 // pred_region
        %p6302 = scmp.lt.s32.totalorder %s22, 1
        %s6303 = scalar_select %p6302, %s22, 1
        %p6304 = scmp.lt.s32.totalorder %s23, 0
        %s6305 = scalar_select %p6304, %s23, 0
        %s6306 = smul.addr %s6305, 32
        %s6307 = smul.addr %s6303, 32
        %s6308 = sadd.s32 %s6306, %s6307
        %s6309 = smul.addr %s6308, 8
        %s6310 = scalar_lea.vmem %s5, %s6309
      $region56: #{up_forward.1} parent=51 // pred_fallthru
        _
    $region52: #{up_forward.1} parent=5 // pred_fallthru
      _
  $region6: #{up_forward.1} parent=0 // loop_footer
    %s15 = sadd.s32 1, %s11
  $region7: #{up_forward.1} parent=0 // loop_footer_branch
    %10 = sbr.rel target = $region3
  $region8: #{up_forward.1} parent=0 // loop_exit
    _

</llo_original>
